<compile_context>
chip_gen: v7x
topology: tpu7x:2x2x1
jax: 0.10.0
libtpu: 0.0.40
codegen_flags: <defaults>
</compile_context>

<pallas_src>
import math
from functools import partial

import jax
import jax.numpy as jnp
from jax.experimental import pallas as pl
from jax.experimental.pallas import tpu as pltpu

NEG_INF = -1e30   # large-negative additive mask (stands in for -inf)
LN_EPS = 1e-5     # PyTorch LayerNorm default


# ------------------------- in-kernel building blocks -------------------------

def _add_layernorm(x, r, g, b):
    """LayerNorm(x + r) with weight g, bias b (g, b are [1, D])."""
    h = x + r
    mu = jnp.mean(h, axis=-1, keepdims=True)
    d = h - mu
    var = jnp.mean(d * d, axis=-1, keepdims=True)
    return d * jax.lax.rsqrt(var + LN_EPS) * g + b


def _ffn(x, w1, b1, w2, b2):
    """linear1 -> ReLU -> linear2 (PyTorch TransformerLayer FFN)."""
    h = jnp.dot(x, w1, preferred_element_type=jnp.float32) + b1
    h = jnp.maximum(h, 0.0)
    return jnp.dot(h, w2, preferred_element_type=jnp.float32) + b2


def _mha(x_q, x_kv, wq, bq, wk, bk, wv, bv, wo, bo, add_masks, n_heads):
    """Multi-head attention for one batch element, fully resident in VMEM.

    x_q: [Sq, D], x_kv: [Sk, D]
    wq/wk/wv: refs [H, D, dh] (per-head projections; q already scale-folded)
    bq/bk/bv: refs [H, 1, dh]
    wo:       ref  [H, dh, D] (per-head rows of out_proj^T; contributions summed)
    bo:       ref  [1, D]
    add_masks: list of additive f32 arrays broadcastable to [Sq, Sk]
    """
    Sq, D = x_q.shape
    out = jnp.zeros((Sq, D), jnp.float32)
    for h in range(n_heads):                     # static unroll (small H)
        qh = jnp.dot(x_q, wq[h], preferred_element_type=jnp.float32) + bq[h]
        kh = jnp.dot(x_kv, wk[h], preferred_element_type=jnp.float32) + bk[h]
        vh = jnp.dot(x_kv, wv[h], preferred_element_type=jnp.float32) + bv[h]
        s = jnp.dot(qh, kh.T, preferred_element_type=jnp.float32)       # [Sq, Sk]
        for m in add_masks:
            s = s + m
        s = s - jnp.max(s, axis=-1, keepdims=True)
        p = jnp.exp(s)
        p = p * pl.reciprocal(jnp.sum(p, axis=-1, keepdims=True), approx=True)
        ctx = jnp.dot(p, vh, preferred_element_type=jnp.float32)        # [Sq, dh]
        out = out + jnp.dot(ctx, wo[h], preferred_element_type=jnp.float32)
    return out + bo[...]


# ------------------------------ fused kernels --------------------------------

def _encoder_layer_kernel(x_ref, kpm_ref,
                          wq_ref, bq_ref, wk_ref, bk_ref, wv_ref, bv_ref,
                          wo_ref, bo_ref,
                          ln1g_ref, ln1b_ref,
                          w1_ref, b1_ref, w2_ref, b2_ref,
                          ln2g_ref, ln2b_ref,
                          o_ref, *, n_heads):
    x = x_ref[...]                                        # [S, D]
    sa = _mha(x, x, wq_ref, bq_ref, wk_ref, bk_ref, wv_ref, bv_ref,
              wo_ref, bo_ref, [kpm_ref[...]], n_heads)
    x1 = _add_layernorm(x, sa, ln1g_ref[...], ln1b_ref[...])
    ff = _ffn(x1, w1_ref[...], b1_ref[...], w2_ref[...], b2_ref[...])
    o_ref[...] = _add_layernorm(x1, ff, ln2g_ref[...], ln2b_ref[...])


def _decoder_layer_kernel(y_ref, mem_ref, tam_ref, tkpm_ref, skpm_ref,
                          swq_ref, sbq_ref, swk_ref, sbk_ref, swv_ref, sbv_ref,
                          swo_ref, sbo_ref,
                          ln1g_ref, ln1b_ref,
                          cwq_ref, cbq_ref, cwk_ref, cbk_ref, cwv_ref, cbv_ref,
                          cwo_ref, cbo_ref,
                          ln2g_ref, ln2b_ref,
                          w1_ref, b1_ref, w2_ref, b2_ref,
                          ln3g_ref, ln3b_ref,
                          o_ref, *, n_heads):
    y = y_ref[...]                                        # [St, D]
    mem = mem_ref[...]                                    # [Ss, D]

    # causal self-attention (tgt causal mask + tgt key-padding mask)
    sa = _mha(y, y, swq_ref, sbq_ref, swk_ref, sbk_ref, swv_ref, sbv_ref,
              swo_ref, sbo_ref, [tam_ref[...], tkpm_ref[...]], n_heads)
    y1 = _add_layernorm(y, sa, ln1g_ref[...], ln1b_ref[...])

    # cross-attention over encoder memory (src key-padding mask)
    ca = _mha(y1, mem, cwq_ref, cbq_ref, cwk_ref, cbk_ref, cwv_ref, cbv_ref,
              cwo_ref, cbo_ref, [skpm_ref[...]], n_heads)
    y2 = _add_layernorm(y1, ca, ln2g_ref[...], ln2b_ref[...])

    ff = _ffn(y2, w1_ref[...], b1_ref[...], w2_ref[...], b2_ref[...])
    o_ref[...] = _add_layernorm(y2, ff, ln3g_ref[...], ln3b_ref[...])


def _final_linear_kernel(y_ref, w_ref, b_ref, o_ref):
    o_ref[...] = (jnp.dot(y_ref[...], w_ref[...],
                          preferred_element_type=jnp.float32) + b_ref[...])


# ------------------------------ Pallas wrappers -------------------------------

def _rep_spec(arr):
    """Full-array block replicated across the (batch) grid."""
    zeros = (0,) * arr.ndim
    return pl.BlockSpec(arr.shape, lambda b, _z=zeros: _z)


def _mha_weight_tuple(ap):
    return (ap["wq"], ap["bq"], ap["wk"], ap["bk"], ap["wv"], ap["bv"],
            ap["wo"], ap["bo"])


def encoder_layer(x, src_kpm, lp, n_heads):
    B, S, D = x.shape
    weights = (_mha_weight_tuple(lp["sa"])
               + (lp["ln1_w"], lp["ln1_b"],
                  lp["w1"], lp["b1"], lp["w2"], lp["b2"],
                  lp["ln2_w"], lp["ln2_b"]))
    return pl.pallas_call(
        partial(_encoder_layer_kernel, n_heads=n_heads),
        out_shape=jax.ShapeDtypeStruct((B, S, D), jnp.float32),
        grid=(B,),
        in_specs=([pl.BlockSpec((None, S, D), lambda b: (b, 0, 0)),
                   pl.BlockSpec((None, 1, S), lambda b: (b, 0, 0))]
                  + [_rep_spec(w) for w in weights]),
        out_specs=pl.BlockSpec((None, S, D), lambda b: (b, 0, 0)),
        compiler_params=pltpu.CompilerParams(
            dimension_semantics=("parallel",)),
    )(x, src_kpm, *weights)


def decoder_layer(y, memory, tgt_am, tgt_kpm, src_kpm, lp, n_heads):
    B, St, D = y.shape
    Ss = memory.shape[1]
    weights = (_mha_weight_tuple(lp["sa"]) + (lp["ln1_w"], lp["ln1_b"])
               + _mha_weight_tuple(lp["ca"]) + (lp["ln2_w"], lp["ln2_b"])
               + (lp["w1"], lp["b1"], lp["w2"], lp["b2"],
                  lp["ln3_w"], lp["ln3_b"]))
    return pl.pallas_call(
        partial(_decoder_layer_kernel, n_heads=n_heads),
        out_shape=jax.ShapeDtypeStruct((B, St, D), jnp.float32),
        grid=(B,),
        in_specs=([pl.BlockSpec((None, St, D), lambda b: (b, 0, 0)),
                   pl.BlockSpec((None, Ss, D), lambda b: (b, 0, 0)),
                   pl.BlockSpec((St, St), lambda b: (0, 0)),
                   pl.BlockSpec((None, 1, St), lambda b: (b, 0, 0)),
                   pl.BlockSpec((None, 1, Ss), lambda b: (b, 0, 0))]
                  + [_rep_spec(w) for w in weights]),
        out_specs=pl.BlockSpec((None, St, D), lambda b: (b, 0, 0)),
        compiler_params=pltpu.CompilerParams(
            dimension_semantics=("parallel",)),
    )(y, memory, tgt_am, tgt_kpm, src_kpm, *weights)


def final_linear(y, w_t, b):
    """y: [B, S, D]; w_t: [D, V] (pre-transposed); b: [1, V]."""
    B, S, D = y.shape
    V = w_t.shape[-1]
    return pl.pallas_call(
        _final_linear_kernel,
        out_shape=jax.ShapeDtypeStruct((B, S, V), jnp.float32),
        grid=(B,),
        in_specs=[pl.BlockSpec((None, S, D), lambda b: (b, 0, 0)),
                  pl.BlockSpec((D, V), lambda b: (0, 0)),
                  pl.BlockSpec((1, V), lambda b: (0, 0))],
        out_specs=pl.BlockSpec((None, S, V), lambda b: (b, 0, 0)),
        compiler_params=pltpu.CompilerParams(
            dimension_semantics=("parallel",)),
    )(y, w_t, b)


# ------------------------------- glue (JAX) -----------------------------------

def positional_encoding_table(max_len, d_model):
    pos = jnp.arange(max_len, dtype=jnp.float32)[:, None]
    div = jnp.exp(jnp.arange(0, d_model, 2, dtype=jnp.float32)
                  * (-math.log(10000.0) / d_model))
    pe = jnp.zeros((max_len, d_model), jnp.float32)
    pe = pe.at[:, 0::2].set(jnp.sin(pos * div))
    pe = pe.at[:, 1::2].set(jnp.cos(pos * div))
    return pe


def transformer_autoencoder_forward(prep, cfg, src, tgt,
                                    src_pad_mask, tgt_mask, tgt_pad_mask):
    B, Ss = src.shape
    _, St = tgt.shape
    D, H = cfg["hid_dim"], cfg["n_heads"]
    pe = prep["pe"]

    # compact additive masks (no [B, H, Sq, Sk] materialization)
    src_kpm = jnp.where(src_pad_mask, NEG_INF, 0.0).astype(jnp.float32)[:, None, :]
    tgt_kpm = jnp.where(tgt_pad_mask, NEG_INF, 0.0).astype(jnp.float32)[:, None, :]
    tgt_am = jnp.where(tgt_mask, NEG_INF, 0.0).astype(jnp.float32)

    # ----- Encoder -----
    x = prep["enc_emb"][src] * math.sqrt(D) + pe[:Ss][None]
    for lp in prep["enc_layers"]:
        x = encoder_layer(x, src_kpm, lp, H)
    memory = x

    # ----- Decoder -----
    y = prep["dec_emb"][tgt] * math.sqrt(D) + pe[:St][None]
    for lp in prep["dec_layers"]:
        y = decoder_layer(y, memory, tgt_am, tgt_kpm, src_kpm, lp, H)

    # ----- Final Linear (hid_dim -> num_emb) -----
    return final_linear(y, prep["fc_w"], prep["fc_b"])


# ----------------- one-time parameter re-layout (torch -> kernel) -------------

def _prep_mha(p, D, H):
    """torch MHA params -> per-head, pre-transposed, q-scale-folded layout."""
    dh = D // H
    scale = 1.0 / math.sqrt(dh)
    w_in, b_in = p["in_proj_weight"], p["in_proj_bias"]   # [3D, D], [3D]

    def w_heads(w):   # torch [D_out, D_in] -> [H, D_in, dh]
        return jnp.transpose(w.reshape(H, dh, D), (0, 2, 1))

    def b_heads(b):   # [D] -> [H, 1, dh]
        return b.reshape(H, 1, dh)

    return {
        "wq": w_heads(w_in[:D]) * scale,  "bq": b_heads(b_in[:D]) * scale,
        "wk": w_heads(w_in[D:2 * D]),     "bk": b_heads(b_in[D:2 * D]),
        "wv": w_heads(w_in[2 * D:]),      "bv": b_heads(b_in[2 * D:]),
        # out = sum_h ctx_h @ (W_o^T)[h*dh:(h+1)*dh, :]
        "wo": jnp.transpose(p["out_proj_weight"]).reshape(H, dh, D),
        "bo": p["out_proj_bias"].reshape(1, D),
    }


def _prep_enc_layer(lp, cfg):
    D, F, H = cfg["hid_dim"], cfg["ff_dim"], cfg["n_heads"]
    return {
        "sa": _prep_mha(lp["self_attn"], D, H),
        "ln1_w": lp["ln1_w"].reshape(1, D), "ln1_b": lp["ln1_b"].reshape(1, D),
        "w1": jnp.transpose(lp["lin1_w"]), "b1": lp["lin1_b"].reshape(1, F),
        "w2": jnp.transpose(lp["lin2_w"]), "b2": lp["lin2_b"].reshape(1, D),
        "ln2_w": lp["ln2_w"].reshape(1, D), "ln2_b": lp["ln2_b"].reshape(1, D),
    }


def _prep_dec_layer(lp, cfg):
    D, F, H = cfg["hid_dim"], cfg["ff_dim"], cfg["n_heads"]
    return {
        "sa": _prep_mha(lp["self_attn"], D, H),
        "ca": _prep_mha(lp["cross_attn"], D, H),
        "ln1_w": lp["ln1_w"].reshape(1, D), "ln1_b": lp["ln1_b"].reshape(1, D),
        "ln2_w": lp["ln2_w"].reshape(1, D), "ln2_b": lp["ln2_b"].reshape(1, D),
        "ln3_w": lp["ln3_w"].reshape(1, D), "ln3_b": lp["ln3_b"].reshape(1, D),
        "w1": jnp.transpose(lp["lin1_w"]), "b1": lp["lin1_b"].reshape(1, F),
        "w2": jnp.transpose(lp["lin2_w"]), "b2": lp["lin2_b"].reshape(1, D),
    }


def prepare_params(params, cfg):
    return {
        "pe": params["pe"],
        "enc_emb": params["enc_emb"],
        "dec_emb": params["dec_emb"],
        "fc_w": jnp.transpose(params["fc_w"]),            # [D, V]
        "fc_b": params["fc_b"].reshape(1, -1),            # [1, V]
        "enc_layers": [_prep_enc_layer(lp, cfg) for lp in params["enc_layers"]],
        "dec_layers": [_prep_dec_layer(lp, cfg) for lp in params["dec_layers"]],
    }


# -------------------------- parameter init (torch layout) ---------------------

def xavier_uniform(key, shape):
    fan_out, fan_in = shape[0], shape[1]
    a = math.sqrt(6.0 / (fan_in + fan_out))
    return jax.random.uniform(key, shape, jnp.float32, -a, a)


def init_mha(key, D):
    k1, k2 = jax.random.split(key)
    return {
        "in_proj_weight": xavier_uniform(k1, (3 * D, D)),
        "in_proj_bias": jnp.zeros((3 * D,), jnp.float32),
        "out_proj_weight": xavier_uniform(k2, (D, D)),
        "out_proj_bias": jnp.zeros((D,), jnp.float32),
    }


def init_enc_layer(key, D, F):
    ks = jax.random.split(key, 3)
    return {
        "self_attn": init_mha(ks[0], D),
        "lin1_w": xavier_uniform(ks[1], (F, D)),
        "lin1_b": jnp.zeros((F,), jnp.float32),
        "lin2_w": xavier_uniform(ks[2], (D, F)),
        "lin2_b": jnp.zeros((D,), jnp.float32),
        "ln1_w": jnp.ones((D,), jnp.float32), "ln1_b": jnp.zeros((D,), jnp.float32),
        "ln2_w": jnp.ones((D,), jnp.float32), "ln2_b": jnp.zeros((D,), jnp.float32),
    }


def init_dec_layer(key, D, F):
    ks = jax.random.split(key, 4)
    return {
        "self_attn": init_mha(ks[0], D),
        "cross_attn": init_mha(ks[1], D),
        "lin1_w": xavier_uniform(ks[2], (F, D)),
        "lin1_b": jnp.zeros((F,), jnp.float32),
        "lin2_w": xavier_uniform(ks[3], (D, F)),
        "lin2_b": jnp.zeros((D,), jnp.float32),
        "ln1_w": jnp.ones((D,), jnp.float32), "ln1_b": jnp.zeros((D,), jnp.float32),
        "ln2_w": jnp.ones((D,), jnp.float32), "ln2_b": jnp.zeros((D,), jnp.float32),
        "ln3_w": jnp.ones((D,), jnp.float32), "ln3_b": jnp.zeros((D,), jnp.float32),
    }


def init_params(key, cfg):
    V, D, L, F = cfg["num_emb"], cfg["hid_dim"], cfg["n_layers"], cfg["ff_dim"]
    keys = jax.random.split(key, 3 + 2 * L)
    return {
        "enc_emb": xavier_uniform(keys[0], (V, D)),
        "dec_emb": xavier_uniform(keys[1], (V, D)),
        "fc_w": xavier_uniform(keys[2], (V, D)),
        "fc_b": jnp.zeros((V,), jnp.float32),
        "pe": positional_encoding_table(cfg["max_length"], D),
        "enc_layers": [init_enc_layer(keys[3 + i], D, F) for i in range(L)],
        "dec_layers": [init_dec_layer(keys[3 + L + i], D, F) for i in range(L)],
    }


# ----------------------------------- main --------------------------------------

if __name__ == "__main__":
    cfg = dict(num_emb=16, hid_dim=32, n_layers=2, n_heads=4,
               ff_dim=64, max_length=100)
    B, Ss, St = 2, 8, 8

    root = jax.random.PRNGKey(0)
    kp, ks, kt = jax.random.split(root, 3)

    params = init_params(kp, cfg)          # torch-layout parameters
    prep = prepare_params(params, cfg)     # one-time re-layout for the kernels

    src = jax.random.randint(ks, (B, Ss), 0, cfg["num_emb"], dtype=jnp.int32)
    tgt = jax.random.randint(kt, (B, St), 0, cfg["num_emb"], dtype=jnp.int32)

    # padding masks: True == padded (ignored). Pad last 2 src / 1 tgt token of batch 1.
    src_pad_mask = jnp.zeros((B, Ss), bool).at[1, Ss - 2:].set(True)
    tgt_pad_mask = jnp.zeros((B, St), bool).at[1, St - 1:].set(True)
    # causal mask: True above the diagonal == not allowed to attend.
    tgt_mask = jnp.triu(jnp.ones((St, St), bool), k=1)

    fwd = jax.jit(lambda p, s, t, spm, tm, tpm:
                  transformer_autoencoder_forward(p, cfg, s, t, spm, tm, tpm))
    out = jax.block_until_ready(fwd(prep, src, tgt,
                                    src_pad_mask, tgt_mask, tgt_pad_mask))

    assert out.shape == (B, St, cfg["num_emb"]), out.shape
    assert bool(jnp.all(jnp.isfinite(out)))
    print("KERNEL_OK")
</pallas_src>

<mosaic_0001>
module attributes {stable_mosaic.version = 11 : i64} {
  func.func @_encoder_layer_kernel(%arg0: i32, %arg1: memref<1x8x32xf32, #tpu.memory_space<vmem>>, %arg2: memref<1x1x8xf32, #tpu.memory_space<vmem>>, %arg3: memref<4x32x8xf32, #tpu.memory_space<vmem>>, %arg4: memref<4x1x8xf32, #tpu.memory_space<vmem>>, %arg5: memref<4x32x8xf32, #tpu.memory_space<vmem>>, %arg6: memref<4x1x8xf32, #tpu.memory_space<vmem>>, %arg7: memref<4x32x8xf32, #tpu.memory_space<vmem>>, %arg8: memref<4x1x8xf32, #tpu.memory_space<vmem>>, %arg9: memref<4x8x32xf32, #tpu.memory_space<vmem>>, %arg10: memref<1x32xf32, #tpu.memory_space<vmem>>, %arg11: memref<1x32xf32, #tpu.memory_space<vmem>>, %arg12: memref<1x32xf32, #tpu.memory_space<vmem>>, %arg13: memref<32x64xf32, #tpu.memory_space<vmem>>, %arg14: memref<1x64xf32, #tpu.memory_space<vmem>>, %arg15: memref<64x32xf32, #tpu.memory_space<vmem>>, %arg16: memref<1x32xf32, #tpu.memory_space<vmem>>, %arg17: memref<1x32xf32, #tpu.memory_space<vmem>>, %arg18: memref<1x32xf32, #tpu.memory_space<vmem>>, %arg19: memref<1x8x32xf32, #tpu.memory_space<vmem>>) attributes {dimension_semantics = [#tpu.dimension_semantics<parallel>], iteration_bounds = array<i64: 2>, scalar_prefetch = 0 : i64, scratch_operands = 0 : i64, tpu.core_type = #tpu.core_type<tc>, window_params = [{transform_indices = @transform_0, window_bounds = array<i64: 1, 8, 32>}, {transform_indices = @transform_1, window_bounds = array<i64: 1, 1, 8>}, {pipeline_mode = #tpu.pipeline_mode<synchronous>, transform_indices = @transform_2, window_bounds = array<i64: 4, 32, 8>}, {pipeline_mode = #tpu.pipeline_mode<synchronous>, transform_indices = @transform_3, window_bounds = array<i64: 4, 1, 8>}, {pipeline_mode = #tpu.pipeline_mode<synchronous>, transform_indices = @transform_4, window_bounds = array<i64: 4, 32, 8>}, {pipeline_mode = #tpu.pipeline_mode<synchronous>, transform_indices = @transform_5, window_bounds = array<i64: 4, 1, 8>}, {pipeline_mode = #tpu.pipeline_mode<synchronous>, transform_indices = @transform_6, window_bounds = array<i64: 4, 32, 8>}, {pipeline_mode = #tpu.pipeline_mode<synchronous>, transform_indices = @transform_7, window_bounds = array<i64: 4, 1, 8>}, {pipeline_mode = #tpu.pipeline_mode<synchronous>, transform_indices = @transform_8, window_bounds = array<i64: 4, 8, 32>}, {pipeline_mode = #tpu.pipeline_mode<synchronous>, transform_indices = @transform_9, window_bounds = array<i64: 1, 32>}, {pipeline_mode = #tpu.pipeline_mode<synchronous>, transform_indices = @transform_10, window_bounds = array<i64: 1, 32>}, {pipeline_mode = #tpu.pipeline_mode<synchronous>, transform_indices = @transform_11, window_bounds = array<i64: 1, 32>}, {pipeline_mode = #tpu.pipeline_mode<synchronous>, transform_indices = @transform_12, window_bounds = array<i64: 32, 64>}, {pipeline_mode = #tpu.pipeline_mode<synchronous>, transform_indices = @transform_13, window_bounds = array<i64: 1, 64>}, {pipeline_mode = #tpu.pipeline_mode<synchronous>, transform_indices = @transform_14, window_bounds = array<i64: 64, 32>}, {pipeline_mode = #tpu.pipeline_mode<synchronous>, transform_indices = @transform_15, window_bounds = array<i64: 1, 32>}, {pipeline_mode = #tpu.pipeline_mode<synchronous>, transform_indices = @transform_16, window_bounds = array<i64: 1, 32>}, {pipeline_mode = #tpu.pipeline_mode<synchronous>, transform_indices = @transform_17, window_bounds = array<i64: 1, 32>}, {transform_indices = @transform_18, window_bounds = array<i64: 1, 8, 32>}]} {
    %c0 = arith.constant 0 : index
    %c0_0 = arith.constant 0 : index
    %c0_1 = arith.constant 0 : index
    %0 = vector.load %arg1[%c0, %c0_0, %c0_1] : memref<1x8x32xf32, #tpu.memory_space<vmem>>, vector<1x8x32xf32>
    %1 = vector.shape_cast %0 : vector<1x8x32xf32> to vector<8x32xf32>
    %c0_2 = arith.constant 0 : index
    %c0_3 = arith.constant 0 : index
    %c0_4 = arith.constant 0 : index
    %2 = vector.load %arg2[%c0_2, %c0_3, %c0_4] : memref<1x1x8xf32, #tpu.memory_space<vmem>>, vector<1x1x8xf32>
    %3 = vector.shape_cast %2 : vector<1x1x8xf32> to vector<1x8xf32>
    %cst = arith.constant 0.000000e+00 : f32
    %4 = vector.broadcast %cst : f32 to vector<8x32xf32>
    %c0_5 = arith.constant 0 : index
    %c0_6 = arith.constant 0 : index
    %c0_7 = arith.constant 0 : index
    %5 = vector.load %arg3[%c0_5, %c0_6, %c0_7] : memref<4x32x8xf32, #tpu.memory_space<vmem>>, vector<1x32x8xf32>
    %6 = vector.shape_cast %5 : vector<1x32x8xf32> to vector<32x8xf32>
    %cst_8 = arith.constant dense<0.000000e+00> : vector<8x8xf32>
    %7 = tpu.matmul %1, %6, %cst_8 {dimension_numbers = #tpu.dot_dimension_numbers<[1], [0], [0], [1], [0, 0, 1, 1], [], []>} : vector<8x32xf32>, vector<32x8xf32>, vector<8x8xf32> -> vector<8x8xf32>
    %c0_9 = arith.constant 0 : index
    %c0_10 = arith.constant 0 : index
    %c0_11 = arith.constant 0 : index
    %8 = vector.load %arg4[%c0_9, %c0_10, %c0_11] : memref<4x1x8xf32, #tpu.memory_space<vmem>>, vector<1x1x8xf32>
    %9 = vector.shape_cast %8 : vector<1x1x8xf32> to vector<1x8xf32>
    %10 = vector.broadcast %9 : vector<1x8xf32> to vector<8x8xf32>
    %11 = arith.addf %7, %10 : vector<8x8xf32>
    %c0_12 = arith.constant 0 : index
    %c0_13 = arith.constant 0 : index
    %c0_14 = arith.constant 0 : index
    %12 = vector.load %arg5[%c0_12, %c0_13, %c0_14] : memref<4x32x8xf32, #tpu.memory_space<vmem>>, vector<1x32x8xf32>
    %13 = vector.shape_cast %12 : vector<1x32x8xf32> to vector<32x8xf32>
    %cst_15 = arith.constant dense<0.000000e+00> : vector<8x8xf32>
    %14 = tpu.matmul %1, %13, %cst_15 {dimension_numbers = #tpu.dot_dimension_numbers<[1], [0], [0], [1], [0, 0, 1, 1], [], []>} : vector<8x32xf32>, vector<32x8xf32>, vector<8x8xf32> -> vector<8x8xf32>
    %c0_16 = arith.constant 0 : index
    %c0_17 = arith.constant 0 : index
    %c0_18 = arith.constant 0 : index
    %15 = vector.load %arg6[%c0_16, %c0_17, %c0_18] : memref<4x1x8xf32, #tpu.memory_space<vmem>>, vector<1x1x8xf32>
    %16 = vector.shape_cast %15 : vector<1x1x8xf32> to vector<1x8xf32>
    %17 = vector.broadcast %16 : vector<1x8xf32> to vector<8x8xf32>
    %18 = arith.addf %14, %17 : vector<8x8xf32>
    %c0_19 = arith.constant 0 : index
    %c0_20 = arith.constant 0 : index
    %c0_21 = arith.constant 0 : index
    %19 = vector.load %arg7[%c0_19, %c0_20, %c0_21] : memref<4x32x8xf32, #tpu.memory_space<vmem>>, vector<1x32x8xf32>
    %20 = vector.shape_cast %19 : vector<1x32x8xf32> to vector<32x8xf32>
    %cst_22 = arith.constant dense<0.000000e+00> : vector<8x8xf32>
    %21 = tpu.matmul %1, %20, %cst_22 {dimension_numbers = #tpu.dot_dimension_numbers<[1], [0], [0], [1], [0, 0, 1, 1], [], []>} : vector<8x32xf32>, vector<32x8xf32>, vector<8x8xf32> -> vector<8x8xf32>
    %c0_23 = arith.constant 0 : index
    %c0_24 = arith.constant 0 : index
    %c0_25 = arith.constant 0 : index
    %22 = vector.load %arg8[%c0_23, %c0_24, %c0_25] : memref<4x1x8xf32, #tpu.memory_space<vmem>>, vector<1x1x8xf32>
    %23 = vector.shape_cast %22 : vector<1x1x8xf32> to vector<1x8xf32>
    %24 = vector.broadcast %23 : vector<1x8xf32> to vector<8x8xf32>
    %25 = arith.addf %21, %24 : vector<8x8xf32>
    %26 = tpu.transpose %18, [1, 0] : vector<8x8xf32> -> vector<8x8xf32>
    %cst_26 = arith.constant dense<0.000000e+00> : vector<8x8xf32>
    %27 = tpu.matmul %11, %26, %cst_26 {dimension_numbers = #tpu.dot_dimension_numbers<[1], [0], [0], [1], [0, 0, 1, 1], [], []>} : vector<8x8xf32>, vector<8x8xf32>, vector<8x8xf32> -> vector<8x8xf32>
    %28 = vector.broadcast %3 : vector<1x8xf32> to vector<8x8xf32>
    %29 = arith.addf %27, %28 : vector<8x8xf32>
    %cst_27 = arith.constant dense<0xFF800000> : vector<8xf32>
    %30 = vector.multi_reduction <maximumf>, %29, %cst_27 [1] : vector<8x8xf32> to vector<8xf32>
    %31 = vector.shape_cast %30 : vector<8xf32> to vector<8x1xf32>
    %32 = vector.broadcast %31 : vector<8x1xf32> to vector<8x8xf32>
    %33 = arith.subf %29, %32 : vector<8x8xf32>
    %34 = math.exp %33 : vector<8x8xf32>
    %cst_28 = arith.constant dense<0.000000e+00> : vector<8xf32>
    %35 = vector.multi_reduction <add>, %34, %cst_28 [1] : vector<8x8xf32> to vector<8xf32>
    %36 = vector.shape_cast %35 : vector<8xf32> to vector<8x1xf32>
    %37 = tpu.reciprocal %36 {approx = true} : vector<8x1xf32> -> vector<8x1xf32>
    %38 = vector.broadcast %37 : vector<8x1xf32> to vector<8x8xf32>
    %39 = arith.mulf %34, %38 : vector<8x8xf32>
    %cst_29 = arith.constant dense<0.000000e+00> : vector<8x8xf32>
    %40 = tpu.matmul %39, %25, %cst_29 {dimension_numbers = #tpu.dot_dimension_numbers<[1], [0], [0], [1], [0, 0, 1, 1], [], []>} : vector<8x8xf32>, vector<8x8xf32>, vector<8x8xf32> -> vector<8x8xf32>
    %c0_30 = arith.constant 0 : index
    %c0_31 = arith.constant 0 : index
    %c0_32 = arith.constant 0 : index
    %41 = vector.load %arg9[%c0_30, %c0_31, %c0_32] : memref<4x8x32xf32, #tpu.memory_space<vmem>>, vector<1x8x32xf32>
    %42 = vector.shape_cast %41 : vector<1x8x32xf32> to vector<8x32xf32>
    %cst_33 = arith.constant dense<0.000000e+00> : vector<8x32xf32>
    %43 = tpu.matmul %40, %42, %cst_33 {dimension_numbers = #tpu.dot_dimension_numbers<[1], [0], [0], [1], [0, 0, 1, 1], [], []>} : vector<8x8xf32>, vector<8x32xf32>, vector<8x32xf32> -> vector<8x32xf32>
    %44 = arith.addf %4, %43 : vector<8x32xf32>
    %c1 = arith.constant 1 : index
    %c0_34 = arith.constant 0 : index
    %c0_35 = arith.constant 0 : index
    %45 = vector.load %arg3[%c1, %c0_34, %c0_35] : memref<4x32x8xf32, #tpu.memory_space<vmem>>, vector<1x32x8xf32>
    %46 = vector.shape_cast %45 : vector<1x32x8xf32> to vector<32x8xf32>
    %cst_36 = arith.constant dense<0.000000e+00> : vector<8x8xf32>
    %47 = tpu.matmul %1, %46, %cst_36 {dimension_numbers = #tpu.dot_dimension_numbers<[1], [0], [0], [1], [0, 0, 1, 1], [], []>} : vector<8x32xf32>, vector<32x8xf32>, vector<8x8xf32> -> vector<8x8xf32>
    %c1_37 = arith.constant 1 : index
    %c0_38 = arith.constant 0 : index
    %c0_39 = arith.constant 0 : index
    %48 = vector.load %arg4[%c1_37, %c0_38, %c0_39] : memref<4x1x8xf32, #tpu.memory_space<vmem>>, vector<1x1x8xf32>
    %49 = vector.shape_cast %48 : vector<1x1x8xf32> to vector<1x8xf32>
    %50 = vector.broadcast %49 : vector<1x8xf32> to vector<8x8xf32>
    %51 = arith.addf %47, %50 : vector<8x8xf32>
    %c1_40 = arith.constant 1 : index
    %c0_41 = arith.constant 0 : index
    %c0_42 = arith.constant 0 : index
    %52 = vector.load %arg5[%c1_40, %c0_41, %c0_42] : memref<4x32x8xf32, #tpu.memory_space<vmem>>, vector<1x32x8xf32>
    %53 = vector.shape_cast %52 : vector<1x32x8xf32> to vector<32x8xf32>
    %cst_43 = arith.constant dense<0.000000e+00> : vector<8x8xf32>
    %54 = tpu.matmul %1, %53, %cst_43 {dimension_numbers = #tpu.dot_dimension_numbers<[1], [0], [0], [1], [0, 0, 1, 1], [], []>} : vector<8x32xf32>, vector<32x8xf32>, vector<8x8xf32> -> vector<8x8xf32>
    %c1_44 = arith.constant 1 : index
    %c0_45 = arith.constant 0 : index
    %c0_46 = arith.constant 0 : index
    %55 = vector.load %arg6[%c1_44, %c0_45, %c0_46] : memref<4x1x8xf32, #tpu.memory_space<vmem>>, vector<1x1x8xf32>
    %56 = vector.shape_cast %55 : vector<1x1x8xf32> to vector<1x8xf32>
    %57 = vector.broadcast %56 : vector<1x8xf32> to vector<8x8xf32>
    %58 = arith.addf %54, %57 : vector<8x8xf32>
    %c1_47 = arith.constant 1 : index
    %c0_48 = arith.constant 0 : index
    %c0_49 = arith.constant 0 : index
    %59 = vector.load %arg7[%c1_47, %c0_48, %c0_49] : memref<4x32x8xf32, #tpu.memory_space<vmem>>, vector<1x32x8xf32>
    %60 = vector.shape_cast %59 : vector<1x32x8xf32> to vector<32x8xf32>
    %cst_50 = arith.constant dense<0.000000e+00> : vector<8x8xf32>
    %61 = tpu.matmul %1, %60, %cst_50 {dimension_numbers = #tpu.dot_dimension_numbers<[1], [0], [0], [1], [0, 0, 1, 1], [], []>} : vector<8x32xf32>, vector<32x8xf32>, vector<8x8xf32> -> vector<8x8xf32>
    %c1_51 = arith.constant 1 : index
    %c0_52 = arith.constant 0 : index
    %c0_53 = arith.constant 0 : index
    %62 = vector.load %arg8[%c1_51, %c0_52, %c0_53] : memref<4x1x8xf32, #tpu.memory_space<vmem>>, vector<1x1x8xf32>
    %63 = vector.shape_cast %62 : vector<1x1x8xf32> to vector<1x8xf32>
    %64 = vector.broadcast %63 : vector<1x8xf32> to vector<8x8xf32>
    %65 = arith.addf %61, %64 : vector<8x8xf32>
    %66 = tpu.transpose %58, [1, 0] : vector<8x8xf32> -> vector<8x8xf32>
    %cst_54 = arith.constant dense<0.000000e+00> : vector<8x8xf32>
    %67 = tpu.matmul %51, %66, %cst_54 {dimension_numbers = #tpu.dot_dimension_numbers<[1], [0], [0], [1], [0, 0, 1, 1], [], []>} : vector<8x8xf32>, vector<8x8xf32>, vector<8x8xf32> -> vector<8x8xf32>
    %68 = vector.broadcast %3 : vector<1x8xf32> to vector<8x8xf32>
    %69 = arith.addf %67, %68 : vector<8x8xf32>
    %cst_55 = arith.constant dense<0xFF800000> : vector<8xf32>
    %70 = vector.multi_reduction <maximumf>, %69, %cst_55 [1] : vector<8x8xf32> to vector<8xf32>
    %71 = vector.shape_cast %70 : vector<8xf32> to vector<8x1xf32>
    %72 = vector.broadcast %71 : vector<8x1xf32> to vector<8x8xf32>
    %73 = arith.subf %69, %72 : vector<8x8xf32>
    %74 = math.exp %73 : vector<8x8xf32>
    %cst_56 = arith.constant dense<0.000000e+00> : vector<8xf32>
    %75 = vector.multi_reduction <add>, %74, %cst_56 [1] : vector<8x8xf32> to vector<8xf32>
    %76 = vector.shape_cast %75 : vector<8xf32> to vector<8x1xf32>
    %77 = tpu.reciprocal %76 {approx = true} : vector<8x1xf32> -> vector<8x1xf32>
    %78 = vector.broadcast %77 : vector<8x1xf32> to vector<8x8xf32>
    %79 = arith.mulf %74, %78 : vector<8x8xf32>
    %cst_57 = arith.constant dense<0.000000e+00> : vector<8x8xf32>
    %80 = tpu.matmul %79, %65, %cst_57 {dimension_numbers = #tpu.dot_dimension_numbers<[1], [0], [0], [1], [0, 0, 1, 1], [], []>} : vector<8x8xf32>, vector<8x8xf32>, vector<8x8xf32> -> vector<8x8xf32>
    %c1_58 = arith.constant 1 : index
    %c0_59 = arith.constant 0 : index
    %c0_60 = arith.constant 0 : index
    %81 = vector.load %arg9[%c1_58, %c0_59, %c0_60] : memref<4x8x32xf32, #tpu.memory_space<vmem>>, vector<1x8x32xf32>
    %82 = vector.shape_cast %81 : vector<1x8x32xf32> to vector<8x32xf32>
    %cst_61 = arith.constant dense<0.000000e+00> : vector<8x32xf32>
    %83 = tpu.matmul %80, %82, %cst_61 {dimension_numbers = #tpu.dot_dimension_numbers<[1], [0], [0], [1], [0, 0, 1, 1], [], []>} : vector<8x8xf32>, vector<8x32xf32>, vector<8x32xf32> -> vector<8x32xf32>
    %84 = arith.addf %44, %83 : vector<8x32xf32>
    %c2 = arith.constant 2 : index
    %c0_62 = arith.constant 0 : index
    %c0_63 = arith.constant 0 : index
    %85 = vector.load %arg3[%c2, %c0_62, %c0_63] : memref<4x32x8xf32, #tpu.memory_space<vmem>>, vector<1x32x8xf32>
    %86 = vector.shape_cast %85 : vector<1x32x8xf32> to vector<32x8xf32>
    %cst_64 = arith.constant dense<0.000000e+00> : vector<8x8xf32>
    %87 = tpu.matmul %1, %86, %cst_64 {dimension_numbers = #tpu.dot_dimension_numbers<[1], [0], [0], [1], [0, 0, 1, 1], [], []>} : vector<8x32xf32>, vector<32x8xf32>, vector<8x8xf32> -> vector<8x8xf32>
    %c2_65 = arith.constant 2 : index
    %c0_66 = arith.constant 0 : index
    %c0_67 = arith.constant 0 : index
    %88 = vector.load %arg4[%c2_65, %c0_66, %c0_67] : memref<4x1x8xf32, #tpu.memory_space<vmem>>, vector<1x1x8xf32>
    %89 = vector.shape_cast %88 : vector<1x1x8xf32> to vector<1x8xf32>
    %90 = vector.broadcast %89 : vector<1x8xf32> to vector<8x8xf32>
    %91 = arith.addf %87, %90 : vector<8x8xf32>
    %c2_68 = arith.constant 2 : index
    %c0_69 = arith.constant 0 : index
    %c0_70 = arith.constant 0 : index
    %92 = vector.load %arg5[%c2_68, %c0_69, %c0_70] : memref<4x32x8xf32, #tpu.memory_space<vmem>>, vector<1x32x8xf32>
    %93 = vector.shape_cast %92 : vector<1x32x8xf32> to vector<32x8xf32>
    %cst_71 = arith.constant dense<0.000000e+00> : vector<8x8xf32>
    %94 = tpu.matmul %1, %93, %cst_71 {dimension_numbers = #tpu.dot_dimension_numbers<[1], [0], [0], [1], [0, 0, 1, 1], [], []>} : vector<8x32xf32>, vector<32x8xf32>, vector<8x8xf32> -> vector<8x8xf32>
    %c2_72 = arith.constant 2 : index
    %c0_73 = arith.constant 0 : index
    %c0_74 = arith.constant 0 : index
    %95 = vector.load %arg6[%c2_72, %c0_73, %c0_74] : memref<4x1x8xf32, #tpu.memory_space<vmem>>, vector<1x1x8xf32>
    %96 = vector.shape_cast %95 : vector<1x1x8xf32> to vector<1x8xf32>
    %97 = vector.broadcast %96 : vector<1x8xf32> to vector<8x8xf32>
    %98 = arith.addf %94, %97 : vector<8x8xf32>
    %c2_75 = arith.constant 2 : index
    %c0_76 = arith.constant 0 : index
    %c0_77 = arith.constant 0 : index
    %99 = vector.load %arg7[%c2_75, %c0_76, %c0_77] : memref<4x32x8xf32, #tpu.memory_space<vmem>>, vector<1x32x8xf32>
    %100 = vector.shape_cast %99 : vector<1x32x8xf32> to vector<32x8xf32>
    %cst_78 = arith.constant dense<0.000000e+00> : vector<8x8xf32>
    %101 = tpu.matmul %1, %100, %cst_78 {dimension_numbers = #tpu.dot_dimension_numbers<[1], [0], [0], [1], [0, 0, 1, 1], [], []>} : vector<8x32xf32>, vector<32x8xf32>, vector<8x8xf32> -> vector<8x8xf32>
    %c2_79 = arith.constant 2 : index
    %c0_80 = arith.constant 0 : index
    %c0_81 = arith.constant 0 : index
    %102 = vector.load %arg8[%c2_79, %c0_80, %c0_81] : memref<4x1x8xf32, #tpu.memory_space<vmem>>, vector<1x1x8xf32>
    %103 = vector.shape_cast %102 : vector<1x1x8xf32> to vector<1x8xf32>
    %104 = vector.broadcast %103 : vector<1x8xf32> to vector<8x8xf32>
    %105 = arith.addf %101, %104 : vector<8x8xf32>
    %106 = tpu.transpose %98, [1, 0] : vector<8x8xf32> -> vector<8x8xf32>
    %cst_82 = arith.constant dense<0.000000e+00> : vector<8x8xf32>
    %107 = tpu.matmul %91, %106, %cst_82 {dimension_numbers = #tpu.dot_dimension_numbers<[1], [0], [0], [1], [0, 0, 1, 1], [], []>} : vector<8x8xf32>, vector<8x8xf32>, vector<8x8xf32> -> vector<8x8xf32>
    %108 = vector.broadcast %3 : vector<1x8xf32> to vector<8x8xf32>
    %109 = arith.addf %107, %108 : vector<8x8xf32>
    %cst_83 = arith.constant dense<0xFF800000> : vector<8xf32>
    %110 = vector.multi_reduction <maximumf>, %109, %cst_83 [1] : vector<8x8xf32> to vector<8xf32>
    %111 = vector.shape_cast %110 : vector<8xf32> to vector<8x1xf32>
    %112 = vector.broadcast %111 : vector<8x1xf32> to vector<8x8xf32>
    %113 = arith.subf %109, %112 : vector<8x8xf32>
    %114 = math.exp %113 : vector<8x8xf32>
    %cst_84 = arith.constant dense<0.000000e+00> : vector<8xf32>
    %115 = vector.multi_reduction <add>, %114, %cst_84 [1] : vector<8x8xf32> to vector<8xf32>
    %116 = vector.shape_cast %115 : vector<8xf32> to vector<8x1xf32>
    %117 = tpu.reciprocal %116 {approx = true} : vector<8x1xf32> -> vector<8x1xf32>
    %118 = vector.broadcast %117 : vector<8x1xf32> to vector<8x8xf32>
    %119 = arith.mulf %114, %118 : vector<8x8xf32>
    %cst_85 = arith.constant dense<0.000000e+00> : vector<8x8xf32>
    %120 = tpu.matmul %119, %105, %cst_85 {dimension_numbers = #tpu.dot_dimension_numbers<[1], [0], [0], [1], [0, 0, 1, 1], [], []>} : vector<8x8xf32>, vector<8x8xf32>, vector<8x8xf32> -> vector<8x8xf32>
    %c2_86 = arith.constant 2 : index
    %c0_87 = arith.constant 0 : index
    %c0_88 = arith.constant 0 : index
    %121 = vector.load %arg9[%c2_86, %c0_87, %c0_88] : memref<4x8x32xf32, #tpu.memory_space<vmem>>, vector<1x8x32xf32>
    %122 = vector.shape_cast %121 : vector<1x8x32xf32> to vector<8x32xf32>
    %cst_89 = arith.constant dense<0.000000e+00> : vector<8x32xf32>
    %123 = tpu.matmul %120, %122, %cst_89 {dimension_numbers = #tpu.dot_dimension_numbers<[1], [0], [0], [1], [0, 0, 1, 1], [], []>} : vector<8x8xf32>, vector<8x32xf32>, vector<8x32xf32> -> vector<8x32xf32>
    %124 = arith.addf %84, %123 : vector<8x32xf32>
    %c3 = arith.constant 3 : index
    %c0_90 = arith.constant 0 : index
    %c0_91 = arith.constant 0 : index
    %125 = vector.load %arg3[%c3, %c0_90, %c0_91] : memref<4x32x8xf32, #tpu.memory_space<vmem>>, vector<1x32x8xf32>
    %126 = vector.shape_cast %125 : vector<1x32x8xf32> to vector<32x8xf32>
    %cst_92 = arith.constant dense<0.000000e+00> : vector<8x8xf32>
    %127 = tpu.matmul %1, %126, %cst_92 {dimension_numbers = #tpu.dot_dimension_numbers<[1], [0], [0], [1], [0, 0, 1, 1], [], []>} : vector<8x32xf32>, vector<32x8xf32>, vector<8x8xf32> -> vector<8x8xf32>
    %c3_93 = arith.constant 3 : index
    %c0_94 = arith.constant 0 : index
    %c0_95 = arith.constant 0 : index
    %128 = vector.load %arg4[%c3_93, %c0_94, %c0_95] : memref<4x1x8xf32, #tpu.memory_space<vmem>>, vector<1x1x8xf32>
    %129 = vector.shape_cast %128 : vector<1x1x8xf32> to vector<1x8xf32>
    %130 = vector.broadcast %129 : vector<1x8xf32> to vector<8x8xf32>
    %131 = arith.addf %127, %130 : vector<8x8xf32>
    %c3_96 = arith.constant 3 : index
    %c0_97 = arith.constant 0 : index
    %c0_98 = arith.constant 0 : index
    %132 = vector.load %arg5[%c3_96, %c0_97, %c0_98] : memref<4x32x8xf32, #tpu.memory_space<vmem>>, vector<1x32x8xf32>
    %133 = vector.shape_cast %132 : vector<1x32x8xf32> to vector<32x8xf32>
    %cst_99 = arith.constant dense<0.000000e+00> : vector<8x8xf32>
    %134 = tpu.matmul %1, %133, %cst_99 {dimension_numbers = #tpu.dot_dimension_numbers<[1], [0], [0], [1], [0, 0, 1, 1], [], []>} : vector<8x32xf32>, vector<32x8xf32>, vector<8x8xf32> -> vector<8x8xf32>
    %c3_100 = arith.constant 3 : index
    %c0_101 = arith.constant 0 : index
    %c0_102 = arith.constant 0 : index
    %135 = vector.load %arg6[%c3_100, %c0_101, %c0_102] : memref<4x1x8xf32, #tpu.memory_space<vmem>>, vector<1x1x8xf32>
    %136 = vector.shape_cast %135 : vector<1x1x8xf32> to vector<1x8xf32>
    %137 = vector.broadcast %136 : vector<1x8xf32> to vector<8x8xf32>
    %138 = arith.addf %134, %137 : vector<8x8xf32>
    %c3_103 = arith.constant 3 : index
    %c0_104 = arith.constant 0 : index
    %c0_105 = arith.constant 0 : index
    %139 = vector.load %arg7[%c3_103, %c0_104, %c0_105] : memref<4x32x8xf32, #tpu.memory_space<vmem>>, vector<1x32x8xf32>
    %140 = vector.shape_cast %139 : vector<1x32x8xf32> to vector<32x8xf32>
    %cst_106 = arith.constant dense<0.000000e+00> : vector<8x8xf32>
    %141 = tpu.matmul %1, %140, %cst_106 {dimension_numbers = #tpu.dot_dimension_numbers<[1], [0], [0], [1], [0, 0, 1, 1], [], []>} : vector<8x32xf32>, vector<32x8xf32>, vector<8x8xf32> -> vector<8x8xf32>
    %c3_107 = arith.constant 3 : index
    %c0_108 = arith.constant 0 : index
    %c0_109 = arith.constant 0 : index
    %142 = vector.load %arg8[%c3_107, %c0_108, %c0_109] : memref<4x1x8xf32, #tpu.memory_space<vmem>>, vector<1x1x8xf32>
    %143 = vector.shape_cast %142 : vector<1x1x8xf32> to vector<1x8xf32>
    %144 = vector.broadcast %143 : vector<1x8xf32> to vector<8x8xf32>
    %145 = arith.addf %141, %144 : vector<8x8xf32>
    %146 = tpu.transpose %138, [1, 0] : vector<8x8xf32> -> vector<8x8xf32>
    %cst_110 = arith.constant dense<0.000000e+00> : vector<8x8xf32>
    %147 = tpu.matmul %131, %146, %cst_110 {dimension_numbers = #tpu.dot_dimension_numbers<[1], [0], [0], [1], [0, 0, 1, 1], [], []>} : vector<8x8xf32>, vector<8x8xf32>, vector<8x8xf32> -> vector<8x8xf32>
    %148 = vector.broadcast %3 : vector<1x8xf32> to vector<8x8xf32>
    %149 = arith.addf %147, %148 : vector<8x8xf32>
    %cst_111 = arith.constant dense<0xFF800000> : vector<8xf32>
    %150 = vector.multi_reduction <maximumf>, %149, %cst_111 [1] : vector<8x8xf32> to vector<8xf32>
    %151 = vector.shape_cast %150 : vector<8xf32> to vector<8x1xf32>
    %152 = vector.broadcast %151 : vector<8x1xf32> to vector<8x8xf32>
    %153 = arith.subf %149, %152 : vector<8x8xf32>
    %154 = math.exp %153 : vector<8x8xf32>
    %cst_112 = arith.constant dense<0.000000e+00> : vector<8xf32>
    %155 = vector.multi_reduction <add>, %154, %cst_112 [1] : vector<8x8xf32> to vector<8xf32>
    %156 = vector.shape_cast %155 : vector<8xf32> to vector<8x1xf32>
    %157 = tpu.reciprocal %156 {approx = true} : vector<8x1xf32> -> vector<8x1xf32>
    %158 = vector.broadcast %157 : vector<8x1xf32> to vector<8x8xf32>
    %159 = arith.mulf %154, %158 : vector<8x8xf32>
    %cst_113 = arith.constant dense<0.000000e+00> : vector<8x8xf32>
    %160 = tpu.matmul %159, %145, %cst_113 {dimension_numbers = #tpu.dot_dimension_numbers<[1], [0], [0], [1], [0, 0, 1, 1], [], []>} : vector<8x8xf32>, vector<8x8xf32>, vector<8x8xf32> -> vector<8x8xf32>
    %c3_114 = arith.constant 3 : index
    %c0_115 = arith.constant 0 : index
    %c0_116 = arith.constant 0 : index
    %161 = vector.load %arg9[%c3_114, %c0_115, %c0_116] : memref<4x8x32xf32, #tpu.memory_space<vmem>>, vector<1x8x32xf32>
    %162 = vector.shape_cast %161 : vector<1x8x32xf32> to vector<8x32xf32>
    %cst_117 = arith.constant dense<0.000000e+00> : vector<8x32xf32>
    %163 = tpu.matmul %160, %162, %cst_117 {dimension_numbers = #tpu.dot_dimension_numbers<[1], [0], [0], [1], [0, 0, 1, 1], [], []>} : vector<8x8xf32>, vector<8x32xf32>, vector<8x32xf32> -> vector<8x32xf32>
    %164 = arith.addf %124, %163 : vector<8x32xf32>
    %c0_118 = arith.constant 0 : index
    %c0_119 = arith.constant 0 : index
    %165 = vector.load %arg10[%c0_118, %c0_119] : memref<1x32xf32, #tpu.memory_space<vmem>>, vector<1x32xf32>
    %166 = vector.broadcast %165 : vector<1x32xf32> to vector<8x32xf32>
    %167 = arith.addf %164, %166 : vector<8x32xf32>
    %c0_120 = arith.constant 0 : index
    %c0_121 = arith.constant 0 : index
    %168 = vector.load %arg11[%c0_120, %c0_121] : memref<1x32xf32, #tpu.memory_space<vmem>>, vector<1x32xf32>
    %c0_122 = arith.constant 0 : index
    %c0_123 = arith.constant 0 : index
    %169 = vector.load %arg12[%c0_122, %c0_123] : memref<1x32xf32, #tpu.memory_space<vmem>>, vector<1x32xf32>
    %170 = arith.addf %1, %167 : vector<8x32xf32>
    %cst_124 = arith.constant dense<0.000000e+00> : vector<8xf32>
    %171 = vector.multi_reduction <add>, %170, %cst_124 [1] : vector<8x32xf32> to vector<8xf32>
    %172 = vector.shape_cast %171 : vector<8xf32> to vector<8x1xf32>
    %cst_125 = arith.constant 3.200000e+01 : f32
    %173 = vector.broadcast %cst_125 : f32 to vector<8x1xf32>
    %174 = arith.divf %172, %173 : vector<8x1xf32>
    %175 = vector.broadcast %174 : vector<8x1xf32> to vector<8x32xf32>
    %176 = arith.subf %170, %175 : vector<8x32xf32>
    %177 = arith.mulf %176, %176 : vector<8x32xf32>
    %cst_126 = arith.constant dense<0.000000e+00> : vector<8xf32>
    %178 = vector.multi_reduction <add>, %177, %cst_126 [1] : vector<8x32xf32> to vector<8xf32>
    %179 = vector.shape_cast %178 : vector<8xf32> to vector<8x1xf32>
    %cst_127 = arith.constant 3.200000e+01 : f32
    %180 = vector.broadcast %cst_127 : f32 to vector<8x1xf32>
    %181 = arith.divf %179, %180 : vector<8x1xf32>
    %cst_128 = arith.constant 9.99999974E-6 : f32
    %182 = vector.broadcast %cst_128 : f32 to vector<8x1xf32>
    %183 = arith.addf %181, %182 : vector<8x1xf32>
    %184 = math.rsqrt %183 : vector<8x1xf32>
    %185 = vector.broadcast %184 : vector<8x1xf32> to vector<8x32xf32>
    %186 = arith.mulf %176, %185 : vector<8x32xf32>
    %187 = vector.broadcast %168 : vector<1x32xf32> to vector<8x32xf32>
    %188 = arith.mulf %186, %187 : vector<8x32xf32>
    %189 = vector.broadcast %169 : vector<1x32xf32> to vector<8x32xf32>
    %190 = arith.addf %188, %189 : vector<8x32xf32>
    %c0_129 = arith.constant 0 : index
    %c0_130 = arith.constant 0 : index
    %191 = vector.load %arg13[%c0_129, %c0_130] : memref<32x64xf32, #tpu.memory_space<vmem>>, vector<32x64xf32>
    %c0_131 = arith.constant 0 : index
    %c0_132 = arith.constant 0 : index
    %192 = vector.load %arg14[%c0_131, %c0_132] : memref<1x64xf32, #tpu.memory_space<vmem>>, vector<1x64xf32>
    %c0_133 = arith.constant 0 : index
    %c0_134 = arith.constant 0 : index
    %193 = vector.load %arg15[%c0_133, %c0_134] : memref<64x32xf32, #tpu.memory_space<vmem>>, vector<64x32xf32>
    %c0_135 = arith.constant 0 : index
    %c0_136 = arith.constant 0 : index
    %194 = vector.load %arg16[%c0_135, %c0_136] : memref<1x32xf32, #tpu.memory_space<vmem>>, vector<1x32xf32>
    %cst_137 = arith.constant dense<0.000000e+00> : vector<8x64xf32>
    %195 = tpu.matmul %190, %191, %cst_137 {dimension_numbers = #tpu.dot_dimension_numbers<[1], [0], [0], [1], [0, 0, 1, 1], [], []>} : vector<8x32xf32>, vector<32x64xf32>, vector<8x64xf32> -> vector<8x64xf32>
    %196 = vector.broadcast %192 : vector<1x64xf32> to vector<8x64xf32>
    %197 = arith.addf %195, %196 : vector<8x64xf32>
    %cst_138 = arith.constant 0.000000e+00 : f32
    %198 = vector.broadcast %cst_138 : f32 to vector<8x64xf32>
    %199 = arith.maximumf %197, %198 : vector<8x64xf32>
    %cst_139 = arith.constant dense<0.000000e+00> : vector<8x32xf32>
    %200 = tpu.matmul %199, %193, %cst_139 {dimension_numbers = #tpu.dot_dimension_numbers<[1], [0], [0], [1], [0, 0, 1, 1], [], []>} : vector<8x64xf32>, vector<64x32xf32>, vector<8x32xf32> -> vector<8x32xf32>
    %201 = vector.broadcast %194 : vector<1x32xf32> to vector<8x32xf32>
    %202 = arith.addf %200, %201 : vector<8x32xf32>
    %c0_140 = arith.constant 0 : index
    %c0_141 = arith.constant 0 : index
    %203 = vector.load %arg17[%c0_140, %c0_141] : memref<1x32xf32, #tpu.memory_space<vmem>>, vector<1x32xf32>
    %c0_142 = arith.constant 0 : index
    %c0_143 = arith.constant 0 : index
    %204 = vector.load %arg18[%c0_142, %c0_143] : memref<1x32xf32, #tpu.memory_space<vmem>>, vector<1x32xf32>
    %205 = arith.addf %190, %202 : vector<8x32xf32>
    %cst_144 = arith.constant dense<0.000000e+00> : vector<8xf32>
    %206 = vector.multi_reduction <add>, %205, %cst_144 [1] : vector<8x32xf32> to vector<8xf32>
    %207 = vector.shape_cast %206 : vector<8xf32> to vector<8x1xf32>
    %cst_145 = arith.constant 3.200000e+01 : f32
    %208 = vector.broadcast %cst_145 : f32 to vector<8x1xf32>
    %209 = arith.divf %207, %208 : vector<8x1xf32>
    %210 = vector.broadcast %209 : vector<8x1xf32> to vector<8x32xf32>
    %211 = arith.subf %205, %210 : vector<8x32xf32>
    %212 = arith.mulf %211, %211 : vector<8x32xf32>
    %cst_146 = arith.constant dense<0.000000e+00> : vector<8xf32>
    %213 = vector.multi_reduction <add>, %212, %cst_146 [1] : vector<8x32xf32> to vector<8xf32>
    %214 = vector.shape_cast %213 : vector<8xf32> to vector<8x1xf32>
    %cst_147 = arith.constant 3.200000e+01 : f32
    %215 = vector.broadcast %cst_147 : f32 to vector<8x1xf32>
    %216 = arith.divf %214, %215 : vector<8x1xf32>
    %cst_148 = arith.constant 9.99999974E-6 : f32
    %217 = vector.broadcast %cst_148 : f32 to vector<8x1xf32>
    %218 = arith.addf %216, %217 : vector<8x1xf32>
    %219 = math.rsqrt %218 : vector<8x1xf32>
    %220 = vector.broadcast %219 : vector<8x1xf32> to vector<8x32xf32>
    %221 = arith.mulf %211, %220 : vector<8x32xf32>
    %222 = vector.broadcast %203 : vector<1x32xf32> to vector<8x32xf32>
    %223 = arith.mulf %221, %222 : vector<8x32xf32>
    %224 = vector.broadcast %204 : vector<1x32xf32> to vector<8x32xf32>
    %225 = arith.addf %223, %224 : vector<8x32xf32>
    %c0_149 = arith.constant 0 : index
    %c0_150 = arith.constant 0 : index
    %c0_151 = arith.constant 0 : index
    %226 = vector.load %arg19[%c0_149, %c0_150, %c0_151] : memref<1x8x32xf32, #tpu.memory_space<vmem>>, vector<1x8x32xf32>
    %227 = vector.shape_cast %226 : vector<1x8x32xf32> to vector<8x32xf32>
    %228 = vector.shape_cast %225 : vector<8x32xf32> to vector<1x8x32xf32>
    tpu.vector_store %arg19[%c0_149, %c0_150, %c0_151], %228 {strides = array<i32>} : memref<1x8x32xf32, #tpu.memory_space<vmem>>, vector<1x8x32xf32>,
    return
  }
  func.func @transform_0(%arg0: i32) -> (i32, i32, i32) {
    %c0_i32 = arith.constant 0 : i32
    %c0_i32_0 = arith.constant 0 : i32
    %c0_i32_1 = arith.constant 0 : i32
    return %arg0, %c0_i32, %c0_i32_0 : i32, i32, i32
  }
  func.func @transform_1(%arg0: i32) -> (i32, i32, i32) {
    %c0_i32 = arith.constant 0 : i32
    %c0_i32_0 = arith.constant 0 : i32
    %c0_i32_1 = arith.constant 0 : i32
    return %arg0, %c0_i32, %c0_i32_0 : i32, i32, i32
  }
  func.func @transform_2(%arg0: i32) -> (i32, i32, i32) {
    %c0_i32 = arith.constant 0 : i32
    %c0_i32_0 = arith.constant 0 : i32
    %c0_i32_1 = arith.constant 0 : i32
    %c0_i32_2 = arith.constant 0 : i32
    return %c0_i32, %c0_i32_0, %c0_i32_1 : i32, i32, i32
  }
  func.func @transform_3(%arg0: i32) -> (i32, i32, i32) {
    %c0_i32 = arith.constant 0 : i32
    %c0_i32_0 = arith.constant 0 : i32
    %c0_i32_1 = arith.constant 0 : i32
    %c0_i32_2 = arith.constant 0 : i32
    return %c0_i32, %c0_i32_0, %c0_i32_1 : i32, i32, i32
  }
  func.func @transform_4(%arg0: i32) -> (i32, i32, i32) {
    %c0_i32 = arith.constant 0 : i32
    %c0_i32_0 = arith.constant 0 : i32
    %c0_i32_1 = arith.constant 0 : i32
    %c0_i32_2 = arith.constant 0 : i32
    return %c0_i32, %c0_i32_0, %c0_i32_1 : i32, i32, i32
  }
  func.func @transform_5(%arg0: i32) -> (i32, i32, i32) {
    %c0_i32 = arith.constant 0 : i32
    %c0_i32_0 = arith.constant 0 : i32
    %c0_i32_1 = arith.constant 0 : i32
    %c0_i32_2 = arith.constant 0 : i32
    return %c0_i32, %c0_i32_0, %c0_i32_1 : i32, i32, i32
  }
  func.func @transform_6(%arg0: i32) -> (i32, i32, i32) {
    %c0_i32 = arith.constant 0 : i32
    %c0_i32_0 = arith.constant 0 : i32
    %c0_i32_1 = arith.constant 0 : i32
    %c0_i32_2 = arith.constant 0 : i32
    return %c0_i32, %c0_i32_0, %c0_i32_1 : i32, i32, i32
  }
  func.func @transform_7(%arg0: i32) -> (i32, i32, i32) {
    %c0_i32 = arith.constant 0 : i32
    %c0_i32_0 = arith.constant 0 : i32
    %c0_i32_1 = arith.constant 0 : i32
    %c0_i32_2 = arith.constant 0 : i32
    return %c0_i32, %c0_i32_0, %c0_i32_1 : i32, i32, i32
  }
  func.func @transform_8(%arg0: i32) -> (i32, i32, i32) {
    %c0_i32 = arith.constant 0 : i32
    %c0_i32_0 = arith.constant 0 : i32
    %c0_i32_1 = arith.constant 0 : i32
    %c0_i32_2 = arith.constant 0 : i32
    return %c0_i32, %c0_i32_0, %c0_i32_1 : i32, i32, i32
  }
  func.func @transform_9(%arg0: i32) -> (i32, i32) {
    %c0_i32 = arith.constant 0 : i32
    %c0_i32_0 = arith.constant 0 : i32
    %c0_i32_1 = arith.constant 0 : i32
    return %c0_i32, %c0_i32_0 : i32, i32
  }
  func.func @transform_10(%arg0: i32) -> (i32, i32) {
    %c0_i32 = arith.constant 0 : i32
    %c0_i32_0 = arith.constant 0 : i32
    %c0_i32_1 = arith.constant 0 : i32
    return %c0_i32, %c0_i32_0 : i32, i32
  }
  func.func @transform_11(%arg0: i32) -> (i32, i32) {
    %c0_i32 = arith.constant 0 : i32
    %c0_i32_0 = arith.constant 0 : i32
    %c0_i32_1 = arith.constant 0 : i32
    return %c0_i32, %c0_i32_0 : i32, i32
  }
  func.func @transform_12(%arg0: i32) -> (i32, i32) {
    %c0_i32 = arith.constant 0 : i32
    %c0_i32_0 = arith.constant 0 : i32
    %c0_i32_1 = arith.constant 0 : i32
    return %c0_i32, %c0_i32_0 : i32, i32
  }
  func.func @transform_13(%arg0: i32) -> (i32, i32) {
    %c0_i32 = arith.constant 0 : i32
    %c0_i32_0 = arith.constant 0 : i32
    %c0_i32_1 = arith.constant 0 : i32
    return %c0_i32, %c0_i32_0 : i32, i32
  }
  func.func @transform_14(%arg0: i32) -> (i32, i32) {
    %c0_i32 = arith.constant 0 : i32
    %c0_i32_0 = arith.constant 0 : i32
    %c0_i32_1 = arith.constant 0 : i32
    return %c0_i32, %c0_i32_0 : i32, i32
  }
  func.func @transform_15(%arg0: i32) -> (i32, i32) {
    %c0_i32 = arith.constant 0 : i32
    %c0_i32_0 = arith.constant 0 : i32
    %c0_i32_1 = arith.constant 0 : i32
    return %c0_i32, %c0_i32_0 : i32, i32
  }
  func.func @transform_16(%arg0: i32) -> (i32, i32) {
    %c0_i32 = arith.constant 0 : i32
    %c0_i32_0 = arith.constant 0 : i32
    %c0_i32_1 = arith.constant 0 : i32
    return %c0_i32, %c0_i32_0 : i32, i32
  }
  func.func @transform_17(%arg0: i32) -> (i32, i32) {
    %c0_i32 = arith.constant 0 : i32
    %c0_i32_0 = arith.constant 0 : i32
    %c0_i32_1 = arith.constant 0 : i32
    return %c0_i32, %c0_i32_0 : i32, i32
  }
  func.func @transform_18(%arg0: i32) -> (i32, i32, i32) {
    %c0_i32 = arith.constant 0 : i32
    %c0_i32_0 = arith.constant 0 : i32
    %c0_i32_1 = arith.constant 0 : i32
    return %arg0, %c0_i32, %c0_i32_0 : i32, i32, i32
  }
}

module attributes {stable_mosaic.version = 11 : i64} {
  func.func @_final_linear_kernel(%arg0: i32, %arg1: memref<1x8x32xf32, #tpu.memory_space<vmem>>, %arg2: memref<32x16xf32, #tpu.memory_space<vmem>>, %arg3: memref<1x16xf32, #tpu.memory_space<vmem>>, %arg4: memref<1x8x16xf32, #tpu.memory_space<vmem>>) attributes {dimension_semantics = [#tpu.dimension_semantics<parallel>], iteration_bounds = array<i64: 2>, scalar_prefetch = 0 : i64, scratch_operands = 0 : i64, tpu.core_type = #tpu.core_type<tc>, window_params = [{transform_indices = @transform_0, window_bounds = array<i64: 1, 8, 32>}, {pipeline_mode = #tpu.pipeline_mode<synchronous>, transform_indices = @transform_1, window_bounds = array<i64: 32, 16>}, {pipeline_mode = #tpu.pipeline_mode<synchronous>, transform_indices = @transform_2, window_bounds = array<i64: 1, 16>}, {transform_indices = @transform_3, window_bounds = array<i64: 1, 8, 16>}]} {
    %c0 = arith.constant 0 : index
    %c0_0 = arith.constant 0 : index
    %c0_1 = arith.constant 0 : index
    %0 = vector.load %arg1[%c0, %c0_0, %c0_1] : memref<1x8x32xf32, #tpu.memory_space<vmem>>, vector<1x8x32xf32>
    %1 = vector.shape_cast %0 : vector<1x8x32xf32> to vector<8x32xf32>
    %c0_2 = arith.constant 0 : index
    %c0_3 = arith.constant 0 : index
    %2 = vector.load %arg2[%c0_2, %c0_3] : memref<32x16xf32, #tpu.memory_space<vmem>>, vector<32x16xf32>
    %cst = arith.constant dense<0.000000e+00> : vector<8x16xf32>
    %3 = tpu.matmul %1, %2, %cst {dimension_numbers = #tpu.dot_dimension_numbers<[1], [0], [0], [1], [0, 0, 1, 1], [], []>} : vector<8x32xf32>, vector<32x16xf32>, vector<8x16xf32> -> vector<8x16xf32>
    %c0_4 = arith.constant 0 : index
    %c0_5 = arith.constant 0 : index
    %4 = vector.load %arg3[%c0_4, %c0_5] : memref<1x16xf32, #tpu.memory_space<vmem>>, vector<1x16xf32>
    %5 = vector.broadcast %4 : vector<1x16xf32> to vector<8x16xf32>
    %6 = arith.addf %3, %5 : vector<8x16xf32>
    %c0_6 = arith.constant 0 : index
    %c0_7 = arith.constant 0 : index
    %c0_8 = arith.constant 0 : index
    %7 = vector.load %arg4[%c0_6, %c0_7, %c0_8] : memref<1x8x16xf32, #tpu.memory_space<vmem>>, vector<1x8x16xf32>
    %8 = vector.shape_cast %7 : vector<1x8x16xf32> to vector<8x16xf32>
    %9 = vector.shape_cast %6 : vector<8x16xf32> to vector<1x8x16xf32>
    tpu.vector_store %arg4[%c0_6, %c0_7, %c0_8], %9 {strides = array<i32>} : memref<1x8x16xf32, #tpu.memory_space<vmem>>, vector<1x8x16xf32>,
    return
  }
  func.func @transform_0(%arg0: i32) -> (i32, i32, i32) {
    %c0_i32 = arith.constant 0 : i32
    %c0_i32_0 = arith.constant 0 : i32
    %c0_i32_1 = arith.constant 0 : i32
    return %arg0, %c0_i32, %c0_i32_0 : i32, i32, i32
  }
  func.func @transform_1(%arg0: i32) -> (i32, i32) {
    %c0_i32 = arith.constant 0 : i32
    %c0_i32_0 = arith.constant 0 : i32
    %c0_i32_1 = arith.constant 0 : i32
    return %c0_i32, %c0_i32_0 : i32, i32
  }
  func.func @transform_2(%arg0: i32) -> (i32, i32) {
    %c0_i32 = arith.constant 0 : i32
    %c0_i32_0 = arith.constant 0 : i32
    %c0_i32_1 = arith.constant 0 : i32
    return %c0_i32, %c0_i32_0 : i32, i32
  }
  func.func @transform_3(%arg0: i32) -> (i32, i32, i32) {
    %c0_i32 = arith.constant 0 : i32
    %c0_i32_0 = arith.constant 0 : i32
    %c0_i32_1 = arith.constant 0 : i32
    return %arg0, %c0_i32, %c0_i32_0 : i32, i32, i32
  }
}

module attributes {stable_mosaic.version = 11 : i64} {
  func.func @_decoder_layer_kernel(%arg0: i32, %arg1: memref<1x8x32xf32, #tpu.memory_space<vmem>>, %arg2: memref<1x8x32xf32, #tpu.memory_space<vmem>>, %arg3: memref<8x8xf32, #tpu.memory_space<vmem>>, %arg4: memref<1x1x8xf32, #tpu.memory_space<vmem>>, %arg5: memref<1x1x8xf32, #tpu.memory_space<vmem>>, %arg6: memref<4x32x8xf32, #tpu.memory_space<vmem>>, %arg7: memref<4x1x8xf32, #tpu.memory_space<vmem>>, %arg8: memref<4x32x8xf32, #tpu.memory_space<vmem>>, %arg9: memref<4x1x8xf32, #tpu.memory_space<vmem>>, %arg10: memref<4x32x8xf32, #tpu.memory_space<vmem>>, %arg11: memref<4x1x8xf32, #tpu.memory_space<vmem>>, %arg12: memref<4x8x32xf32, #tpu.memory_space<vmem>>, %arg13: memref<1x32xf32, #tpu.memory_space<vmem>>, %arg14: memref<1x32xf32, #tpu.memory_space<vmem>>, %arg15: memref<1x32xf32, #tpu.memory_space<vmem>>, %arg16: memref<4x32x8xf32, #tpu.memory_space<vmem>>, %arg17: memref<4x1x8xf32, #tpu.memory_space<vmem>>, %arg18: memref<4x32x8xf32, #tpu.memory_space<vmem>>, %arg19: memref<4x1x8xf32, #tpu.memory_space<vmem>>, %arg20: memref<4x32x8xf32, #tpu.memory_space<vmem>>, %arg21: memref<4x1x8xf32, #tpu.memory_space<vmem>>, %arg22: memref<4x8x32xf32, #tpu.memory_space<vmem>>, %arg23: memref<1x32xf32, #tpu.memory_space<vmem>>, %arg24: memref<1x32xf32, #tpu.memory_space<vmem>>, %arg25: memref<1x32xf32, #tpu.memory_space<vmem>>, %arg26: memref<32x64xf32, #tpu.memory_space<vmem>>, %arg27: memref<1x64xf32, #tpu.memory_space<vmem>>, %arg28: memref<64x32xf32, #tpu.memory_space<vmem>>, %arg29: memref<1x32xf32, #tpu.memory_space<vmem>>, %arg30: memref<1x32xf32, #tpu.memory_space<vmem>>, %arg31: memref<1x32xf32, #tpu.memory_space<vmem>>, %arg32: memref<1x8x32xf32, #tpu.memory_space<vmem>>) attributes {dimension_semantics = [#tpu.dimension_semantics<parallel>], iteration_bounds = array<i64: 2>, scalar_prefetch = 0 : i64, scratch_operands = 0 : i64, tpu.core_type = #tpu.core_type<tc>, window_params = [{transform_indices = @transform_0, window_bounds = array<i64: 1, 8, 32>}, {transform_indices = @transform_1, window_bounds = array<i64: 1, 8, 32>}, {pipeline_mode = #tpu.pipeline_mode<synchronous>, transform_indices = @transform_2, window_bounds = array<i64: 8, 8>}, {transform_indices = @transform_3, window_bounds = array<i64: 1, 1, 8>}, {transform_indices = @transform_4, window_bounds = array<i64: 1, 1, 8>}, {pipeline_mode = #tpu.pipeline_mode<synchronous>, transform_indices = @transform_5, window_bounds = array<i64: 4, 32, 8>}, {pipeline_mode = #tpu.pipeline_mode<synchronous>, transform_indices = @transform_6, window_bounds = array<i64: 4, 1, 8>}, {pipeline_mode = #tpu.pipeline_mode<synchronous>, transform_indices = @transform_7, window_bounds = array<i64: 4, 32, 8>}, {pipeline_mode = #tpu.pipeline_mode<synchronous>, transform_indices = @transform_8, window_bounds = array<i64: 4, 1, 8>}, {pipeline_mode = #tpu.pipeline_mode<synchronous>, transform_indices = @transform_9, window_bounds = array<i64: 4, 32, 8>}, {pipeline_mode = #tpu.pipeline_mode<synchronous>, transform_indices = @transform_10, window_bounds = array<i64: 4, 1, 8>}, {pipeline_mode = #tpu.pipeline_mode<synchronous>, transform_indices = @transform_11, window_bounds = array<i64: 4, 8, 32>}, {pipeline_mode = #tpu.pipeline_mode<synchronous>, transform_indices = @transform_12, window_bounds = array<i64: 1, 32>}, {pipeline_mode = #tpu.pipeline_mode<synchronous>, transform_indices = @transform_13, window_bounds = array<i64: 1, 32>}, {pipeline_mode = #tpu.pipeline_mode<synchronous>, transform_indices = @transform_14, window_bounds = array<i64: 1, 32>}, {pipeline_mode = #tpu.pipeline_mode<synchronous>, transform_indices = @transform_15, window_bounds = array<i64: 4, 32, 8>}, {pipeline_mode = #tpu.pipeline_mode<synchronous>, transform_indices = @transform_16, window_bounds = array<i64: 4, 1, 8>}, {pipeline_mode = #tpu.pipeline_mode<synchronous>, transform_indices = @transform_17, window_bounds = array<i64: 4, 32, 8>}, {pipeline_mode = #tpu.pipeline_mode<synchronous>, transform_indices = @transform_18, window_bounds = array<i64: 4, 1, 8>}, {pipeline_mode = #tpu.pipeline_mode<synchronous>, transform_indices = @transform_19, window_bounds = array<i64: 4, 32, 8>}, {pipeline_mode = #tpu.pipeline_mode<synchronous>, transform_indices = @transform_20, window_bounds = array<i64: 4, 1, 8>}, {pipeline_mode = #tpu.pipeline_mode<synchronous>, transform_indices = @transform_21, window_bounds = array<i64: 4, 8, 32>}, {pipeline_mode = #tpu.pipeline_mode<synchronous>, transform_indices = @transform_22, window_bounds = array<i64: 1, 32>}, {pipeline_mode = #tpu.pipeline_mode<synchronous>, transform_indices = @transform_23, window_bounds = array<i64: 1, 32>}, {pipeline_mode = #tpu.pipeline_mode<synchronous>, transform_indices = @transform_24, window_bounds = array<i64: 1, 32>}, {pipeline_mode = #tpu.pipeline_mode<synchronous>, transform_indices = @transform_25, window_bounds = array<i64: 32, 64>}, {pipeline_mode = #tpu.pipeline_mode<synchronous>, transform_indices = @transform_26, window_bounds = array<i64: 1, 64>}, {pipeline_mode = #tpu.pipeline_mode<synchronous>, transform_indices = @transform_27, window_bounds = array<i64: 64, 32>}, {pipeline_mode = #tpu.pipeline_mode<synchronous>, transform_indices = @transform_28, window_bounds = array<i64: 1, 32>}, {pipeline_mode = #tpu.pipeline_mode<synchronous>, transform_indices = @transform_29, window_bounds = array<i64: 1, 32>}, {pipeline_mode = #tpu.pipeline_mode<synchronous>, transform_indices = @transform_30, window_bounds = array<i64: 1, 32>}, {transform_indices = @transform_31, window_bounds = array<i64: 1, 8, 32>}]} {
    %c0 = arith.constant 0 : index
    %c0_0 = arith.constant 0 : index
    %c0_1 = arith.constant 0 : index
    %0 = vector.load %arg1[%c0, %c0_0, %c0_1] : memref<1x8x32xf32, #tpu.memory_space<vmem>>, vector<1x8x32xf32>
    %1 = vector.shape_cast %0 : vector<1x8x32xf32> to vector<8x32xf32>
    %c0_2 = arith.constant 0 : index
    %c0_3 = arith.constant 0 : index
    %c0_4 = arith.constant 0 : index
    %2 = vector.load %arg2[%c0_2, %c0_3, %c0_4] : memref<1x8x32xf32, #tpu.memory_space<vmem>>, vector<1x8x32xf32>
    %3 = vector.shape_cast %2 : vector<1x8x32xf32> to vector<8x32xf32>
    %c0_5 = arith.constant 0 : index
    %c0_6 = arith.constant 0 : index
    %4 = vector.load %arg3[%c0_5, %c0_6] : memref<8x8xf32, #tpu.memory_space<vmem>>, vector<8x8xf32>
    %c0_7 = arith.constant 0 : index
    %c0_8 = arith.constant 0 : index
    %c0_9 = arith.constant 0 : index
    %5 = vector.load %arg4[%c0_7, %c0_8, %c0_9] : memref<1x1x8xf32, #tpu.memory_space<vmem>>, vector<1x1x8xf32>
    %6 = vector.shape_cast %5 : vector<1x1x8xf32> to vector<1x8xf32>
    %cst = arith.constant 0.000000e+00 : f32
    %7 = vector.broadcast %cst : f32 to vector<8x32xf32>
    %c0_10 = arith.constant 0 : index
    %c0_11 = arith.constant 0 : index
    %c0_12 = arith.constant 0 : index
    %8 = vector.load %arg6[%c0_10, %c0_11, %c0_12] : memref<4x32x8xf32, #tpu.memory_space<vmem>>, vector<1x32x8xf32>
    %9 = vector.shape_cast %8 : vector<1x32x8xf32> to vector<32x8xf32>
    %cst_13 = arith.constant dense<0.000000e+00> : vector<8x8xf32>
    %10 = tpu.matmul %1, %9, %cst_13 {dimension_numbers = #tpu.dot_dimension_numbers<[1], [0], [0], [1], [0, 0, 1, 1], [], []>} : vector<8x32xf32>, vector<32x8xf32>, vector<8x8xf32> -> vector<8x8xf32>
    %c0_14 = arith.constant 0 : index
    %c0_15 = arith.constant 0 : index
    %c0_16 = arith.constant 0 : index
    %11 = vector.load %arg7[%c0_14, %c0_15, %c0_16] : memref<4x1x8xf32, #tpu.memory_space<vmem>>, vector<1x1x8xf32>
    %12 = vector.shape_cast %11 : vector<1x1x8xf32> to vector<1x8xf32>
    %13 = vector.broadcast %12 : vector<1x8xf32> to vector<8x8xf32>
    %14 = arith.addf %10, %13 : vector<8x8xf32>
    %c0_17 = arith.constant 0 : index
    %c0_18 = arith.constant 0 : index
    %c0_19 = arith.constant 0 : index
    %15 = vector.load %arg8[%c0_17, %c0_18, %c0_19] : memref<4x32x8xf32, #tpu.memory_space<vmem>>, vector<1x32x8xf32>
    %16 = vector.shape_cast %15 : vector<1x32x8xf32> to vector<32x8xf32>
    %cst_20 = arith.constant dense<0.000000e+00> : vector<8x8xf32>
    %17 = tpu.matmul %1, %16, %cst_20 {dimension_numbers = #tpu.dot_dimension_numbers<[1], [0], [0], [1], [0, 0, 1, 1], [], []>} : vector<8x32xf32>, vector<32x8xf32>, vector<8x8xf32> -> vector<8x8xf32>
    %c0_21 = arith.constant 0 : index
    %c0_22 = arith.constant 0 : index
    %c0_23 = arith.constant 0 : index
    %18 = vector.load %arg9[%c0_21, %c0_22, %c0_23] : memref<4x1x8xf32, #tpu.memory_space<vmem>>, vector<1x1x8xf32>
    %19 = vector.shape_cast %18 : vector<1x1x8xf32> to vector<1x8xf32>
    %20 = vector.broadcast %19 : vector<1x8xf32> to vector<8x8xf32>
    %21 = arith.addf %17, %20 : vector<8x8xf32>
    %c0_24 = arith.constant 0 : index
    %c0_25 = arith.constant 0 : index
    %c0_26 = arith.constant 0 : index
    %22 = vector.load %arg10[%c0_24, %c0_25, %c0_26] : memref<4x32x8xf32, #tpu.memory_space<vmem>>, vector<1x32x8xf32>
    %23 = vector.shape_cast %22 : vector<1x32x8xf32> to vector<32x8xf32>
    %cst_27 = arith.constant dense<0.000000e+00> : vector<8x8xf32>
    %24 = tpu.matmul %1, %23, %cst_27 {dimension_numbers = #tpu.dot_dimension_numbers<[1], [0], [0], [1], [0, 0, 1, 1], [], []>} : vector<8x32xf32>, vector<32x8xf32>, vector<8x8xf32> -> vector<8x8xf32>
    %c0_28 = arith.constant 0 : index
    %c0_29 = arith.constant 0 : index
    %c0_30 = arith.constant 0 : index
    %25 = vector.load %arg11[%c0_28, %c0_29, %c0_30] : memref<4x1x8xf32, #tpu.memory_space<vmem>>, vector<1x1x8xf32>
    %26 = vector.shape_cast %25 : vector<1x1x8xf32> to vector<1x8xf32>
    %27 = vector.broadcast %26 : vector<1x8xf32> to vector<8x8xf32>
    %28 = arith.addf %24, %27 : vector<8x8xf32>
    %29 = tpu.transpose %21, [1, 0] : vector<8x8xf32> -> vector<8x8xf32>
    %cst_31 = arith.constant dense<0.000000e+00> : vector<8x8xf32>
    %30 = tpu.matmul %14, %29, %cst_31 {dimension_numbers = #tpu.dot_dimension_numbers<[1], [0], [0], [1], [0, 0, 1, 1], [], []>} : vector<8x8xf32>, vector<8x8xf32>, vector<8x8xf32> -> vector<8x8xf32>
    %31 = arith.addf %30, %4 : vector<8x8xf32>
    %32 = vector.broadcast %6 : vector<1x8xf32> to vector<8x8xf32>
    %33 = arith.addf %31, %32 : vector<8x8xf32>
    %cst_32 = arith.constant dense<0xFF800000> : vector<8xf32>
    %34 = vector.multi_reduction <maximumf>, %33, %cst_32 [1] : vector<8x8xf32> to vector<8xf32>
    %35 = vector.shape_cast %34 : vector<8xf32> to vector<8x1xf32>
    %36 = vector.broadcast %35 : vector<8x1xf32> to vector<8x8xf32>
    %37 = arith.subf %33, %36 : vector<8x8xf32>
    %38 = math.exp %37 : vector<8x8xf32>
    %cst_33 = arith.constant dense<0.000000e+00> : vector<8xf32>
    %39 = vector.multi_reduction <add>, %38, %cst_33 [1] : vector<8x8xf32> to vector<8xf32>
    %40 = vector.shape_cast %39 : vector<8xf32> to vector<8x1xf32>
    %41 = tpu.reciprocal %40 {approx = true} : vector<8x1xf32> -> vector<8x1xf32>
    %42 = vector.broadcast %41 : vector<8x1xf32> to vector<8x8xf32>
    %43 = arith.mulf %38, %42 : vector<8x8xf32>
    %cst_34 = arith.constant dense<0.000000e+00> : vector<8x8xf32>
    %44 = tpu.matmul %43, %28, %cst_34 {dimension_numbers = #tpu.dot_dimension_numbers<[1], [0], [0], [1], [0, 0, 1, 1], [], []>} : vector<8x8xf32>, vector<8x8xf32>, vector<8x8xf32> -> vector<8x8xf32>
    %c0_35 = arith.constant 0 : index
    %c0_36 = arith.constant 0 : index
    %c0_37 = arith.constant 0 : index
    %45 = vector.load %arg12[%c0_35, %c0_36, %c0_37] : memref<4x8x32xf32, #tpu.memory_space<vmem>>, vector<1x8x32xf32>
    %46 = vector.shape_cast %45 : vector<1x8x32xf32> to vector<8x32xf32>
    %cst_38 = arith.constant dense<0.000000e+00> : vector<8x32xf32>
    %47 = tpu.matmul %44, %46, %cst_38 {dimension_numbers = #tpu.dot_dimension_numbers<[1], [0], [0], [1], [0, 0, 1, 1], [], []>} : vector<8x8xf32>, vector<8x32xf32>, vector<8x32xf32> -> vector<8x32xf32>
    %48 = arith.addf %7, %47 : vector<8x32xf32>
    %c1 = arith.constant 1 : index
    %c0_39 = arith.constant 0 : index
    %c0_40 = arith.constant 0 : index
    %49 = vector.load %arg6[%c1, %c0_39, %c0_40] : memref<4x32x8xf32, #tpu.memory_space<vmem>>, vector<1x32x8xf32>
    %50 = vector.shape_cast %49 : vector<1x32x8xf32> to vector<32x8xf32>
    %cst_41 = arith.constant dense<0.000000e+00> : vector<8x8xf32>
    %51 = tpu.matmul %1, %50, %cst_41 {dimension_numbers = #tpu.dot_dimension_numbers<[1], [0], [0], [1], [0, 0, 1, 1], [], []>} : vector<8x32xf32>, vector<32x8xf32>, vector<8x8xf32> -> vector<8x8xf32>
    %c1_42 = arith.constant 1 : index
    %c0_43 = arith.constant 0 : index
    %c0_44 = arith.constant 0 : index
    %52 = vector.load %arg7[%c1_42, %c0_43, %c0_44] : memref<4x1x8xf32, #tpu.memory_space<vmem>>, vector<1x1x8xf32>
    %53 = vector.shape_cast %52 : vector<1x1x8xf32> to vector<1x8xf32>
    %54 = vector.broadcast %53 : vector<1x8xf32> to vector<8x8xf32>
    %55 = arith.addf %51, %54 : vector<8x8xf32>
    %c1_45 = arith.constant 1 : index
    %c0_46 = arith.constant 0 : index
    %c0_47 = arith.constant 0 : index
    %56 = vector.load %arg8[%c1_45, %c0_46, %c0_47] : memref<4x32x8xf32, #tpu.memory_space<vmem>>, vector<1x32x8xf32>
    %57 = vector.shape_cast %56 : vector<1x32x8xf32> to vector<32x8xf32>
    %cst_48 = arith.constant dense<0.000000e+00> : vector<8x8xf32>
    %58 = tpu.matmul %1, %57, %cst_48 {dimension_numbers = #tpu.dot_dimension_numbers<[1], [0], [0], [1], [0, 0, 1, 1], [], []>} : vector<8x32xf32>, vector<32x8xf32>, vector<8x8xf32> -> vector<8x8xf32>
    %c1_49 = arith.constant 1 : index
    %c0_50 = arith.constant 0 : index
    %c0_51 = arith.constant 0 : index
    %59 = vector.load %arg9[%c1_49, %c0_50, %c0_51] : memref<4x1x8xf32, #tpu.memory_space<vmem>>, vector<1x1x8xf32>
    %60 = vector.shape_cast %59 : vector<1x1x8xf32> to vector<1x8xf32>
    %61 = vector.broadcast %60 : vector<1x8xf32> to vector<8x8xf32>
    %62 = arith.addf %58, %61 : vector<8x8xf32>
    %c1_52 = arith.constant 1 : index
    %c0_53 = arith.constant 0 : index
    %c0_54 = arith.constant 0 : index
    %63 = vector.load %arg10[%c1_52, %c0_53, %c0_54] : memref<4x32x8xf32, #tpu.memory_space<vmem>>, vector<1x32x8xf32>
    %64 = vector.shape_cast %63 : vector<1x32x8xf32> to vector<32x8xf32>
    %cst_55 = arith.constant dense<0.000000e+00> : vector<8x8xf32>
    %65 = tpu.matmul %1, %64, %cst_55 {dimension_numbers = #tpu.dot_dimension_numbers<[1], [0], [0], [1], [0, 0, 1, 1], [], []>} : vector<8x32xf32>, vector<32x8xf32>, vector<8x8xf32> -> vector<8x8xf32>
    %c1_56 = arith.constant 1 : index
    %c0_57 = arith.constant 0 : index
    %c0_58 = arith.constant 0 : index
    %66 = vector.load %arg11[%c1_56, %c0_57, %c0_58] : memref<4x1x8xf32, #tpu.memory_space<vmem>>, vector<1x1x8xf32>
    %67 = vector.shape_cast %66 : vector<1x1x8xf32> to vector<1x8xf32>
    %68 = vector.broadcast %67 : vector<1x8xf32> to vector<8x8xf32>
    %69 = arith.addf %65, %68 : vector<8x8xf32>
    %70 = tpu.transpose %62, [1, 0] : vector<8x8xf32> -> vector<8x8xf32>
    %cst_59 = arith.constant dense<0.000000e+00> : vector<8x8xf32>
    %71 = tpu.matmul %55, %70, %cst_59 {dimension_numbers = #tpu.dot_dimension_numbers<[1], [0], [0], [1], [0, 0, 1, 1], [], []>} : vector<8x8xf32>, vector<8x8xf32>, vector<8x8xf32> -> vector<8x8xf32>
    %72 = arith.addf %71, %4 : vector<8x8xf32>
    %73 = vector.broadcast %6 : vector<1x8xf32> to vector<8x8xf32>
    %74 = arith.addf %72, %73 : vector<8x8xf32>
    %cst_60 = arith.constant dense<0xFF800000> : vector<8xf32>
    %75 = vector.multi_reduction <maximumf>, %74, %cst_60 [1] : vector<8x8xf32> to vector<8xf32>
    %76 = vector.shape_cast %75 : vector<8xf32> to vector<8x1xf32>
    %77 = vector.broadcast %76 : vector<8x1xf32> to vector<8x8xf32>
    %78 = arith.subf %74, %77 : vector<8x8xf32>
    %79 = math.exp %78 : vector<8x8xf32>
    %cst_61 = arith.constant dense<0.000000e+00> : vector<8xf32>
    %80 = vector.multi_reduction <add>, %79, %cst_61 [1] : vector<8x8xf32> to vector<8xf32>
    %81 = vector.shape_cast %80 : vector<8xf32> to vector<8x1xf32>
    %82 = tpu.reciprocal %81 {approx = true} : vector<8x1xf32> -> vector<8x1xf32>
    %83 = vector.broadcast %82 : vector<8x1xf32> to vector<8x8xf32>
    %84 = arith.mulf %79, %83 : vector<8x8xf32>
    %cst_62 = arith.constant dense<0.000000e+00> : vector<8x8xf32>
    %85 = tpu.matmul %84, %69, %cst_62 {dimension_numbers = #tpu.dot_dimension_numbers<[1], [0], [0], [1], [0, 0, 1, 1], [], []>} : vector<8x8xf32>, vector<8x8xf32>, vector<8x8xf32> -> vector<8x8xf32>
    %c1_63 = arith.constant 1 : index
    %c0_64 = arith.constant 0 : index
    %c0_65 = arith.constant 0 : index
    %86 = vector.load %arg12[%c1_63, %c0_64, %c0_65] : memref<4x8x32xf32, #tpu.memory_space<vmem>>, vector<1x8x32xf32>
    %87 = vector.shape_cast %86 : vector<1x8x32xf32> to vector<8x32xf32>
    %cst_66 = arith.constant dense<0.000000e+00> : vector<8x32xf32>
    %88 = tpu.matmul %85, %87, %cst_66 {dimension_numbers = #tpu.dot_dimension_numbers<[1], [0], [0], [1], [0, 0, 1, 1], [], []>} : vector<8x8xf32>, vector<8x32xf32>, vector<8x32xf32> -> vector<8x32xf32>
    %89 = arith.addf %48, %88 : vector<8x32xf32>
    %c2 = arith.constant 2 : index
    %c0_67 = arith.constant 0 : index
    %c0_68 = arith.constant 0 : index
    %90 = vector.load %arg6[%c2, %c0_67, %c0_68] : memref<4x32x8xf32, #tpu.memory_space<vmem>>, vector<1x32x8xf32>
    %91 = vector.shape_cast %90 : vector<1x32x8xf32> to vector<32x8xf32>
    %cst_69 = arith.constant dense<0.000000e+00> : vector<8x8xf32>
    %92 = tpu.matmul %1, %91, %cst_69 {dimension_numbers = #tpu.dot_dimension_numbers<[1], [0], [0], [1], [0, 0, 1, 1], [], []>} : vector<8x32xf32>, vector<32x8xf32>, vector<8x8xf32> -> vector<8x8xf32>
    %c2_70 = arith.constant 2 : index
    %c0_71 = arith.constant 0 : index
    %c0_72 = arith.constant 0 : index
    %93 = vector.load %arg7[%c2_70, %c0_71, %c0_72] : memref<4x1x8xf32, #tpu.memory_space<vmem>>, vector<1x1x8xf32>
    %94 = vector.shape_cast %93 : vector<1x1x8xf32> to vector<1x8xf32>
    %95 = vector.broadcast %94 : vector<1x8xf32> to vector<8x8xf32>
    %96 = arith.addf %92, %95 : vector<8x8xf32>
    %c2_73 = arith.constant 2 : index
    %c0_74 = arith.constant 0 : index
    %c0_75 = arith.constant 0 : index
    %97 = vector.load %arg8[%c2_73, %c0_74, %c0_75] : memref<4x32x8xf32, #tpu.memory_space<vmem>>, vector<1x32x8xf32>
    %98 = vector.shape_cast %97 : vector<1x32x8xf32> to vector<32x8xf32>
    %cst_76 = arith.constant dense<0.000000e+00> : vector<8x8xf32>
    %99 = tpu.matmul %1, %98, %cst_76 {dimension_numbers = #tpu.dot_dimension_numbers<[1], [0], [0], [1], [0, 0, 1, 1], [], []>} : vector<8x32xf32>, vector<32x8xf32>, vector<8x8xf32> -> vector<8x8xf32>
    %c2_77 = arith.constant 2 : index
    %c0_78 = arith.constant 0 : index
    %c0_79 = arith.constant 0 : index
    %100 = vector.load %arg9[%c2_77, %c0_78, %c0_79] : memref<4x1x8xf32, #tpu.memory_space<vmem>>, vector<1x1x8xf32>
    %101 = vector.shape_cast %100 : vector<1x1x8xf32> to vector<1x8xf32>
    %102 = vector.broadcast %101 : vector<1x8xf32> to vector<8x8xf32>
    %103 = arith.addf %99, %102 : vector<8x8xf32>
    %c2_80 = arith.constant 2 : index
    %c0_81 = arith.constant 0 : index
    %c0_82 = arith.constant 0 : index
    %104 = vector.load %arg10[%c2_80, %c0_81, %c0_82] : memref<4x32x8xf32, #tpu.memory_space<vmem>>, vector<1x32x8xf32>
    %105 = vector.shape_cast %104 : vector<1x32x8xf32> to vector<32x8xf32>
    %cst_83 = arith.constant dense<0.000000e+00> : vector<8x8xf32>
    %106 = tpu.matmul %1, %105, %cst_83 {dimension_numbers = #tpu.dot_dimension_numbers<[1], [0], [0], [1], [0, 0, 1, 1], [], []>} : vector<8x32xf32>, vector<32x8xf32>, vector<8x8xf32> -> vector<8x8xf32>
    %c2_84 = arith.constant 2 : index
    %c0_85 = arith.constant 0 : index
    %c0_86 = arith.constant 0 : index
    %107 = vector.load %arg11[%c2_84, %c0_85, %c0_86] : memref<4x1x8xf32, #tpu.memory_space<vmem>>, vector<1x1x8xf32>
    %108 = vector.shape_cast %107 : vector<1x1x8xf32> to vector<1x8xf32>
    %109 = vector.broadcast %108 : vector<1x8xf32> to vector<8x8xf32>
    %110 = arith.addf %106, %109 : vector<8x8xf32>
    %111 = tpu.transpose %103, [1, 0] : vector<8x8xf32> -> vector<8x8xf32>
    %cst_87 = arith.constant dense<0.000000e+00> : vector<8x8xf32>
    %112 = tpu.matmul %96, %111, %cst_87 {dimension_numbers = #tpu.dot_dimension_numbers<[1], [0], [0], [1], [0, 0, 1, 1], [], []>} : vector<8x8xf32>, vector<8x8xf32>, vector<8x8xf32> -> vector<8x8xf32>
    %113 = arith.addf %112, %4 : vector<8x8xf32>
    %114 = vector.broadcast %6 : vector<1x8xf32> to vector<8x8xf32>
    %115 = arith.addf %113, %114 : vector<8x8xf32>
    %cst_88 = arith.constant dense<0xFF800000> : vector<8xf32>
    %116 = vector.multi_reduction <maximumf>, %115, %cst_88 [1] : vector<8x8xf32> to vector<8xf32>
    %117 = vector.shape_cast %116 : vector<8xf32> to vector<8x1xf32>
    %118 = vector.broadcast %117 : vector<8x1xf32> to vector<8x8xf32>
    %119 = arith.subf %115, %118 : vector<8x8xf32>
    %120 = math.exp %119 : vector<8x8xf32>
    %cst_89 = arith.constant dense<0.000000e+00> : vector<8xf32>
    %121 = vector.multi_reduction <add>, %120, %cst_89 [1] : vector<8x8xf32> to vector<8xf32>
    %122 = vector.shape_cast %121 : vector<8xf32> to vector<8x1xf32>
    %123 = tpu.reciprocal %122 {approx = true} : vector<8x1xf32> -> vector<8x1xf32>
    %124 = vector.broadcast %123 : vector<8x1xf32> to vector<8x8xf32>
    %125 = arith.mulf %120, %124 : vector<8x8xf32>
    %cst_90 = arith.constant dense<0.000000e+00> : vector<8x8xf32>
    %126 = tpu.matmul %125, %110, %cst_90 {dimension_numbers = #tpu.dot_dimension_numbers<[1], [0], [0], [1], [0, 0, 1, 1], [], []>} : vector<8x8xf32>, vector<8x8xf32>, vector<8x8xf32> -> vector<8x8xf32>
    %c2_91 = arith.constant 2 : index
    %c0_92 = arith.constant 0 : index
    %c0_93 = arith.constant 0 : index
    %127 = vector.load %arg12[%c2_91, %c0_92, %c0_93] : memref<4x8x32xf32, #tpu.memory_space<vmem>>, vector<1x8x32xf32>
    %128 = vector.shape_cast %127 : vector<1x8x32xf32> to vector<8x32xf32>
    %cst_94 = arith.constant dense<0.000000e+00> : vector<8x32xf32>
    %129 = tpu.matmul %126, %128, %cst_94 {dimension_numbers = #tpu.dot_dimension_numbers<[1], [0], [0], [1], [0, 0, 1, 1], [], []>} : vector<8x8xf32>, vector<8x32xf32>, vector<8x32xf32> -> vector<8x32xf32>
    %130 = arith.addf %89, %129 : vector<8x32xf32>
    %c3 = arith.constant 3 : index
    %c0_95 = arith.constant 0 : index
    %c0_96 = arith.constant 0 : index
    %131 = vector.load %arg6[%c3, %c0_95, %c0_96] : memref<4x32x8xf32, #tpu.memory_space<vmem>>, vector<1x32x8xf32>
    %132 = vector.shape_cast %131 : vector<1x32x8xf32> to vector<32x8xf32>
    %cst_97 = arith.constant dense<0.000000e+00> : vector<8x8xf32>
    %133 = tpu.matmul %1, %132, %cst_97 {dimension_numbers = #tpu.dot_dimension_numbers<[1], [0], [0], [1], [0, 0, 1, 1], [], []>} : vector<8x32xf32>, vector<32x8xf32>, vector<8x8xf32> -> vector<8x8xf32>
    %c3_98 = arith.constant 3 : index
    %c0_99 = arith.constant 0 : index
    %c0_100 = arith.constant 0 : index
    %134 = vector.load %arg7[%c3_98, %c0_99, %c0_100] : memref<4x1x8xf32, #tpu.memory_space<vmem>>, vector<1x1x8xf32>
    %135 = vector.shape_cast %134 : vector<1x1x8xf32> to vector<1x8xf32>
    %136 = vector.broadcast %135 : vector<1x8xf32> to vector<8x8xf32>
    %137 = arith.addf %133, %136 : vector<8x8xf32>
    %c3_101 = arith.constant 3 : index
    %c0_102 = arith.constant 0 : index
    %c0_103 = arith.constant 0 : index
    %138 = vector.load %arg8[%c3_101, %c0_102, %c0_103] : memref<4x32x8xf32, #tpu.memory_space<vmem>>, vector<1x32x8xf32>
    %139 = vector.shape_cast %138 : vector<1x32x8xf32> to vector<32x8xf32>
    %cst_104 = arith.constant dense<0.000000e+00> : vector<8x8xf32>
    %140 = tpu.matmul %1, %139, %cst_104 {dimension_numbers = #tpu.dot_dimension_numbers<[1], [0], [0], [1], [0, 0, 1, 1], [], []>} : vector<8x32xf32>, vector<32x8xf32>, vector<8x8xf32> -> vector<8x8xf32>
    %c3_105 = arith.constant 3 : index
    %c0_106 = arith.constant 0 : index
    %c0_107 = arith.constant 0 : index
    %141 = vector.load %arg9[%c3_105, %c0_106, %c0_107] : memref<4x1x8xf32, #tpu.memory_space<vmem>>, vector<1x1x8xf32>
    %142 = vector.shape_cast %141 : vector<1x1x8xf32> to vector<1x8xf32>
    %143 = vector.broadcast %142 : vector<1x8xf32> to vector<8x8xf32>
    %144 = arith.addf %140, %143 : vector<8x8xf32>
    %c3_108 = arith.constant 3 : index
    %c0_109 = arith.constant 0 : index
    %c0_110 = arith.constant 0 : index
    %145 = vector.load %arg10[%c3_108, %c0_109, %c0_110] : memref<4x32x8xf32, #tpu.memory_space<vmem>>, vector<1x32x8xf32>
    %146 = vector.shape_cast %145 : vector<1x32x8xf32> to vector<32x8xf32>
    %cst_111 = arith.constant dense<0.000000e+00> : vector<8x8xf32>
    %147 = tpu.matmul %1, %146, %cst_111 {dimension_numbers = #tpu.dot_dimension_numbers<[1], [0], [0], [1], [0, 0, 1, 1], [], []>} : vector<8x32xf32>, vector<32x8xf32>, vector<8x8xf32> -> vector<8x8xf32>
    %c3_112 = arith.constant 3 : index
    %c0_113 = arith.constant 0 : index
    %c0_114 = arith.constant 0 : index
    %148 = vector.load %arg11[%c3_112, %c0_113, %c0_114] : memref<4x1x8xf32, #tpu.memory_space<vmem>>, vector<1x1x8xf32>
    %149 = vector.shape_cast %148 : vector<1x1x8xf32> to vector<1x8xf32>
    %150 = vector.broadcast %149 : vector<1x8xf32> to vector<8x8xf32>
    %151 = arith.addf %147, %150 : vector<8x8xf32>
    %152 = tpu.transpose %144, [1, 0] : vector<8x8xf32> -> vector<8x8xf32>
    %cst_115 = arith.constant dense<0.000000e+00> : vector<8x8xf32>
    %153 = tpu.matmul %137, %152, %cst_115 {dimension_numbers = #tpu.dot_dimension_numbers<[1], [0], [0], [1], [0, 0, 1, 1], [], []>} : vector<8x8xf32>, vector<8x8xf32>, vector<8x8xf32> -> vector<8x8xf32>
    %154 = arith.addf %153, %4 : vector<8x8xf32>
    %155 = vector.broadcast %6 : vector<1x8xf32> to vector<8x8xf32>
    %156 = arith.addf %154, %155 : vector<8x8xf32>
    %cst_116 = arith.constant dense<0xFF800000> : vector<8xf32>
    %157 = vector.multi_reduction <maximumf>, %156, %cst_116 [1] : vector<8x8xf32> to vector<8xf32>
    %158 = vector.shape_cast %157 : vector<8xf32> to vector<8x1xf32>
    %159 = vector.broadcast %158 : vector<8x1xf32> to vector<8x8xf32>
    %160 = arith.subf %156, %159 : vector<8x8xf32>
    %161 = math.exp %160 : vector<8x8xf32>
    %cst_117 = arith.constant dense<0.000000e+00> : vector<8xf32>
    %162 = vector.multi_reduction <add>, %161, %cst_117 [1] : vector<8x8xf32> to vector<8xf32>
    %163 = vector.shape_cast %162 : vector<8xf32> to vector<8x1xf32>
    %164 = tpu.reciprocal %163 {approx = true} : vector<8x1xf32> -> vector<8x1xf32>
    %165 = vector.broadcast %164 : vector<8x1xf32> to vector<8x8xf32>
    %166 = arith.mulf %161, %165 : vector<8x8xf32>
    %cst_118 = arith.constant dense<0.000000e+00> : vector<8x8xf32>
    %167 = tpu.matmul %166, %151, %cst_118 {dimension_numbers = #tpu.dot_dimension_numbers<[1], [0], [0], [1], [0, 0, 1, 1], [], []>} : vector<8x8xf32>, vector<8x8xf32>, vector<8x8xf32> -> vector<8x8xf32>
    %c3_119 = arith.constant 3 : index
    %c0_120 = arith.constant 0 : index
    %c0_121 = arith.constant 0 : index
    %168 = vector.load %arg12[%c3_119, %c0_120, %c0_121] : memref<4x8x32xf32, #tpu.memory_space<vmem>>, vector<1x8x32xf32>
    %169 = vector.shape_cast %168 : vector<1x8x32xf32> to vector<8x32xf32>
    %cst_122 = arith.constant dense<0.000000e+00> : vector<8x32xf32>
    %170 = tpu.matmul %167, %169, %cst_122 {dimension_numbers = #tpu.dot_dimension_numbers<[1], [0], [0], [1], [0, 0, 1, 1], [], []>} : vector<8x8xf32>, vector<8x32xf32>, vector<8x32xf32> -> vector<8x32xf32>
    %171 = arith.addf %130, %170 : vector<8x32xf32>
    %c0_123 = arith.constant 0 : index
    %c0_124 = arith.constant 0 : index
    %172 = vector.load %arg13[%c0_123, %c0_124] : memref<1x32xf32, #tpu.memory_space<vmem>>, vector<1x32xf32>
    %173 = vector.broadcast %172 : vector<1x32xf32> to vector<8x32xf32>
    %174 = arith.addf %171, %173 : vector<8x32xf32>
    %c0_125 = arith.constant 0 : index
    %c0_126 = arith.constant 0 : index
    %175 = vector.load %arg14[%c0_125, %c0_126] : memref<1x32xf32, #tpu.memory_space<vmem>>, vector<1x32xf32>
    %c0_127 = arith.constant 0 : index
    %c0_128 = arith.constant 0 : index
    %176 = vector.load %arg15[%c0_127, %c0_128] : memref<1x32xf32, #tpu.memory_space<vmem>>, vector<1x32xf32>
    %177 = arith.addf %1, %174 : vector<8x32xf32>
    %cst_129 = arith.constant dense<0.000000e+00> : vector<8xf32>
    %178 = vector.multi_reduction <add>, %177, %cst_129 [1] : vector<8x32xf32> to vector<8xf32>
    %179 = vector.shape_cast %178 : vector<8xf32> to vector<8x1xf32>
    %cst_130 = arith.constant 3.200000e+01 : f32
    %180 = vector.broadcast %cst_130 : f32 to vector<8x1xf32>
    %181 = arith.divf %179, %180 : vector<8x1xf32>
    %182 = vector.broadcast %181 : vector<8x1xf32> to vector<8x32xf32>
    %183 = arith.subf %177, %182 : vector<8x32xf32>
    %184 = arith.mulf %183, %183 : vector<8x32xf32>
    %cst_131 = arith.constant dense<0.000000e+00> : vector<8xf32>
    %185 = vector.multi_reduction <add>, %184, %cst_131 [1] : vector<8x32xf32> to vector<8xf32>
    %186 = vector.shape_cast %185 : vector<8xf32> to vector<8x1xf32>
    %cst_132 = arith.constant 3.200000e+01 : f32
    %187 = vector.broadcast %cst_132 : f32 to vector<8x1xf32>
    %188 = arith.divf %186, %187 : vector<8x1xf32>
    %cst_133 = arith.constant 9.99999974E-6 : f32
    %189 = vector.broadcast %cst_133 : f32 to vector<8x1xf32>
    %190 = arith.addf %188, %189 : vector<8x1xf32>
    %191 = math.rsqrt %190 : vector<8x1xf32>
    %192 = vector.broadcast %191 : vector<8x1xf32> to vector<8x32xf32>
    %193 = arith.mulf %183, %192 : vector<8x32xf32>
    %194 = vector.broadcast %175 : vector<1x32xf32> to vector<8x32xf32>
    %195 = arith.mulf %193, %194 : vector<8x32xf32>
    %196 = vector.broadcast %176 : vector<1x32xf32> to vector<8x32xf32>
    %197 = arith.addf %195, %196 : vector<8x32xf32>
    %c0_134 = arith.constant 0 : index
    %c0_135 = arith.constant 0 : index
    %c0_136 = arith.constant 0 : index
    %198 = vector.load %arg5[%c0_134, %c0_135, %c0_136] : memref<1x1x8xf32, #tpu.memory_space<vmem>>, vector<1x1x8xf32>
    %199 = vector.shape_cast %198 : vector<1x1x8xf32> to vector<1x8xf32>
    %cst_137 = arith.constant 0.000000e+00 : f32
    %200 = vector.broadcast %cst_137 : f32 to vector<8x32xf32>
    %c0_138 = arith.constant 0 : index
    %c0_139 = arith.constant 0 : index
    %c0_140 = arith.constant 0 : index
    %201 = vector.load %arg16[%c0_138, %c0_139, %c0_140] : memref<4x32x8xf32, #tpu.memory_space<vmem>>, vector<1x32x8xf32>
    %202 = vector.shape_cast %201 : vector<1x32x8xf32> to vector<32x8xf32>
    %cst_141 = arith.constant dense<0.000000e+00> : vector<8x8xf32>
    %203 = tpu.matmul %197, %202, %cst_141 {dimension_numbers = #tpu.dot_dimension_numbers<[1], [0], [0], [1], [0, 0, 1, 1], [], []>} : vector<8x32xf32>, vector<32x8xf32>, vector<8x8xf32> -> vector<8x8xf32>
    %c0_142 = arith.constant 0 : index
    %c0_143 = arith.constant 0 : index
    %c0_144 = arith.constant 0 : index
    %204 = vector.load %arg17[%c0_142, %c0_143, %c0_144] : memref<4x1x8xf32, #tpu.memory_space<vmem>>, vector<1x1x8xf32>
    %205 = vector.shape_cast %204 : vector<1x1x8xf32> to vector<1x8xf32>
    %206 = vector.broadcast %205 : vector<1x8xf32> to vector<8x8xf32>
    %207 = arith.addf %203, %206 : vector<8x8xf32>
    %c0_145 = arith.constant 0 : index
    %c0_146 = arith.constant 0 : index
    %c0_147 = arith.constant 0 : index
    %208 = vector.load %arg18[%c0_145, %c0_146, %c0_147] : memref<4x32x8xf32, #tpu.memory_space<vmem>>, vector<1x32x8xf32>
    %209 = vector.shape_cast %208 : vector<1x32x8xf32> to vector<32x8xf32>
    %cst_148 = arith.constant dense<0.000000e+00> : vector<8x8xf32>
    %210 = tpu.matmul %3, %209, %cst_148 {dimension_numbers = #tpu.dot_dimension_numbers<[1], [0], [0], [1], [0, 0, 1, 1], [], []>} : vector<8x32xf32>, vector<32x8xf32>, vector<8x8xf32> -> vector<8x8xf32>
    %c0_149 = arith.constant 0 : index
    %c0_150 = arith.constant 0 : index
    %c0_151 = arith.constant 0 : index
    %211 = vector.load %arg19[%c0_149, %c0_150, %c0_151] : memref<4x1x8xf32, #tpu.memory_space<vmem>>, vector<1x1x8xf32>
    %212 = vector.shape_cast %211 : vector<1x1x8xf32> to vector<1x8xf32>
    %213 = vector.broadcast %212 : vector<1x8xf32> to vector<8x8xf32>
    %214 = arith.addf %210, %213 : vector<8x8xf32>
    %c0_152 = arith.constant 0 : index
    %c0_153 = arith.constant 0 : index
    %c0_154 = arith.constant 0 : index
    %215 = vector.load %arg20[%c0_152, %c0_153, %c0_154] : memref<4x32x8xf32, #tpu.memory_space<vmem>>, vector<1x32x8xf32>
    %216 = vector.shape_cast %215 : vector<1x32x8xf32> to vector<32x8xf32>
    %cst_155 = arith.constant dense<0.000000e+00> : vector<8x8xf32>
    %217 = tpu.matmul %3, %216, %cst_155 {dimension_numbers = #tpu.dot_dimension_numbers<[1], [0], [0], [1], [0, 0, 1, 1], [], []>} : vector<8x32xf32>, vector<32x8xf32>, vector<8x8xf32> -> vector<8x8xf32>
    %c0_156 = arith.constant 0 : index
    %c0_157 = arith.constant 0 : index
    %c0_158 = arith.constant 0 : index
    %218 = vector.load %arg21[%c0_156, %c0_157, %c0_158] : memref<4x1x8xf32, #tpu.memory_space<vmem>>, vector<1x1x8xf32>
    %219 = vector.shape_cast %218 : vector<1x1x8xf32> to vector<1x8xf32>
    %220 = vector.broadcast %219 : vector<1x8xf32> to vector<8x8xf32>
    %221 = arith.addf %217, %220 : vector<8x8xf32>
    %222 = tpu.transpose %214, [1, 0] : vector<8x8xf32> -> vector<8x8xf32>
    %cst_159 = arith.constant dense<0.000000e+00> : vector<8x8xf32>
    %223 = tpu.matmul %207, %222, %cst_159 {dimension_numbers = #tpu.dot_dimension_numbers<[1], [0], [0], [1], [0, 0, 1, 1], [], []>} : vector<8x8xf32>, vector<8x8xf32>, vector<8x8xf32> -> vector<8x8xf32>
    %224 = vector.broadcast %199 : vector<1x8xf32> to vector<8x8xf32>
    %225 = arith.addf %223, %224 : vector<8x8xf32>
    %cst_160 = arith.constant dense<0xFF800000> : vector<8xf32>
    %226 = vector.multi_reduction <maximumf>, %225, %cst_160 [1] : vector<8x8xf32> to vector<8xf32>
    %227 = vector.shape_cast %226 : vector<8xf32> to vector<8x1xf32>
    %228 = vector.broadcast %227 : vector<8x1xf32> to vector<8x8xf32>
    %229 = arith.subf %225, %228 : vector<8x8xf32>
    %230 = math.exp %229 : vector<8x8xf32>
    %cst_161 = arith.constant dense<0.000000e+00> : vector<8xf32>
    %231 = vector.multi_reduction <add>, %230, %cst_161 [1] : vector<8x8xf32> to vector<8xf32>
    %232 = vector.shape_cast %231 : vector<8xf32> to vector<8x1xf32>
    %233 = tpu.reciprocal %232 {approx = true} : vector<8x1xf32> -> vector<8x1xf32>
    %234 = vector.broadcast %233 : vector<8x1xf32> to vector<8x8xf32>
    %235 = arith.mulf %230, %234 : vector<8x8xf32>
    %cst_162 = arith.constant dense<0.000000e+00> : vector<8x8xf32>
    %236 = tpu.matmul %235, %221, %cst_162 {dimension_numbers = #tpu.dot_dimension_numbers<[1], [0], [0], [1], [0, 0, 1, 1], [], []>} : vector<8x8xf32>, vector<8x8xf32>, vector<8x8xf32> -> vector<8x8xf32>
    %c0_163 = arith.constant 0 : index
    %c0_164 = arith.constant 0 : index
    %c0_165 = arith.constant 0 : index
    %237 = vector.load %arg22[%c0_163, %c0_164, %c0_165] : memref<4x8x32xf32, #tpu.memory_space<vmem>>, vector<1x8x32xf32>
    %238 = vector.shape_cast %237 : vector<1x8x32xf32> to vector<8x32xf32>
    %cst_166 = arith.constant dense<0.000000e+00> : vector<8x32xf32>
    %239 = tpu.matmul %236, %238, %cst_166 {dimension_numbers = #tpu.dot_dimension_numbers<[1], [0], [0], [1], [0, 0, 1, 1], [], []>} : vector<8x8xf32>, vector<8x32xf32>, vector<8x32xf32> -> vector<8x32xf32>
    %240 = arith.addf %200, %239 : vector<8x32xf32>
    %c1_167 = arith.constant 1 : index
    %c0_168 = arith.constant 0 : index
    %c0_169 = arith.constant 0 : index
    %241 = vector.load %arg16[%c1_167, %c0_168, %c0_169] : memref<4x32x8xf32, #tpu.memory_space<vmem>>, vector<1x32x8xf32>
    %242 = vector.shape_cast %241 : vector<1x32x8xf32> to vector<32x8xf32>
    %cst_170 = arith.constant dense<0.000000e+00> : vector<8x8xf32>
    %243 = tpu.matmul %197, %242, %cst_170 {dimension_numbers = #tpu.dot_dimension_numbers<[1], [0], [0], [1], [0, 0, 1, 1], [], []>} : vector<8x32xf32>, vector<32x8xf32>, vector<8x8xf32> -> vector<8x8xf32>
    %c1_171 = arith.constant 1 : index
    %c0_172 = arith.constant 0 : index
    %c0_173 = arith.constant 0 : index
    %244 = vector.load %arg17[%c1_171, %c0_172, %c0_173] : memref<4x1x8xf32, #tpu.memory_space<vmem>>, vector<1x1x8xf32>
    %245 = vector.shape_cast %244 : vector<1x1x8xf32> to vector<1x8xf32>
    %246 = vector.broadcast %245 : vector<1x8xf32> to vector<8x8xf32>
    %247 = arith.addf %243, %246 : vector<8x8xf32>
    %c1_174 = arith.constant 1 : index
    %c0_175 = arith.constant 0 : index
    %c0_176 = arith.constant 0 : index
    %248 = vector.load %arg18[%c1_174, %c0_175, %c0_176] : memref<4x32x8xf32, #tpu.memory_space<vmem>>, vector<1x32x8xf32>
    %249 = vector.shape_cast %248 : vector<1x32x8xf32> to vector<32x8xf32>
    %cst_177 = arith.constant dense<0.000000e+00> : vector<8x8xf32>
    %250 = tpu.matmul %3, %249, %cst_177 {dimension_numbers = #tpu.dot_dimension_numbers<[1], [0], [0], [1], [0, 0, 1, 1], [], []>} : vector<8x32xf32>, vector<32x8xf32>, vector<8x8xf32> -> vector<8x8xf32>
    %c1_178 = arith.constant 1 : index
    %c0_179 = arith.constant 0 : index
    %c0_180 = arith.constant 0 : index
    %251 = vector.load %arg19[%c1_178, %c0_179, %c0_180] : memref<4x1x8xf32, #tpu.memory_space<vmem>>, vector<1x1x8xf32>
    %252 = vector.shape_cast %251 : vector<1x1x8xf32> to vector<1x8xf32>
    %253 = vector.broadcast %252 : vector<1x8xf32> to vector<8x8xf32>
    %254 = arith.addf %250, %253 : vector<8x8xf32>
    %c1_181 = arith.constant 1 : index
    %c0_182 = arith.constant 0 : index
    %c0_183 = arith.constant 0 : index
    %255 = vector.load %arg20[%c1_181, %c0_182, %c0_183] : memref<4x32x8xf32, #tpu.memory_space<vmem>>, vector<1x32x8xf32>
    %256 = vector.shape_cast %255 : vector<1x32x8xf32> to vector<32x8xf32>
    %cst_184 = arith.constant dense<0.000000e+00> : vector<8x8xf32>
    %257 = tpu.matmul %3, %256, %cst_184 {dimension_numbers = #tpu.dot_dimension_numbers<[1], [0], [0], [1], [0, 0, 1, 1], [], []>} : vector<8x32xf32>, vector<32x8xf32>, vector<8x8xf32> -> vector<8x8xf32>
    %c1_185 = arith.constant 1 : index
    %c0_186 = arith.constant 0 : index
    %c0_187 = arith.constant 0 : index
    %258 = vector.load %arg21[%c1_185, %c0_186, %c0_187] : memref<4x1x8xf32, #tpu.memory_space<vmem>>, vector<1x1x8xf32>
    %259 = vector.shape_cast %258 : vector<1x1x8xf32> to vector<1x8xf32>
    %260 = vector.broadcast %259 : vector<1x8xf32> to vector<8x8xf32>
    %261 = arith.addf %257, %260 : vector<8x8xf32>
    %262 = tpu.transpose %254, [1, 0] : vector<8x8xf32> -> vector<8x8xf32>
    %cst_188 = arith.constant dense<0.000000e+00> : vector<8x8xf32>
    %263 = tpu.matmul %247, %262, %cst_188 {dimension_numbers = #tpu.dot_dimension_numbers<[1], [0], [0], [1], [0, 0, 1, 1], [], []>} : vector<8x8xf32>, vector<8x8xf32>, vector<8x8xf32> -> vector<8x8xf32>
    %264 = vector.broadcast %199 : vector<1x8xf32> to vector<8x8xf32>
    %265 = arith.addf %263, %264 : vector<8x8xf32>
    %cst_189 = arith.constant dense<0xFF800000> : vector<8xf32>
    %266 = vector.multi_reduction <maximumf>, %265, %cst_189 [1] : vector<8x8xf32> to vector<8xf32>
    %267 = vector.shape_cast %266 : vector<8xf32> to vector<8x1xf32>
    %268 = vector.broadcast %267 : vector<8x1xf32> to vector<8x8xf32>
    %269 = arith.subf %265, %268 : vector<8x8xf32>
    %270 = math.exp %269 : vector<8x8xf32>
    %cst_190 = arith.constant dense<0.000000e+00> : vector<8xf32>
    %271 = vector.multi_reduction <add>, %270, %cst_190 [1] : vector<8x8xf32> to vector<8xf32>
    %272 = vector.shape_cast %271 : vector<8xf32> to vector<8x1xf32>
    %273 = tpu.reciprocal %272 {approx = true} : vector<8x1xf32> -> vector<8x1xf32>
    %274 = vector.broadcast %273 : vector<8x1xf32> to vector<8x8xf32>
    %275 = arith.mulf %270, %274 : vector<8x8xf32>
    %cst_191 = arith.constant dense<0.000000e+00> : vector<8x8xf32>
    %276 = tpu.matmul %275, %261, %cst_191 {dimension_numbers = #tpu.dot_dimension_numbers<[1], [0], [0], [1], [0, 0, 1, 1], [], []>} : vector<8x8xf32>, vector<8x8xf32>, vector<8x8xf32> -> vector<8x8xf32>
    %c1_192 = arith.constant 1 : index
    %c0_193 = arith.constant 0 : index
    %c0_194 = arith.constant 0 : index
    %277 = vector.load %arg22[%c1_192, %c0_193, %c0_194] : memref<4x8x32xf32, #tpu.memory_space<vmem>>, vector<1x8x32xf32>
    %278 = vector.shape_cast %277 : vector<1x8x32xf32> to vector<8x32xf32>
    %cst_195 = arith.constant dense<0.000000e+00> : vector<8x32xf32>
    %279 = tpu.matmul %276, %278, %cst_195 {dimension_numbers = #tpu.dot_dimension_numbers<[1], [0], [0], [1], [0, 0, 1, 1], [], []>} : vector<8x8xf32>, vector<8x32xf32>, vector<8x32xf32> -> vector<8x32xf32>
    %280 = arith.addf %240, %279 : vector<8x32xf32>
    %c2_196 = arith.constant 2 : index
    %c0_197 = arith.constant 0 : index
    %c0_198 = arith.constant 0 : index
    %281 = vector.load %arg16[%c2_196, %c0_197, %c0_198] : memref<4x32x8xf32, #tpu.memory_space<vmem>>, vector<1x32x8xf32>
    %282 = vector.shape_cast %281 : vector<1x32x8xf32> to vector<32x8xf32>
    %cst_199 = arith.constant dense<0.000000e+00> : vector<8x8xf32>
    %283 = tpu.matmul %197, %282, %cst_199 {dimension_numbers = #tpu.dot_dimension_numbers<[1], [0], [0], [1], [0, 0, 1, 1], [], []>} : vector<8x32xf32>, vector<32x8xf32>, vector<8x8xf32> -> vector<8x8xf32>
    %c2_200 = arith.constant 2 : index
    %c0_201 = arith.constant 0 : index
    %c0_202 = arith.constant 0 : index
    %284 = vector.load %arg17[%c2_200, %c0_201, %c0_202] : memref<4x1x8xf32, #tpu.memory_space<vmem>>, vector<1x1x8xf32>
    %285 = vector.shape_cast %284 : vector<1x1x8xf32> to vector<1x8xf32>
    %286 = vector.broadcast %285 : vector<1x8xf32> to vector<8x8xf32>
    %287 = arith.addf %283, %286 : vector<8x8xf32>
    %c2_203 = arith.constant 2 : index
    %c0_204 = arith.constant 0 : index
    %c0_205 = arith.constant 0 : index
    %288 = vector.load %arg18[%c2_203, %c0_204, %c0_205] : memref<4x32x8xf32, #tpu.memory_space<vmem>>, vector<1x32x8xf32>
    %289 = vector.shape_cast %288 : vector<1x32x8xf32> to vector<32x8xf32>
    %cst_206 = arith.constant dense<0.000000e+00> : vector<8x8xf32>
    %290 = tpu.matmul %3, %289, %cst_206 {dimension_numbers = #tpu.dot_dimension_numbers<[1], [0], [0], [1], [0, 0, 1, 1], [], []>} : vector<8x32xf32>, vector<32x8xf32>, vector<8x8xf32> -> vector<8x8xf32>
    %c2_207 = arith.constant 2 : index
    %c0_208 = arith.constant 0 : index
    %c0_209 = arith.constant 0 : index
    %291 = vector.load %arg19[%c2_207, %c0_208, %c0_209] : memref<4x1x8xf32, #tpu.memory_space<vmem>>, vector<1x1x8xf32>
    %292 = vector.shape_cast %291 : vector<1x1x8xf32> to vector<1x8xf32>
    %293 = vector.broadcast %292 : vector<1x8xf32> to vector<8x8xf32>
    %294 = arith.addf %290, %293 : vector<8x8xf32>
    %c2_210 = arith.constant 2 : index
    %c0_211 = arith.constant 0 : index
    %c0_212 = arith.constant 0 : index
    %295 = vector.load %arg20[%c2_210, %c0_211, %c0_212] : memref<4x32x8xf32, #tpu.memory_space<vmem>>, vector<1x32x8xf32>
    %296 = vector.shape_cast %295 : vector<1x32x8xf32> to vector<32x8xf32>
    %cst_213 = arith.constant dense<0.000000e+00> : vector<8x8xf32>
    %297 = tpu.matmul %3, %296, %cst_213 {dimension_numbers = #tpu.dot_dimension_numbers<[1], [0], [0], [1], [0, 0, 1, 1], [], []>} : vector<8x32xf32>, vector<32x8xf32>, vector<8x8xf32> -> vector<8x8xf32>
    %c2_214 = arith.constant 2 : index
    %c0_215 = arith.constant 0 : index
    %c0_216 = arith.constant 0 : index
    %298 = vector.load %arg21[%c2_214, %c0_215, %c0_216] : memref<4x1x8xf32, #tpu.memory_space<vmem>>, vector<1x1x8xf32>
    %299 = vector.shape_cast %298 : vector<1x1x8xf32> to vector<1x8xf32>
    %300 = vector.broadcast %299 : vector<1x8xf32> to vector<8x8xf32>
    %301 = arith.addf %297, %300 : vector<8x8xf32>
    %302 = tpu.transpose %294, [1, 0] : vector<8x8xf32> -> vector<8x8xf32>
    %cst_217 = arith.constant dense<0.000000e+00> : vector<8x8xf32>
    %303 = tpu.matmul %287, %302, %cst_217 {dimension_numbers = #tpu.dot_dimension_numbers<[1], [0], [0], [1], [0, 0, 1, 1], [], []>} : vector<8x8xf32>, vector<8x8xf32>, vector<8x8xf32> -> vector<8x8xf32>
    %304 = vector.broadcast %199 : vector<1x8xf32> to vector<8x8xf32>
    %305 = arith.addf %303, %304 : vector<8x8xf32>
    %cst_218 = arith.constant dense<0xFF800000> : vector<8xf32>
    %306 = vector.multi_reduction <maximumf>, %305, %cst_218 [1] : vector<8x8xf32> to vector<8xf32>
    %307 = vector.shape_cast %306 : vector<8xf32> to vector<8x1xf32>
    %308 = vector.broadcast %307 : vector<8x1xf32> to vector<8x8xf32>
    %309 = arith.subf %305, %308 : vector<8x8xf32>
    %310 = math.exp %309 : vector<8x8xf32>
    %cst_219 = arith.constant dense<0.000000e+00> : vector<8xf32>
    %311 = vector.multi_reduction <add>, %310, %cst_219 [1] : vector<8x8xf32> to vector<8xf32>
    %312 = vector.shape_cast %311 : vector<8xf32> to vector<8x1xf32>
    %313 = tpu.reciprocal %312 {approx = true} : vector<8x1xf32> -> vector<8x1xf32>
    %314 = vector.broadcast %313 : vector<8x1xf32> to vector<8x8xf32>
    %315 = arith.mulf %310, %314 : vector<8x8xf32>
    %cst_220 = arith.constant dense<0.000000e+00> : vector<8x8xf32>
    %316 = tpu.matmul %315, %301, %cst_220 {dimension_numbers = #tpu.dot_dimension_numbers<[1], [0], [0], [1], [0, 0, 1, 1], [], []>} : vector<8x8xf32>, vector<8x8xf32>, vector<8x8xf32> -> vector<8x8xf32>
    %c2_221 = arith.constant 2 : index
    %c0_222 = arith.constant 0 : index
    %c0_223 = arith.constant 0 : index
    %317 = vector.load %arg22[%c2_221, %c0_222, %c0_223] : memref<4x8x32xf32, #tpu.memory_space<vmem>>, vector<1x8x32xf32>
    %318 = vector.shape_cast %317 : vector<1x8x32xf32> to vector<8x32xf32>
    %cst_224 = arith.constant dense<0.000000e+00> : vector<8x32xf32>
    %319 = tpu.matmul %316, %318, %cst_224 {dimension_numbers = #tpu.dot_dimension_numbers<[1], [0], [0], [1], [0, 0, 1, 1], [], []>} : vector<8x8xf32>, vector<8x32xf32>, vector<8x32xf32> -> vector<8x32xf32>
    %320 = arith.addf %280, %319 : vector<8x32xf32>
    %c3_225 = arith.constant 3 : index
    %c0_226 = arith.constant 0 : index
    %c0_227 = arith.constant 0 : index
    %321 = vector.load %arg16[%c3_225, %c0_226, %c0_227] : memref<4x32x8xf32, #tpu.memory_space<vmem>>, vector<1x32x8xf32>
    %322 = vector.shape_cast %321 : vector<1x32x8xf32> to vector<32x8xf32>
    %cst_228 = arith.constant dense<0.000000e+00> : vector<8x8xf32>
    %323 = tpu.matmul %197, %322, %cst_228 {dimension_numbers = #tpu.dot_dimension_numbers<[1], [0], [0], [1], [0, 0, 1, 1], [], []>} : vector<8x32xf32>, vector<32x8xf32>, vector<8x8xf32> -> vector<8x8xf32>
    %c3_229 = arith.constant 3 : index
    %c0_230 = arith.constant 0 : index
    %c0_231 = arith.constant 0 : index
    %324 = vector.load %arg17[%c3_229, %c0_230, %c0_231] : memref<4x1x8xf32, #tpu.memory_space<vmem>>, vector<1x1x8xf32>
    %325 = vector.shape_cast %324 : vector<1x1x8xf32> to vector<1x8xf32>
    %326 = vector.broadcast %325 : vector<1x8xf32> to vector<8x8xf32>
    %327 = arith.addf %323, %326 : vector<8x8xf32>
    %c3_232 = arith.constant 3 : index
    %c0_233 = arith.constant 0 : index
    %c0_234 = arith.constant 0 : index
    %328 = vector.load %arg18[%c3_232, %c0_233, %c0_234] : memref<4x32x8xf32, #tpu.memory_space<vmem>>, vector<1x32x8xf32>
    %329 = vector.shape_cast %328 : vector<1x32x8xf32> to vector<32x8xf32>
    %cst_235 = arith.constant dense<0.000000e+00> : vector<8x8xf32>
    %330 = tpu.matmul %3, %329, %cst_235 {dimension_numbers = #tpu.dot_dimension_numbers<[1], [0], [0], [1], [0, 0, 1, 1], [], []>} : vector<8x32xf32>, vector<32x8xf32>, vector<8x8xf32> -> vector<8x8xf32>
    %c3_236 = arith.constant 3 : index
    %c0_237 = arith.constant 0 : index
    %c0_238 = arith.constant 0 : index
    %331 = vector.load %arg19[%c3_236, %c0_237, %c0_238] : memref<4x1x8xf32, #tpu.memory_space<vmem>>, vector<1x1x8xf32>
    %332 = vector.shape_cast %331 : vector<1x1x8xf32> to vector<1x8xf32>
    %333 = vector.broadcast %332 : vector<1x8xf32> to vector<8x8xf32>
    %334 = arith.addf %330, %333 : vector<8x8xf32>
    %c3_239 = arith.constant 3 : index
    %c0_240 = arith.constant 0 : index
    %c0_241 = arith.constant 0 : index
    %335 = vector.load %arg20[%c3_239, %c0_240, %c0_241] : memref<4x32x8xf32, #tpu.memory_space<vmem>>, vector<1x32x8xf32>
    %336 = vector.shape_cast %335 : vector<1x32x8xf32> to vector<32x8xf32>
    %cst_242 = arith.constant dense<0.000000e+00> : vector<8x8xf32>
    %337 = tpu.matmul %3, %336, %cst_242 {dimension_numbers = #tpu.dot_dimension_numbers<[1], [0], [0], [1], [0, 0, 1, 1], [], []>} : vector<8x32xf32>, vector<32x8xf32>, vector<8x8xf32> -> vector<8x8xf32>
    %c3_243 = arith.constant 3 : index
    %c0_244 = arith.constant 0 : index
    %c0_245 = arith.constant 0 : index
    %338 = vector.load %arg21[%c3_243, %c0_244, %c0_245] : memref<4x1x8xf32, #tpu.memory_space<vmem>>, vector<1x1x8xf32>
    %339 = vector.shape_cast %338 : vector<1x1x8xf32> to vector<1x8xf32>
    %340 = vector.broadcast %339 : vector<1x8xf32> to vector<8x8xf32>
    %341 = arith.addf %337, %340 : vector<8x8xf32>
    %342 = tpu.transpose %334, [1, 0] : vector<8x8xf32> -> vector<8x8xf32>
    %cst_246 = arith.constant dense<0.000000e+00> : vector<8x8xf32>
    %343 = tpu.matmul %327, %342, %cst_246 {dimension_numbers = #tpu.dot_dimension_numbers<[1], [0], [0], [1], [0, 0, 1, 1], [], []>} : vector<8x8xf32>, vector<8x8xf32>, vector<8x8xf32> -> vector<8x8xf32>
    %344 = vector.broadcast %199 : vector<1x8xf32> to vector<8x8xf32>
    %345 = arith.addf %343, %344 : vector<8x8xf32>
    %cst_247 = arith.constant dense<0xFF800000> : vector<8xf32>
    %346 = vector.multi_reduction <maximumf>, %345, %cst_247 [1] : vector<8x8xf32> to vector<8xf32>
    %347 = vector.shape_cast %346 : vector<8xf32> to vector<8x1xf32>
    %348 = vector.broadcast %347 : vector<8x1xf32> to vector<8x8xf32>
    %349 = arith.subf %345, %348 : vector<8x8xf32>
    %350 = math.exp %349 : vector<8x8xf32>
    %cst_248 = arith.constant dense<0.000000e+00> : vector<8xf32>
    %351 = vector.multi_reduction <add>, %350, %cst_248 [1] : vector<8x8xf32> to vector<8xf32>
    %352 = vector.shape_cast %351 : vector<8xf32> to vector<8x1xf32>
    %353 = tpu.reciprocal %352 {approx = true} : vector<8x1xf32> -> vector<8x1xf32>
    %354 = vector.broadcast %353 : vector<8x1xf32> to vector<8x8xf32>
    %355 = arith.mulf %350, %354 : vector<8x8xf32>
    %cst_249 = arith.constant dense<0.000000e+00> : vector<8x8xf32>
    %356 = tpu.matmul %355, %341, %cst_249 {dimension_numbers = #tpu.dot_dimension_numbers<[1], [0], [0], [1], [0, 0, 1, 1], [], []>} : vector<8x8xf32>, vector<8x8xf32>, vector<8x8xf32> -> vector<8x8xf32>
    %c3_250 = arith.constant 3 : index
    %c0_251 = arith.constant 0 : index
    %c0_252 = arith.constant 0 : index
    %357 = vector.load %arg22[%c3_250, %c0_251, %c0_252] : memref<4x8x32xf32, #tpu.memory_space<vmem>>, vector<1x8x32xf32>
    %358 = vector.shape_cast %357 : vector<1x8x32xf32> to vector<8x32xf32>
    %cst_253 = arith.constant dense<0.000000e+00> : vector<8x32xf32>
    %359 = tpu.matmul %356, %358, %cst_253 {dimension_numbers = #tpu.dot_dimension_numbers<[1], [0], [0], [1], [0, 0, 1, 1], [], []>} : vector<8x8xf32>, vector<8x32xf32>, vector<8x32xf32> -> vector<8x32xf32>
    %360 = arith.addf %320, %359 : vector<8x32xf32>
    %c0_254 = arith.constant 0 : index
    %c0_255 = arith.constant 0 : index
    %361 = vector.load %arg23[%c0_254, %c0_255] : memref<1x32xf32, #tpu.memory_space<vmem>>, vector<1x32xf32>
    %362 = vector.broadcast %361 : vector<1x32xf32> to vector<8x32xf32>
    %363 = arith.addf %360, %362 : vector<8x32xf32>
    %c0_256 = arith.constant 0 : index
    %c0_257 = arith.constant 0 : index
    %364 = vector.load %arg24[%c0_256, %c0_257] : memref<1x32xf32, #tpu.memory_space<vmem>>, vector<1x32xf32>
    %c0_258 = arith.constant 0 : index
    %c0_259 = arith.constant 0 : index
    %365 = vector.load %arg25[%c0_258, %c0_259] : memref<1x32xf32, #tpu.memory_space<vmem>>, vector<1x32xf32>
    %366 = arith.addf %197, %363 : vector<8x32xf32>
    %cst_260 = arith.constant dense<0.000000e+00> : vector<8xf32>
    %367 = vector.multi_reduction <add>, %366, %cst_260 [1] : vector<8x32xf32> to vector<8xf32>
    %368 = vector.shape_cast %367 : vector<8xf32> to vector<8x1xf32>
    %cst_261 = arith.constant 3.200000e+01 : f32
    %369 = vector.broadcast %cst_261 : f32 to vector<8x1xf32>
    %370 = arith.divf %368, %369 : vector<8x1xf32>
    %371 = vector.broadcast %370 : vector<8x1xf32> to vector<8x32xf32>
    %372 = arith.subf %366, %371 : vector<8x32xf32>
    %373 = arith.mulf %372, %372 : vector<8x32xf32>
    %cst_262 = arith.constant dense<0.000000e+00> : vector<8xf32>
    %374 = vector.multi_reduction <add>, %373, %cst_262 [1] : vector<8x32xf32> to vector<8xf32>
    %375 = vector.shape_cast %374 : vector<8xf32> to vector<8x1xf32>
    %cst_263 = arith.constant 3.200000e+01 : f32
    %376 = vector.broadcast %cst_263 : f32 to vector<8x1xf32>
    %377 = arith.divf %375, %376 : vector<8x1xf32>
    %cst_264 = arith.constant 9.99999974E-6 : f32
    %378 = vector.broadcast %cst_264 : f32 to vector<8x1xf32>
    %379 = arith.addf %377, %378 : vector<8x1xf32>
    %380 = math.rsqrt %379 : vector<8x1xf32>
    %381 = vector.broadcast %380 : vector<8x1xf32> to vector<8x32xf32>
    %382 = arith.mulf %372, %381 : vector<8x32xf32>
    %383 = vector.broadcast %364 : vector<1x32xf32> to vector<8x32xf32>
    %384 = arith.mulf %382, %383 : vector<8x32xf32>
    %385 = vector.broadcast %365 : vector<1x32xf32> to vector<8x32xf32>
    %386 = arith.addf %384, %385 : vector<8x32xf32>
    %c0_265 = arith.constant 0 : index
    %c0_266 = arith.constant 0 : index
    %387 = vector.load %arg26[%c0_265, %c0_266] : memref<32x64xf32, #tpu.memory_space<vmem>>, vector<32x64xf32>
    %c0_267 = arith.constant 0 : index
    %c0_268 = arith.constant 0 : index
    %388 = vector.load %arg27[%c0_267, %c0_268] : memref<1x64xf32, #tpu.memory_space<vmem>>, vector<1x64xf32>
    %c0_269 = arith.constant 0 : index
    %c0_270 = arith.constant 0 : index
    %389 = vector.load %arg28[%c0_269, %c0_270] : memref<64x32xf32, #tpu.memory_space<vmem>>, vector<64x32xf32>
    %c0_271 = arith.constant 0 : index
    %c0_272 = arith.constant 0 : index
    %390 = vector.load %arg29[%c0_271, %c0_272] : memref<1x32xf32, #tpu.memory_space<vmem>>, vector<1x32xf32>
    %cst_273 = arith.constant dense<0.000000e+00> : vector<8x64xf32>
    %391 = tpu.matmul %386, %387, %cst_273 {dimension_numbers = #tpu.dot_dimension_numbers<[1], [0], [0], [1], [0, 0, 1, 1], [], []>} : vector<8x32xf32>, vector<32x64xf32>, vector<8x64xf32> -> vector<8x64xf32>
    %392 = vector.broadcast %388 : vector<1x64xf32> to vector<8x64xf32>
    %393 = arith.addf %391, %392 : vector<8x64xf32>
    %cst_274 = arith.constant 0.000000e+00 : f32
    %394 = vector.broadcast %cst_274 : f32 to vector<8x64xf32>
    %395 = arith.maximumf %393, %394 : vector<8x64xf32>
    %cst_275 = arith.constant dense<0.000000e+00> : vector<8x32xf32>
    %396 = tpu.matmul %395, %389, %cst_275 {dimension_numbers = #tpu.dot_dimension_numbers<[1], [0], [0], [1], [0, 0, 1, 1], [], []>} : vector<8x64xf32>, vector<64x32xf32>, vector<8x32xf32> -> vector<8x32xf32>
    %397 = vector.broadcast %390 : vector<1x32xf32> to vector<8x32xf32>
    %398 = arith.addf %396, %397 : vector<8x32xf32>
    %c0_276 = arith.constant 0 : index
    %c0_277 = arith.constant 0 : index
    %399 = vector.load %arg30[%c0_276, %c0_277] : memref<1x32xf32, #tpu.memory_space<vmem>>, vector<1x32xf32>
    %c0_278 = arith.constant 0 : index
    %c0_279 = arith.constant 0 : index
    %400 = vector.load %arg31[%c0_278, %c0_279] : memref<1x32xf32, #tpu.memory_space<vmem>>, vector<1x32xf32>
    %401 = arith.addf %386, %398 : vector<8x32xf32>
    %cst_280 = arith.constant dense<0.000000e+00> : vector<8xf32>
    %402 = vector.multi_reduction <add>, %401, %cst_280 [1] : vector<8x32xf32> to vector<8xf32>
    %403 = vector.shape_cast %402 : vector<8xf32> to vector<8x1xf32>
    %cst_281 = arith.constant 3.200000e+01 : f32
    %404 = vector.broadcast %cst_281 : f32 to vector<8x1xf32>
    %405 = arith.divf %403, %404 : vector<8x1xf32>
    %406 = vector.broadcast %405 : vector<8x1xf32> to vector<8x32xf32>
    %407 = arith.subf %401, %406 : vector<8x32xf32>
    %408 = arith.mulf %407, %407 : vector<8x32xf32>
    %cst_282 = arith.constant dense<0.000000e+00> : vector<8xf32>
    %409 = vector.multi_reduction <add>, %408, %cst_282 [1] : vector<8x32xf32> to vector<8xf32>
    %410 = vector.shape_cast %409 : vector<8xf32> to vector<8x1xf32>
    %cst_283 = arith.constant 3.200000e+01 : f32
    %411 = vector.broadcast %cst_283 : f32 to vector<8x1xf32>
    %412 = arith.divf %410, %411 : vector<8x1xf32>
    %cst_284 = arith.constant 9.99999974E-6 : f32
    %413 = vector.broadcast %cst_284 : f32 to vector<8x1xf32>
    %414 = arith.addf %412, %413 : vector<8x1xf32>
    %415 = math.rsqrt %414 : vector<8x1xf32>
    %416 = vector.broadcast %415 : vector<8x1xf32> to vector<8x32xf32>
    %417 = arith.mulf %407, %416 : vector<8x32xf32>
    %418 = vector.broadcast %399 : vector<1x32xf32> to vector<8x32xf32>
    %419 = arith.mulf %417, %418 : vector<8x32xf32>
    %420 = vector.broadcast %400 : vector<1x32xf32> to vector<8x32xf32>
    %421 = arith.addf %419, %420 : vector<8x32xf32>
    %c0_285 = arith.constant 0 : index
    %c0_286 = arith.constant 0 : index
    %c0_287 = arith.constant 0 : index
    %422 = vector.load %arg32[%c0_285, %c0_286, %c0_287] : memref<1x8x32xf32, #tpu.memory_space<vmem>>, vector<1x8x32xf32>
    %423 = vector.shape_cast %422 : vector<1x8x32xf32> to vector<8x32xf32>
    %424 = vector.shape_cast %421 : vector<8x32xf32> to vector<1x8x32xf32>
    tpu.vector_store %arg32[%c0_285, %c0_286, %c0_287], %424 {strides = array<i32>} : memref<1x8x32xf32, #tpu.memory_space<vmem>>, vector<1x8x32xf32>,
    return
  }
  func.func @transform_0(%arg0: i32) -> (i32, i32, i32) {
    %c0_i32 = arith.constant 0 : i32
    %c0_i32_0 = arith.constant 0 : i32
    %c0_i32_1 = arith.constant 0 : i32
    return %arg0, %c0_i32, %c0_i32_0 : i32, i32, i32
  }
  func.func @transform_1(%arg0: i32) -> (i32, i32, i32) {
    %c0_i32 = arith.constant 0 : i32
    %c0_i32_0 = arith.constant 0 : i32
    %c0_i32_1 = arith.constant 0 : i32
    return %arg0, %c0_i32, %c0_i32_0 : i32, i32, i32
  }
  func.func @transform_2(%arg0: i32) -> (i32, i32) {
    %c0_i32 = arith.constant 0 : i32
    %c0_i32_0 = arith.constant 0 : i32
    %c0_i32_1 = arith.constant 0 : i32
    return %c0_i32, %c0_i32_0 : i32, i32
  }
  func.func @transform_3(%arg0: i32) -> (i32, i32, i32) {
    %c0_i32 = arith.constant 0 : i32
    %c0_i32_0 = arith.constant 0 : i32
    %c0_i32_1 = arith.constant 0 : i32
    return %arg0, %c0_i32, %c0_i32_0 : i32, i32, i32
  }
  func.func @transform_4(%arg0: i32) -> (i32, i32, i32) {
    %c0_i32 = arith.constant 0 : i32
    %c0_i32_0 = arith.constant 0 : i32
    %c0_i32_1 = arith.constant 0 : i32
    return %arg0, %c0_i32, %c0_i32_0 : i32, i32, i32
  }
  func.func @transform_5(%arg0: i32) -> (i32, i32, i32) {
    %c0_i32 = arith.constant 0 : i32
    %c0_i32_0 = arith.constant 0 : i32
    %c0_i32_1 = arith.constant 0 : i32
    %c0_i32_2 = arith.constant 0 : i32
    return %c0_i32, %c0_i32_0, %c0_i32_1 : i32, i32, i32
  }
  func.func @transform_6(%arg0: i32) -> (i32, i32, i32) {
    %c0_i32 = arith.constant 0 : i32
    %c0_i32_0 = arith.constant 0 : i32
    %c0_i32_1 = arith.constant 0 : i32
    %c0_i32_2 = arith.constant 0 : i32
    return %c0_i32, %c0_i32_0, %c0_i32_1 : i32, i32, i32
  }
  func.func @transform_7(%arg0: i32) -> (i32, i32, i32) {
    %c0_i32 = arith.constant 0 : i32
    %c0_i32_0 = arith.constant 0 : i32
    %c0_i32_1 = arith.constant 0 : i32
    %c0_i32_2 = arith.constant 0 : i32
    return %c0_i32, %c0_i32_0, %c0_i32_1 : i32, i32, i32
  }
  func.func @transform_8(%arg0: i32) -> (i32, i32, i32) {
    %c0_i32 = arith.constant 0 : i32
    %c0_i32_0 = arith.constant 0 : i32
    %c0_i32_1 = arith.constant 0 : i32
    %c0_i32_2 = arith.constant 0 : i32
    return %c0_i32, %c0_i32_0, %c0_i32_1 : i32, i32, i32
  }
  func.func @transform_9(%arg0: i32) -> (i32, i32, i32) {
    %c0_i32 = arith.constant 0 : i32
    %c0_i32_0 = arith.constant 0 : i32
    %c0_i32_1 = arith.constant 0 : i32
    %c0_i32_2 = arith.constant 0 : i32
    return %c0_i32, %c0_i32_0, %c0_i32_1 : i32, i32, i32
  }
  func.func @transform_10(%arg0: i32) -> (i32, i32, i32) {
    %c0_i32 = arith.constant 0 : i32
    %c0_i32_0 = arith.constant 0 : i32
    %c0_i32_1 = arith.constant 0 : i32
    %c0_i32_2 = arith.constant 0 : i32
    return %c0_i32, %c0_i32_0, %c0_i32_1 : i32, i32, i32
  }
  func.func @transform_11(%arg0: i32) -> (i32, i32, i32) {
    %c0_i32 = arith.constant 0 : i32
    %c0_i32_0 = arith.constant 0 : i32
    %c0_i32_1 = arith.constant 0 : i32
    %c0_i32_2 = arith.constant 0 : i32
    return %c0_i32, %c0_i32_0, %c0_i32_1 : i32, i32, i32
  }
  func.func @transform_12(%arg0: i32) -> (i32, i32) {
    %c0_i32 = arith.constant 0 : i32
    %c0_i32_0 = arith.constant 0 : i32
    %c0_i32_1 = arith.constant 0 : i32
    return %c0_i32, %c0_i32_0 : i32, i32
  }
  func.func @transform_13(%arg0: i32) -> (i32, i32) {
    %c0_i32 = arith.constant 0 : i32
    %c0_i32_0 = arith.constant 0 : i32
    %c0_i32_1 = arith.constant 0 : i32
    return %c0_i32, %c0_i32_0 : i32, i32
  }
  func.func @transform_14(%arg0: i32) -> (i32, i32) {
    %c0_i32 = arith.constant 0 : i32
    %c0_i32_0 = arith.constant 0 : i32
    %c0_i32_1 = arith.constant 0 : i32
    return %c0_i32, %c0_i32_0 : i32, i32
  }
  func.func @transform_15(%arg0: i32) -> (i32, i32, i32) {
    %c0_i32 = arith.constant 0 : i32
    %c0_i32_0 = arith.constant 0 : i32
    %c0_i32_1 = arith.constant 0 : i32
    %c0_i32_2 = arith.constant 0 : i32
    return %c0_i32, %c0_i32_0, %c0_i32_1 : i32, i32, i32
  }
  func.func @transform_16(%arg0: i32) -> (i32, i32, i32) {
    %c0_i32 = arith.constant 0 : i32
    %c0_i32_0 = arith.constant 0 : i32
    %c0_i32_1 = arith.constant 0 : i32
    %c0_i32_2 = arith.constant 0 : i32
    return %c0_i32, %c0_i32_0, %c0_i32_1 : i32, i32, i32
  }
  func.func @transform_17(%arg0: i32) -> (i32, i32, i32) {
    %c0_i32 = arith.constant 0 : i32
    %c0_i32_0 = arith.constant 0 : i32
    %c0_i32_1 = arith.constant 0 : i32
    %c0_i32_2 = arith.constant 0 : i32
    return %c0_i32, %c0_i32_0, %c0_i32_1 : i32, i32, i32
  }
  func.func @transform_18(%arg0: i32) -> (i32, i32, i32) {
    %c0_i32 = arith.constant 0 : i32
    %c0_i32_0 = arith.constant 0 : i32
    %c0_i32_1 = arith.constant 0 : i32
    %c0_i32_2 = arith.constant 0 : i32
    return %c0_i32, %c0_i32_0, %c0_i32_1 : i32, i32, i32
  }
  func.func @transform_19(%arg0: i32) -> (i32, i32, i32) {
    %c0_i32 = arith.constant 0 : i32
    %c0_i32_0 = arith.constant 0 : i32
    %c0_i32_1 = arith.constant 0 : i32
    %c0_i32_2 = arith.constant 0 : i32
    return %c0_i32, %c0_i32_0, %c0_i32_1 : i32, i32, i32
  }
  func.func @transform_20(%arg0: i32) -> (i32, i32, i32) {
    %c0_i32 = arith.constant 0 : i32
    %c0_i32_0 = arith.constant 0 : i32
    %c0_i32_1 = arith.constant 0 : i32
    %c0_i32_2 = arith.constant 0 : i32
    return %c0_i32, %c0_i32_0, %c0_i32_1 : i32, i32, i32
  }
  func.func @transform_21(%arg0: i32) -> (i32, i32, i32) {
    %c0_i32 = arith.constant 0 : i32
    %c0_i32_0 = arith.constant 0 : i32
    %c0_i32_1 = arith.constant 0 : i32
    %c0_i32_2 = arith.constant 0 : i32
    return %c0_i32, %c0_i32_0, %c0_i32_1 : i32, i32, i32
  }
  func.func @transform_22(%arg0: i32) -> (i32, i32) {
    %c0_i32 = arith.constant 0 : i32
    %c0_i32_0 = arith.constant 0 : i32
    %c0_i32_1 = arith.constant 0 : i32
    return %c0_i32, %c0_i32_0 : i32, i32
  }
  func.func @transform_23(%arg0: i32) -> (i32, i32) {
    %c0_i32 = arith.constant 0 : i32
    %c0_i32_0 = arith.constant 0 : i32
    %c0_i32_1 = arith.constant 0 : i32
    return %c0_i32, %c0_i32_0 : i32, i32
  }
  func.func @transform_24(%arg0: i32) -> (i32, i32) {
    %c0_i32 = arith.constant 0 : i32
    %c0_i32_0 = arith.constant 0 : i32
    %c0_i32_1 = arith.constant 0 : i32
    return %c0_i32, %c0_i32_0 : i32, i32
  }
  func.func @transform_25(%arg0: i32) -> (i32, i32) {
    %c0_i32 = arith.constant 0 : i32
    %c0_i32_0 = arith.constant 0 : i32
    %c0_i32_1 = arith.constant 0 : i32
    return %c0_i32, %c0_i32_0 : i32, i32
  }
  func.func @transform_26(%arg0: i32) -> (i32, i32) {
    %c0_i32 = arith.constant 0 : i32
    %c0_i32_0 = arith.constant 0 : i32
    %c0_i32_1 = arith.constant 0 : i32
    return %c0_i32, %c0_i32_0 : i32, i32
  }
  func.func @transform_27(%arg0: i32) -> (i32, i32) {
    %c0_i32 = arith.constant 0 : i32
    %c0_i32_0 = arith.constant 0 : i32
    %c0_i32_1 = arith.constant 0 : i32
    return %c0_i32, %c0_i32_0 : i32, i32
  }
  func.func @transform_28(%arg0: i32) -> (i32, i32) {
    %c0_i32 = arith.constant 0 : i32
    %c0_i32_0 = arith.constant 0 : i32
    %c0_i32_1 = arith.constant 0 : i32
    return %c0_i32, %c0_i32_0 : i32, i32
  }
  func.func @transform_29(%arg0: i32) -> (i32, i32) {
    %c0_i32 = arith.constant 0 : i32
    %c0_i32_0 = arith.constant 0 : i32
    %c0_i32_1 = arith.constant 0 : i32
    return %c0_i32, %c0_i32_0 : i32, i32
  }
  func.func @transform_30(%arg0: i32) -> (i32, i32) {
    %c0_i32 = arith.constant 0 : i32
    %c0_i32_0 = arith.constant 0 : i32
    %c0_i32_1 = arith.constant 0 : i32
    return %c0_i32, %c0_i32_0 : i32, i32
  }
  func.func @transform_31(%arg0: i32) -> (i32, i32, i32) {
    %c0_i32 = arith.constant 0 : i32
    %c0_i32_0 = arith.constant 0 : i32
    %c0_i32_1 = arith.constant 0 : i32
    return %arg0, %c0_i32, %c0_i32_0 : i32, i32, i32
  }
}

</mosaic_0001>

<llo_original>
// kernel: _lambda_.9
$region0: #{_lambda_.9}
  #allocation0 [shape = 'u32[]', space=smem, size = 0x4, offset = 0x4, fixed_abs, tag = 'smem constant byte address 0x4 - core index']
  #allocation1 [shape = 'u32[144,128]{1,0:T(1,128)}', space=vmem, size = 0x12000, scoped, tag = 'internal scratch']
  %s0 = inlined_call_operand.vmem [shape: f32[2,8,32], index: 0, kind: input, shape index: {}]
  %s1 = inlined_call_operand.vmem [shape: f32[32,16], index: 1, kind: input, shape index: {}]
  %s2 = inlined_call_operand.vmem [shape: f32[1,16], index: 2, kind: input, shape index: {}]
  %s3 = inlined_call_operand.hbm [shape: f32[2,8,16], index: 3, kind: output, shape index: {}]
  %s4 = sld [smem:[#allocation0]]
  $region45: #{_lambda_.9} parent=0
    _
  %s6 = ssub.s32 1, %s4
  %s7 = scalar_select 0, %s6, %s4
  $region1: #{_lambda_.9} parent=0
    #allocation2 [shape = 'u8[8192]{0}', space=vmem, size = 0x2000, scoped, tag = 'output window, operand 0']
    #allocation3 [shape = 's32[2]{0}', space=sflag, size = 0x8, scoped, tag = 'scoped memory for _lambda_.9']
    %8 = vsyncpa [#allocation3], 0
    %s9 = scalar_lea.sflag [#allocation3], 1
    %10 = vsyncpa %s9, 0
    loop: start=0, step=1, limit=4
    $region2: #{_lambda_.9} parent=1 // loop_pre_header
      _
    $region3: #{_lambda_.9} parent=1 // loop_header
      %s12 = sphi 0, %s16
      %p13 = scmp.ge.s32.totalorder %s12, 4
      %s22 = sphi 0, %s24
      %s25 = sphi 0, %s22
      %s26 = sphi 0, %s25
      %s42 = sphi 0, %s26
      %s46 = sphi 0, %s46
      %s48 = sphi 0, %s46
      %s49 = sphi 0, %s48
      %s63 = sphi 0, %s49
      %s67 = sphi 0, %s67
      %s69 = sphi 0, %s67
      %s70 = sphi 0, %s69
      %s84 = sphi 0, %s70
      %s90 = sphi 0, %s92
      %s93 = sphi 0, %s90
      %s94 = sphi 0, %s93
      %s110 = sphi 0, %s94
    $region4: #{_lambda_.9} parent=1 // loop_header_branch
      %15 = sbr.rel (%p13) target = $region8
    $region5: #{_lambda_.9} parent=1 // loop_body
      %s17 = ssub.s32 %s12, 1
      %s18 = ssub.s32 %s12, 2
      %s19 = sadd.s32 %s12, 1
      %s20 = ssub.s32 %s12, %s19
      %p21 = scmp.eq.s32.totalorder %s20, 0
      %s23 = sadd.s32 %s22, 1
      %s24 = scalar_select %p21, %s22, %s23
      %p27 = pneg %p21
      %p28 = scmp.eq.s32.totalorder %s12, 1
      %p29 = por %p27, %p28
      %p30 = scmp.ne.s32.totalorder %s22, %s25
      %p31 = scmp.eq.s32.totalorder %s12, 0
      %p32 = por %p30, %p31
      %p33 = scmp.ne.s32.totalorder %s22, %s25
      %p34 = scmp.eq.s32.totalorder %s17, 1
      %p35 = por %p33, %p34
      %p36 = scmp.ne.s32.totalorder %s25, %s26
      %p37 = scmp.eq.s32.totalorder %s17, 0
      %p38 = por %p36, %p37
      %p39 = scmp.ne.s32.totalorder %s25, %s26
      %p40 = scmp.eq.s32.totalorder %s18, 1
      %p41 = por %p39, %p40
      %p43 = scmp.ne.s32.totalorder %s26, %s42
      %p44 = scmp.eq.s32.totalorder %s18, 0
      %p45 = por %p43, %p44
      %s47 = sadd.s32 %s46, 1
      %p50 = scmp.eq.s32.totalorder %s12, 1
      %p51 = scmp.ne.s32.totalorder %s46, %s48
      %p52 = scmp.eq.s32.totalorder %s12, 0
      %p53 = por %p51, %p52
      %p54 = scmp.ne.s32.totalorder %s46, %s48
      %p55 = scmp.eq.s32.totalorder %s17, 1
      %p56 = por %p54, %p55
      %p57 = scmp.ne.s32.totalorder %s48, %s49
      %p58 = scmp.eq.s32.totalorder %s17, 0
      %p59 = por %p57, %p58
      %p60 = scmp.ne.s32.totalorder %s48, %s49
      %p61 = scmp.eq.s32.totalorder %s18, 1
      %p62 = por %p60, %p61
      %p64 = scmp.ne.s32.totalorder %s49, %s63
      %p65 = scmp.eq.s32.totalorder %s18, 0
      %p66 = por %p64, %p65
      %s68 = sadd.s32 %s67, 1
      %p71 = scmp.eq.s32.totalorder %s12, 1
      %p72 = scmp.ne.s32.totalorder %s67, %s69
      %p73 = scmp.eq.s32.totalorder %s12, 0
      %p74 = por %p72, %p73
      %p75 = scmp.ne.s32.totalorder %s67, %s69
      %p76 = scmp.eq.s32.totalorder %s17, 1
      %p77 = por %p75, %p76
      %p78 = scmp.ne.s32.totalorder %s69, %s70
      %p79 = scmp.eq.s32.totalorder %s17, 0
      %p80 = por %p78, %p79
      %p81 = scmp.ne.s32.totalorder %s69, %s70
      %p82 = scmp.eq.s32.totalorder %s18, 1
      %p83 = por %p81, %p82
      %p85 = scmp.ne.s32.totalorder %s70, %s84
      %p86 = scmp.eq.s32.totalorder %s18, 0
      %p87 = por %p85, %p86
      %s88 = ssub.s32 %s12, %s19
      %p89 = scmp.eq.s32.totalorder %s88, 0
      %s91 = sadd.s32 %s90, 1
      %s92 = scalar_select %p89, %s90, %s91
      %p95 = pneg %p89
      %p96 = scmp.eq.s32.totalorder %s12, 1
      %p97 = por %p95, %p96
      %p98 = scmp.ne.s32.totalorder %s90, %s93
      %p99 = scmp.eq.s32.totalorder %s12, 0
      %p100 = por %p98, %p99
      %p101 = scmp.ne.s32.totalorder %s90, %s93
      %p102 = scmp.eq.s32.totalorder %s17, 1
      %p103 = por %p101, %p102
      %p104 = scmp.ne.s32.totalorder %s93, %s94
      %p105 = scmp.eq.s32.totalorder %s17, 0
      %p106 = por %p104, %p105
      %p107 = scmp.ne.s32.totalorder %s93, %s94
      %p108 = scmp.eq.s32.totalorder %s18, 1
      %p109 = por %p107, %p108
      %p111 = scmp.ne.s32.totalorder %s94, %s110
      %p112 = scmp.eq.s32.totalorder %s18, 0
      %p113 = por %p111, %p112
      %p114 = scmp.le.s32.totalorder 1, %s12
      %p115 = scmp.lt.s32.totalorder %s12, 3
      %p116 = pnand %p114, %p115
      %p117 = pneg %p116
      // Predicated region
      $region9: #{_lambda_.9} parent=5 // pred_check
        _
      $region10: #{_lambda_.9} parent=5 // pred_check_branch
        %119 = sbr.rel (%p116) target = $region12
      $region11: #{_lambda_.9} parent=5 // pred_region
        %s120 = ssub.s32 %s12, 1
        // Predicated region
        $region13: #{_lambda_.9} parent=11 // pred_check
          %p121 = pneg %p59
        $region14: #{_lambda_.9} parent=11 // pred_check_branch
          %123 = sbr.rel (%p121) target = $region16
        $region15: #{_lambda_.9} parent=11 // pred_region
          _
        $region16: #{_lambda_.9} parent=11 // pred_fallthru
          _
        // Predicated region
        $region17: #{_lambda_.9} parent=11 // pred_check
          %p124 = pneg %p80
        $region18: #{_lambda_.9} parent=11 // pred_check_branch
          %126 = sbr.rel (%p124) target = $region20
        $region19: #{_lambda_.9} parent=11 // pred_region
          _
        $region20: #{_lambda_.9} parent=11 // pred_fallthru
          _
      $region12: #{_lambda_.9} parent=5 // pred_fallthru
        _
      %p127 = scmp.lt.s32.totalorder %s12, 2
      // Predicated region
      $region21: #{_lambda_.9} parent=5 // pred_check
        %p128 = pneg %p127
      $region22: #{_lambda_.9} parent=5 // pred_check_branch
        %130 = sbr.rel (%p128) target = $region24
      $region23: #{_lambda_.9} parent=5 // pred_region
        // Predicated region
        $region25: #{_lambda_.9} parent=23 // pred_check
          %p131 = pneg %p32
        $region26: #{_lambda_.9} parent=23 // pred_check_branch
          %133 = sbr.rel (%p131) target = $region28
        $region27: #{_lambda_.9} parent=23 // pred_region
          %p134 = scmp.lt.s32.totalorder %s12, 1
          %s135 = scalar_select %p134, %s12, 1
          %s136 = smul.addr %s135, 8
          %s137 = scalar_lea.vmem %s0, %s136
        $region28: #{_lambda_.9} parent=23 // pred_fallthru
          _
      $region24: #{_lambda_.9} parent=5 // pred_fallthru
        _
      %p138 = scmp.le.s32.totalorder 1, %s12
      %p139 = scmp.lt.s32.totalorder %s12, 3
      %p140 = pnand %p138, %p139
      %p141 = pneg %p140
      // Predicated region
      $region29: #{_lambda_.9} parent=5 // pred_check
        _
      $region30: #{_lambda_.9} parent=5 // pred_check_branch
        %143 = sbr.rel (%p140) target = $region32
      $region31: #{_lambda_.9} parent=5 // pred_region
        %s144 = ssub.s32 %s12, 1
        %p145 = scmp.lt.s32.totalorder %s17, 1
        %s146 = scalar_select %p145, %s17, 1
        %s147 = smul.addr %s146, 8
        %s148 = scalar_lea.vmem %s0, %s147
        %p149 = pneg %p38
        %p150 = pneg %p35
        %p151 = pneg %p59
        %p152 = pneg %p56
        %p153 = pneg %p80
        %p154 = pneg %p77
        %p155 = pneg %p106
        %p156 = pneg %p103
        %s157 = sand.u32 %s93, 1
        %s158 = scalar_lea.sflag [#allocation3], %s157
        %s159 = sand.u32 %s93, 1
        %s160 = smul.addr %s159, 8
        %s161 = scalar_lea.vmem [#allocation2], %s160
        %p162 = scmp.lt.s32.totalorder %s17, 1
        %s163 = scalar_select %p162, %s17, 1
        %s164 = smul.addr %s163, 8
        %s165 = scalar_lea.vmem %s0, %s164
        %v166 = vld [vmem:[%s165] sm:$0xff]
        %v167 = vld [vmem:[%s1] sm:$0xff]
        %v168 = vld [vmem:[%s1 + $0x8] sm:$0xff]
        %v169 = vld [vmem:[%s1 + $0x10] sm:$0xff]
        %v170 = vld [vmem:[%s1 + $0x18] sm:$0xff]
        %v171 = vld [vmem:[%s2] sm:$0x1]
        %v173 = vlaneseq
        %v174 = vshrl.u32 %v173, 7
        %v175 = vsub.s32 0, %v174
        %v176 = vrot.slane %v171, %v175
        %vm178 = vcmask 261120
        %v180 = vsel %vm178, %v166, 0
        %182 = vmatprep.subr.mxu0 0.0
        %183 = vmatpush1.msra.mxu0 %v167
        %184 = vmatprep.subr.mxu0 0.0
        %185 = vmatpush1.msra.mxu0 %v168
        %186 = vmatprep.subr.mxu0 0.0
        %187 = vmatpush1.msra.mxu0 %v169
        %188 = vmatprep.subr.mxu0 0.0
        %189 = vmatpush1.msra.mxu0 %v170
        %190 = vmatprep.subr.mxu0 0.0
        %191 = vmatpush1.msra.mxu0 0.0
        %192 = vmatprep.subr.mxu0 0.0
        %193 = vmatpush1.msra.mxu0 0.0
        %194 = vmatprep.subr.mxu0 0.0
        %195 = vmatpush1.msra.mxu0 0.0
        %196 = vmatprep.subr.mxu0 0.0
        %197 = vmatpush1.msra.mxu0 0.0
        %198 = vmatprep.subr.mxu0 0.0
        %199 = vmatpush1.msra.mxu0 0.0
        %200 = vmatprep.subr.mxu0 0.0
        %201 = vmatpush1.msra.mxu0 0.0
        %202 = vmatprep.subr.mxu0 0.0
        %203 = vmatpush1.msra.mxu0 0.0
        %204 = vmatprep.subr.mxu0 0.0
        %205 = vmatpush1.msra.mxu0 0.0
        %206 = vmatprep.subr.mxu0 0.0
        %207 = vmatpush1.msra.mxu0 0.0
        %208 = vmatprep.subr.mxu0 0.0
        %209 = vmatpush1.msra.mxu0 0.0
        %210 = vmatprep.subr.mxu0 0.0
        %211 = vmatpush1.msra.mxu0 0.0
        %212 = vmatprep.subr.mxu0 0.0
        %213 = vmatpush1.msra.mxu0 0.0
        %214 = vmatprep.subr.mxu0 0.0
        %215 = vmatpush1.msra.mxu0 0.0
        %216 = vmatprep.subr.mxu0 0.0
        %217 = vmatpush1.msra.mxu0 0.0
        %218 = vmatprep.subr.mxu0 0.0
        %219 = vmatpush1.msra.mxu0 0.0
        %220 = vmatprep.subr.mxu0 0.0
        %221 = vmatpush1.msra.mxu0 0.0
        %222 = vmatprep.subr.mxu0 0.0
        %223 = vmatpush1.msra.mxu0 0.0
        %224 = vmatprep.subr.mxu0 0.0
        %225 = vmatpush1.msra.mxu0 0.0
        %226 = vmatprep.subr.mxu0 0.0
        %227 = vmatpush1.msra.mxu0 0.0
        %228 = vmatprep.subr.mxu0 0.0
        %229 = vmatpush1.msra.mxu0 0.0
        %230 = vmatprep.subr.mxu0 0.0
        %231 = vmatpush1.msra.mxu0 0.0
        %232 = vmatprep.subr.mxu0 0.0
        %233 = vmatpush1.msra.mxu0 0.0
        %234 = vmatprep.subr.mxu0 0.0
        %235 = vmatpush1.msra.mxu0 0.0
        %236 = vmatprep.subr.mxu0 0.0
        %237 = vmatpush1.msra.mxu0 0.0
        %238 = vmatprep.subr.mxu0 0.0
        %239 = vmatpush1.msra.mxu0 0.0
        %240 = vmatprep.subr.mxu0 0.0
        %241 = vmatpush1.msra.mxu0 0.0
        %242 = vmatprep.subr.mxu0 0.0
        %243 = vmatpush1.msra.mxu0 0.0
        %244 = vmatprep.subr.mxu0 0.0
        %245 = vmatpush1.msra.mxu0 0.0
        %246 = vmatprep.mubr.f32.mxu0 0.0
        %247 = vmatmul.mubr.f32.gmra.mrb[0].mxu0 %v180
        %v248 = vpop.f32.mrb[0].mxu0
        %v249 = vadd.f32 %v176, %v248
        %v250 = vpop.f32.mrb[0].mxu0
        %251 = vdwg.mxu0
        %vm252 = vcmask 130048
        %253 = vst.msk [vmem:[%s161] sm:$0xff] %vm252, %v249
        %s254 = sand.u32 %s93, 1
        %s255 = scalar_lea.sflag [#allocation3], %s254
        %s256 = sand.u32 %s93, 1
        %s257 = smul.addr %s256, 8
        %s258 = scalar_lea.vmem [#allocation2], %s257
        // Predicated region
        $region33: #{_lambda_.9} parent=31 // pred_check
          %p259 = pneg %p103
        $region34: #{_lambda_.9} parent=31 // pred_check_branch
          %261 = sbr.rel (%p259) target = $region36
        $region35: #{_lambda_.9} parent=31 // pred_region
          %s263 = ssub.s32 128, 128
          %264 = vsyncadd %s255, %s263
          %s265 = smul.addr %s17, 128
          %s266 = scalar_lea.hbm %s3, %s265
          %s268 = sshll.u32 %s258, 4
          %s269 = int_to_ptr.vmem [resolvable:$true] %s268
          %271 = dma.vmem_to_hbm [thread:$0]  %s269, 128, %s266, %s255
        $region36: #{_lambda_.9} parent=31 // pred_fallthru
          _
      $region32: #{_lambda_.9} parent=5 // pred_fallthru
        _
      %p272 = scmp.le.s32.totalorder 2, %s12
      // Predicated region
      $region37: #{_lambda_.9} parent=5 // pred_check
        %p273 = pneg %p272
      $region38: #{_lambda_.9} parent=5 // pred_check_branch
        %275 = sbr.rel (%p273) target = $region40
      $region39: #{_lambda_.9} parent=5 // pred_region
        %s276 = ssub.s32 %s12, 2
        // Predicated region
        $region41: #{_lambda_.9} parent=39 // pred_check
          %p277 = pneg %p109
        $region42: #{_lambda_.9} parent=39 // pred_check_branch
          %279 = sbr.rel (%p277) target = $region44
        $region43: #{_lambda_.9} parent=39 // pred_region
          %s280 = sand.u32 %s94, 1
          %s281 = scalar_lea.sflag [#allocation3], %s280
          %s282 = sand.u32 %s94, 1
          %s283 = smul.addr %s282, 8
          %s284 = scalar_lea.vmem [#allocation2], %s283
          %285 = dma.done %s281, 128
        $region44: #{_lambda_.9} parent=39 // pred_fallthru
          _
      $region40: #{_lambda_.9} parent=5 // pred_fallthru
        _
    $region6: #{_lambda_.9} parent=1 // loop_footer
      %s16 = sadd.s32 1, %s12
    $region7: #{_lambda_.9} parent=1 // loop_footer_branch
      %11 = sbr.rel target = $region3
    $region8: #{_lambda_.9} parent=1 // loop_exit
      _
    %286 = vsyncpa [#allocation3], 1
    %s287 = scalar_lea.sflag [#allocation3], 1
    %288 = vsyncpa %s287, 1

// kernel: _lambda_.5
$region0: #{_lambda_.5}
  #allocation0 [shape = 'u32[]', space=smem, size = 0x4, offset = 0x4, fixed_abs, tag = 'smem constant byte address 0x4 - core index']
  #allocation1 [shape = 'u32[144,128]{1,0:T(1,128)}', space=vmem, size = 0x12000, scoped, tag = 'internal scratch']
  %s0 = inlined_call_operand.vmem [shape: f32[2,8,32], index: 0, kind: input, shape index: {}]
  %s1 = inlined_call_operand.vmem [shape: f32[2,1,8], index: 1, kind: input, shape index: {}]
  %s2 = inlined_call_operand.vmem [shape: f32[4,32,8], index: 2, kind: input, shape index: {}]
  %s3 = inlined_call_operand.vmem [shape: f32[4,1,8], index: 3, kind: input, shape index: {}]
  %s4 = inlined_call_operand.vmem [shape: f32[4,32,8], index: 4, kind: input, shape index: {}]
  %s5 = inlined_call_operand.vmem [shape: f32[4,1,8], index: 5, kind: input, shape index: {}]
  %s6 = inlined_call_operand.vmem [shape: f32[4,32,8], index: 6, kind: input, shape index: {}]
  %s7 = inlined_call_operand.vmem [shape: f32[4,1,8], index: 7, kind: input, shape index: {}]
  %s8 = inlined_call_operand.vmem [shape: f32[4,8,32], index: 8, kind: input, shape index: {}]
  %s9 = inlined_call_operand.vmem [shape: f32[1,32], index: 9, kind: input, shape index: {}]
  %s10 = inlined_call_operand.vmem [shape: f32[1,32], index: 10, kind: input, shape index: {}]
  %s11 = inlined_call_operand.vmem [shape: f32[1,32], index: 11, kind: input, shape index: {}]
  %s12 = inlined_call_operand.vmem [shape: f32[32,64], index: 12, kind: input, shape index: {}]
  %s13 = inlined_call_operand.vmem [shape: f32[1,64], index: 13, kind: input, shape index: {}]
  %s14 = inlined_call_operand.vmem [shape: f32[64,32], index: 14, kind: input, shape index: {}]
  %s15 = inlined_call_operand.vmem [shape: f32[1,32], index: 15, kind: input, shape index: {}]
  %s16 = inlined_call_operand.vmem [shape: f32[1,32], index: 16, kind: input, shape index: {}]
  %s17 = inlined_call_operand.vmem [shape: f32[1,32], index: 17, kind: input, shape index: {}]
  %s18 = inlined_call_operand.vmem [shape: f32[2,8,32], index: 18, kind: output, shape index: {}]
  %s19 = sld [smem:[#allocation0]]
  $region105: #{_lambda_.5} parent=0
    _
  %s21 = ssub.s32 1, %s19
  %s22 = scalar_select 0, %s21, %s19
  loop: start=0, step=1, limit=4
  $region2: #{_lambda_.5} parent=0 // loop_pre_header
    _
  $region3: #{_lambda_.5} parent=0 // loop_header
    %s24 = sphi 0, %s28
    %p25 = scmp.ge.s32.totalorder %s24, 4
    %s34 = sphi 0, %s36
    %s37 = sphi 0, %s34
    %s38 = sphi 0, %s37
    %s54 = sphi 0, %s38
    %s60 = sphi 0, %s62
    %s63 = sphi 0, %s60
    %s64 = sphi 0, %s63
    %s80 = sphi 0, %s64
    %s84 = sphi 0, %s84
    %s86 = sphi 0, %s84
    %s87 = sphi 0, %s86
    %s101 = sphi 0, %s87
    %s105 = sphi 0, %s105
    %s107 = sphi 0, %s105
    %s108 = sphi 0, %s107
    %s122 = sphi 0, %s108
    %s126 = sphi 0, %s126
    %s128 = sphi 0, %s126
    %s129 = sphi 0, %s128
    %s143 = sphi 0, %s129
    %s147 = sphi 0, %s147
    %s149 = sphi 0, %s147
    %s150 = sphi 0, %s149
    %s164 = sphi 0, %s150
    %s168 = sphi 0, %s168
    %s170 = sphi 0, %s168
    %s171 = sphi 0, %s170
    %s185 = sphi 0, %s171
    %s189 = sphi 0, %s189
    %s191 = sphi 0, %s189
    %s192 = sphi 0, %s191
    %s206 = sphi 0, %s192
    %s210 = sphi 0, %s210
    %s212 = sphi 0, %s210
    %s213 = sphi 0, %s212
    %s227 = sphi 0, %s213
    %s231 = sphi 0, %s231
    %s233 = sphi 0, %s231
    %s234 = sphi 0, %s233
    %s248 = sphi 0, %s234
    %s252 = sphi 0, %s252
    %s254 = sphi 0, %s252
    %s255 = sphi 0, %s254
    %s269 = sphi 0, %s255
    %s273 = sphi 0, %s273
    %s275 = sphi 0, %s273
    %s276 = sphi 0, %s275
    %s290 = sphi 0, %s276
    %s294 = sphi 0, %s294
    %s296 = sphi 0, %s294
    %s297 = sphi 0, %s296
    %s311 = sphi 0, %s297
    %s315 = sphi 0, %s315
    %s317 = sphi 0, %s315
    %s318 = sphi 0, %s317
    %s332 = sphi 0, %s318
    %s336 = sphi 0, %s336
    %s338 = sphi 0, %s336
    %s339 = sphi 0, %s338
    %s353 = sphi 0, %s339
    %s357 = sphi 0, %s357
    %s359 = sphi 0, %s357
    %s360 = sphi 0, %s359
    %s374 = sphi 0, %s360
    %s378 = sphi 0, %s378
    %s380 = sphi 0, %s378
    %s381 = sphi 0, %s380
    %s395 = sphi 0, %s381
    %s399 = sphi 0, %s399
    %s401 = sphi 0, %s399
    %s402 = sphi 0, %s401
    %s416 = sphi 0, %s402
    %s422 = sphi 0, %s424
    %s425 = sphi 0, %s422
    %s426 = sphi 0, %s425
    %s442 = sphi 0, %s426
  $region4: #{_lambda_.5} parent=0 // loop_header_branch
    %27 = sbr.rel (%p25) target = $region8
  $region5: #{_lambda_.5} parent=0 // loop_body
    %s29 = ssub.s32 %s24, 1
    %s30 = ssub.s32 %s24, 2
    %s31 = sadd.s32 %s24, 1
    %s32 = ssub.s32 %s24, %s31
    %p33 = scmp.eq.s32.totalorder %s32, 0
    %s35 = sadd.s32 %s34, 1
    %s36 = scalar_select %p33, %s34, %s35
    %p39 = pneg %p33
    %p40 = scmp.eq.s32.totalorder %s24, 1
    %p41 = por %p39, %p40
    %p42 = scmp.ne.s32.totalorder %s34, %s37
    %p43 = scmp.eq.s32.totalorder %s24, 0
    %p44 = por %p42, %p43
    %p45 = scmp.ne.s32.totalorder %s34, %s37
    %p46 = scmp.eq.s32.totalorder %s29, 1
    %p47 = por %p45, %p46
    %p48 = scmp.ne.s32.totalorder %s37, %s38
    %p49 = scmp.eq.s32.totalorder %s29, 0
    %p50 = por %p48, %p49
    %p51 = scmp.ne.s32.totalorder %s37, %s38
    %p52 = scmp.eq.s32.totalorder %s30, 1
    %p53 = por %p51, %p52
    %p55 = scmp.ne.s32.totalorder %s38, %s54
    %p56 = scmp.eq.s32.totalorder %s30, 0
    %p57 = por %p55, %p56
    %s58 = ssub.s32 %s24, %s31
    %p59 = scmp.eq.s32.totalorder %s58, 0
    %s61 = sadd.s32 %s60, 1
    %s62 = scalar_select %p59, %s60, %s61
    %p65 = pneg %p59
    %p66 = scmp.eq.s32.totalorder %s24, 1
    %p67 = por %p65, %p66
    %p68 = scmp.ne.s32.totalorder %s60, %s63
    %p69 = scmp.eq.s32.totalorder %s24, 0
    %p70 = por %p68, %p69
    %p71 = scmp.ne.s32.totalorder %s60, %s63
    %p72 = scmp.eq.s32.totalorder %s29, 1
    %p73 = por %p71, %p72
    %p74 = scmp.ne.s32.totalorder %s63, %s64
    %p75 = scmp.eq.s32.totalorder %s29, 0
    %p76 = por %p74, %p75
    %p77 = scmp.ne.s32.totalorder %s63, %s64
    %p78 = scmp.eq.s32.totalorder %s30, 1
    %p79 = por %p77, %p78
    %p81 = scmp.ne.s32.totalorder %s64, %s80
    %p82 = scmp.eq.s32.totalorder %s30, 0
    %p83 = por %p81, %p82
    %s85 = sadd.s32 %s84, 1
    %p88 = scmp.eq.s32.totalorder %s24, 1
    %p89 = scmp.ne.s32.totalorder %s84, %s86
    %p90 = scmp.eq.s32.totalorder %s24, 0
    %p91 = por %p89, %p90
    %p92 = scmp.ne.s32.totalorder %s84, %s86
    %p93 = scmp.eq.s32.totalorder %s29, 1
    %p94 = por %p92, %p93
    %p95 = scmp.ne.s32.totalorder %s86, %s87
    %p96 = scmp.eq.s32.totalorder %s29, 0
    %p97 = por %p95, %p96
    %p98 = scmp.ne.s32.totalorder %s86, %s87
    %p99 = scmp.eq.s32.totalorder %s30, 1
    %p100 = por %p98, %p99
    %p102 = scmp.ne.s32.totalorder %s87, %s101
    %p103 = scmp.eq.s32.totalorder %s30, 0
    %p104 = por %p102, %p103
    %s106 = sadd.s32 %s105, 1
    %p109 = scmp.eq.s32.totalorder %s24, 1
    %p110 = scmp.ne.s32.totalorder %s105, %s107
    %p111 = scmp.eq.s32.totalorder %s24, 0
    %p112 = por %p110, %p111
    %p113 = scmp.ne.s32.totalorder %s105, %s107
    %p114 = scmp.eq.s32.totalorder %s29, 1
    %p115 = por %p113, %p114
    %p116 = scmp.ne.s32.totalorder %s107, %s108
    %p117 = scmp.eq.s32.totalorder %s29, 0
    %p118 = por %p116, %p117
    %p119 = scmp.ne.s32.totalorder %s107, %s108
    %p120 = scmp.eq.s32.totalorder %s30, 1
    %p121 = por %p119, %p120
    %p123 = scmp.ne.s32.totalorder %s108, %s122
    %p124 = scmp.eq.s32.totalorder %s30, 0
    %p125 = por %p123, %p124
    %s127 = sadd.s32 %s126, 1
    %p130 = scmp.eq.s32.totalorder %s24, 1
    %p131 = scmp.ne.s32.totalorder %s126, %s128
    %p132 = scmp.eq.s32.totalorder %s24, 0
    %p133 = por %p131, %p132
    %p134 = scmp.ne.s32.totalorder %s126, %s128
    %p135 = scmp.eq.s32.totalorder %s29, 1
    %p136 = por %p134, %p135
    %p137 = scmp.ne.s32.totalorder %s128, %s129
    %p138 = scmp.eq.s32.totalorder %s29, 0
    %p139 = por %p137, %p138
    %p140 = scmp.ne.s32.totalorder %s128, %s129
    %p141 = scmp.eq.s32.totalorder %s30, 1
    %p142 = por %p140, %p141
    %p144 = scmp.ne.s32.totalorder %s129, %s143
    %p145 = scmp.eq.s32.totalorder %s30, 0
    %p146 = por %p144, %p145
    %s148 = sadd.s32 %s147, 1
    %p151 = scmp.eq.s32.totalorder %s24, 1
    %p152 = scmp.ne.s32.totalorder %s147, %s149
    %p153 = scmp.eq.s32.totalorder %s24, 0
    %p154 = por %p152, %p153
    %p155 = scmp.ne.s32.totalorder %s147, %s149
    %p156 = scmp.eq.s32.totalorder %s29, 1
    %p157 = por %p155, %p156
    %p158 = scmp.ne.s32.totalorder %s149, %s150
    %p159 = scmp.eq.s32.totalorder %s29, 0
    %p160 = por %p158, %p159
    %p161 = scmp.ne.s32.totalorder %s149, %s150
    %p162 = scmp.eq.s32.totalorder %s30, 1
    %p163 = por %p161, %p162
    %p165 = scmp.ne.s32.totalorder %s150, %s164
    %p166 = scmp.eq.s32.totalorder %s30, 0
    %p167 = por %p165, %p166
    %s169 = sadd.s32 %s168, 1
    %p172 = scmp.eq.s32.totalorder %s24, 1
    %p173 = scmp.ne.s32.totalorder %s168, %s170
    %p174 = scmp.eq.s32.totalorder %s24, 0
    %p175 = por %p173, %p174
    %p176 = scmp.ne.s32.totalorder %s168, %s170
    %p177 = scmp.eq.s32.totalorder %s29, 1
    %p178 = por %p176, %p177
    %p179 = scmp.ne.s32.totalorder %s170, %s171
    %p180 = scmp.eq.s32.totalorder %s29, 0
    %p181 = por %p179, %p180
    %p182 = scmp.ne.s32.totalorder %s170, %s171
    %p183 = scmp.eq.s32.totalorder %s30, 1
    %p184 = por %p182, %p183
    %p186 = scmp.ne.s32.totalorder %s171, %s185
    %p187 = scmp.eq.s32.totalorder %s30, 0
    %p188 = por %p186, %p187
    %s190 = sadd.s32 %s189, 1
    %p193 = scmp.eq.s32.totalorder %s24, 1
    %p194 = scmp.ne.s32.totalorder %s189, %s191
    %p195 = scmp.eq.s32.totalorder %s24, 0
    %p196 = por %p194, %p195
    %p197 = scmp.ne.s32.totalorder %s189, %s191
    %p198 = scmp.eq.s32.totalorder %s29, 1
    %p199 = por %p197, %p198
    %p200 = scmp.ne.s32.totalorder %s191, %s192
    %p201 = scmp.eq.s32.totalorder %s29, 0
    %p202 = por %p200, %p201
    %p203 = scmp.ne.s32.totalorder %s191, %s192
    %p204 = scmp.eq.s32.totalorder %s30, 1
    %p205 = por %p203, %p204
    %p207 = scmp.ne.s32.totalorder %s192, %s206
    %p208 = scmp.eq.s32.totalorder %s30, 0
    %p209 = por %p207, %p208
    %s211 = sadd.s32 %s210, 1
    %p214 = scmp.eq.s32.totalorder %s24, 1
    %p215 = scmp.ne.s32.totalorder %s210, %s212
    %p216 = scmp.eq.s32.totalorder %s24, 0
    %p217 = por %p215, %p216
    %p218 = scmp.ne.s32.totalorder %s210, %s212
    %p219 = scmp.eq.s32.totalorder %s29, 1
    %p220 = por %p218, %p219
    %p221 = scmp.ne.s32.totalorder %s212, %s213
    %p222 = scmp.eq.s32.totalorder %s29, 0
    %p223 = por %p221, %p222
    %p224 = scmp.ne.s32.totalorder %s212, %s213
    %p225 = scmp.eq.s32.totalorder %s30, 1
    %p226 = por %p224, %p225
    %p228 = scmp.ne.s32.totalorder %s213, %s227
    %p229 = scmp.eq.s32.totalorder %s30, 0
    %p230 = por %p228, %p229
    %s232 = sadd.s32 %s231, 1
    %p235 = scmp.eq.s32.totalorder %s24, 1
    %p236 = scmp.ne.s32.totalorder %s231, %s233
    %p237 = scmp.eq.s32.totalorder %s24, 0
    %p238 = por %p236, %p237
    %p239 = scmp.ne.s32.totalorder %s231, %s233
    %p240 = scmp.eq.s32.totalorder %s29, 1
    %p241 = por %p239, %p240
    %p242 = scmp.ne.s32.totalorder %s233, %s234
    %p243 = scmp.eq.s32.totalorder %s29, 0
    %p244 = por %p242, %p243
    %p245 = scmp.ne.s32.totalorder %s233, %s234
    %p246 = scmp.eq.s32.totalorder %s30, 1
    %p247 = por %p245, %p246
    %p249 = scmp.ne.s32.totalorder %s234, %s248
    %p250 = scmp.eq.s32.totalorder %s30, 0
    %p251 = por %p249, %p250
    %s253 = sadd.s32 %s252, 1
    %p256 = scmp.eq.s32.totalorder %s24, 1
    %p257 = scmp.ne.s32.totalorder %s252, %s254
    %p258 = scmp.eq.s32.totalorder %s24, 0
    %p259 = por %p257, %p258
    %p260 = scmp.ne.s32.totalorder %s252, %s254
    %p261 = scmp.eq.s32.totalorder %s29, 1
    %p262 = por %p260, %p261
    %p263 = scmp.ne.s32.totalorder %s254, %s255
    %p264 = scmp.eq.s32.totalorder %s29, 0
    %p265 = por %p263, %p264
    %p266 = scmp.ne.s32.totalorder %s254, %s255
    %p267 = scmp.eq.s32.totalorder %s30, 1
    %p268 = por %p266, %p267
    %p270 = scmp.ne.s32.totalorder %s255, %s269
    %p271 = scmp.eq.s32.totalorder %s30, 0
    %p272 = por %p270, %p271
    %s274 = sadd.s32 %s273, 1
    %p277 = scmp.eq.s32.totalorder %s24, 1
    %p278 = scmp.ne.s32.totalorder %s273, %s275
    %p279 = scmp.eq.s32.totalorder %s24, 0
    %p280 = por %p278, %p279
    %p281 = scmp.ne.s32.totalorder %s273, %s275
    %p282 = scmp.eq.s32.totalorder %s29, 1
    %p283 = por %p281, %p282
    %p284 = scmp.ne.s32.totalorder %s275, %s276
    %p285 = scmp.eq.s32.totalorder %s29, 0
    %p286 = por %p284, %p285
    %p287 = scmp.ne.s32.totalorder %s275, %s276
    %p288 = scmp.eq.s32.totalorder %s30, 1
    %p289 = por %p287, %p288
    %p291 = scmp.ne.s32.totalorder %s276, %s290
    %p292 = scmp.eq.s32.totalorder %s30, 0
    %p293 = por %p291, %p292
    %s295 = sadd.s32 %s294, 1
    %p298 = scmp.eq.s32.totalorder %s24, 1
    %p299 = scmp.ne.s32.totalorder %s294, %s296
    %p300 = scmp.eq.s32.totalorder %s24, 0
    %p301 = por %p299, %p300
    %p302 = scmp.ne.s32.totalorder %s294, %s296
    %p303 = scmp.eq.s32.totalorder %s29, 1
    %p304 = por %p302, %p303
    %p305 = scmp.ne.s32.totalorder %s296, %s297
    %p306 = scmp.eq.s32.totalorder %s29, 0
    %p307 = por %p305, %p306
    %p308 = scmp.ne.s32.totalorder %s296, %s297
    %p309 = scmp.eq.s32.totalorder %s30, 1
    %p310 = por %p308, %p309
    %p312 = scmp.ne.s32.totalorder %s297, %s311
    %p313 = scmp.eq.s32.totalorder %s30, 0
    %p314 = por %p312, %p313
    %s316 = sadd.s32 %s315, 1
    %p319 = scmp.eq.s32.totalorder %s24, 1
    %p320 = scmp.ne.s32.totalorder %s315, %s317
    %p321 = scmp.eq.s32.totalorder %s24, 0
    %p322 = por %p320, %p321
    %p323 = scmp.ne.s32.totalorder %s315, %s317
    %p324 = scmp.eq.s32.totalorder %s29, 1
    %p325 = por %p323, %p324
    %p326 = scmp.ne.s32.totalorder %s317, %s318
    %p327 = scmp.eq.s32.totalorder %s29, 0
    %p328 = por %p326, %p327
    %p329 = scmp.ne.s32.totalorder %s317, %s318
    %p330 = scmp.eq.s32.totalorder %s30, 1
    %p331 = por %p329, %p330
    %p333 = scmp.ne.s32.totalorder %s318, %s332
    %p334 = scmp.eq.s32.totalorder %s30, 0
    %p335 = por %p333, %p334
    %s337 = sadd.s32 %s336, 1
    %p340 = scmp.eq.s32.totalorder %s24, 1
    %p341 = scmp.ne.s32.totalorder %s336, %s338
    %p342 = scmp.eq.s32.totalorder %s24, 0
    %p343 = por %p341, %p342
    %p344 = scmp.ne.s32.totalorder %s336, %s338
    %p345 = scmp.eq.s32.totalorder %s29, 1
    %p346 = por %p344, %p345
    %p347 = scmp.ne.s32.totalorder %s338, %s339
    %p348 = scmp.eq.s32.totalorder %s29, 0
    %p349 = por %p347, %p348
    %p350 = scmp.ne.s32.totalorder %s338, %s339
    %p351 = scmp.eq.s32.totalorder %s30, 1
    %p352 = por %p350, %p351
    %p354 = scmp.ne.s32.totalorder %s339, %s353
    %p355 = scmp.eq.s32.totalorder %s30, 0
    %p356 = por %p354, %p355
    %s358 = sadd.s32 %s357, 1
    %p361 = scmp.eq.s32.totalorder %s24, 1
    %p362 = scmp.ne.s32.totalorder %s357, %s359
    %p363 = scmp.eq.s32.totalorder %s24, 0
    %p364 = por %p362, %p363
    %p365 = scmp.ne.s32.totalorder %s357, %s359
    %p366 = scmp.eq.s32.totalorder %s29, 1
    %p367 = por %p365, %p366
    %p368 = scmp.ne.s32.totalorder %s359, %s360
    %p369 = scmp.eq.s32.totalorder %s29, 0
    %p370 = por %p368, %p369
    %p371 = scmp.ne.s32.totalorder %s359, %s360
    %p372 = scmp.eq.s32.totalorder %s30, 1
    %p373 = por %p371, %p372
    %p375 = scmp.ne.s32.totalorder %s360, %s374
    %p376 = scmp.eq.s32.totalorder %s30, 0
    %p377 = por %p375, %p376
    %s379 = sadd.s32 %s378, 1
    %p382 = scmp.eq.s32.totalorder %s24, 1
    %p383 = scmp.ne.s32.totalorder %s378, %s380
    %p384 = scmp.eq.s32.totalorder %s24, 0
    %p385 = por %p383, %p384
    %p386 = scmp.ne.s32.totalorder %s378, %s380
    %p387 = scmp.eq.s32.totalorder %s29, 1
    %p388 = por %p386, %p387
    %p389 = scmp.ne.s32.totalorder %s380, %s381
    %p390 = scmp.eq.s32.totalorder %s29, 0
    %p391 = por %p389, %p390
    %p392 = scmp.ne.s32.totalorder %s380, %s381
    %p393 = scmp.eq.s32.totalorder %s30, 1
    %p394 = por %p392, %p393
    %p396 = scmp.ne.s32.totalorder %s381, %s395
    %p397 = scmp.eq.s32.totalorder %s30, 0
    %p398 = por %p396, %p397
    %s400 = sadd.s32 %s399, 1
    %p403 = scmp.eq.s32.totalorder %s24, 1
    %p404 = scmp.ne.s32.totalorder %s399, %s401
    %p405 = scmp.eq.s32.totalorder %s24, 0
    %p406 = por %p404, %p405
    %p407 = scmp.ne.s32.totalorder %s399, %s401
    %p408 = scmp.eq.s32.totalorder %s29, 1
    %p409 = por %p407, %p408
    %p410 = scmp.ne.s32.totalorder %s401, %s402
    %p411 = scmp.eq.s32.totalorder %s29, 0
    %p412 = por %p410, %p411
    %p413 = scmp.ne.s32.totalorder %s401, %s402
    %p414 = scmp.eq.s32.totalorder %s30, 1
    %p415 = por %p413, %p414
    %p417 = scmp.ne.s32.totalorder %s402, %s416
    %p418 = scmp.eq.s32.totalorder %s30, 0
    %p419 = por %p417, %p418
    %s420 = ssub.s32 %s24, %s31
    %p421 = scmp.eq.s32.totalorder %s420, 0
    %s423 = sadd.s32 %s422, 1
    %s424 = scalar_select %p421, %s422, %s423
    %p427 = pneg %p421
    %p428 = scmp.eq.s32.totalorder %s24, 1
    %p429 = por %p427, %p428
    %p430 = scmp.ne.s32.totalorder %s422, %s425
    %p431 = scmp.eq.s32.totalorder %s24, 0
    %p432 = por %p430, %p431
    %p433 = scmp.ne.s32.totalorder %s422, %s425
    %p434 = scmp.eq.s32.totalorder %s29, 1
    %p435 = por %p433, %p434
    %p436 = scmp.ne.s32.totalorder %s425, %s426
    %p437 = scmp.eq.s32.totalorder %s29, 0
    %p438 = por %p436, %p437
    %p439 = scmp.ne.s32.totalorder %s425, %s426
    %p440 = scmp.eq.s32.totalorder %s30, 1
    %p441 = por %p439, %p440
    %p443 = scmp.ne.s32.totalorder %s426, %s442
    %p444 = scmp.eq.s32.totalorder %s30, 0
    %p445 = por %p443, %p444
    %p446 = scmp.le.s32.totalorder 1, %s24
    %p447 = scmp.lt.s32.totalorder %s24, 3
    %p448 = pnand %p446, %p447
    %p449 = pneg %p448
    // Predicated region
    $region9: #{_lambda_.5} parent=5 // pred_check
      _
    $region10: #{_lambda_.5} parent=5 // pred_check_branch
      %451 = sbr.rel (%p448) target = $region12
    $region11: #{_lambda_.5} parent=5 // pred_region
      %s452 = ssub.s32 %s24, 1
      // Predicated region
      $region13: #{_lambda_.5} parent=11 // pred_check
        %p453 = pneg %p97
      $region14: #{_lambda_.5} parent=11 // pred_check_branch
        %455 = sbr.rel (%p453) target = $region16
      $region15: #{_lambda_.5} parent=11 // pred_region
        _
      $region16: #{_lambda_.5} parent=11 // pred_fallthru
        _
      // Predicated region
      $region17: #{_lambda_.5} parent=11 // pred_check
        %p456 = pneg %p118
      $region18: #{_lambda_.5} parent=11 // pred_check_branch
        %458 = sbr.rel (%p456) target = $region20
      $region19: #{_lambda_.5} parent=11 // pred_region
        _
      $region20: #{_lambda_.5} parent=11 // pred_fallthru
        _
      // Predicated region
      $region21: #{_lambda_.5} parent=11 // pred_check
        %p459 = pneg %p139
      $region22: #{_lambda_.5} parent=11 // pred_check_branch
        %461 = sbr.rel (%p459) target = $region24
      $region23: #{_lambda_.5} parent=11 // pred_region
        _
      $region24: #{_lambda_.5} parent=11 // pred_fallthru
        _
      // Predicated region
      $region25: #{_lambda_.5} parent=11 // pred_check
        %p462 = pneg %p160
      $region26: #{_lambda_.5} parent=11 // pred_check_branch
        %464 = sbr.rel (%p462) target = $region28
      $region27: #{_lambda_.5} parent=11 // pred_region
        _
      $region28: #{_lambda_.5} parent=11 // pred_fallthru
        _
      // Predicated region
      $region29: #{_lambda_.5} parent=11 // pred_check
        %p465 = pneg %p181
      $region30: #{_lambda_.5} parent=11 // pred_check_branch
        %467 = sbr.rel (%p465) target = $region32
      $region31: #{_lambda_.5} parent=11 // pred_region
        _
      $region32: #{_lambda_.5} parent=11 // pred_fallthru
        _
      // Predicated region
      $region33: #{_lambda_.5} parent=11 // pred_check
        %p468 = pneg %p202
      $region34: #{_lambda_.5} parent=11 // pred_check_branch
        %470 = sbr.rel (%p468) target = $region36
      $region35: #{_lambda_.5} parent=11 // pred_region
        _
      $region36: #{_lambda_.5} parent=11 // pred_fallthru
        _
      // Predicated region
      $region37: #{_lambda_.5} parent=11 // pred_check
        %p471 = pneg %p223
      $region38: #{_lambda_.5} parent=11 // pred_check_branch
        %473 = sbr.rel (%p471) target = $region40
      $region39: #{_lambda_.5} parent=11 // pred_region
        _
      $region40: #{_lambda_.5} parent=11 // pred_fallthru
        _
      // Predicated region
      $region41: #{_lambda_.5} parent=11 // pred_check
        %p474 = pneg %p244
      $region42: #{_lambda_.5} parent=11 // pred_check_branch
        %476 = sbr.rel (%p474) target = $region44
      $region43: #{_lambda_.5} parent=11 // pred_region
        _
      $region44: #{_lambda_.5} parent=11 // pred_fallthru
        _
      // Predicated region
      $region45: #{_lambda_.5} parent=11 // pred_check
        %p477 = pneg %p265
      $region46: #{_lambda_.5} parent=11 // pred_check_branch
        %479 = sbr.rel (%p477) target = $region48
      $region47: #{_lambda_.5} parent=11 // pred_region
        _
      $region48: #{_lambda_.5} parent=11 // pred_fallthru
        _
      // Predicated region
      $region49: #{_lambda_.5} parent=11 // pred_check
        %p480 = pneg %p286
      $region50: #{_lambda_.5} parent=11 // pred_check_branch
        %482 = sbr.rel (%p480) target = $region52
      $region51: #{_lambda_.5} parent=11 // pred_region
        _
      $region52: #{_lambda_.5} parent=11 // pred_fallthru
        _
      // Predicated region
      $region53: #{_lambda_.5} parent=11 // pred_check
        %p483 = pneg %p307
      $region54: #{_lambda_.5} parent=11 // pred_check_branch
        %485 = sbr.rel (%p483) target = $region56
      $region55: #{_lambda_.5} parent=11 // pred_region
        _
      $region56: #{_lambda_.5} parent=11 // pred_fallthru
        _
      // Predicated region
      $region57: #{_lambda_.5} parent=11 // pred_check
        %p486 = pneg %p328
      $region58: #{_lambda_.5} parent=11 // pred_check_branch
        %488 = sbr.rel (%p486) target = $region60
      $region59: #{_lambda_.5} parent=11 // pred_region
        _
      $region60: #{_lambda_.5} parent=11 // pred_fallthru
        _
      // Predicated region
      $region61: #{_lambda_.5} parent=11 // pred_check
        %p489 = pneg %p349
      $region62: #{_lambda_.5} parent=11 // pred_check_branch
        %491 = sbr.rel (%p489) target = $region64
      $region63: #{_lambda_.5} parent=11 // pred_region
        _
      $region64: #{_lambda_.5} parent=11 // pred_fallthru
        _
      // Predicated region
      $region65: #{_lambda_.5} parent=11 // pred_check
        %p492 = pneg %p370
      $region66: #{_lambda_.5} parent=11 // pred_check_branch
        %494 = sbr.rel (%p492) target = $region68
      $region67: #{_lambda_.5} parent=11 // pred_region
        _
      $region68: #{_lambda_.5} parent=11 // pred_fallthru
        _
      // Predicated region
      $region69: #{_lambda_.5} parent=11 // pred_check
        %p495 = pneg %p391
      $region70: #{_lambda_.5} parent=11 // pred_check_branch
        %497 = sbr.rel (%p495) target = $region72
      $region71: #{_lambda_.5} parent=11 // pred_region
        _
      $region72: #{_lambda_.5} parent=11 // pred_fallthru
        _
      // Predicated region
      $region73: #{_lambda_.5} parent=11 // pred_check
        %p498 = pneg %p412
      $region74: #{_lambda_.5} parent=11 // pred_check_branch
        %500 = sbr.rel (%p498) target = $region76
      $region75: #{_lambda_.5} parent=11 // pred_region
        _
      $region76: #{_lambda_.5} parent=11 // pred_fallthru
        _
    $region12: #{_lambda_.5} parent=5 // pred_fallthru
      _
    %p501 = scmp.lt.s32.totalorder %s24, 2
    // Predicated region
    $region77: #{_lambda_.5} parent=5 // pred_check
      %p502 = pneg %p501
    $region78: #{_lambda_.5} parent=5 // pred_check_branch
      %504 = sbr.rel (%p502) target = $region80
    $region79: #{_lambda_.5} parent=5 // pred_region
      // Predicated region
      $region81: #{_lambda_.5} parent=79 // pred_check
        %p505 = pneg %p44
      $region82: #{_lambda_.5} parent=79 // pred_check_branch
        %507 = sbr.rel (%p505) target = $region84
      $region83: #{_lambda_.5} parent=79 // pred_region
        %p508 = scmp.lt.s32.totalorder %s24, 1
        %s509 = scalar_select %p508, %s24, 1
        %s510 = smul.addr %s509, 8
        %s511 = scalar_lea.vmem %s0, %s510
      $region84: #{_lambda_.5} parent=79 // pred_fallthru
        _
      // Predicated region
      $region85: #{_lambda_.5} parent=79 // pred_check
        %p512 = pneg %p70
      $region86: #{_lambda_.5} parent=79 // pred_check_branch
        %514 = sbr.rel (%p512) target = $region88
      $region87: #{_lambda_.5} parent=79 // pred_region
        %p515 = scmp.lt.s32.totalorder %s24, 1
        %s516 = scalar_select %p515, %s24, 1
        %s517 = scalar_lea.vmem %s1, %s516
      $region88: #{_lambda_.5} parent=79 // pred_fallthru
        _
    $region80: #{_lambda_.5} parent=5 // pred_fallthru
      _
    %p518 = scmp.le.s32.totalorder 1, %s24
    %p519 = scmp.lt.s32.totalorder %s24, 3
    %p520 = pnand %p518, %p519
    %p521 = pneg %p520
    // Predicated region
    $region89: #{_lambda_.5} parent=5 // pred_check
      _
    $region90: #{_lambda_.5} parent=5 // pred_check_branch
      %523 = sbr.rel (%p520) target = $region92
    $region91: #{_lambda_.5} parent=5 // pred_region
      %s524 = ssub.s32 %s24, 1
      %p525 = scmp.lt.s32.totalorder %s29, 1
      %s526 = scalar_select %p525, %s29, 1
      %s527 = smul.addr %s526, 8
      %s528 = scalar_lea.vmem %s0, %s527
      %p529 = pneg %p50
      %p530 = pneg %p47
      %p531 = scmp.lt.s32.totalorder %s29, 1
      %s532 = scalar_select %p531, %s29, 1
      %s533 = scalar_lea.vmem %s1, %s532
      %p534 = pneg %p76
      %p535 = pneg %p73
      %p536 = pneg %p97
      %p537 = pneg %p94
      %p538 = pneg %p118
      %p539 = pneg %p115
      %p540 = pneg %p139
      %p541 = pneg %p136
      %p542 = pneg %p160
      %p543 = pneg %p157
      %p544 = pneg %p181
      %p545 = pneg %p178
      %p546 = pneg %p202
      %p547 = pneg %p199
      %p548 = pneg %p223
      %p549 = pneg %p220
      %p550 = pneg %p244
      %p551 = pneg %p241
      %p552 = pneg %p265
      %p553 = pneg %p262
      %p554 = pneg %p286
      %p555 = pneg %p283
      %p556 = pneg %p307
      %p557 = pneg %p304
      %p558 = pneg %p328
      %p559 = pneg %p325
      %p560 = pneg %p349
      %p561 = pneg %p346
      %p562 = pneg %p370
      %p563 = pneg %p367
      %p564 = pneg %p391
      %p565 = pneg %p388
      %p566 = pneg %p412
      %p567 = pneg %p409
      %p568 = pneg %p438
      %p569 = pneg %p435
      %p570 = scmp.lt.s32.totalorder %s29, 1
      %s571 = scalar_select %p570, %s29, 1
      %s572 = smul.addr %s571, 8
      %s573 = scalar_lea.vmem %s18, %s572
      %p574 = scmp.lt.s32.totalorder %s29, 1
      %s575 = scalar_select %p574, %s29, 1
      %s576 = smul.addr %s575, 8
      %s577 = scalar_lea.vmem %s0, %s576
      %p578 = scmp.lt.s32.totalorder %s29, 1
      %s579 = scalar_select %p578, %s29, 1
      %s580 = scalar_lea.vmem %s1, %s579
      %p581 = scmp.lt.s32.totalorder %s29, 1
      %s582 = scalar_select %p581, %s29, 1
      %s583 = smul.addr %s582, 8
      %s584 = scalar_lea.vmem %s18, %s583
      %v585 = vld [vmem:[%s577] sm:$0xff]
      %v586 = vld [vmem:[%s580] sm:$0x1]
      %v587 = vld [vmem:[%s2] sm:$0xff]
      %v588 = vld [vmem:[%s2 + $0x8] sm:$0xff]
      %v589 = vld [vmem:[%s2 + $0x10] sm:$0xff]
      %v590 = vld [vmem:[%s2 + $0x18] sm:$0xff]
      %v591 = vld [vmem:[%s3] sm:$0x1]
      %v593 = vlaneseq
      %v594 = vshrl.u32 %v593, 7
      %v595 = vsub.s32 0, %v594
      %v596 = vrot.slane %v591, %v595
      %vm598 = vcmask 261120
      %v600 = vsel %vm598, %v585, 0
      %602 = vmatprep.subr.mxu0 0.0
      %603 = vmatpush1.msra.mxu0 %v587
      %604 = vmatprep.subr.mxu0 0.0
      %605 = vmatpush1.msra.mxu0 %v588
      %606 = vmatprep.subr.mxu0 0.0
      %607 = vmatpush1.msra.mxu0 %v589
      %608 = vmatprep.subr.mxu0 0.0
      %609 = vmatpush1.msra.mxu0 %v590
      %610 = vmatprep.subr.mxu0 0.0
      %611 = vmatpush1.msra.mxu0 0.0
      %612 = vmatprep.subr.mxu0 0.0
      %613 = vmatpush1.msra.mxu0 0.0
      %614 = vmatprep.subr.mxu0 0.0
      %615 = vmatpush1.msra.mxu0 0.0
      %616 = vmatprep.subr.mxu0 0.0
      %617 = vmatpush1.msra.mxu0 0.0
      %618 = vmatprep.subr.mxu0 0.0
      %619 = vmatpush1.msra.mxu0 0.0
      %620 = vmatprep.subr.mxu0 0.0
      %621 = vmatpush1.msra.mxu0 0.0
      %622 = vmatprep.subr.mxu0 0.0
      %623 = vmatpush1.msra.mxu0 0.0
      %624 = vmatprep.subr.mxu0 0.0
      %625 = vmatpush1.msra.mxu0 0.0
      %626 = vmatprep.subr.mxu0 0.0
      %627 = vmatpush1.msra.mxu0 0.0
      %628 = vmatprep.subr.mxu0 0.0
      %629 = vmatpush1.msra.mxu0 0.0
      %630 = vmatprep.subr.mxu0 0.0
      %631 = vmatpush1.msra.mxu0 0.0
      %632 = vmatprep.subr.mxu0 0.0
      %633 = vmatpush1.msra.mxu0 0.0
      %634 = vmatprep.subr.mxu0 0.0
      %635 = vmatpush1.msra.mxu0 0.0
      %636 = vmatprep.subr.mxu0 0.0
      %637 = vmatpush1.msra.mxu0 0.0
      %638 = vmatprep.subr.mxu0 0.0
      %639 = vmatpush1.msra.mxu0 0.0
      %640 = vmatprep.subr.mxu0 0.0
      %641 = vmatpush1.msra.mxu0 0.0
      %642 = vmatprep.subr.mxu0 0.0
      %643 = vmatpush1.msra.mxu0 0.0
      %644 = vmatprep.subr.mxu0 0.0
      %645 = vmatpush1.msra.mxu0 0.0
      %646 = vmatprep.subr.mxu0 0.0
      %647 = vmatpush1.msra.mxu0 0.0
      %648 = vmatprep.subr.mxu0 0.0
      %649 = vmatpush1.msra.mxu0 0.0
      %650 = vmatprep.subr.mxu0 0.0
      %651 = vmatpush1.msra.mxu0 0.0
      %652 = vmatprep.subr.mxu0 0.0
      %653 = vmatpush1.msra.mxu0 0.0
      %654 = vmatprep.subr.mxu0 0.0
      %655 = vmatpush1.msra.mxu0 0.0
      %656 = vmatprep.subr.mxu0 0.0
      %657 = vmatpush1.msra.mxu0 0.0
      %658 = vmatprep.subr.mxu0 0.0
      %659 = vmatpush1.msra.mxu0 0.0
      %660 = vmatprep.subr.mxu0 0.0
      %661 = vmatpush1.msra.mxu0 0.0
      %662 = vmatprep.subr.mxu0 0.0
      %663 = vmatpush1.msra.mxu0 0.0
      %664 = vmatprep.subr.mxu0 0.0
      %665 = vmatpush1.msra.mxu0 0.0
      %666 = vmatprep.mubr.f32.mxu0 0.0
      %667 = vmatmul.mubr.f32.gmra.mrb[0].mxu0 %v600
      %v668 = vpop.f32.mrb[0].mxu0
      %v669 = vadd.f32 %v596, %v668
      %v670 = vpop.f32.mrb[0].mxu0
      %671 = vdwg.mxu0
      %v672 = vld [vmem:[%s4] sm:$0xff]
      %v673 = vld [vmem:[%s4 + $0x8] sm:$0xff]
      %v674 = vld [vmem:[%s4 + $0x10] sm:$0xff]
      %v675 = vld [vmem:[%s4 + $0x18] sm:$0xff]
      %v676 = vld [vmem:[%s5] sm:$0x1]
      %v678 = vlaneseq
      %v679 = vshrl.u32 %v678, 7
      %v680 = vsub.s32 0, %v679
      %v681 = vrot.slane %v676, %v680
      %683 = vmatprep.subr.mxu0 0.0
      %684 = vmatpush1.msra.mxu0 %v672
      %685 = vmatprep.subr.mxu0 0.0
      %686 = vmatpush1.msra.mxu0 %v673
      %687 = vmatprep.subr.mxu0 0.0
      %688 = vmatpush1.msra.mxu0 %v674
      %689 = vmatprep.subr.mxu0 0.0
      %690 = vmatpush1.msra.mxu0 %v675
      %691 = vmatprep.subr.mxu0 0.0
      %692 = vmatpush1.msra.mxu0 0.0
      %693 = vmatprep.subr.mxu0 0.0
      %694 = vmatpush1.msra.mxu0 0.0
      %695 = vmatprep.subr.mxu0 0.0
      %696 = vmatpush1.msra.mxu0 0.0
      %697 = vmatprep.subr.mxu0 0.0
      %698 = vmatpush1.msra.mxu0 0.0
      %699 = vmatprep.subr.mxu0 0.0
      %700 = vmatpush1.msra.mxu0 0.0
      %701 = vmatprep.subr.mxu0 0.0
      %702 = vmatpush1.msra.mxu0 0.0
      %703 = vmatprep.subr.mxu0 0.0
      %704 = vmatpush1.msra.mxu0 0.0
      %705 = vmatprep.subr.mxu0 0.0
      %706 = vmatpush1.msra.mxu0 0.0
      %707 = vmatprep.subr.mxu0 0.0
      %708 = vmatpush1.msra.mxu0 0.0
      %709 = vmatprep.subr.mxu0 0.0
      %710 = vmatpush1.msra.mxu0 0.0
      %711 = vmatprep.subr.mxu0 0.0
      %712 = vmatpush1.msra.mxu0 0.0
      %713 = vmatprep.subr.mxu0 0.0
      %714 = vmatpush1.msra.mxu0 0.0
      %715 = vmatprep.subr.mxu0 0.0
      %716 = vmatpush1.msra.mxu0 0.0
      %717 = vmatprep.subr.mxu0 0.0
      %718 = vmatpush1.msra.mxu0 0.0
      %719 = vmatprep.subr.mxu0 0.0
      %720 = vmatpush1.msra.mxu0 0.0
      %721 = vmatprep.subr.mxu0 0.0
      %722 = vmatpush1.msra.mxu0 0.0
      %723 = vmatprep.subr.mxu0 0.0
      %724 = vmatpush1.msra.mxu0 0.0
      %725 = vmatprep.subr.mxu0 0.0
      %726 = vmatpush1.msra.mxu0 0.0
      %727 = vmatprep.subr.mxu0 0.0
      %728 = vmatpush1.msra.mxu0 0.0
      %729 = vmatprep.subr.mxu0 0.0
      %730 = vmatpush1.msra.mxu0 0.0
      %731 = vmatprep.subr.mxu0 0.0
      %732 = vmatpush1.msra.mxu0 0.0
      %733 = vmatprep.subr.mxu0 0.0
      %734 = vmatpush1.msra.mxu0 0.0
      %735 = vmatprep.subr.mxu0 0.0
      %736 = vmatpush1.msra.mxu0 0.0
      %737 = vmatprep.subr.mxu0 0.0
      %738 = vmatpush1.msra.mxu0 0.0
      %739 = vmatprep.subr.mxu0 0.0
      %740 = vmatpush1.msra.mxu0 0.0
      %741 = vmatprep.subr.mxu0 0.0
      %742 = vmatpush1.msra.mxu0 0.0
      %743 = vmatprep.subr.mxu0 0.0
      %744 = vmatpush1.msra.mxu0 0.0
      %745 = vmatprep.subr.mxu0 0.0
      %746 = vmatpush1.msra.mxu0 0.0
      %747 = vmatprep.mubr.f32.mxu0 0.0
      %748 = vmatmul.mubr.f32.gmra.mrb[0].mxu0 %v600
      %v749 = vpop.f32.mrb[0].mxu0
      %v750 = vadd.f32 %v681, %v749
      %v751 = vpop.f32.mrb[0].mxu0
      %752 = vdwg.mxu0
      %v753 = vld [vmem:[%s6] sm:$0xff]
      %v754 = vld [vmem:[%s6 + $0x8] sm:$0xff]
      %v755 = vld [vmem:[%s6 + $0x10] sm:$0xff]
      %v756 = vld [vmem:[%s6 + $0x18] sm:$0xff]
      %v757 = vld [vmem:[%s7] sm:$0x1]
      %v759 = vlaneseq
      %v760 = vshrl.u32 %v759, 7
      %v761 = vsub.s32 0, %v760
      %v762 = vrot.slane %v757, %v761
      %764 = vmatprep.subr.mxu0 0.0
      %765 = vmatpush1.msra.mxu0 %v753
      %766 = vmatprep.subr.mxu0 0.0
      %767 = vmatpush1.msra.mxu0 %v754
      %768 = vmatprep.subr.mxu0 0.0
      %769 = vmatpush1.msra.mxu0 %v755
      %770 = vmatprep.subr.mxu0 0.0
      %771 = vmatpush1.msra.mxu0 %v756
      %772 = vmatprep.subr.mxu0 0.0
      %773 = vmatpush1.msra.mxu0 0.0
      %774 = vmatprep.subr.mxu0 0.0
      %775 = vmatpush1.msra.mxu0 0.0
      %776 = vmatprep.subr.mxu0 0.0
      %777 = vmatpush1.msra.mxu0 0.0
      %778 = vmatprep.subr.mxu0 0.0
      %779 = vmatpush1.msra.mxu0 0.0
      %780 = vmatprep.subr.mxu0 0.0
      %781 = vmatpush1.msra.mxu0 0.0
      %782 = vmatprep.subr.mxu0 0.0
      %783 = vmatpush1.msra.mxu0 0.0
      %784 = vmatprep.subr.mxu0 0.0
      %785 = vmatpush1.msra.mxu0 0.0
      %786 = vmatprep.subr.mxu0 0.0
      %787 = vmatpush1.msra.mxu0 0.0
      %788 = vmatprep.subr.mxu0 0.0
      %789 = vmatpush1.msra.mxu0 0.0
      %790 = vmatprep.subr.mxu0 0.0
      %791 = vmatpush1.msra.mxu0 0.0
      %792 = vmatprep.subr.mxu0 0.0
      %793 = vmatpush1.msra.mxu0 0.0
      %794 = vmatprep.subr.mxu0 0.0
      %795 = vmatpush1.msra.mxu0 0.0
      %796 = vmatprep.subr.mxu0 0.0
      %797 = vmatpush1.msra.mxu0 0.0
      %798 = vmatprep.subr.mxu0 0.0
      %799 = vmatpush1.msra.mxu0 0.0
      %800 = vmatprep.subr.mxu0 0.0
      %801 = vmatpush1.msra.mxu0 0.0
      %802 = vmatprep.subr.mxu0 0.0
      %803 = vmatpush1.msra.mxu0 0.0
      %804 = vmatprep.subr.mxu0 0.0
      %805 = vmatpush1.msra.mxu0 0.0
      %806 = vmatprep.subr.mxu0 0.0
      %807 = vmatpush1.msra.mxu0 0.0
      %808 = vmatprep.subr.mxu0 0.0
      %809 = vmatpush1.msra.mxu0 0.0
      %810 = vmatprep.subr.mxu0 0.0
      %811 = vmatpush1.msra.mxu0 0.0
      %812 = vmatprep.subr.mxu0 0.0
      %813 = vmatpush1.msra.mxu0 0.0
      %814 = vmatprep.subr.mxu0 0.0
      %815 = vmatpush1.msra.mxu0 0.0
      %816 = vmatprep.subr.mxu0 0.0
      %817 = vmatpush1.msra.mxu0 0.0
      %818 = vmatprep.subr.mxu0 0.0
      %819 = vmatpush1.msra.mxu0 0.0
      %820 = vmatprep.subr.mxu0 0.0
      %821 = vmatpush1.msra.mxu0 0.0
      %822 = vmatprep.subr.mxu0 0.0
      %823 = vmatpush1.msra.mxu0 0.0
      %824 = vmatprep.subr.mxu0 0.0
      %825 = vmatpush1.msra.mxu0 0.0
      %826 = vmatprep.subr.mxu0 0.0
      %827 = vmatpush1.msra.mxu0 0.0
      %828 = vmatprep.mubr.f32.mxu0 0.0
      %829 = vmatmul.mubr.f32.gmra.mrb[0].mxu0 %v600
      %v830 = vpop.f32.mrb[0].mxu0
      %v831 = vadd.f32 %v762, %v830
      %v832 = vpop.f32.mrb[0].mxu0
      %833 = vdwg.mxu0
      %v835 = vlaneseq
      %v836 = vshrl.u32 %v835, 7
      %v837 = vsub.s32 0, %v836
      %v838 = vrot.slane %v586, %v837
      %vm840 = vcmask 64512
      %v842 = vsel %vm840, %v669, 0
      %v845 = vsel %vm840, %v750, 0
      %847 = vmatprep.subr.mxu0 0.0
      %848 = vmatpush1.xpose.msra.mxu0 %v845
      %849 = vmatprep.subr.mxu0 0.0
      %850 = vmatpush1.xpose.msra.mxu0 0.0
      %851 = vmatprep.subr.mxu0 0.0
      %852 = vmatpush1.xpose.msra.mxu0 0.0
      %853 = vmatprep.subr.mxu0 0.0
      %854 = vmatpush1.xpose.msra.mxu0 0.0
      %855 = vmatprep.subr.mxu0 0.0
      %856 = vmatpush1.xpose.msra.mxu0 0.0
      %857 = vmatprep.subr.mxu0 0.0
      %858 = vmatpush1.xpose.msra.mxu0 0.0
      %859 = vmatprep.subr.mxu0 0.0
      %860 = vmatpush1.xpose.msra.mxu0 0.0
      %861 = vmatprep.subr.mxu0 0.0
      %862 = vmatpush1.xpose.msra.mxu0 0.0
      %863 = vmatprep.subr.mxu0 0.0
      %864 = vmatpush1.xpose.msra.mxu0 0.0
      %865 = vmatprep.subr.mxu0 0.0
      %866 = vmatpush1.xpose.msra.mxu0 0.0
      %867 = vmatprep.subr.mxu0 0.0
      %868 = vmatpush1.xpose.msra.mxu0 0.0
      %869 = vmatprep.subr.mxu0 0.0
      %870 = vmatpush1.xpose.msra.mxu0 0.0
      %871 = vmatprep.subr.mxu0 0.0
      %872 = vmatpush1.xpose.msra.mxu0 0.0
      %873 = vmatprep.subr.mxu0 0.0
      %874 = vmatpush1.xpose.msra.mxu0 0.0
      %875 = vmatprep.subr.mxu0 0.0
      %876 = vmatpush1.xpose.msra.mxu0 0.0
      %877 = vmatprep.subr.mxu0 0.0
      %878 = vmatpush1.xpose.msra.mxu0 0.0
      %879 = vmatprep.subr.mxu0 0.0
      %880 = vmatpush1.xpose.msra.mxu0 0.0
      %881 = vmatprep.subr.mxu0 0.0
      %882 = vmatpush1.xpose.msra.mxu0 0.0
      %883 = vmatprep.subr.mxu0 0.0
      %884 = vmatpush1.xpose.msra.mxu0 0.0
      %885 = vmatprep.subr.mxu0 0.0
      %886 = vmatpush1.xpose.msra.mxu0 0.0
      %887 = vmatprep.subr.mxu0 0.0
      %888 = vmatpush1.xpose.msra.mxu0 0.0
      %889 = vmatprep.subr.mxu0 0.0
      %890 = vmatpush1.xpose.msra.mxu0 0.0
      %891 = vmatprep.subr.mxu0 0.0
      %892 = vmatpush1.xpose.msra.mxu0 0.0
      %893 = vmatprep.subr.mxu0 0.0
      %894 = vmatpush1.xpose.msra.mxu0 0.0
      %895 = vmatprep.subr.mxu0 0.0
      %896 = vmatpush1.xpose.msra.mxu0 0.0
      %897 = vmatprep.subr.mxu0 0.0
      %898 = vmatpush1.xpose.msra.mxu0 0.0
      %899 = vmatprep.subr.mxu0 0.0
      %900 = vmatpush1.xpose.msra.mxu0 0.0
      %901 = vmatprep.subr.mxu0 0.0
      %902 = vmatpush1.xpose.msra.mxu0 0.0
      %903 = vmatprep.subr.mxu0 0.0
      %904 = vmatpush1.xpose.msra.mxu0 0.0
      %905 = vmatprep.subr.mxu0 0.0
      %906 = vmatpush1.xpose.msra.mxu0 0.0
      %907 = vmatprep.subr.mxu0 0.0
      %908 = vmatpush1.xpose.msra.mxu0 0.0
      %909 = vmatprep.subr.mxu0 0.0
      %910 = vmatpush1.xpose.msra.mxu0 0.0
      %911 = vmatprep.mubr.f32.mxu0 0.0
      %912 = vmatmul.mubr.f32.gmra.mrb[0].mxu0 %v842
      %v913 = vpop.f32.mrb[0].mxu0
      %v914 = vadd.f32 %v838, %v913
      %v915 = vpop.f32.mrb[0].mxu0
      %916 = vdwg.mxu0
      %v917 = vsel %vm840, %v914, -inf
      %918 = vmax.xlane.f32.xlu0 %v917
      %v919 = vpop.xlane.xlu0 %918
      %v920 = vsub.f32 %v914, %v919
      %v921 = vmul.f32 %v920, 1.442695
      %v922 = vpow.pop %v921
      %v923 = vsel %vm840, %v922, 0.0
      %924 = vadd.xlane.f32.xlu0 %v923
      %v925 = vpop.xlane.xlu0 %924
      %v926 = vrcp.pop %v925
      %v927 = vmul.f32 %v922, %v926
      %v929 = vsel %vm840, %v927, 0
      %931 = vmatprep.subr.mxu0 0.0
      %932 = vmatpush1.msra.mxu0 %v831
      %933 = vmatprep.subr.mxu0 0.0
      %934 = vmatpush1.msra.mxu0 0.0
      %935 = vmatprep.subr.mxu0 0.0
      %936 = vmatpush1.msra.mxu0 0.0
      %937 = vmatprep.subr.mxu0 0.0
      %938 = vmatpush1.msra.mxu0 0.0
      %939 = vmatprep.subr.mxu0 0.0
      %940 = vmatpush1.msra.mxu0 0.0
      %941 = vmatprep.subr.mxu0 0.0
      %942 = vmatpush1.msra.mxu0 0.0
      %943 = vmatprep.subr.mxu0 0.0
      %944 = vmatpush1.msra.mxu0 0.0
      %945 = vmatprep.subr.mxu0 0.0
      %946 = vmatpush1.msra.mxu0 0.0
      %947 = vmatprep.subr.mxu0 0.0
      %948 = vmatpush1.msra.mxu0 0.0
      %949 = vmatprep.subr.mxu0 0.0
      %950 = vmatpush1.msra.mxu0 0.0
      %951 = vmatprep.subr.mxu0 0.0
      %952 = vmatpush1.msra.mxu0 0.0
      %953 = vmatprep.subr.mxu0 0.0
      %954 = vmatpush1.msra.mxu0 0.0
      %955 = vmatprep.subr.mxu0 0.0
      %956 = vmatpush1.msra.mxu0 0.0
      %957 = vmatprep.subr.mxu0 0.0
      %958 = vmatpush1.msra.mxu0 0.0
      %959 = vmatprep.subr.mxu0 0.0
      %960 = vmatpush1.msra.mxu0 0.0
      %961 = vmatprep.subr.mxu0 0.0
      %962 = vmatpush1.msra.mxu0 0.0
      %963 = vmatprep.subr.mxu0 0.0
      %964 = vmatpush1.msra.mxu0 0.0
      %965 = vmatprep.subr.mxu0 0.0
      %966 = vmatpush1.msra.mxu0 0.0
      %967 = vmatprep.subr.mxu0 0.0
      %968 = vmatpush1.msra.mxu0 0.0
      %969 = vmatprep.subr.mxu0 0.0
      %970 = vmatpush1.msra.mxu0 0.0
      %971 = vmatprep.subr.mxu0 0.0
      %972 = vmatpush1.msra.mxu0 0.0
      %973 = vmatprep.subr.mxu0 0.0
      %974 = vmatpush1.msra.mxu0 0.0
      %975 = vmatprep.subr.mxu0 0.0
      %976 = vmatpush1.msra.mxu0 0.0
      %977 = vmatprep.subr.mxu0 0.0
      %978 = vmatpush1.msra.mxu0 0.0
      %979 = vmatprep.subr.mxu0 0.0
      %980 = vmatpush1.msra.mxu0 0.0
      %981 = vmatprep.subr.mxu0 0.0
      %982 = vmatpush1.msra.mxu0 0.0
      %983 = vmatprep.subr.mxu0 0.0
      %984 = vmatpush1.msra.mxu0 0.0
      %985 = vmatprep.subr.mxu0 0.0
      %986 = vmatpush1.msra.mxu0 0.0
      %987 = vmatprep.subr.mxu0 0.0
      %988 = vmatpush1.msra.mxu0 0.0
      %989 = vmatprep.subr.mxu0 0.0
      %990 = vmatpush1.msra.mxu0 0.0
      %991 = vmatprep.subr.mxu0 0.0
      %992 = vmatpush1.msra.mxu0 0.0
      %993 = vmatprep.subr.mxu0 0.0
      %994 = vmatpush1.msra.mxu0 0.0
      %995 = vmatprep.mubr.f32.mxu0 0.0
      %996 = vmatmul.mubr.f32.gmra.mrb[0].mxu0 %v929
      %v997 = vpop.f32.mrb[0].mxu0
      %v998 = vadd.f32 0.0, %v997
      %v999 = vpop.f32.mrb[0].mxu0
      %1000 = vdwg.mxu0
      %v1001 = vld [vmem:[%s8] sm:$0xff]
      %s1002 = scalar_lea.vmem %s2, 32
      %v1003 = vld [vmem:[%s1002] sm:$0xff]
      %v1004 = vld [vmem:[%s1002 + $0x8] sm:$0xff]
      %v1005 = vld [vmem:[%s1002 + $0x10] sm:$0xff]
      %v1006 = vld [vmem:[%s1002 + $0x18] sm:$0xff]
      %s1007 = scalar_lea.vmem %s3, 1
      %v1008 = vld [vmem:[%s1007] sm:$0x1]
      %v1010 = vlaneseq
      %v1011 = vshrl.u32 %v1010, 7
      %v1012 = vsub.s32 0, %v1011
      %v1013 = vrot.slane %v1008, %v1012
      %1015 = vmatprep.subr.mxu0 0.0
      %1016 = vmatpush1.msra.mxu0 %v1003
      %1017 = vmatprep.subr.mxu0 0.0
      %1018 = vmatpush1.msra.mxu0 %v1004
      %1019 = vmatprep.subr.mxu0 0.0
      %1020 = vmatpush1.msra.mxu0 %v1005
      %1021 = vmatprep.subr.mxu0 0.0
      %1022 = vmatpush1.msra.mxu0 %v1006
      %1023 = vmatprep.subr.mxu0 0.0
      %1024 = vmatpush1.msra.mxu0 0.0
      %1025 = vmatprep.subr.mxu0 0.0
      %1026 = vmatpush1.msra.mxu0 0.0
      %1027 = vmatprep.subr.mxu0 0.0
      %1028 = vmatpush1.msra.mxu0 0.0
      %1029 = vmatprep.subr.mxu0 0.0
      %1030 = vmatpush1.msra.mxu0 0.0
      %1031 = vmatprep.subr.mxu0 0.0
      %1032 = vmatpush1.msra.mxu0 0.0
      %1033 = vmatprep.subr.mxu0 0.0
      %1034 = vmatpush1.msra.mxu0 0.0
      %1035 = vmatprep.subr.mxu0 0.0
      %1036 = vmatpush1.msra.mxu0 0.0
      %1037 = vmatprep.subr.mxu0 0.0
      %1038 = vmatpush1.msra.mxu0 0.0
      %1039 = vmatprep.subr.mxu0 0.0
      %1040 = vmatpush1.msra.mxu0 0.0
      %1041 = vmatprep.subr.mxu0 0.0
      %1042 = vmatpush1.msra.mxu0 0.0
      %1043 = vmatprep.subr.mxu0 0.0
      %1044 = vmatpush1.msra.mxu0 0.0
      %1045 = vmatprep.subr.mxu0 0.0
      %1046 = vmatpush1.msra.mxu0 0.0
      %1047 = vmatprep.subr.mxu0 0.0
      %1048 = vmatpush1.msra.mxu0 0.0
      %1049 = vmatprep.subr.mxu0 0.0
      %1050 = vmatpush1.msra.mxu0 0.0
      %1051 = vmatprep.subr.mxu0 0.0
      %1052 = vmatpush1.msra.mxu0 0.0
      %1053 = vmatprep.subr.mxu0 0.0
      %1054 = vmatpush1.msra.mxu0 0.0
      %1055 = vmatprep.subr.mxu0 0.0
      %1056 = vmatpush1.msra.mxu0 0.0
      %1057 = vmatprep.subr.mxu0 0.0
      %1058 = vmatpush1.msra.mxu0 0.0
      %1059 = vmatprep.subr.mxu0 0.0
      %1060 = vmatpush1.msra.mxu0 0.0
      %1061 = vmatprep.subr.mxu0 0.0
      %1062 = vmatpush1.msra.mxu0 0.0
      %1063 = vmatprep.subr.mxu0 0.0
      %1064 = vmatpush1.msra.mxu0 0.0
      %1065 = vmatprep.subr.mxu0 0.0
      %1066 = vmatpush1.msra.mxu0 0.0
      %1067 = vmatprep.subr.mxu0 0.0
      %1068 = vmatpush1.msra.mxu0 0.0
      %1069 = vmatprep.subr.mxu0 0.0
      %1070 = vmatpush1.msra.mxu0 0.0
      %1071 = vmatprep.subr.mxu0 0.0
      %1072 = vmatpush1.msra.mxu0 0.0
      %1073 = vmatprep.subr.mxu0 0.0
      %1074 = vmatpush1.msra.mxu0 0.0
      %1075 = vmatprep.subr.mxu0 0.0
      %1076 = vmatpush1.msra.mxu0 0.0
      %1077 = vmatprep.subr.mxu0 0.0
      %1078 = vmatpush1.msra.mxu0 0.0
      %1079 = vmatprep.mubr.f32.mxu0 0.0
      %1080 = vmatmul.mubr.f32.gmra.mrb[0].mxu0 %v600
      %v1081 = vpop.f32.mrb[0].mxu0
      %v1082 = vadd.f32 %v1013, %v1081
      %v1083 = vpop.f32.mrb[0].mxu0
      %1084 = vdwg.mxu0
      %s1085 = scalar_lea.vmem %s4, 32
      %v1086 = vld [vmem:[%s1085] sm:$0xff]
      %v1087 = vld [vmem:[%s1085 + $0x8] sm:$0xff]
      %v1088 = vld [vmem:[%s1085 + $0x10] sm:$0xff]
      %v1089 = vld [vmem:[%s1085 + $0x18] sm:$0xff]
      %s1090 = scalar_lea.vmem %s5, 1
      %v1091 = vld [vmem:[%s1090] sm:$0x1]
      %v1093 = vlaneseq
      %v1094 = vshrl.u32 %v1093, 7
      %v1095 = vsub.s32 0, %v1094
      %v1096 = vrot.slane %v1091, %v1095
      %1098 = vmatprep.subr.mxu0 0.0
      %1099 = vmatpush1.msra.mxu0 %v1086
      %1100 = vmatprep.subr.mxu0 0.0
      %1101 = vmatpush1.msra.mxu0 %v1087
      %1102 = vmatprep.subr.mxu0 0.0
      %1103 = vmatpush1.msra.mxu0 %v1088
      %1104 = vmatprep.subr.mxu0 0.0
      %1105 = vmatpush1.msra.mxu0 %v1089
      %1106 = vmatprep.subr.mxu0 0.0
      %1107 = vmatpush1.msra.mxu0 0.0
      %1108 = vmatprep.subr.mxu0 0.0
      %1109 = vmatpush1.msra.mxu0 0.0
      %1110 = vmatprep.subr.mxu0 0.0
      %1111 = vmatpush1.msra.mxu0 0.0
      %1112 = vmatprep.subr.mxu0 0.0
      %1113 = vmatpush1.msra.mxu0 0.0
      %1114 = vmatprep.subr.mxu0 0.0
      %1115 = vmatpush1.msra.mxu0 0.0
      %1116 = vmatprep.subr.mxu0 0.0
      %1117 = vmatpush1.msra.mxu0 0.0
      %1118 = vmatprep.subr.mxu0 0.0
      %1119 = vmatpush1.msra.mxu0 0.0
      %1120 = vmatprep.subr.mxu0 0.0
      %1121 = vmatpush1.msra.mxu0 0.0
      %1122 = vmatprep.subr.mxu0 0.0
      %1123 = vmatpush1.msra.mxu0 0.0
      %1124 = vmatprep.subr.mxu0 0.0
      %1125 = vmatpush1.msra.mxu0 0.0
      %1126 = vmatprep.subr.mxu0 0.0
      %1127 = vmatpush1.msra.mxu0 0.0
      %1128 = vmatprep.subr.mxu0 0.0
      %1129 = vmatpush1.msra.mxu0 0.0
      %1130 = vmatprep.subr.mxu0 0.0
      %1131 = vmatpush1.msra.mxu0 0.0
      %1132 = vmatprep.subr.mxu0 0.0
      %1133 = vmatpush1.msra.mxu0 0.0
      %1134 = vmatprep.subr.mxu0 0.0
      %1135 = vmatpush1.msra.mxu0 0.0
      %1136 = vmatprep.subr.mxu0 0.0
      %1137 = vmatpush1.msra.mxu0 0.0
      %1138 = vmatprep.subr.mxu0 0.0
      %1139 = vmatpush1.msra.mxu0 0.0
      %1140 = vmatprep.subr.mxu0 0.0
      %1141 = vmatpush1.msra.mxu0 0.0
      %1142 = vmatprep.subr.mxu0 0.0
      %1143 = vmatpush1.msra.mxu0 0.0
      %1144 = vmatprep.subr.mxu0 0.0
      %1145 = vmatpush1.msra.mxu0 0.0
      %1146 = vmatprep.subr.mxu0 0.0
      %1147 = vmatpush1.msra.mxu0 0.0
      %1148 = vmatprep.subr.mxu0 0.0
      %1149 = vmatpush1.msra.mxu0 0.0
      %1150 = vmatprep.subr.mxu0 0.0
      %1151 = vmatpush1.msra.mxu0 0.0
      %1152 = vmatprep.subr.mxu0 0.0
      %1153 = vmatpush1.msra.mxu0 0.0
      %1154 = vmatprep.subr.mxu0 0.0
      %1155 = vmatpush1.msra.mxu0 0.0
      %1156 = vmatprep.subr.mxu0 0.0
      %1157 = vmatpush1.msra.mxu0 0.0
      %1158 = vmatprep.subr.mxu0 0.0
      %1159 = vmatpush1.msra.mxu0 0.0
      %1160 = vmatprep.subr.mxu0 0.0
      %1161 = vmatpush1.msra.mxu0 0.0
      %1162 = vmatprep.mubr.f32.mxu0 0.0
      %1163 = vmatmul.mubr.f32.gmra.mrb[0].mxu0 %v600
      %v1164 = vpop.f32.mrb[0].mxu0
      %v1165 = vadd.f32 %v1096, %v1164
      %v1166 = vpop.f32.mrb[0].mxu0
      %1167 = vdwg.mxu0
      %s1168 = scalar_lea.vmem %s6, 32
      %v1169 = vld [vmem:[%s1168] sm:$0xff]
      %v1170 = vld [vmem:[%s1168 + $0x8] sm:$0xff]
      %v1171 = vld [vmem:[%s1168 + $0x10] sm:$0xff]
      %v1172 = vld [vmem:[%s1168 + $0x18] sm:$0xff]
      %s1173 = scalar_lea.vmem %s7, 1
      %v1174 = vld [vmem:[%s1173] sm:$0x1]
      %v1176 = vlaneseq
      %v1177 = vshrl.u32 %v1176, 7
      %v1178 = vsub.s32 0, %v1177
      %v1179 = vrot.slane %v1174, %v1178
      %1181 = vmatprep.subr.mxu0 0.0
      %1182 = vmatpush1.msra.mxu0 %v1169
      %1183 = vmatprep.subr.mxu0 0.0
      %1184 = vmatpush1.msra.mxu0 %v1170
      %1185 = vmatprep.subr.mxu0 0.0
      %1186 = vmatpush1.msra.mxu0 %v1171
      %1187 = vmatprep.subr.mxu0 0.0
      %1188 = vmatpush1.msra.mxu0 %v1172
      %1189 = vmatprep.subr.mxu0 0.0
      %1190 = vmatpush1.msra.mxu0 0.0
      %1191 = vmatprep.subr.mxu0 0.0
      %1192 = vmatpush1.msra.mxu0 0.0
      %1193 = vmatprep.subr.mxu0 0.0
      %1194 = vmatpush1.msra.mxu0 0.0
      %1195 = vmatprep.subr.mxu0 0.0
      %1196 = vmatpush1.msra.mxu0 0.0
      %1197 = vmatprep.subr.mxu0 0.0
      %1198 = vmatpush1.msra.mxu0 0.0
      %1199 = vmatprep.subr.mxu0 0.0
      %1200 = vmatpush1.msra.mxu0 0.0
      %1201 = vmatprep.subr.mxu0 0.0
      %1202 = vmatpush1.msra.mxu0 0.0
      %1203 = vmatprep.subr.mxu0 0.0
      %1204 = vmatpush1.msra.mxu0 0.0
      %1205 = vmatprep.subr.mxu0 0.0
      %1206 = vmatpush1.msra.mxu0 0.0
      %1207 = vmatprep.subr.mxu0 0.0
      %1208 = vmatpush1.msra.mxu0 0.0
      %1209 = vmatprep.subr.mxu0 0.0
      %1210 = vmatpush1.msra.mxu0 0.0
      %1211 = vmatprep.subr.mxu0 0.0
      %1212 = vmatpush1.msra.mxu0 0.0
      %1213 = vmatprep.subr.mxu0 0.0
      %1214 = vmatpush1.msra.mxu0 0.0
      %1215 = vmatprep.subr.mxu0 0.0
      %1216 = vmatpush1.msra.mxu0 0.0
      %1217 = vmatprep.subr.mxu0 0.0
      %1218 = vmatpush1.msra.mxu0 0.0
      %1219 = vmatprep.subr.mxu0 0.0
      %1220 = vmatpush1.msra.mxu0 0.0
      %1221 = vmatprep.subr.mxu0 0.0
      %1222 = vmatpush1.msra.mxu0 0.0
      %1223 = vmatprep.subr.mxu0 0.0
      %1224 = vmatpush1.msra.mxu0 0.0
      %1225 = vmatprep.subr.mxu0 0.0
      %1226 = vmatpush1.msra.mxu0 0.0
      %1227 = vmatprep.subr.mxu0 0.0
      %1228 = vmatpush1.msra.mxu0 0.0
      %1229 = vmatprep.subr.mxu0 0.0
      %1230 = vmatpush1.msra.mxu0 0.0
      %1231 = vmatprep.subr.mxu0 0.0
      %1232 = vmatpush1.msra.mxu0 0.0
      %1233 = vmatprep.subr.mxu0 0.0
      %1234 = vmatpush1.msra.mxu0 0.0
      %1235 = vmatprep.subr.mxu0 0.0
      %1236 = vmatpush1.msra.mxu0 0.0
      %1237 = vmatprep.subr.mxu0 0.0
      %1238 = vmatpush1.msra.mxu0 0.0
      %1239 = vmatprep.subr.mxu0 0.0
      %1240 = vmatpush1.msra.mxu0 0.0
      %1241 = vmatprep.subr.mxu0 0.0
      %1242 = vmatpush1.msra.mxu0 0.0
      %1243 = vmatprep.subr.mxu0 0.0
      %1244 = vmatpush1.msra.mxu0 0.0
      %1245 = vmatprep.mubr.f32.mxu0 0.0
      %1246 = vmatmul.mubr.f32.gmra.mrb[0].mxu0 %v600
      %v1247 = vpop.f32.mrb[0].mxu0
      %v1248 = vadd.f32 %v1179, %v1247
      %v1249 = vpop.f32.mrb[0].mxu0
      %1250 = vdwg.mxu0
      %v1252 = vsel %vm840, %v1082, 0
      %v1255 = vsel %vm840, %v1165, 0
      %1257 = vmatprep.subr.mxu0 0.0
      %1258 = vmatpush1.xpose.msra.mxu0 %v1255
      %1259 = vmatprep.subr.mxu0 0.0
      %1260 = vmatpush1.xpose.msra.mxu0 0.0
      %1261 = vmatprep.subr.mxu0 0.0
      %1262 = vmatpush1.xpose.msra.mxu0 0.0
      %1263 = vmatprep.subr.mxu0 0.0
      %1264 = vmatpush1.xpose.msra.mxu0 0.0
      %1265 = vmatprep.subr.mxu0 0.0
      %1266 = vmatpush1.xpose.msra.mxu0 0.0
      %1267 = vmatprep.subr.mxu0 0.0
      %1268 = vmatpush1.xpose.msra.mxu0 0.0
      %1269 = vmatprep.subr.mxu0 0.0
      %1270 = vmatpush1.xpose.msra.mxu0 0.0
      %1271 = vmatprep.subr.mxu0 0.0
      %1272 = vmatpush1.xpose.msra.mxu0 0.0
      %1273 = vmatprep.subr.mxu0 0.0
      %1274 = vmatpush1.xpose.msra.mxu0 0.0
      %1275 = vmatprep.subr.mxu0 0.0
      %1276 = vmatpush1.xpose.msra.mxu0 0.0
      %1277 = vmatprep.subr.mxu0 0.0
      %1278 = vmatpush1.xpose.msra.mxu0 0.0
      %1279 = vmatprep.subr.mxu0 0.0
      %1280 = vmatpush1.xpose.msra.mxu0 0.0
      %1281 = vmatprep.subr.mxu0 0.0
      %1282 = vmatpush1.xpose.msra.mxu0 0.0
      %1283 = vmatprep.subr.mxu0 0.0
      %1284 = vmatpush1.xpose.msra.mxu0 0.0
      %1285 = vmatprep.subr.mxu0 0.0
      %1286 = vmatpush1.xpose.msra.mxu0 0.0
      %1287 = vmatprep.subr.mxu0 0.0
      %1288 = vmatpush1.xpose.msra.mxu0 0.0
      %1289 = vmatprep.subr.mxu0 0.0
      %1290 = vmatpush1.xpose.msra.mxu0 0.0
      %1291 = vmatprep.subr.mxu0 0.0
      %1292 = vmatpush1.xpose.msra.mxu0 0.0
      %1293 = vmatprep.subr.mxu0 0.0
      %1294 = vmatpush1.xpose.msra.mxu0 0.0
      %1295 = vmatprep.subr.mxu0 0.0
      %1296 = vmatpush1.xpose.msra.mxu0 0.0
      %1297 = vmatprep.subr.mxu0 0.0
      %1298 = vmatpush1.xpose.msra.mxu0 0.0
      %1299 = vmatprep.subr.mxu0 0.0
      %1300 = vmatpush1.xpose.msra.mxu0 0.0
      %1301 = vmatprep.subr.mxu0 0.0
      %1302 = vmatpush1.xpose.msra.mxu0 0.0
      %1303 = vmatprep.subr.mxu0 0.0
      %1304 = vmatpush1.xpose.msra.mxu0 0.0
      %1305 = vmatprep.subr.mxu0 0.0
      %1306 = vmatpush1.xpose.msra.mxu0 0.0
      %1307 = vmatprep.subr.mxu0 0.0
      %1308 = vmatpush1.xpose.msra.mxu0 0.0
      %1309 = vmatprep.subr.mxu0 0.0
      %1310 = vmatpush1.xpose.msra.mxu0 0.0
      %1311 = vmatprep.subr.mxu0 0.0
      %1312 = vmatpush1.xpose.msra.mxu0 0.0
      %1313 = vmatprep.subr.mxu0 0.0
      %1314 = vmatpush1.xpose.msra.mxu0 0.0
      %1315 = vmatprep.subr.mxu0 0.0
      %1316 = vmatpush1.xpose.msra.mxu0 0.0
      %1317 = vmatprep.subr.mxu0 0.0
      %1318 = vmatpush1.xpose.msra.mxu0 0.0
      %1319 = vmatprep.subr.mxu0 0.0
      %1320 = vmatpush1.xpose.msra.mxu0 0.0
      %1321 = vmatprep.mubr.f32.mxu0 0.0
      %1322 = vmatmul.mubr.f32.gmra.mrb[0].mxu0 %v1252
      %v1323 = vpop.f32.mrb[0].mxu0
      %v1324 = vadd.f32 %v838, %v1323
      %v1325 = vpop.f32.mrb[0].mxu0
      %1326 = vdwg.mxu0
      %v1327 = vsel %vm840, %v1324, -inf
      %1328 = vmax.xlane.f32.xlu0 %v1327
      %v1329 = vpop.xlane.xlu0 %1328
      %v1330 = vsub.f32 %v1324, %v1329
      %v1331 = vmul.f32 %v1330, 1.442695
      %v1332 = vpow.pop %v1331
      %v1333 = vsel %vm840, %v1332, 0.0
      %1334 = vadd.xlane.f32.xlu0 %v1333
      %v1335 = vpop.xlane.xlu0 %1334
      %v1336 = vrcp.pop %v1335
      %v1337 = vmul.f32 %v1332, %v1336
      %v1339 = vsel %vm840, %v1337, 0
      %1341 = vmatprep.subr.mxu0 0.0
      %1342 = vmatpush1.msra.mxu0 %v1248
      %1343 = vmatprep.subr.mxu0 0.0
      %1344 = vmatpush1.msra.mxu0 0.0
      %1345 = vmatprep.subr.mxu0 0.0
      %1346 = vmatpush1.msra.mxu0 0.0
      %1347 = vmatprep.subr.mxu0 0.0
      %1348 = vmatpush1.msra.mxu0 0.0
      %1349 = vmatprep.subr.mxu0 0.0
      %1350 = vmatpush1.msra.mxu0 0.0
      %1351 = vmatprep.subr.mxu0 0.0
      %1352 = vmatpush1.msra.mxu0 0.0
      %1353 = vmatprep.subr.mxu0 0.0
      %1354 = vmatpush1.msra.mxu0 0.0
      %1355 = vmatprep.subr.mxu0 0.0
      %1356 = vmatpush1.msra.mxu0 0.0
      %1357 = vmatprep.subr.mxu0 0.0
      %1358 = vmatpush1.msra.mxu0 0.0
      %1359 = vmatprep.subr.mxu0 0.0
      %1360 = vmatpush1.msra.mxu0 0.0
      %1361 = vmatprep.subr.mxu0 0.0
      %1362 = vmatpush1.msra.mxu0 0.0
      %1363 = vmatprep.subr.mxu0 0.0
      %1364 = vmatpush1.msra.mxu0 0.0
      %1365 = vmatprep.subr.mxu0 0.0
      %1366 = vmatpush1.msra.mxu0 0.0
      %1367 = vmatprep.subr.mxu0 0.0
      %1368 = vmatpush1.msra.mxu0 0.0
      %1369 = vmatprep.subr.mxu0 0.0
      %1370 = vmatpush1.msra.mxu0 0.0
      %1371 = vmatprep.subr.mxu0 0.0
      %1372 = vmatpush1.msra.mxu0 0.0
      %1373 = vmatprep.subr.mxu0 0.0
      %1374 = vmatpush1.msra.mxu0 0.0
      %1375 = vmatprep.subr.mxu0 0.0
      %1376 = vmatpush1.msra.mxu0 0.0
      %1377 = vmatprep.subr.mxu0 0.0
      %1378 = vmatpush1.msra.mxu0 0.0
      %1379 = vmatprep.subr.mxu0 0.0
      %1380 = vmatpush1.msra.mxu0 0.0
      %1381 = vmatprep.subr.mxu0 0.0
      %1382 = vmatpush1.msra.mxu0 0.0
      %1383 = vmatprep.subr.mxu0 0.0
      %1384 = vmatpush1.msra.mxu0 0.0
      %1385 = vmatprep.subr.mxu0 0.0
      %1386 = vmatpush1.msra.mxu0 0.0
      %1387 = vmatprep.subr.mxu0 0.0
      %1388 = vmatpush1.msra.mxu0 0.0
      %1389 = vmatprep.subr.mxu0 0.0
      %1390 = vmatpush1.msra.mxu0 0.0
      %1391 = vmatprep.subr.mxu0 0.0
      %1392 = vmatpush1.msra.mxu0 0.0
      %1393 = vmatprep.subr.mxu0 0.0
      %1394 = vmatpush1.msra.mxu0 0.0
      %1395 = vmatprep.subr.mxu0 0.0
      %1396 = vmatpush1.msra.mxu0 0.0
      %1397 = vmatprep.subr.mxu0 0.0
      %1398 = vmatpush1.msra.mxu0 0.0
      %1399 = vmatprep.subr.mxu0 0.0
      %1400 = vmatpush1.msra.mxu0 0.0
      %1401 = vmatprep.subr.mxu0 0.0
      %1402 = vmatpush1.msra.mxu0 0.0
      %1403 = vmatprep.subr.mxu0 0.0
      %1404 = vmatpush1.msra.mxu0 0.0
      %1405 = vmatprep.mubr.f32.mxu0 0.0
      %1406 = vmatmul.mubr.f32.gmra.mrb[0].mxu0 %v1339
      %v1407 = vpop.f32.mrb[0].mxu0
      %v1408 = vadd.f32 0.0, %v1407
      %v1409 = vpop.f32.mrb[0].mxu0
      %1410 = vdwg.mxu0
      %s1411 = scalar_lea.vmem %s8, 8
      %v1412 = vld [vmem:[%s1411] sm:$0xff]
      %v1414 = vsel %vm840, %v1408, 0
      %1416 = vmatprep.subr.mxu0 0.0
      %1417 = vmatpush1.msra.mxu0 %v1412
      %1418 = vmatprep.subr.mxu0 0.0
      %1419 = vmatpush1.msra.mxu0 0.0
      %1420 = vmatprep.subr.mxu0 0.0
      %1421 = vmatpush1.msra.mxu0 0.0
      %1422 = vmatprep.subr.mxu0 0.0
      %1423 = vmatpush1.msra.mxu0 0.0
      %1424 = vmatprep.subr.mxu0 0.0
      %1425 = vmatpush1.msra.mxu0 0.0
      %1426 = vmatprep.subr.mxu0 0.0
      %1427 = vmatpush1.msra.mxu0 0.0
      %1428 = vmatprep.subr.mxu0 0.0
      %1429 = vmatpush1.msra.mxu0 0.0
      %1430 = vmatprep.subr.mxu0 0.0
      %1431 = vmatpush1.msra.mxu0 0.0
      %1432 = vmatprep.subr.mxu0 0.0
      %1433 = vmatpush1.msra.mxu0 0.0
      %1434 = vmatprep.subr.mxu0 0.0
      %1435 = vmatpush1.msra.mxu0 0.0
      %1436 = vmatprep.subr.mxu0 0.0
      %1437 = vmatpush1.msra.mxu0 0.0
      %1438 = vmatprep.subr.mxu0 0.0
      %1439 = vmatpush1.msra.mxu0 0.0
      %1440 = vmatprep.subr.mxu0 0.0
      %1441 = vmatpush1.msra.mxu0 0.0
      %1442 = vmatprep.subr.mxu0 0.0
      %1443 = vmatpush1.msra.mxu0 0.0
      %1444 = vmatprep.subr.mxu0 0.0
      %1445 = vmatpush1.msra.mxu0 0.0
      %1446 = vmatprep.subr.mxu0 0.0
      %1447 = vmatpush1.msra.mxu0 0.0
      %1448 = vmatprep.subr.mxu0 0.0
      %1449 = vmatpush1.msra.mxu0 0.0
      %1450 = vmatprep.subr.mxu0 0.0
      %1451 = vmatpush1.msra.mxu0 0.0
      %1452 = vmatprep.subr.mxu0 0.0
      %1453 = vmatpush1.msra.mxu0 0.0
      %1454 = vmatprep.subr.mxu0 0.0
      %1455 = vmatpush1.msra.mxu0 0.0
      %1456 = vmatprep.subr.mxu0 0.0
      %1457 = vmatpush1.msra.mxu0 0.0
      %1458 = vmatprep.subr.mxu0 0.0
      %1459 = vmatpush1.msra.mxu0 0.0
      %1460 = vmatprep.subr.mxu0 0.0
      %1461 = vmatpush1.msra.mxu0 0.0
      %1462 = vmatprep.subr.mxu0 0.0
      %1463 = vmatpush1.msra.mxu0 0.0
      %1464 = vmatprep.subr.mxu0 0.0
      %1465 = vmatpush1.msra.mxu0 0.0
      %1466 = vmatprep.subr.mxu0 0.0
      %1467 = vmatpush1.msra.mxu0 0.0
      %1468 = vmatprep.subr.mxu0 0.0
      %1469 = vmatpush1.msra.mxu0 0.0
      %1470 = vmatprep.subr.mxu0 0.0
      %1471 = vmatpush1.msra.mxu0 0.0
      %1472 = vmatprep.subr.mxu0 0.0
      %1473 = vmatpush1.msra.mxu0 0.0
      %1474 = vmatprep.subr.mxu0 0.0
      %1475 = vmatpush1.msra.mxu0 0.0
      %1476 = vmatprep.subr.mxu0 0.0
      %1477 = vmatpush1.msra.mxu0 0.0
      %1478 = vmatprep.subr.mxu0 0.0
      %1479 = vmatpush1.msra.mxu0 0.0
      %1480 = vmatprep.mubr.f32.mxu0 0.0
      %1481 = vmatmul.mubr.f32.gmra.mrb[0].mxu0 %v1414
      %v1482 = vpop.f32.mrb[0].mxu0
      %v1483 = vadd.f32 0.0, %v1482
      %v1484 = vpop.f32.mrb[0].mxu0
      %1485 = vdwg.mxu0
      %v1487 = vsel %vm840, %v998, 0
      %1489 = vmatprep.subr.mxu0 0.0
      %1490 = vmatpush1.msra.mxu0 %v1001
      %1491 = vmatprep.subr.mxu0 0.0
      %1492 = vmatpush1.msra.mxu0 0.0
      %1493 = vmatprep.subr.mxu0 0.0
      %1494 = vmatpush1.msra.mxu0 0.0
      %1495 = vmatprep.subr.mxu0 0.0
      %1496 = vmatpush1.msra.mxu0 0.0
      %1497 = vmatprep.subr.mxu0 0.0
      %1498 = vmatpush1.msra.mxu0 0.0
      %1499 = vmatprep.subr.mxu0 0.0
      %1500 = vmatpush1.msra.mxu0 0.0
      %1501 = vmatprep.subr.mxu0 0.0
      %1502 = vmatpush1.msra.mxu0 0.0
      %1503 = vmatprep.subr.mxu0 0.0
      %1504 = vmatpush1.msra.mxu0 0.0
      %1505 = vmatprep.subr.mxu0 0.0
      %1506 = vmatpush1.msra.mxu0 0.0
      %1507 = vmatprep.subr.mxu0 0.0
      %1508 = vmatpush1.msra.mxu0 0.0
      %1509 = vmatprep.subr.mxu0 0.0
      %1510 = vmatpush1.msra.mxu0 0.0
      %1511 = vmatprep.subr.mxu0 0.0
      %1512 = vmatpush1.msra.mxu0 0.0
      %1513 = vmatprep.subr.mxu0 0.0
      %1514 = vmatpush1.msra.mxu0 0.0
      %1515 = vmatprep.subr.mxu0 0.0
      %1516 = vmatpush1.msra.mxu0 0.0
      %1517 = vmatprep.subr.mxu0 0.0
      %1518 = vmatpush1.msra.mxu0 0.0
      %1519 = vmatprep.subr.mxu0 0.0
      %1520 = vmatpush1.msra.mxu0 0.0
      %1521 = vmatprep.subr.mxu0 0.0
      %1522 = vmatpush1.msra.mxu0 0.0
      %1523 = vmatprep.subr.mxu0 0.0
      %1524 = vmatpush1.msra.mxu0 0.0
      %1525 = vmatprep.subr.mxu0 0.0
      %1526 = vmatpush1.msra.mxu0 0.0
      %1527 = vmatprep.subr.mxu0 0.0
      %1528 = vmatpush1.msra.mxu0 0.0
      %1529 = vmatprep.subr.mxu0 0.0
      %1530 = vmatpush1.msra.mxu0 0.0
      %1531 = vmatprep.subr.mxu0 0.0
      %1532 = vmatpush1.msra.mxu0 0.0
      %1533 = vmatprep.subr.mxu0 0.0
      %1534 = vmatpush1.msra.mxu0 0.0
      %1535 = vmatprep.subr.mxu0 0.0
      %1536 = vmatpush1.msra.mxu0 0.0
      %1537 = vmatprep.subr.mxu0 0.0
      %1538 = vmatpush1.msra.mxu0 0.0
      %1539 = vmatprep.subr.mxu0 0.0
      %1540 = vmatpush1.msra.mxu0 0.0
      %1541 = vmatprep.subr.mxu0 0.0
      %1542 = vmatpush1.msra.mxu0 0.0
      %1543 = vmatprep.subr.mxu0 0.0
      %1544 = vmatpush1.msra.mxu0 0.0
      %1545 = vmatprep.subr.mxu0 0.0
      %1546 = vmatpush1.msra.mxu0 0.0
      %1547 = vmatprep.subr.mxu0 0.0
      %1548 = vmatpush1.msra.mxu0 0.0
      %1549 = vmatprep.subr.mxu0 0.0
      %1550 = vmatpush1.msra.mxu0 0.0
      %1551 = vmatprep.subr.mxu0 0.0
      %1552 = vmatpush1.msra.mxu0 0.0
      %1553 = vmatprep.mubr.f32.mxu0 0.0
      %1554 = vmatmul.mubr.f32.gmra.mrb[0].mxu0 %v1487
      %v1555 = vpop.f32.mrb[0].mxu0
      %v1556 = vadd.f32 %v1483, %v1555
      %v1557 = vpop.f32.mrb[0].mxu0
      %1558 = vdwg.mxu0
      %s1559 = scalar_lea.vmem %s2, 64
      %v1560 = vld [vmem:[%s1559] sm:$0xff]
      %v1561 = vld [vmem:[%s1559 + $0x8] sm:$0xff]
      %v1562 = vld [vmem:[%s1559 + $0x10] sm:$0xff]
      %v1563 = vld [vmem:[%s1559 + $0x18] sm:$0xff]
      %s1564 = scalar_lea.vmem %s3, 2
      %v1565 = vld [vmem:[%s1564] sm:$0x1]
      %v1567 = vlaneseq
      %v1568 = vshrl.u32 %v1567, 7
      %v1569 = vsub.s32 0, %v1568
      %v1570 = vrot.slane %v1565, %v1569
      %1572 = vmatprep.subr.mxu0 0.0
      %1573 = vmatpush1.msra.mxu0 %v1560
      %1574 = vmatprep.subr.mxu0 0.0
      %1575 = vmatpush1.msra.mxu0 %v1561
      %1576 = vmatprep.subr.mxu0 0.0
      %1577 = vmatpush1.msra.mxu0 %v1562
      %1578 = vmatprep.subr.mxu0 0.0
      %1579 = vmatpush1.msra.mxu0 %v1563
      %1580 = vmatprep.subr.mxu0 0.0
      %1581 = vmatpush1.msra.mxu0 0.0
      %1582 = vmatprep.subr.mxu0 0.0
      %1583 = vmatpush1.msra.mxu0 0.0
      %1584 = vmatprep.subr.mxu0 0.0
      %1585 = vmatpush1.msra.mxu0 0.0
      %1586 = vmatprep.subr.mxu0 0.0
      %1587 = vmatpush1.msra.mxu0 0.0
      %1588 = vmatprep.subr.mxu0 0.0
      %1589 = vmatpush1.msra.mxu0 0.0
      %1590 = vmatprep.subr.mxu0 0.0
      %1591 = vmatpush1.msra.mxu0 0.0
      %1592 = vmatprep.subr.mxu0 0.0
      %1593 = vmatpush1.msra.mxu0 0.0
      %1594 = vmatprep.subr.mxu0 0.0
      %1595 = vmatpush1.msra.mxu0 0.0
      %1596 = vmatprep.subr.mxu0 0.0
      %1597 = vmatpush1.msra.mxu0 0.0
      %1598 = vmatprep.subr.mxu0 0.0
      %1599 = vmatpush1.msra.mxu0 0.0
      %1600 = vmatprep.subr.mxu0 0.0
      %1601 = vmatpush1.msra.mxu0 0.0
      %1602 = vmatprep.subr.mxu0 0.0
      %1603 = vmatpush1.msra.mxu0 0.0
      %1604 = vmatprep.subr.mxu0 0.0
      %1605 = vmatpush1.msra.mxu0 0.0
      %1606 = vmatprep.subr.mxu0 0.0
      %1607 = vmatpush1.msra.mxu0 0.0
      %1608 = vmatprep.subr.mxu0 0.0
      %1609 = vmatpush1.msra.mxu0 0.0
      %1610 = vmatprep.subr.mxu0 0.0
      %1611 = vmatpush1.msra.mxu0 0.0
      %1612 = vmatprep.subr.mxu0 0.0
      %1613 = vmatpush1.msra.mxu0 0.0
      %1614 = vmatprep.subr.mxu0 0.0
      %1615 = vmatpush1.msra.mxu0 0.0
      %1616 = vmatprep.subr.mxu0 0.0
      %1617 = vmatpush1.msra.mxu0 0.0
      %1618 = vmatprep.subr.mxu0 0.0
      %1619 = vmatpush1.msra.mxu0 0.0
      %1620 = vmatprep.subr.mxu0 0.0
      %1621 = vmatpush1.msra.mxu0 0.0
      %1622 = vmatprep.subr.mxu0 0.0
      %1623 = vmatpush1.msra.mxu0 0.0
      %1624 = vmatprep.subr.mxu0 0.0
      %1625 = vmatpush1.msra.mxu0 0.0
      %1626 = vmatprep.subr.mxu0 0.0
      %1627 = vmatpush1.msra.mxu0 0.0
      %1628 = vmatprep.subr.mxu0 0.0
      %1629 = vmatpush1.msra.mxu0 0.0
      %1630 = vmatprep.subr.mxu0 0.0
      %1631 = vmatpush1.msra.mxu0 0.0
      %1632 = vmatprep.subr.mxu0 0.0
      %1633 = vmatpush1.msra.mxu0 0.0
      %1634 = vmatprep.subr.mxu0 0.0
      %1635 = vmatpush1.msra.mxu0 0.0
      %1636 = vmatprep.mubr.f32.mxu0 0.0
      %1637 = vmatmul.mubr.f32.gmra.mrb[0].mxu0 %v600
      %v1638 = vpop.f32.mrb[0].mxu0
      %v1639 = vadd.f32 %v1570, %v1638
      %v1640 = vpop.f32.mrb[0].mxu0
      %1641 = vdwg.mxu0
      %s1642 = scalar_lea.vmem %s4, 64
      %v1643 = vld [vmem:[%s1642] sm:$0xff]
      %v1644 = vld [vmem:[%s1642 + $0x8] sm:$0xff]
      %v1645 = vld [vmem:[%s1642 + $0x10] sm:$0xff]
      %v1646 = vld [vmem:[%s1642 + $0x18] sm:$0xff]
      %s1647 = scalar_lea.vmem %s5, 2
      %v1648 = vld [vmem:[%s1647] sm:$0x1]
      %v1650 = vlaneseq
      %v1651 = vshrl.u32 %v1650, 7
      %v1652 = vsub.s32 0, %v1651
      %v1653 = vrot.slane %v1648, %v1652
      %1655 = vmatprep.subr.mxu0 0.0
      %1656 = vmatpush1.msra.mxu0 %v1643
      %1657 = vmatprep.subr.mxu0 0.0
      %1658 = vmatpush1.msra.mxu0 %v1644
      %1659 = vmatprep.subr.mxu0 0.0
      %1660 = vmatpush1.msra.mxu0 %v1645
      %1661 = vmatprep.subr.mxu0 0.0
      %1662 = vmatpush1.msra.mxu0 %v1646
      %1663 = vmatprep.subr.mxu0 0.0
      %1664 = vmatpush1.msra.mxu0 0.0
      %1665 = vmatprep.subr.mxu0 0.0
      %1666 = vmatpush1.msra.mxu0 0.0
      %1667 = vmatprep.subr.mxu0 0.0
      %1668 = vmatpush1.msra.mxu0 0.0
      %1669 = vmatprep.subr.mxu0 0.0
      %1670 = vmatpush1.msra.mxu0 0.0
      %1671 = vmatprep.subr.mxu0 0.0
      %1672 = vmatpush1.msra.mxu0 0.0
      %1673 = vmatprep.subr.mxu0 0.0
      %1674 = vmatpush1.msra.mxu0 0.0
      %1675 = vmatprep.subr.mxu0 0.0
      %1676 = vmatpush1.msra.mxu0 0.0
      %1677 = vmatprep.subr.mxu0 0.0
      %1678 = vmatpush1.msra.mxu0 0.0
      %1679 = vmatprep.subr.mxu0 0.0
      %1680 = vmatpush1.msra.mxu0 0.0
      %1681 = vmatprep.subr.mxu0 0.0
      %1682 = vmatpush1.msra.mxu0 0.0
      %1683 = vmatprep.subr.mxu0 0.0
      %1684 = vmatpush1.msra.mxu0 0.0
      %1685 = vmatprep.subr.mxu0 0.0
      %1686 = vmatpush1.msra.mxu0 0.0
      %1687 = vmatprep.subr.mxu0 0.0
      %1688 = vmatpush1.msra.mxu0 0.0
      %1689 = vmatprep.subr.mxu0 0.0
      %1690 = vmatpush1.msra.mxu0 0.0
      %1691 = vmatprep.subr.mxu0 0.0
      %1692 = vmatpush1.msra.mxu0 0.0
      %1693 = vmatprep.subr.mxu0 0.0
      %1694 = vmatpush1.msra.mxu0 0.0
      %1695 = vmatprep.subr.mxu0 0.0
      %1696 = vmatpush1.msra.mxu0 0.0
      %1697 = vmatprep.subr.mxu0 0.0
      %1698 = vmatpush1.msra.mxu0 0.0
      %1699 = vmatprep.subr.mxu0 0.0
      %1700 = vmatpush1.msra.mxu0 0.0
      %1701 = vmatprep.subr.mxu0 0.0
      %1702 = vmatpush1.msra.mxu0 0.0
      %1703 = vmatprep.subr.mxu0 0.0
      %1704 = vmatpush1.msra.mxu0 0.0
      %1705 = vmatprep.subr.mxu0 0.0
      %1706 = vmatpush1.msra.mxu0 0.0
      %1707 = vmatprep.subr.mxu0 0.0
      %1708 = vmatpush1.msra.mxu0 0.0
      %1709 = vmatprep.subr.mxu0 0.0
      %1710 = vmatpush1.msra.mxu0 0.0
      %1711 = vmatprep.subr.mxu0 0.0
      %1712 = vmatpush1.msra.mxu0 0.0
      %1713 = vmatprep.subr.mxu0 0.0
      %1714 = vmatpush1.msra.mxu0 0.0
      %1715 = vmatprep.subr.mxu0 0.0
      %1716 = vmatpush1.msra.mxu0 0.0
      %1717 = vmatprep.subr.mxu0 0.0
      %1718 = vmatpush1.msra.mxu0 0.0
      %1719 = vmatprep.mubr.f32.mxu0 0.0
      %1720 = vmatmul.mubr.f32.gmra.mrb[0].mxu0 %v600
      %v1721 = vpop.f32.mrb[0].mxu0
      %v1722 = vadd.f32 %v1653, %v1721
      %v1723 = vpop.f32.mrb[0].mxu0
      %1724 = vdwg.mxu0
      %s1725 = scalar_lea.vmem %s6, 64
      %v1726 = vld [vmem:[%s1725] sm:$0xff]
      %v1727 = vld [vmem:[%s1725 + $0x8] sm:$0xff]
      %v1728 = vld [vmem:[%s1725 + $0x10] sm:$0xff]
      %v1729 = vld [vmem:[%s1725 + $0x18] sm:$0xff]
      %s1730 = scalar_lea.vmem %s7, 2
      %v1731 = vld [vmem:[%s1730] sm:$0x1]
      %v1733 = vlaneseq
      %v1734 = vshrl.u32 %v1733, 7
      %v1735 = vsub.s32 0, %v1734
      %v1736 = vrot.slane %v1731, %v1735
      %1738 = vmatprep.subr.mxu0 0.0
      %1739 = vmatpush1.msra.mxu0 %v1726
      %1740 = vmatprep.subr.mxu0 0.0
      %1741 = vmatpush1.msra.mxu0 %v1727
      %1742 = vmatprep.subr.mxu0 0.0
      %1743 = vmatpush1.msra.mxu0 %v1728
      %1744 = vmatprep.subr.mxu0 0.0
      %1745 = vmatpush1.msra.mxu0 %v1729
      %1746 = vmatprep.subr.mxu0 0.0
      %1747 = vmatpush1.msra.mxu0 0.0
      %1748 = vmatprep.subr.mxu0 0.0
      %1749 = vmatpush1.msra.mxu0 0.0
      %1750 = vmatprep.subr.mxu0 0.0
      %1751 = vmatpush1.msra.mxu0 0.0
      %1752 = vmatprep.subr.mxu0 0.0
      %1753 = vmatpush1.msra.mxu0 0.0
      %1754 = vmatprep.subr.mxu0 0.0
      %1755 = vmatpush1.msra.mxu0 0.0
      %1756 = vmatprep.subr.mxu0 0.0
      %1757 = vmatpush1.msra.mxu0 0.0
      %1758 = vmatprep.subr.mxu0 0.0
      %1759 = vmatpush1.msra.mxu0 0.0
      %1760 = vmatprep.subr.mxu0 0.0
      %1761 = vmatpush1.msra.mxu0 0.0
      %1762 = vmatprep.subr.mxu0 0.0
      %1763 = vmatpush1.msra.mxu0 0.0
      %1764 = vmatprep.subr.mxu0 0.0
      %1765 = vmatpush1.msra.mxu0 0.0
      %1766 = vmatprep.subr.mxu0 0.0
      %1767 = vmatpush1.msra.mxu0 0.0
      %1768 = vmatprep.subr.mxu0 0.0
      %1769 = vmatpush1.msra.mxu0 0.0
      %1770 = vmatprep.subr.mxu0 0.0
      %1771 = vmatpush1.msra.mxu0 0.0
      %1772 = vmatprep.subr.mxu0 0.0
      %1773 = vmatpush1.msra.mxu0 0.0
      %1774 = vmatprep.subr.mxu0 0.0
      %1775 = vmatpush1.msra.mxu0 0.0
      %1776 = vmatprep.subr.mxu0 0.0
      %1777 = vmatpush1.msra.mxu0 0.0
      %1778 = vmatprep.subr.mxu0 0.0
      %1779 = vmatpush1.msra.mxu0 0.0
      %1780 = vmatprep.subr.mxu0 0.0
      %1781 = vmatpush1.msra.mxu0 0.0
      %1782 = vmatprep.subr.mxu0 0.0
      %1783 = vmatpush1.msra.mxu0 0.0
      %1784 = vmatprep.subr.mxu0 0.0
      %1785 = vmatpush1.msra.mxu0 0.0
      %1786 = vmatprep.subr.mxu0 0.0
      %1787 = vmatpush1.msra.mxu0 0.0
      %1788 = vmatprep.subr.mxu0 0.0
      %1789 = vmatpush1.msra.mxu0 0.0
      %1790 = vmatprep.subr.mxu0 0.0
      %1791 = vmatpush1.msra.mxu0 0.0
      %1792 = vmatprep.subr.mxu0 0.0
      %1793 = vmatpush1.msra.mxu0 0.0
      %1794 = vmatprep.subr.mxu0 0.0
      %1795 = vmatpush1.msra.mxu0 0.0
      %1796 = vmatprep.subr.mxu0 0.0
      %1797 = vmatpush1.msra.mxu0 0.0
      %1798 = vmatprep.subr.mxu0 0.0
      %1799 = vmatpush1.msra.mxu0 0.0
      %1800 = vmatprep.subr.mxu0 0.0
      %1801 = vmatpush1.msra.mxu0 0.0
      %1802 = vmatprep.mubr.f32.mxu0 0.0
      %1803 = vmatmul.mubr.f32.gmra.mrb[0].mxu0 %v600
      %v1804 = vpop.f32.mrb[0].mxu0
      %v1805 = vadd.f32 %v1736, %v1804
      %v1806 = vpop.f32.mrb[0].mxu0
      %1807 = vdwg.mxu0
      %v1809 = vsel %vm840, %v1639, 0
      %v1812 = vsel %vm840, %v1722, 0
      %1814 = vmatprep.subr.mxu0 0.0
      %1815 = vmatpush1.xpose.msra.mxu0 %v1812
      %1816 = vmatprep.subr.mxu0 0.0
      %1817 = vmatpush1.xpose.msra.mxu0 0.0
      %1818 = vmatprep.subr.mxu0 0.0
      %1819 = vmatpush1.xpose.msra.mxu0 0.0
      %1820 = vmatprep.subr.mxu0 0.0
      %1821 = vmatpush1.xpose.msra.mxu0 0.0
      %1822 = vmatprep.subr.mxu0 0.0
      %1823 = vmatpush1.xpose.msra.mxu0 0.0
      %1824 = vmatprep.subr.mxu0 0.0
      %1825 = vmatpush1.xpose.msra.mxu0 0.0
      %1826 = vmatprep.subr.mxu0 0.0
      %1827 = vmatpush1.xpose.msra.mxu0 0.0
      %1828 = vmatprep.subr.mxu0 0.0
      %1829 = vmatpush1.xpose.msra.mxu0 0.0
      %1830 = vmatprep.subr.mxu0 0.0
      %1831 = vmatpush1.xpose.msra.mxu0 0.0
      %1832 = vmatprep.subr.mxu0 0.0
      %1833 = vmatpush1.xpose.msra.mxu0 0.0
      %1834 = vmatprep.subr.mxu0 0.0
      %1835 = vmatpush1.xpose.msra.mxu0 0.0
      %1836 = vmatprep.subr.mxu0 0.0
      %1837 = vmatpush1.xpose.msra.mxu0 0.0
      %1838 = vmatprep.subr.mxu0 0.0
      %1839 = vmatpush1.xpose.msra.mxu0 0.0
      %1840 = vmatprep.subr.mxu0 0.0
      %1841 = vmatpush1.xpose.msra.mxu0 0.0
      %1842 = vmatprep.subr.mxu0 0.0
      %1843 = vmatpush1.xpose.msra.mxu0 0.0
      %1844 = vmatprep.subr.mxu0 0.0
      %1845 = vmatpush1.xpose.msra.mxu0 0.0
      %1846 = vmatprep.subr.mxu0 0.0
      %1847 = vmatpush1.xpose.msra.mxu0 0.0
      %1848 = vmatprep.subr.mxu0 0.0
      %1849 = vmatpush1.xpose.msra.mxu0 0.0
      %1850 = vmatprep.subr.mxu0 0.0
      %1851 = vmatpush1.xpose.msra.mxu0 0.0
      %1852 = vmatprep.subr.mxu0 0.0
      %1853 = vmatpush1.xpose.msra.mxu0 0.0
      %1854 = vmatprep.subr.mxu0 0.0
      %1855 = vmatpush1.xpose.msra.mxu0 0.0
      %1856 = vmatprep.subr.mxu0 0.0
      %1857 = vmatpush1.xpose.msra.mxu0 0.0
      %1858 = vmatprep.subr.mxu0 0.0
      %1859 = vmatpush1.xpose.msra.mxu0 0.0
      %1860 = vmatprep.subr.mxu0 0.0
      %1861 = vmatpush1.xpose.msra.mxu0 0.0
      %1862 = vmatprep.subr.mxu0 0.0
      %1863 = vmatpush1.xpose.msra.mxu0 0.0
      %1864 = vmatprep.subr.mxu0 0.0
      %1865 = vmatpush1.xpose.msra.mxu0 0.0
      %1866 = vmatprep.subr.mxu0 0.0
      %1867 = vmatpush1.xpose.msra.mxu0 0.0
      %1868 = vmatprep.subr.mxu0 0.0
      %1869 = vmatpush1.xpose.msra.mxu0 0.0
      %1870 = vmatprep.subr.mxu0 0.0
      %1871 = vmatpush1.xpose.msra.mxu0 0.0
      %1872 = vmatprep.subr.mxu0 0.0
      %1873 = vmatpush1.xpose.msra.mxu0 0.0
      %1874 = vmatprep.subr.mxu0 0.0
      %1875 = vmatpush1.xpose.msra.mxu0 0.0
      %1876 = vmatprep.subr.mxu0 0.0
      %1877 = vmatpush1.xpose.msra.mxu0 0.0
      %1878 = vmatprep.mubr.f32.mxu0 0.0
      %1879 = vmatmul.mubr.f32.gmra.mrb[0].mxu0 %v1809
      %v1880 = vpop.f32.mrb[0].mxu0
      %v1881 = vadd.f32 %v838, %v1880
      %v1882 = vpop.f32.mrb[0].mxu0
      %1883 = vdwg.mxu0
      %v1884 = vsel %vm840, %v1881, -inf
      %1885 = vmax.xlane.f32.xlu0 %v1884
      %v1886 = vpop.xlane.xlu0 %1885
      %v1887 = vsub.f32 %v1881, %v1886
      %v1888 = vmul.f32 %v1887, 1.442695
      %v1889 = vpow.pop %v1888
      %v1890 = vsel %vm840, %v1889, 0.0
      %1891 = vadd.xlane.f32.xlu0 %v1890
      %v1892 = vpop.xlane.xlu0 %1891
      %v1893 = vrcp.pop %v1892
      %v1894 = vmul.f32 %v1889, %v1893
      %v1896 = vsel %vm840, %v1894, 0
      %1898 = vmatprep.subr.mxu0 0.0
      %1899 = vmatpush1.msra.mxu0 %v1805
      %1900 = vmatprep.subr.mxu0 0.0
      %1901 = vmatpush1.msra.mxu0 0.0
      %1902 = vmatprep.subr.mxu0 0.0
      %1903 = vmatpush1.msra.mxu0 0.0
      %1904 = vmatprep.subr.mxu0 0.0
      %1905 = vmatpush1.msra.mxu0 0.0
      %1906 = vmatprep.subr.mxu0 0.0
      %1907 = vmatpush1.msra.mxu0 0.0
      %1908 = vmatprep.subr.mxu0 0.0
      %1909 = vmatpush1.msra.mxu0 0.0
      %1910 = vmatprep.subr.mxu0 0.0
      %1911 = vmatpush1.msra.mxu0 0.0
      %1912 = vmatprep.subr.mxu0 0.0
      %1913 = vmatpush1.msra.mxu0 0.0
      %1914 = vmatprep.subr.mxu0 0.0
      %1915 = vmatpush1.msra.mxu0 0.0
      %1916 = vmatprep.subr.mxu0 0.0
      %1917 = vmatpush1.msra.mxu0 0.0
      %1918 = vmatprep.subr.mxu0 0.0
      %1919 = vmatpush1.msra.mxu0 0.0
      %1920 = vmatprep.subr.mxu0 0.0
      %1921 = vmatpush1.msra.mxu0 0.0
      %1922 = vmatprep.subr.mxu0 0.0
      %1923 = vmatpush1.msra.mxu0 0.0
      %1924 = vmatprep.subr.mxu0 0.0
      %1925 = vmatpush1.msra.mxu0 0.0
      %1926 = vmatprep.subr.mxu0 0.0
      %1927 = vmatpush1.msra.mxu0 0.0
      %1928 = vmatprep.subr.mxu0 0.0
      %1929 = vmatpush1.msra.mxu0 0.0
      %1930 = vmatprep.subr.mxu0 0.0
      %1931 = vmatpush1.msra.mxu0 0.0
      %1932 = vmatprep.subr.mxu0 0.0
      %1933 = vmatpush1.msra.mxu0 0.0
      %1934 = vmatprep.subr.mxu0 0.0
      %1935 = vmatpush1.msra.mxu0 0.0
      %1936 = vmatprep.subr.mxu0 0.0
      %1937 = vmatpush1.msra.mxu0 0.0
      %1938 = vmatprep.subr.mxu0 0.0
      %1939 = vmatpush1.msra.mxu0 0.0
      %1940 = vmatprep.subr.mxu0 0.0
      %1941 = vmatpush1.msra.mxu0 0.0
      %1942 = vmatprep.subr.mxu0 0.0
      %1943 = vmatpush1.msra.mxu0 0.0
      %1944 = vmatprep.subr.mxu0 0.0
      %1945 = vmatpush1.msra.mxu0 0.0
      %1946 = vmatprep.subr.mxu0 0.0
      %1947 = vmatpush1.msra.mxu0 0.0
      %1948 = vmatprep.subr.mxu0 0.0
      %1949 = vmatpush1.msra.mxu0 0.0
      %1950 = vmatprep.subr.mxu0 0.0
      %1951 = vmatpush1.msra.mxu0 0.0
      %1952 = vmatprep.subr.mxu0 0.0
      %1953 = vmatpush1.msra.mxu0 0.0
      %1954 = vmatprep.subr.mxu0 0.0
      %1955 = vmatpush1.msra.mxu0 0.0
      %1956 = vmatprep.subr.mxu0 0.0
      %1957 = vmatpush1.msra.mxu0 0.0
      %1958 = vmatprep.subr.mxu0 0.0
      %1959 = vmatpush1.msra.mxu0 0.0
      %1960 = vmatprep.subr.mxu0 0.0
      %1961 = vmatpush1.msra.mxu0 0.0
      %1962 = vmatprep.mubr.f32.mxu0 0.0
      %1963 = vmatmul.mubr.f32.gmra.mrb[0].mxu0 %v1896
      %v1964 = vpop.f32.mrb[0].mxu0
      %v1965 = vadd.f32 0.0, %v1964
      %v1966 = vpop.f32.mrb[0].mxu0
      %1967 = vdwg.mxu0
      %s1968 = scalar_lea.vmem %s8, 16
      %v1969 = vld [vmem:[%s1968] sm:$0xff]
      %v1971 = vsel %vm840, %v1965, 0
      %1973 = vmatprep.subr.mxu0 0.0
      %1974 = vmatpush1.msra.mxu0 %v1969
      %1975 = vmatprep.subr.mxu0 0.0
      %1976 = vmatpush1.msra.mxu0 0.0
      %1977 = vmatprep.subr.mxu0 0.0
      %1978 = vmatpush1.msra.mxu0 0.0
      %1979 = vmatprep.subr.mxu0 0.0
      %1980 = vmatpush1.msra.mxu0 0.0
      %1981 = vmatprep.subr.mxu0 0.0
      %1982 = vmatpush1.msra.mxu0 0.0
      %1983 = vmatprep.subr.mxu0 0.0
      %1984 = vmatpush1.msra.mxu0 0.0
      %1985 = vmatprep.subr.mxu0 0.0
      %1986 = vmatpush1.msra.mxu0 0.0
      %1987 = vmatprep.subr.mxu0 0.0
      %1988 = vmatpush1.msra.mxu0 0.0
      %1989 = vmatprep.subr.mxu0 0.0
      %1990 = vmatpush1.msra.mxu0 0.0
      %1991 = vmatprep.subr.mxu0 0.0
      %1992 = vmatpush1.msra.mxu0 0.0
      %1993 = vmatprep.subr.mxu0 0.0
      %1994 = vmatpush1.msra.mxu0 0.0
      %1995 = vmatprep.subr.mxu0 0.0
      %1996 = vmatpush1.msra.mxu0 0.0
      %1997 = vmatprep.subr.mxu0 0.0
      %1998 = vmatpush1.msra.mxu0 0.0
      %1999 = vmatprep.subr.mxu0 0.0
      %2000 = vmatpush1.msra.mxu0 0.0
      %2001 = vmatprep.subr.mxu0 0.0
      %2002 = vmatpush1.msra.mxu0 0.0
      %2003 = vmatprep.subr.mxu0 0.0
      %2004 = vmatpush1.msra.mxu0 0.0
      %2005 = vmatprep.subr.mxu0 0.0
      %2006 = vmatpush1.msra.mxu0 0.0
      %2007 = vmatprep.subr.mxu0 0.0
      %2008 = vmatpush1.msra.mxu0 0.0
      %2009 = vmatprep.subr.mxu0 0.0
      %2010 = vmatpush1.msra.mxu0 0.0
      %2011 = vmatprep.subr.mxu0 0.0
      %2012 = vmatpush1.msra.mxu0 0.0
      %2013 = vmatprep.subr.mxu0 0.0
      %2014 = vmatpush1.msra.mxu0 0.0
      %2015 = vmatprep.subr.mxu0 0.0
      %2016 = vmatpush1.msra.mxu0 0.0
      %2017 = vmatprep.subr.mxu0 0.0
      %2018 = vmatpush1.msra.mxu0 0.0
      %2019 = vmatprep.subr.mxu0 0.0
      %2020 = vmatpush1.msra.mxu0 0.0
      %2021 = vmatprep.subr.mxu0 0.0
      %2022 = vmatpush1.msra.mxu0 0.0
      %2023 = vmatprep.subr.mxu0 0.0
      %2024 = vmatpush1.msra.mxu0 0.0
      %2025 = vmatprep.subr.mxu0 0.0
      %2026 = vmatpush1.msra.mxu0 0.0
      %2027 = vmatprep.subr.mxu0 0.0
      %2028 = vmatpush1.msra.mxu0 0.0
      %2029 = vmatprep.subr.mxu0 0.0
      %2030 = vmatpush1.msra.mxu0 0.0
      %2031 = vmatprep.subr.mxu0 0.0
      %2032 = vmatpush1.msra.mxu0 0.0
      %2033 = vmatprep.subr.mxu0 0.0
      %2034 = vmatpush1.msra.mxu0 0.0
      %2035 = vmatprep.subr.mxu0 0.0
      %2036 = vmatpush1.msra.mxu0 0.0
      %2037 = vmatprep.mubr.f32.mxu0 0.0
      %2038 = vmatmul.mubr.f32.gmra.mrb[0].mxu0 %v1971
      %v2039 = vpop.f32.mrb[0].mxu0
      %v2040 = vadd.f32 0.0, %v2039
      %v2041 = vpop.f32.mrb[0].mxu0
      %2042 = vdwg.mxu0
      %v2043 = vadd.f32 %v1556, %v2040
      %s2044 = scalar_lea.vmem %s2, 96
      %v2045 = vld [vmem:[%s2044] sm:$0xff]
      %v2046 = vld [vmem:[%s2044 + $0x8] sm:$0xff]
      %v2047 = vld [vmem:[%s2044 + $0x10] sm:$0xff]
      %v2048 = vld [vmem:[%s2044 + $0x18] sm:$0xff]
      %s2049 = scalar_lea.vmem %s3, 3
      %v2050 = vld [vmem:[%s2049] sm:$0x1]
      %v2052 = vlaneseq
      %v2053 = vshrl.u32 %v2052, 7
      %v2054 = vsub.s32 0, %v2053
      %v2055 = vrot.slane %v2050, %v2054
      %2057 = vmatprep.subr.mxu0 0.0
      %2058 = vmatpush1.msra.mxu0 %v2045
      %2059 = vmatprep.subr.mxu0 0.0
      %2060 = vmatpush1.msra.mxu0 %v2046
      %2061 = vmatprep.subr.mxu0 0.0
      %2062 = vmatpush1.msra.mxu0 %v2047
      %2063 = vmatprep.subr.mxu0 0.0
      %2064 = vmatpush1.msra.mxu0 %v2048
      %2065 = vmatprep.subr.mxu0 0.0
      %2066 = vmatpush1.msra.mxu0 0.0
      %2067 = vmatprep.subr.mxu0 0.0
      %2068 = vmatpush1.msra.mxu0 0.0
      %2069 = vmatprep.subr.mxu0 0.0
      %2070 = vmatpush1.msra.mxu0 0.0
      %2071 = vmatprep.subr.mxu0 0.0
      %2072 = vmatpush1.msra.mxu0 0.0
      %2073 = vmatprep.subr.mxu0 0.0
      %2074 = vmatpush1.msra.mxu0 0.0
      %2075 = vmatprep.subr.mxu0 0.0
      %2076 = vmatpush1.msra.mxu0 0.0
      %2077 = vmatprep.subr.mxu0 0.0
      %2078 = vmatpush1.msra.mxu0 0.0
      %2079 = vmatprep.subr.mxu0 0.0
      %2080 = vmatpush1.msra.mxu0 0.0
      %2081 = vmatprep.subr.mxu0 0.0
      %2082 = vmatpush1.msra.mxu0 0.0
      %2083 = vmatprep.subr.mxu0 0.0
      %2084 = vmatpush1.msra.mxu0 0.0
      %2085 = vmatprep.subr.mxu0 0.0
      %2086 = vmatpush1.msra.mxu0 0.0
      %2087 = vmatprep.subr.mxu0 0.0
      %2088 = vmatpush1.msra.mxu0 0.0
      %2089 = vmatprep.subr.mxu0 0.0
      %2090 = vmatpush1.msra.mxu0 0.0
      %2091 = vmatprep.subr.mxu0 0.0
      %2092 = vmatpush1.msra.mxu0 0.0
      %2093 = vmatprep.subr.mxu0 0.0
      %2094 = vmatpush1.msra.mxu0 0.0
      %2095 = vmatprep.subr.mxu0 0.0
      %2096 = vmatpush1.msra.mxu0 0.0
      %2097 = vmatprep.subr.mxu0 0.0
      %2098 = vmatpush1.msra.mxu0 0.0
      %2099 = vmatprep.subr.mxu0 0.0
      %2100 = vmatpush1.msra.mxu0 0.0
      %2101 = vmatprep.subr.mxu0 0.0
      %2102 = vmatpush1.msra.mxu0 0.0
      %2103 = vmatprep.subr.mxu0 0.0
      %2104 = vmatpush1.msra.mxu0 0.0
      %2105 = vmatprep.subr.mxu0 0.0
      %2106 = vmatpush1.msra.mxu0 0.0
      %2107 = vmatprep.subr.mxu0 0.0
      %2108 = vmatpush1.msra.mxu0 0.0
      %2109 = vmatprep.subr.mxu0 0.0
      %2110 = vmatpush1.msra.mxu0 0.0
      %2111 = vmatprep.subr.mxu0 0.0
      %2112 = vmatpush1.msra.mxu0 0.0
      %2113 = vmatprep.subr.mxu0 0.0
      %2114 = vmatpush1.msra.mxu0 0.0
      %2115 = vmatprep.subr.mxu0 0.0
      %2116 = vmatpush1.msra.mxu0 0.0
      %2117 = vmatprep.subr.mxu0 0.0
      %2118 = vmatpush1.msra.mxu0 0.0
      %2119 = vmatprep.subr.mxu0 0.0
      %2120 = vmatpush1.msra.mxu0 0.0
      %2121 = vmatprep.mubr.f32.mxu0 0.0
      %2122 = vmatmul.mubr.f32.gmra.mrb[0].mxu0 %v600
      %v2123 = vpop.f32.mrb[0].mxu0
      %v2124 = vadd.f32 %v2055, %v2123
      %v2125 = vpop.f32.mrb[0].mxu0
      %2126 = vdwg.mxu0
      %s2127 = scalar_lea.vmem %s4, 96
      %v2128 = vld [vmem:[%s2127] sm:$0xff]
      %v2129 = vld [vmem:[%s2127 + $0x8] sm:$0xff]
      %v2130 = vld [vmem:[%s2127 + $0x10] sm:$0xff]
      %v2131 = vld [vmem:[%s2127 + $0x18] sm:$0xff]
      %s2132 = scalar_lea.vmem %s5, 3
      %v2133 = vld [vmem:[%s2132] sm:$0x1]
      %v2135 = vlaneseq
      %v2136 = vshrl.u32 %v2135, 7
      %v2137 = vsub.s32 0, %v2136
      %v2138 = vrot.slane %v2133, %v2137
      %2140 = vmatprep.subr.mxu0 0.0
      %2141 = vmatpush1.msra.mxu0 %v2128
      %2142 = vmatprep.subr.mxu0 0.0
      %2143 = vmatpush1.msra.mxu0 %v2129
      %2144 = vmatprep.subr.mxu0 0.0
      %2145 = vmatpush1.msra.mxu0 %v2130
      %2146 = vmatprep.subr.mxu0 0.0
      %2147 = vmatpush1.msra.mxu0 %v2131
      %2148 = vmatprep.subr.mxu0 0.0
      %2149 = vmatpush1.msra.mxu0 0.0
      %2150 = vmatprep.subr.mxu0 0.0
      %2151 = vmatpush1.msra.mxu0 0.0
      %2152 = vmatprep.subr.mxu0 0.0
      %2153 = vmatpush1.msra.mxu0 0.0
      %2154 = vmatprep.subr.mxu0 0.0
      %2155 = vmatpush1.msra.mxu0 0.0
      %2156 = vmatprep.subr.mxu0 0.0
      %2157 = vmatpush1.msra.mxu0 0.0
      %2158 = vmatprep.subr.mxu0 0.0
      %2159 = vmatpush1.msra.mxu0 0.0
      %2160 = vmatprep.subr.mxu0 0.0
      %2161 = vmatpush1.msra.mxu0 0.0
      %2162 = vmatprep.subr.mxu0 0.0
      %2163 = vmatpush1.msra.mxu0 0.0
      %2164 = vmatprep.subr.mxu0 0.0
      %2165 = vmatpush1.msra.mxu0 0.0
      %2166 = vmatprep.subr.mxu0 0.0
      %2167 = vmatpush1.msra.mxu0 0.0
      %2168 = vmatprep.subr.mxu0 0.0
      %2169 = vmatpush1.msra.mxu0 0.0
      %2170 = vmatprep.subr.mxu0 0.0
      %2171 = vmatpush1.msra.mxu0 0.0
      %2172 = vmatprep.subr.mxu0 0.0
      %2173 = vmatpush1.msra.mxu0 0.0
      %2174 = vmatprep.subr.mxu0 0.0
      %2175 = vmatpush1.msra.mxu0 0.0
      %2176 = vmatprep.subr.mxu0 0.0
      %2177 = vmatpush1.msra.mxu0 0.0
      %2178 = vmatprep.subr.mxu0 0.0
      %2179 = vmatpush1.msra.mxu0 0.0
      %2180 = vmatprep.subr.mxu0 0.0
      %2181 = vmatpush1.msra.mxu0 0.0
      %2182 = vmatprep.subr.mxu0 0.0
      %2183 = vmatpush1.msra.mxu0 0.0
      %2184 = vmatprep.subr.mxu0 0.0
      %2185 = vmatpush1.msra.mxu0 0.0
      %2186 = vmatprep.subr.mxu0 0.0
      %2187 = vmatpush1.msra.mxu0 0.0
      %2188 = vmatprep.subr.mxu0 0.0
      %2189 = vmatpush1.msra.mxu0 0.0
      %2190 = vmatprep.subr.mxu0 0.0
      %2191 = vmatpush1.msra.mxu0 0.0
      %2192 = vmatprep.subr.mxu0 0.0
      %2193 = vmatpush1.msra.mxu0 0.0
      %2194 = vmatprep.subr.mxu0 0.0
      %2195 = vmatpush1.msra.mxu0 0.0
      %2196 = vmatprep.subr.mxu0 0.0
      %2197 = vmatpush1.msra.mxu0 0.0
      %2198 = vmatprep.subr.mxu0 0.0
      %2199 = vmatpush1.msra.mxu0 0.0
      %2200 = vmatprep.subr.mxu0 0.0
      %2201 = vmatpush1.msra.mxu0 0.0
      %2202 = vmatprep.subr.mxu0 0.0
      %2203 = vmatpush1.msra.mxu0 0.0
      %2204 = vmatprep.mubr.f32.mxu0 0.0
      %2205 = vmatmul.mubr.f32.gmra.mrb[0].mxu0 %v600
      %v2206 = vpop.f32.mrb[0].mxu0
      %v2207 = vadd.f32 %v2138, %v2206
      %v2208 = vpop.f32.mrb[0].mxu0
      %2209 = vdwg.mxu0
      %s2210 = scalar_lea.vmem %s6, 96
      %v2211 = vld [vmem:[%s2210] sm:$0xff]
      %v2212 = vld [vmem:[%s2210 + $0x8] sm:$0xff]
      %v2213 = vld [vmem:[%s2210 + $0x10] sm:$0xff]
      %v2214 = vld [vmem:[%s2210 + $0x18] sm:$0xff]
      %s2215 = scalar_lea.vmem %s7, 3
      %v2216 = vld [vmem:[%s2215] sm:$0x1]
      %v2218 = vlaneseq
      %v2219 = vshrl.u32 %v2218, 7
      %v2220 = vsub.s32 0, %v2219
      %v2221 = vrot.slane %v2216, %v2220
      %2223 = vmatprep.subr.mxu0 0.0
      %2224 = vmatpush1.msra.mxu0 %v2211
      %2225 = vmatprep.subr.mxu0 0.0
      %2226 = vmatpush1.msra.mxu0 %v2212
      %2227 = vmatprep.subr.mxu0 0.0
      %2228 = vmatpush1.msra.mxu0 %v2213
      %2229 = vmatprep.subr.mxu0 0.0
      %2230 = vmatpush1.msra.mxu0 %v2214
      %2231 = vmatprep.subr.mxu0 0.0
      %2232 = vmatpush1.msra.mxu0 0.0
      %2233 = vmatprep.subr.mxu0 0.0
      %2234 = vmatpush1.msra.mxu0 0.0
      %2235 = vmatprep.subr.mxu0 0.0
      %2236 = vmatpush1.msra.mxu0 0.0
      %2237 = vmatprep.subr.mxu0 0.0
      %2238 = vmatpush1.msra.mxu0 0.0
      %2239 = vmatprep.subr.mxu0 0.0
      %2240 = vmatpush1.msra.mxu0 0.0
      %2241 = vmatprep.subr.mxu0 0.0
      %2242 = vmatpush1.msra.mxu0 0.0
      %2243 = vmatprep.subr.mxu0 0.0
      %2244 = vmatpush1.msra.mxu0 0.0
      %2245 = vmatprep.subr.mxu0 0.0
      %2246 = vmatpush1.msra.mxu0 0.0
      %2247 = vmatprep.subr.mxu0 0.0
      %2248 = vmatpush1.msra.mxu0 0.0
      %2249 = vmatprep.subr.mxu0 0.0
      %2250 = vmatpush1.msra.mxu0 0.0
      %2251 = vmatprep.subr.mxu0 0.0
      %2252 = vmatpush1.msra.mxu0 0.0
      %2253 = vmatprep.subr.mxu0 0.0
      %2254 = vmatpush1.msra.mxu0 0.0
      %2255 = vmatprep.subr.mxu0 0.0
      %2256 = vmatpush1.msra.mxu0 0.0
      %2257 = vmatprep.subr.mxu0 0.0
      %2258 = vmatpush1.msra.mxu0 0.0
      %2259 = vmatprep.subr.mxu0 0.0
      %2260 = vmatpush1.msra.mxu0 0.0
      %2261 = vmatprep.subr.mxu0 0.0
      %2262 = vmatpush1.msra.mxu0 0.0
      %2263 = vmatprep.subr.mxu0 0.0
      %2264 = vmatpush1.msra.mxu0 0.0
      %2265 = vmatprep.subr.mxu0 0.0
      %2266 = vmatpush1.msra.mxu0 0.0
      %2267 = vmatprep.subr.mxu0 0.0
      %2268 = vmatpush1.msra.mxu0 0.0
      %2269 = vmatprep.subr.mxu0 0.0
      %2270 = vmatpush1.msra.mxu0 0.0
      %2271 = vmatprep.subr.mxu0 0.0
      %2272 = vmatpush1.msra.mxu0 0.0
      %2273 = vmatprep.subr.mxu0 0.0
      %2274 = vmatpush1.msra.mxu0 0.0
      %2275 = vmatprep.subr.mxu0 0.0
      %2276 = vmatpush1.msra.mxu0 0.0
      %2277 = vmatprep.subr.mxu0 0.0
      %2278 = vmatpush1.msra.mxu0 0.0
      %2279 = vmatprep.subr.mxu0 0.0
      %2280 = vmatpush1.msra.mxu0 0.0
      %2281 = vmatprep.subr.mxu0 0.0
      %2282 = vmatpush1.msra.mxu0 0.0
      %2283 = vmatprep.subr.mxu0 0.0
      %2284 = vmatpush1.msra.mxu0 0.0
      %2285 = vmatprep.subr.mxu0 0.0
      %2286 = vmatpush1.msra.mxu0 0.0
      %2287 = vmatprep.mubr.f32.mxu0 0.0
      %2288 = vmatmul.mubr.f32.gmra.mrb[0].mxu0 %v600
      %v2289 = vpop.f32.mrb[0].mxu0
      %v2290 = vadd.f32 %v2221, %v2289
      %v2291 = vpop.f32.mrb[0].mxu0
      %2292 = vdwg.mxu0
      %v2294 = vsel %vm840, %v2124, 0
      %v2297 = vsel %vm840, %v2207, 0
      %2299 = vmatprep.subr.mxu0 0.0
      %2300 = vmatpush1.xpose.msra.mxu0 %v2297
      %2301 = vmatprep.subr.mxu0 0.0
      %2302 = vmatpush1.xpose.msra.mxu0 0.0
      %2303 = vmatprep.subr.mxu0 0.0
      %2304 = vmatpush1.xpose.msra.mxu0 0.0
      %2305 = vmatprep.subr.mxu0 0.0
      %2306 = vmatpush1.xpose.msra.mxu0 0.0
      %2307 = vmatprep.subr.mxu0 0.0
      %2308 = vmatpush1.xpose.msra.mxu0 0.0
      %2309 = vmatprep.subr.mxu0 0.0
      %2310 = vmatpush1.xpose.msra.mxu0 0.0
      %2311 = vmatprep.subr.mxu0 0.0
      %2312 = vmatpush1.xpose.msra.mxu0 0.0
      %2313 = vmatprep.subr.mxu0 0.0
      %2314 = vmatpush1.xpose.msra.mxu0 0.0
      %2315 = vmatprep.subr.mxu0 0.0
      %2316 = vmatpush1.xpose.msra.mxu0 0.0
      %2317 = vmatprep.subr.mxu0 0.0
      %2318 = vmatpush1.xpose.msra.mxu0 0.0
      %2319 = vmatprep.subr.mxu0 0.0
      %2320 = vmatpush1.xpose.msra.mxu0 0.0
      %2321 = vmatprep.subr.mxu0 0.0
      %2322 = vmatpush1.xpose.msra.mxu0 0.0
      %2323 = vmatprep.subr.mxu0 0.0
      %2324 = vmatpush1.xpose.msra.mxu0 0.0
      %2325 = vmatprep.subr.mxu0 0.0
      %2326 = vmatpush1.xpose.msra.mxu0 0.0
      %2327 = vmatprep.subr.mxu0 0.0
      %2328 = vmatpush1.xpose.msra.mxu0 0.0
      %2329 = vmatprep.subr.mxu0 0.0
      %2330 = vmatpush1.xpose.msra.mxu0 0.0
      %2331 = vmatprep.subr.mxu0 0.0
      %2332 = vmatpush1.xpose.msra.mxu0 0.0
      %2333 = vmatprep.subr.mxu0 0.0
      %2334 = vmatpush1.xpose.msra.mxu0 0.0
      %2335 = vmatprep.subr.mxu0 0.0
      %2336 = vmatpush1.xpose.msra.mxu0 0.0
      %2337 = vmatprep.subr.mxu0 0.0
      %2338 = vmatpush1.xpose.msra.mxu0 0.0
      %2339 = vmatprep.subr.mxu0 0.0
      %2340 = vmatpush1.xpose.msra.mxu0 0.0
      %2341 = vmatprep.subr.mxu0 0.0
      %2342 = vmatpush1.xpose.msra.mxu0 0.0
      %2343 = vmatprep.subr.mxu0 0.0
      %2344 = vmatpush1.xpose.msra.mxu0 0.0
      %2345 = vmatprep.subr.mxu0 0.0
      %2346 = vmatpush1.xpose.msra.mxu0 0.0
      %2347 = vmatprep.subr.mxu0 0.0
      %2348 = vmatpush1.xpose.msra.mxu0 0.0
      %2349 = vmatprep.subr.mxu0 0.0
      %2350 = vmatpush1.xpose.msra.mxu0 0.0
      %2351 = vmatprep.subr.mxu0 0.0
      %2352 = vmatpush1.xpose.msra.mxu0 0.0
      %2353 = vmatprep.subr.mxu0 0.0
      %2354 = vmatpush1.xpose.msra.mxu0 0.0
      %2355 = vmatprep.subr.mxu0 0.0
      %2356 = vmatpush1.xpose.msra.mxu0 0.0
      %2357 = vmatprep.subr.mxu0 0.0
      %2358 = vmatpush1.xpose.msra.mxu0 0.0
      %2359 = vmatprep.subr.mxu0 0.0
      %2360 = vmatpush1.xpose.msra.mxu0 0.0
      %2361 = vmatprep.subr.mxu0 0.0
      %2362 = vmatpush1.xpose.msra.mxu0 0.0
      %2363 = vmatprep.mubr.f32.mxu0 0.0
      %2364 = vmatmul.mubr.f32.gmra.mrb[0].mxu0 %v2294
      %v2365 = vpop.f32.mrb[0].mxu0
      %v2366 = vadd.f32 %v838, %v2365
      %v2367 = vpop.f32.mrb[0].mxu0
      %2368 = vdwg.mxu0
      %v2369 = vsel %vm840, %v2366, -inf
      %2370 = vmax.xlane.f32.xlu0 %v2369
      %v2371 = vpop.xlane.xlu0 %2370
      %v2372 = vsub.f32 %v2366, %v2371
      %v2373 = vmul.f32 %v2372, 1.442695
      %v2374 = vpow.pop %v2373
      %v2375 = vsel %vm840, %v2374, 0.0
      %2376 = vadd.xlane.f32.xlu0 %v2375
      %v2377 = vpop.xlane.xlu0 %2376
      %v2378 = vrcp.pop %v2377
      %v2379 = vmul.f32 %v2374, %v2378
      %v2381 = vsel %vm840, %v2379, 0
      %2383 = vmatprep.subr.mxu0 0.0
      %2384 = vmatpush1.msra.mxu0 %v2290
      %2385 = vmatprep.subr.mxu0 0.0
      %2386 = vmatpush1.msra.mxu0 0.0
      %2387 = vmatprep.subr.mxu0 0.0
      %2388 = vmatpush1.msra.mxu0 0.0
      %2389 = vmatprep.subr.mxu0 0.0
      %2390 = vmatpush1.msra.mxu0 0.0
      %2391 = vmatprep.subr.mxu0 0.0
      %2392 = vmatpush1.msra.mxu0 0.0
      %2393 = vmatprep.subr.mxu0 0.0
      %2394 = vmatpush1.msra.mxu0 0.0
      %2395 = vmatprep.subr.mxu0 0.0
      %2396 = vmatpush1.msra.mxu0 0.0
      %2397 = vmatprep.subr.mxu0 0.0
      %2398 = vmatpush1.msra.mxu0 0.0
      %2399 = vmatprep.subr.mxu0 0.0
      %2400 = vmatpush1.msra.mxu0 0.0
      %2401 = vmatprep.subr.mxu0 0.0
      %2402 = vmatpush1.msra.mxu0 0.0
      %2403 = vmatprep.subr.mxu0 0.0
      %2404 = vmatpush1.msra.mxu0 0.0
      %2405 = vmatprep.subr.mxu0 0.0
      %2406 = vmatpush1.msra.mxu0 0.0
      %2407 = vmatprep.subr.mxu0 0.0
      %2408 = vmatpush1.msra.mxu0 0.0
      %2409 = vmatprep.subr.mxu0 0.0
      %2410 = vmatpush1.msra.mxu0 0.0
      %2411 = vmatprep.subr.mxu0 0.0
      %2412 = vmatpush1.msra.mxu0 0.0
      %2413 = vmatprep.subr.mxu0 0.0
      %2414 = vmatpush1.msra.mxu0 0.0
      %2415 = vmatprep.subr.mxu0 0.0
      %2416 = vmatpush1.msra.mxu0 0.0
      %2417 = vmatprep.subr.mxu0 0.0
      %2418 = vmatpush1.msra.mxu0 0.0
      %2419 = vmatprep.subr.mxu0 0.0
      %2420 = vmatpush1.msra.mxu0 0.0
      %2421 = vmatprep.subr.mxu0 0.0
      %2422 = vmatpush1.msra.mxu0 0.0
      %2423 = vmatprep.subr.mxu0 0.0
      %2424 = vmatpush1.msra.mxu0 0.0
      %2425 = vmatprep.subr.mxu0 0.0
      %2426 = vmatpush1.msra.mxu0 0.0
      %2427 = vmatprep.subr.mxu0 0.0
      %2428 = vmatpush1.msra.mxu0 0.0
      %2429 = vmatprep.subr.mxu0 0.0
      %2430 = vmatpush1.msra.mxu0 0.0
      %2431 = vmatprep.subr.mxu0 0.0
      %2432 = vmatpush1.msra.mxu0 0.0
      %2433 = vmatprep.subr.mxu0 0.0
      %2434 = vmatpush1.msra.mxu0 0.0
      %2435 = vmatprep.subr.mxu0 0.0
      %2436 = vmatpush1.msra.mxu0 0.0
      %2437 = vmatprep.subr.mxu0 0.0
      %2438 = vmatpush1.msra.mxu0 0.0
      %2439 = vmatprep.subr.mxu0 0.0
      %2440 = vmatpush1.msra.mxu0 0.0
      %2441 = vmatprep.subr.mxu0 0.0
      %2442 = vmatpush1.msra.mxu0 0.0
      %2443 = vmatprep.subr.mxu0 0.0
      %2444 = vmatpush1.msra.mxu0 0.0
      %2445 = vmatprep.subr.mxu0 0.0
      %2446 = vmatpush1.msra.mxu0 0.0
      %2447 = vmatprep.mubr.f32.mxu0 0.0
      %2448 = vmatmul.mubr.f32.gmra.mrb[0].mxu0 %v2381
      %v2449 = vpop.f32.mrb[0].mxu0
      %v2450 = vadd.f32 0.0, %v2449
      %v2451 = vpop.f32.mrb[0].mxu0
      %2452 = vdwg.mxu0
      %s2453 = scalar_lea.vmem %s8, 24
      %v2454 = vld [vmem:[%s2453] sm:$0xff]
      %v2456 = vsel %vm840, %v2450, 0
      %2458 = vmatprep.subr.mxu0 0.0
      %2459 = vmatpush1.msra.mxu0 %v2454
      %2460 = vmatprep.subr.mxu0 0.0
      %2461 = vmatpush1.msra.mxu0 0.0
      %2462 = vmatprep.subr.mxu0 0.0
      %2463 = vmatpush1.msra.mxu0 0.0
      %2464 = vmatprep.subr.mxu0 0.0
      %2465 = vmatpush1.msra.mxu0 0.0
      %2466 = vmatprep.subr.mxu0 0.0
      %2467 = vmatpush1.msra.mxu0 0.0
      %2468 = vmatprep.subr.mxu0 0.0
      %2469 = vmatpush1.msra.mxu0 0.0
      %2470 = vmatprep.subr.mxu0 0.0
      %2471 = vmatpush1.msra.mxu0 0.0
      %2472 = vmatprep.subr.mxu0 0.0
      %2473 = vmatpush1.msra.mxu0 0.0
      %2474 = vmatprep.subr.mxu0 0.0
      %2475 = vmatpush1.msra.mxu0 0.0
      %2476 = vmatprep.subr.mxu0 0.0
      %2477 = vmatpush1.msra.mxu0 0.0
      %2478 = vmatprep.subr.mxu0 0.0
      %2479 = vmatpush1.msra.mxu0 0.0
      %2480 = vmatprep.subr.mxu0 0.0
      %2481 = vmatpush1.msra.mxu0 0.0
      %2482 = vmatprep.subr.mxu0 0.0
      %2483 = vmatpush1.msra.mxu0 0.0
      %2484 = vmatprep.subr.mxu0 0.0
      %2485 = vmatpush1.msra.mxu0 0.0
      %2486 = vmatprep.subr.mxu0 0.0
      %2487 = vmatpush1.msra.mxu0 0.0
      %2488 = vmatprep.subr.mxu0 0.0
      %2489 = vmatpush1.msra.mxu0 0.0
      %2490 = vmatprep.subr.mxu0 0.0
      %2491 = vmatpush1.msra.mxu0 0.0
      %2492 = vmatprep.subr.mxu0 0.0
      %2493 = vmatpush1.msra.mxu0 0.0
      %2494 = vmatprep.subr.mxu0 0.0
      %2495 = vmatpush1.msra.mxu0 0.0
      %2496 = vmatprep.subr.mxu0 0.0
      %2497 = vmatpush1.msra.mxu0 0.0
      %2498 = vmatprep.subr.mxu0 0.0
      %2499 = vmatpush1.msra.mxu0 0.0
      %2500 = vmatprep.subr.mxu0 0.0
      %2501 = vmatpush1.msra.mxu0 0.0
      %2502 = vmatprep.subr.mxu0 0.0
      %2503 = vmatpush1.msra.mxu0 0.0
      %2504 = vmatprep.subr.mxu0 0.0
      %2505 = vmatpush1.msra.mxu0 0.0
      %2506 = vmatprep.subr.mxu0 0.0
      %2507 = vmatpush1.msra.mxu0 0.0
      %2508 = vmatprep.subr.mxu0 0.0
      %2509 = vmatpush1.msra.mxu0 0.0
      %2510 = vmatprep.subr.mxu0 0.0
      %2511 = vmatpush1.msra.mxu0 0.0
      %2512 = vmatprep.subr.mxu0 0.0
      %2513 = vmatpush1.msra.mxu0 0.0
      %2514 = vmatprep.subr.mxu0 0.0
      %2515 = vmatpush1.msra.mxu0 0.0
      %2516 = vmatprep.subr.mxu0 0.0
      %2517 = vmatpush1.msra.mxu0 0.0
      %2518 = vmatprep.subr.mxu0 0.0
      %2519 = vmatpush1.msra.mxu0 0.0
      %2520 = vmatprep.subr.mxu0 0.0
      %2521 = vmatpush1.msra.mxu0 0.0
      %2522 = vmatprep.mubr.f32.mxu0 0.0
      %2523 = vmatmul.mubr.f32.gmra.mrb[0].mxu0 %v2456
      %v2524 = vpop.f32.mrb[0].mxu0
      %v2525 = vadd.f32 0.0, %v2524
      %v2526 = vpop.f32.mrb[0].mxu0
      %2527 = vdwg.mxu0
      %v2528 = vadd.f32 %v2043, %v2525
      %v2529 = vld [vmem:[%s9] sm:$0x1]
      %v2531 = vlaneseq
      %v2532 = vshrl.u32 %v2531, 7
      %v2533 = vsub.s32 0, %v2532
      %v2534 = vrot.slane %v2529, %v2533
      %v2536 = vadd.f32 %v2528, %v2534
      %v2537 = vld [vmem:[%s10] sm:$0x1]
      %v2538 = vld [vmem:[%s11] sm:$0x1]
      %v2539 = vadd.f32 %v585, %v2536
      %v2540 = vsel %vm598, %v2539, 0.0
      %2541 = vadd.xlane.f32.xlu0 %v2540
      %v2542 = vpop.xlane.xlu0 %2541
      %v2543 = vrcp.pop 32.0
      %v2544 = vmul.f32 %v2542, %v2543
      %v2545 = vsub.f32 %v2539, %v2544
      %v2546 = vmul.f32 %v2545, %v2545
      %v2547 = vsel %vm598, %v2546, 0.0
      %2548 = vadd.xlane.f32.xlu0 %v2547
      %v2549 = vpop.xlane.xlu0 %2548
      %v2550 = vmul.f32 %v2549, %v2543
      %v2551 = vadd.f32 %v2550, 1e-05
      %v2552 = vrsqrt.pop %v2551
      %v2553 = vmul.f32 %v2545, %v2552
      %v2555 = vlaneseq
      %v2556 = vshrl.u32 %v2555, 7
      %v2557 = vsub.s32 0, %v2556
      %v2558 = vrot.slane %v2537, %v2557
      %v2560 = vmul.f32 %v2553, %v2558
      %v2562 = vlaneseq
      %v2563 = vshrl.u32 %v2562, 7
      %v2564 = vsub.s32 0, %v2563
      %v2565 = vrot.slane %v2538, %v2564
      %v2567 = vadd.f32 %v2560, %v2565
      %v2568 = vld [vmem:[%s12] sm:$0xff]
      %v2569 = vld [vmem:[%s12 + $0x8] sm:$0xff]
      %v2570 = vld [vmem:[%s12 + $0x10] sm:$0xff]
      %v2571 = vld [vmem:[%s12 + $0x18] sm:$0xff]
      %v2572 = vld [vmem:[%s13] sm:$0x1]
      %v2573 = vld [vmem:[%s14] sm:$0xff]
      %v2574 = vld [vmem:[%s14 + $0x8] sm:$0xff]
      %v2575 = vld [vmem:[%s14 + $0x10] sm:$0xff]
      %v2576 = vld [vmem:[%s14 + $0x18] sm:$0xff]
      %v2577 = vld [vmem:[%s14 + $0x20] sm:$0xff]
      %v2578 = vld [vmem:[%s14 + $0x28] sm:$0xff]
      %v2579 = vld [vmem:[%s14 + $0x30] sm:$0xff]
      %v2580 = vld [vmem:[%s14 + $0x38] sm:$0xff]
      %v2581 = vld [vmem:[%s15] sm:$0x1]
      %v2583 = vlaneseq
      %v2584 = vshrl.u32 %v2583, 7
      %v2585 = vsub.s32 0, %v2584
      %v2586 = vrot.slane %v2572, %v2585
      %v2589 = vsel %vm598, %v2567, 0
      %2591 = vmatprep.subr.mxu0 0.0
      %2592 = vmatpush1.msra.mxu0 %v2568
      %2593 = vmatprep.subr.mxu0 0.0
      %2594 = vmatpush1.msra.mxu0 %v2569
      %2595 = vmatprep.subr.mxu0 0.0
      %2596 = vmatpush1.msra.mxu0 %v2570
      %2597 = vmatprep.subr.mxu0 0.0
      %2598 = vmatpush1.msra.mxu0 %v2571
      %2599 = vmatprep.subr.mxu0 0.0
      %2600 = vmatpush1.msra.mxu0 0.0
      %2601 = vmatprep.subr.mxu0 0.0
      %2602 = vmatpush1.msra.mxu0 0.0
      %2603 = vmatprep.subr.mxu0 0.0
      %2604 = vmatpush1.msra.mxu0 0.0
      %2605 = vmatprep.subr.mxu0 0.0
      %2606 = vmatpush1.msra.mxu0 0.0
      %2607 = vmatprep.subr.mxu0 0.0
      %2608 = vmatpush1.msra.mxu0 0.0
      %2609 = vmatprep.subr.mxu0 0.0
      %2610 = vmatpush1.msra.mxu0 0.0
      %2611 = vmatprep.subr.mxu0 0.0
      %2612 = vmatpush1.msra.mxu0 0.0
      %2613 = vmatprep.subr.mxu0 0.0
      %2614 = vmatpush1.msra.mxu0 0.0
      %2615 = vmatprep.subr.mxu0 0.0
      %2616 = vmatpush1.msra.mxu0 0.0
      %2617 = vmatprep.subr.mxu0 0.0
      %2618 = vmatpush1.msra.mxu0 0.0
      %2619 = vmatprep.subr.mxu0 0.0
      %2620 = vmatpush1.msra.mxu0 0.0
      %2621 = vmatprep.subr.mxu0 0.0
      %2622 = vmatpush1.msra.mxu0 0.0
      %2623 = vmatprep.subr.mxu0 0.0
      %2624 = vmatpush1.msra.mxu0 0.0
      %2625 = vmatprep.subr.mxu0 0.0
      %2626 = vmatpush1.msra.mxu0 0.0
      %2627 = vmatprep.subr.mxu0 0.0
      %2628 = vmatpush1.msra.mxu0 0.0
      %2629 = vmatprep.subr.mxu0 0.0
      %2630 = vmatpush1.msra.mxu0 0.0
      %2631 = vmatprep.subr.mxu0 0.0
      %2632 = vmatpush1.msra.mxu0 0.0
      %2633 = vmatprep.subr.mxu0 0.0
      %2634 = vmatpush1.msra.mxu0 0.0
      %2635 = vmatprep.subr.mxu0 0.0
      %2636 = vmatpush1.msra.mxu0 0.0
      %2637 = vmatprep.subr.mxu0 0.0
      %2638 = vmatpush1.msra.mxu0 0.0
      %2639 = vmatprep.subr.mxu0 0.0
      %2640 = vmatpush1.msra.mxu0 0.0
      %2641 = vmatprep.subr.mxu0 0.0
      %2642 = vmatpush1.msra.mxu0 0.0
      %2643 = vmatprep.subr.mxu0 0.0
      %2644 = vmatpush1.msra.mxu0 0.0
      %2645 = vmatprep.subr.mxu0 0.0
      %2646 = vmatpush1.msra.mxu0 0.0
      %2647 = vmatprep.subr.mxu0 0.0
      %2648 = vmatpush1.msra.mxu0 0.0
      %2649 = vmatprep.subr.mxu0 0.0
      %2650 = vmatpush1.msra.mxu0 0.0
      %2651 = vmatprep.subr.mxu0 0.0
      %2652 = vmatpush1.msra.mxu0 0.0
      %2653 = vmatprep.subr.mxu0 0.0
      %2654 = vmatpush1.msra.mxu0 0.0
      %2655 = vmatprep.mubr.f32.mxu0 0.0
      %2656 = vmatmul.mubr.f32.gmra.mrb[0].mxu0 %v2589
      %v2657 = vpop.f32.mrb[0].mxu0
      %v2658 = vadd.f32 %v2586, %v2657
      %v2659 = vpop.f32.mrb[0].mxu0
      %2660 = vdwg.mxu0
      %v2661 = vmax.f32 %v2658, 0.0
      %v2663 = vlaneseq
      %v2664 = vshrl.u32 %v2663, 7
      %v2665 = vsub.s32 0, %v2664
      %v2666 = vrot.slane %v2581, %v2665
      %vm2668 = vcmask 523264
      %v2670 = vsel %vm2668, %v2661, 0
      %2672 = vmatprep.subr.mxu0 0.0
      %2673 = vmatpush1.msra.mxu0 %v2573
      %2674 = vmatprep.subr.mxu0 0.0
      %2675 = vmatpush1.msra.mxu0 %v2574
      %2676 = vmatprep.subr.mxu0 0.0
      %2677 = vmatpush1.msra.mxu0 %v2575
      %2678 = vmatprep.subr.mxu0 0.0
      %2679 = vmatpush1.msra.mxu0 %v2576
      %2680 = vmatprep.subr.mxu0 0.0
      %2681 = vmatpush1.msra.mxu0 %v2577
      %2682 = vmatprep.subr.mxu0 0.0
      %2683 = vmatpush1.msra.mxu0 %v2578
      %2684 = vmatprep.subr.mxu0 0.0
      %2685 = vmatpush1.msra.mxu0 %v2579
      %2686 = vmatprep.subr.mxu0 0.0
      %2687 = vmatpush1.msra.mxu0 %v2580
      %2688 = vmatprep.subr.mxu0 0.0
      %2689 = vmatpush1.msra.mxu0 0.0
      %2690 = vmatprep.subr.mxu0 0.0
      %2691 = vmatpush1.msra.mxu0 0.0
      %2692 = vmatprep.subr.mxu0 0.0
      %2693 = vmatpush1.msra.mxu0 0.0
      %2694 = vmatprep.subr.mxu0 0.0
      %2695 = vmatpush1.msra.mxu0 0.0
      %2696 = vmatprep.subr.mxu0 0.0
      %2697 = vmatpush1.msra.mxu0 0.0
      %2698 = vmatprep.subr.mxu0 0.0
      %2699 = vmatpush1.msra.mxu0 0.0
      %2700 = vmatprep.subr.mxu0 0.0
      %2701 = vmatpush1.msra.mxu0 0.0
      %2702 = vmatprep.subr.mxu0 0.0
      %2703 = vmatpush1.msra.mxu0 0.0
      %2704 = vmatprep.subr.mxu0 0.0
      %2705 = vmatpush1.msra.mxu0 0.0
      %2706 = vmatprep.subr.mxu0 0.0
      %2707 = vmatpush1.msra.mxu0 0.0
      %2708 = vmatprep.subr.mxu0 0.0
      %2709 = vmatpush1.msra.mxu0 0.0
      %2710 = vmatprep.subr.mxu0 0.0
      %2711 = vmatpush1.msra.mxu0 0.0
      %2712 = vmatprep.subr.mxu0 0.0
      %2713 = vmatpush1.msra.mxu0 0.0
      %2714 = vmatprep.subr.mxu0 0.0
      %2715 = vmatpush1.msra.mxu0 0.0
      %2716 = vmatprep.subr.mxu0 0.0
      %2717 = vmatpush1.msra.mxu0 0.0
      %2718 = vmatprep.subr.mxu0 0.0
      %2719 = vmatpush1.msra.mxu0 0.0
      %2720 = vmatprep.subr.mxu0 0.0
      %2721 = vmatpush1.msra.mxu0 0.0
      %2722 = vmatprep.subr.mxu0 0.0
      %2723 = vmatpush1.msra.mxu0 0.0
      %2724 = vmatprep.subr.mxu0 0.0
      %2725 = vmatpush1.msra.mxu0 0.0
      %2726 = vmatprep.subr.mxu0 0.0
      %2727 = vmatpush1.msra.mxu0 0.0
      %2728 = vmatprep.subr.mxu0 0.0
      %2729 = vmatpush1.msra.mxu0 0.0
      %2730 = vmatprep.subr.mxu0 0.0
      %2731 = vmatpush1.msra.mxu0 0.0
      %2732 = vmatprep.subr.mxu0 0.0
      %2733 = vmatpush1.msra.mxu0 0.0
      %2734 = vmatprep.subr.mxu0 0.0
      %2735 = vmatpush1.msra.mxu0 0.0
      %2736 = vmatprep.mubr.f32.mxu0 0.0
      %2737 = vmatmul.mubr.f32.gmra.mrb[0].mxu0 %v2670
      %v2738 = vpop.f32.mrb[0].mxu0
      %v2739 = vadd.f32 %v2666, %v2738
      %v2740 = vpop.f32.mrb[0].mxu0
      %2741 = vdwg.mxu0
      %v2742 = vld [vmem:[%s16] sm:$0x1]
      %v2743 = vld [vmem:[%s17] sm:$0x1]
      %v2744 = vadd.f32 %v2567, %v2739
      %v2745 = vsel %vm598, %v2744, 0.0
      %2746 = vadd.xlane.f32.xlu0 %v2745
      %v2747 = vpop.xlane.xlu0 %2746
      %v2748 = vmul.f32 %v2747, %v2543
      %v2749 = vsub.f32 %v2744, %v2748
      %v2750 = vmul.f32 %v2749, %v2749
      %v2751 = vsel %vm598, %v2750, 0.0
      %2752 = vadd.xlane.f32.xlu0 %v2751
      %v2753 = vpop.xlane.xlu0 %2752
      %v2754 = vmul.f32 %v2753, %v2543
      %v2755 = vadd.f32 %v2754, 1e-05
      %v2756 = vrsqrt.pop %v2755
      %v2757 = vmul.f32 %v2749, %v2756
      %v2759 = vlaneseq
      %v2760 = vshrl.u32 %v2759, 7
      %v2761 = vsub.s32 0, %v2760
      %v2762 = vrot.slane %v2742, %v2761
      %v2764 = vmul.f32 %v2757, %v2762
      %v2766 = vlaneseq
      %v2767 = vshrl.u32 %v2766, 7
      %v2768 = vsub.s32 0, %v2767
      %v2769 = vrot.slane %v2743, %v2768
      %v2771 = vadd.f32 %v2764, %v2769
      %2772 = vst.msk [vmem:[%s584] sm:$0xff] %vm598, %v2771
      %p2773 = scmp.lt.s32.totalorder %s29, 1
      %s2774 = scalar_select %p2773, %s29, 1
      %s2775 = smul.addr %s2774, 8
      %s2776 = scalar_lea.vmem %s18, %s2775
      // Predicated region
      $region93: #{_lambda_.5} parent=91 // pred_check
        %p2777 = pneg %p435
      $region94: #{_lambda_.5} parent=91 // pred_check_branch
        %2779 = sbr.rel (%p2777) target = $region96
      $region95: #{_lambda_.5} parent=91 // pred_region
        _
      $region96: #{_lambda_.5} parent=91 // pred_fallthru
        _
    $region92: #{_lambda_.5} parent=5 // pred_fallthru
      _
    %p2780 = scmp.le.s32.totalorder 2, %s24
    // Predicated region
    $region97: #{_lambda_.5} parent=5 // pred_check
      %p2781 = pneg %p2780
    $region98: #{_lambda_.5} parent=5 // pred_check_branch
      %2783 = sbr.rel (%p2781) target = $region100
    $region99: #{_lambda_.5} parent=5 // pred_region
      %s2784 = ssub.s32 %s24, 2
      // Predicated region
      $region101: #{_lambda_.5} parent=99 // pred_check
        %p2785 = pneg %p441
      $region102: #{_lambda_.5} parent=99 // pred_check_branch
        %2787 = sbr.rel (%p2785) target = $region104
      $region103: #{_lambda_.5} parent=99 // pred_region
        %p2788 = scmp.lt.s32.totalorder %s30, 1
        %s2789 = scalar_select %p2788, %s30, 1
        %s2790 = smul.addr %s2789, 8
        %s2791 = scalar_lea.vmem %s18, %s2790
      $region104: #{_lambda_.5} parent=99 // pred_fallthru
        _
    $region100: #{_lambda_.5} parent=5 // pred_fallthru
      _
  $region6: #{_lambda_.5} parent=0 // loop_footer
    %s28 = sadd.s32 1, %s24
  $region7: #{_lambda_.5} parent=0 // loop_footer_branch
    %23 = sbr.rel target = $region3
  $region8: #{_lambda_.5} parent=0 // loop_exit
    _

// kernel: _lambda_.7
$region0: #{_lambda_.7}
  #allocation0 [shape = 'u32[]', space=smem, size = 0x4, offset = 0x4, fixed_abs, tag = 'smem constant byte address 0x4 - core index']
  #allocation1 [shape = 'u32[144,128]{1,0:T(1,128)}', space=vmem, size = 0x12000, scoped, tag = 'internal scratch']
  %s0 = inlined_call_operand.smem [shape: u32[32], index: -1, kind: input, shape index: {}]
  %s1 = sld [smem:[%s0]]
  %s2 = scalar_lea.smem %s0, 1
  %s3 = sld [smem:[%s2]]
  %s4 = scalar_lea.smem %s0, 2
  %s5 = sld [smem:[%s4]]
  %s6 = scalar_lea.smem %s0, 3
  %s7 = sld [smem:[%s6]]
  %s8 = scalar_lea.smem %s0, 4
  %s9 = sld [smem:[%s8]]
  %s10 = scalar_lea.smem %s0, 5
  %s11 = sld [smem:[%s10]]
  %s12 = scalar_lea.smem %s0, 6
  %s13 = sld [smem:[%s12]]
  %s14 = scalar_lea.smem %s0, 7
  %s15 = sld [smem:[%s14]]
  %s16 = scalar_lea.smem %s0, 8
  %s17 = sld [smem:[%s16]]
  %s18 = scalar_lea.smem %s0, 9
  %s19 = sld [smem:[%s18]]
  %s20 = scalar_lea.smem %s0, 10
  %s21 = sld [smem:[%s20]]
  %s22 = scalar_lea.smem %s0, 11
  %s23 = sld [smem:[%s22]]
  %s24 = scalar_lea.smem %s0, 12
  %s25 = sld [smem:[%s24]]
  %s26 = scalar_lea.smem %s0, 13
  %s27 = sld [smem:[%s26]]
  %s28 = scalar_lea.smem %s0, 14
  %s29 = sld [smem:[%s28]]
  %s30 = scalar_lea.smem %s0, 15
  %s31 = sld [smem:[%s30]]
  %s32 = scalar_lea.smem %s0, 16
  %s33 = sld [smem:[%s32]]
  %s34 = scalar_lea.smem %s0, 17
  %s35 = sld [smem:[%s34]]
  %s36 = scalar_lea.smem %s0, 18
  %s37 = sld [smem:[%s36]]
  %s38 = scalar_lea.smem %s0, 19
  %s39 = sld [smem:[%s38]]
  %s40 = scalar_lea.smem %s0, 20
  %s41 = sld [smem:[%s40]]
  %s42 = scalar_lea.smem %s0, 21
  %s43 = sld [smem:[%s42]]
  %s44 = scalar_lea.smem %s0, 22
  %s45 = sld [smem:[%s44]]
  %s46 = scalar_lea.smem %s0, 23
  %s47 = sld [smem:[%s46]]
  %s48 = scalar_lea.smem %s0, 24
  %s49 = sld [smem:[%s48]]
  %s50 = scalar_lea.smem %s0, 25
  %s51 = sld [smem:[%s50]]
  %s52 = scalar_lea.smem %s0, 26
  %s53 = sld [smem:[%s52]]
  %s54 = scalar_lea.smem %s0, 27
  %s55 = sld [smem:[%s54]]
  %s56 = scalar_lea.smem %s0, 28
  %s57 = sld [smem:[%s56]]
  %s58 = scalar_lea.smem %s0, 29
  %s59 = sld [smem:[%s58]]
  %s60 = scalar_lea.smem %s0, 30
  %s61 = sld [smem:[%s60]]
  %s62 = scalar_lea.smem %s0, 31
  %s63 = sld [smem:[%s62]]
  %s64 = sld [smem:[#allocation0]]
  $region157: #{_lambda_.7} parent=0
    _
  %s66 = ssub.s32 1, %s64
  %s67 = scalar_select 0, %s66, %s64
  loop: start=0, step=1, limit=4
  $region2: #{_lambda_.7} parent=0 // loop_pre_header
    _
  $region3: #{_lambda_.7} parent=0 // loop_header
    %s69 = sphi 0, %s73
    %p70 = scmp.ge.s32.totalorder %s69, 4
    %s79 = sphi 0, %s81
    %s82 = sphi 0, %s79
    %s83 = sphi 0, %s82
    %s99 = sphi 0, %s83
    %s105 = sphi 0, %s107
    %s108 = sphi 0, %s105
    %s109 = sphi 0, %s108
    %s125 = sphi 0, %s109
    %s129 = sphi 0, %s129
    %s131 = sphi 0, %s129
    %s132 = sphi 0, %s131
    %s146 = sphi 0, %s132
    %s152 = sphi 0, %s154
    %s155 = sphi 0, %s152
    %s156 = sphi 0, %s155
    %s172 = sphi 0, %s156
    %s178 = sphi 0, %s180
    %s181 = sphi 0, %s178
    %s182 = sphi 0, %s181
    %s198 = sphi 0, %s182
    %s202 = sphi 0, %s202
    %s204 = sphi 0, %s202
    %s205 = sphi 0, %s204
    %s219 = sphi 0, %s205
    %s223 = sphi 0, %s223
    %s225 = sphi 0, %s223
    %s226 = sphi 0, %s225
    %s240 = sphi 0, %s226
    %s244 = sphi 0, %s244
    %s246 = sphi 0, %s244
    %s247 = sphi 0, %s246
    %s261 = sphi 0, %s247
    %s265 = sphi 0, %s265
    %s267 = sphi 0, %s265
    %s268 = sphi 0, %s267
    %s282 = sphi 0, %s268
    %s286 = sphi 0, %s286
    %s288 = sphi 0, %s286
    %s289 = sphi 0, %s288
    %s303 = sphi 0, %s289
    %s307 = sphi 0, %s307
    %s309 = sphi 0, %s307
    %s310 = sphi 0, %s309
    %s324 = sphi 0, %s310
    %s328 = sphi 0, %s328
    %s330 = sphi 0, %s328
    %s331 = sphi 0, %s330
    %s345 = sphi 0, %s331
    %s349 = sphi 0, %s349
    %s351 = sphi 0, %s349
    %s352 = sphi 0, %s351
    %s366 = sphi 0, %s352
    %s370 = sphi 0, %s370
    %s372 = sphi 0, %s370
    %s373 = sphi 0, %s372
    %s387 = sphi 0, %s373
    %s391 = sphi 0, %s391
    %s393 = sphi 0, %s391
    %s394 = sphi 0, %s393
    %s408 = sphi 0, %s394
    %s412 = sphi 0, %s412
    %s414 = sphi 0, %s412
    %s415 = sphi 0, %s414
    %s429 = sphi 0, %s415
    %s433 = sphi 0, %s433
    %s435 = sphi 0, %s433
    %s436 = sphi 0, %s435
    %s450 = sphi 0, %s436
    %s454 = sphi 0, %s454
    %s456 = sphi 0, %s454
    %s457 = sphi 0, %s456
    %s471 = sphi 0, %s457
    %s475 = sphi 0, %s475
    %s477 = sphi 0, %s475
    %s478 = sphi 0, %s477
    %s492 = sphi 0, %s478
    %s496 = sphi 0, %s496
    %s498 = sphi 0, %s496
    %s499 = sphi 0, %s498
    %s513 = sphi 0, %s499
    %s517 = sphi 0, %s517
    %s519 = sphi 0, %s517
    %s520 = sphi 0, %s519
    %s534 = sphi 0, %s520
    %s538 = sphi 0, %s538
    %s540 = sphi 0, %s538
    %s541 = sphi 0, %s540
    %s555 = sphi 0, %s541
    %s559 = sphi 0, %s559
    %s561 = sphi 0, %s559
    %s562 = sphi 0, %s561
    %s576 = sphi 0, %s562
    %s580 = sphi 0, %s580
    %s582 = sphi 0, %s580
    %s583 = sphi 0, %s582
    %s597 = sphi 0, %s583
    %s601 = sphi 0, %s601
    %s603 = sphi 0, %s601
    %s604 = sphi 0, %s603
    %s618 = sphi 0, %s604
    %s622 = sphi 0, %s622
    %s624 = sphi 0, %s622
    %s625 = sphi 0, %s624
    %s639 = sphi 0, %s625
    %s643 = sphi 0, %s643
    %s645 = sphi 0, %s643
    %s646 = sphi 0, %s645
    %s660 = sphi 0, %s646
    %s664 = sphi 0, %s664
    %s666 = sphi 0, %s664
    %s667 = sphi 0, %s666
    %s681 = sphi 0, %s667
    %s685 = sphi 0, %s685
    %s687 = sphi 0, %s685
    %s688 = sphi 0, %s687
    %s702 = sphi 0, %s688
    %s706 = sphi 0, %s706
    %s708 = sphi 0, %s706
    %s709 = sphi 0, %s708
    %s723 = sphi 0, %s709
    %s727 = sphi 0, %s727
    %s729 = sphi 0, %s727
    %s730 = sphi 0, %s729
    %s744 = sphi 0, %s730
    %s750 = sphi 0, %s752
    %s753 = sphi 0, %s750
    %s754 = sphi 0, %s753
    %s770 = sphi 0, %s754
  $region4: #{_lambda_.7} parent=0 // loop_header_branch
    %72 = sbr.rel (%p70) target = $region8
  $region5: #{_lambda_.7} parent=0 // loop_body
    %s74 = ssub.s32 %s69, 1
    %s75 = ssub.s32 %s69, 2
    %s76 = sadd.s32 %s69, 1
    %s77 = ssub.s32 %s69, %s76
    %p78 = scmp.eq.s32.totalorder %s77, 0
    %s80 = sadd.s32 %s79, 1
    %s81 = scalar_select %p78, %s79, %s80
    %p84 = pneg %p78
    %p85 = scmp.eq.s32.totalorder %s69, 1
    %p86 = por %p84, %p85
    %p87 = scmp.ne.s32.totalorder %s79, %s82
    %p88 = scmp.eq.s32.totalorder %s69, 0
    %p89 = por %p87, %p88
    %p90 = scmp.ne.s32.totalorder %s79, %s82
    %p91 = scmp.eq.s32.totalorder %s74, 1
    %p92 = por %p90, %p91
    %p93 = scmp.ne.s32.totalorder %s82, %s83
    %p94 = scmp.eq.s32.totalorder %s74, 0
    %p95 = por %p93, %p94
    %p96 = scmp.ne.s32.totalorder %s82, %s83
    %p97 = scmp.eq.s32.totalorder %s75, 1
    %p98 = por %p96, %p97
    %p100 = scmp.ne.s32.totalorder %s83, %s99
    %p101 = scmp.eq.s32.totalorder %s75, 0
    %p102 = por %p100, %p101
    %s103 = ssub.s32 %s69, %s76
    %p104 = scmp.eq.s32.totalorder %s103, 0
    %s106 = sadd.s32 %s105, 1
    %s107 = scalar_select %p104, %s105, %s106
    %p110 = pneg %p104
    %p111 = scmp.eq.s32.totalorder %s69, 1
    %p112 = por %p110, %p111
    %p113 = scmp.ne.s32.totalorder %s105, %s108
    %p114 = scmp.eq.s32.totalorder %s69, 0
    %p115 = por %p113, %p114
    %p116 = scmp.ne.s32.totalorder %s105, %s108
    %p117 = scmp.eq.s32.totalorder %s74, 1
    %p118 = por %p116, %p117
    %p119 = scmp.ne.s32.totalorder %s108, %s109
    %p120 = scmp.eq.s32.totalorder %s74, 0
    %p121 = por %p119, %p120
    %p122 = scmp.ne.s32.totalorder %s108, %s109
    %p123 = scmp.eq.s32.totalorder %s75, 1
    %p124 = por %p122, %p123
    %p126 = scmp.ne.s32.totalorder %s109, %s125
    %p127 = scmp.eq.s32.totalorder %s75, 0
    %p128 = por %p126, %p127
    %s130 = sadd.s32 %s129, 1
    %p133 = scmp.eq.s32.totalorder %s69, 1
    %p134 = scmp.ne.s32.totalorder %s129, %s131
    %p135 = scmp.eq.s32.totalorder %s69, 0
    %p136 = por %p134, %p135
    %p137 = scmp.ne.s32.totalorder %s129, %s131
    %p138 = scmp.eq.s32.totalorder %s74, 1
    %p139 = por %p137, %p138
    %p140 = scmp.ne.s32.totalorder %s131, %s132
    %p141 = scmp.eq.s32.totalorder %s74, 0
    %p142 = por %p140, %p141
    %p143 = scmp.ne.s32.totalorder %s131, %s132
    %p144 = scmp.eq.s32.totalorder %s75, 1
    %p145 = por %p143, %p144
    %p147 = scmp.ne.s32.totalorder %s132, %s146
    %p148 = scmp.eq.s32.totalorder %s75, 0
    %p149 = por %p147, %p148
    %s150 = ssub.s32 %s69, %s76
    %p151 = scmp.eq.s32.totalorder %s150, 0
    %s153 = sadd.s32 %s152, 1
    %s154 = scalar_select %p151, %s152, %s153
    %p157 = pneg %p151
    %p158 = scmp.eq.s32.totalorder %s69, 1
    %p159 = por %p157, %p158
    %p160 = scmp.ne.s32.totalorder %s152, %s155
    %p161 = scmp.eq.s32.totalorder %s69, 0
    %p162 = por %p160, %p161
    %p163 = scmp.ne.s32.totalorder %s152, %s155
    %p164 = scmp.eq.s32.totalorder %s74, 1
    %p165 = por %p163, %p164
    %p166 = scmp.ne.s32.totalorder %s155, %s156
    %p167 = scmp.eq.s32.totalorder %s74, 0
    %p168 = por %p166, %p167
    %p169 = scmp.ne.s32.totalorder %s155, %s156
    %p170 = scmp.eq.s32.totalorder %s75, 1
    %p171 = por %p169, %p170
    %p173 = scmp.ne.s32.totalorder %s156, %s172
    %p174 = scmp.eq.s32.totalorder %s75, 0
    %p175 = por %p173, %p174
    %s176 = ssub.s32 %s69, %s76
    %p177 = scmp.eq.s32.totalorder %s176, 0
    %s179 = sadd.s32 %s178, 1
    %s180 = scalar_select %p177, %s178, %s179
    %p183 = pneg %p177
    %p184 = scmp.eq.s32.totalorder %s69, 1
    %p185 = por %p183, %p184
    %p186 = scmp.ne.s32.totalorder %s178, %s181
    %p187 = scmp.eq.s32.totalorder %s69, 0
    %p188 = por %p186, %p187
    %p189 = scmp.ne.s32.totalorder %s178, %s181
    %p190 = scmp.eq.s32.totalorder %s74, 1
    %p191 = por %p189, %p190
    %p192 = scmp.ne.s32.totalorder %s181, %s182
    %p193 = scmp.eq.s32.totalorder %s74, 0
    %p194 = por %p192, %p193
    %p195 = scmp.ne.s32.totalorder %s181, %s182
    %p196 = scmp.eq.s32.totalorder %s75, 1
    %p197 = por %p195, %p196
    %p199 = scmp.ne.s32.totalorder %s182, %s198
    %p200 = scmp.eq.s32.totalorder %s75, 0
    %p201 = por %p199, %p200
    %s203 = sadd.s32 %s202, 1
    %p206 = scmp.eq.s32.totalorder %s69, 1
    %p207 = scmp.ne.s32.totalorder %s202, %s204
    %p208 = scmp.eq.s32.totalorder %s69, 0
    %p209 = por %p207, %p208
    %p210 = scmp.ne.s32.totalorder %s202, %s204
    %p211 = scmp.eq.s32.totalorder %s74, 1
    %p212 = por %p210, %p211
    %p213 = scmp.ne.s32.totalorder %s204, %s205
    %p214 = scmp.eq.s32.totalorder %s74, 0
    %p215 = por %p213, %p214
    %p216 = scmp.ne.s32.totalorder %s204, %s205
    %p217 = scmp.eq.s32.totalorder %s75, 1
    %p218 = por %p216, %p217
    %p220 = scmp.ne.s32.totalorder %s205, %s219
    %p221 = scmp.eq.s32.totalorder %s75, 0
    %p222 = por %p220, %p221
    %s224 = sadd.s32 %s223, 1
    %p227 = scmp.eq.s32.totalorder %s69, 1
    %p228 = scmp.ne.s32.totalorder %s223, %s225
    %p229 = scmp.eq.s32.totalorder %s69, 0
    %p230 = por %p228, %p229
    %p231 = scmp.ne.s32.totalorder %s223, %s225
    %p232 = scmp.eq.s32.totalorder %s74, 1
    %p233 = por %p231, %p232
    %p234 = scmp.ne.s32.totalorder %s225, %s226
    %p235 = scmp.eq.s32.totalorder %s74, 0
    %p236 = por %p234, %p235
    %p237 = scmp.ne.s32.totalorder %s225, %s226
    %p238 = scmp.eq.s32.totalorder %s75, 1
    %p239 = por %p237, %p238
    %p241 = scmp.ne.s32.totalorder %s226, %s240
    %p242 = scmp.eq.s32.totalorder %s75, 0
    %p243 = por %p241, %p242
    %s245 = sadd.s32 %s244, 1
    %p248 = scmp.eq.s32.totalorder %s69, 1
    %p249 = scmp.ne.s32.totalorder %s244, %s246
    %p250 = scmp.eq.s32.totalorder %s69, 0
    %p251 = por %p249, %p250
    %p252 = scmp.ne.s32.totalorder %s244, %s246
    %p253 = scmp.eq.s32.totalorder %s74, 1
    %p254 = por %p252, %p253
    %p255 = scmp.ne.s32.totalorder %s246, %s247
    %p256 = scmp.eq.s32.totalorder %s74, 0
    %p257 = por %p255, %p256
    %p258 = scmp.ne.s32.totalorder %s246, %s247
    %p259 = scmp.eq.s32.totalorder %s75, 1
    %p260 = por %p258, %p259
    %p262 = scmp.ne.s32.totalorder %s247, %s261
    %p263 = scmp.eq.s32.totalorder %s75, 0
    %p264 = por %p262, %p263
    %s266 = sadd.s32 %s265, 1
    %p269 = scmp.eq.s32.totalorder %s69, 1
    %p270 = scmp.ne.s32.totalorder %s265, %s267
    %p271 = scmp.eq.s32.totalorder %s69, 0
    %p272 = por %p270, %p271
    %p273 = scmp.ne.s32.totalorder %s265, %s267
    %p274 = scmp.eq.s32.totalorder %s74, 1
    %p275 = por %p273, %p274
    %p276 = scmp.ne.s32.totalorder %s267, %s268
    %p277 = scmp.eq.s32.totalorder %s74, 0
    %p278 = por %p276, %p277
    %p279 = scmp.ne.s32.totalorder %s267, %s268
    %p280 = scmp.eq.s32.totalorder %s75, 1
    %p281 = por %p279, %p280
    %p283 = scmp.ne.s32.totalorder %s268, %s282
    %p284 = scmp.eq.s32.totalorder %s75, 0
    %p285 = por %p283, %p284
    %s287 = sadd.s32 %s286, 1
    %p290 = scmp.eq.s32.totalorder %s69, 1
    %p291 = scmp.ne.s32.totalorder %s286, %s288
    %p292 = scmp.eq.s32.totalorder %s69, 0
    %p293 = por %p291, %p292
    %p294 = scmp.ne.s32.totalorder %s286, %s288
    %p295 = scmp.eq.s32.totalorder %s74, 1
    %p296 = por %p294, %p295
    %p297 = scmp.ne.s32.totalorder %s288, %s289
    %p298 = scmp.eq.s32.totalorder %s74, 0
    %p299 = por %p297, %p298
    %p300 = scmp.ne.s32.totalorder %s288, %s289
    %p301 = scmp.eq.s32.totalorder %s75, 1
    %p302 = por %p300, %p301
    %p304 = scmp.ne.s32.totalorder %s289, %s303
    %p305 = scmp.eq.s32.totalorder %s75, 0
    %p306 = por %p304, %p305
    %s308 = sadd.s32 %s307, 1
    %p311 = scmp.eq.s32.totalorder %s69, 1
    %p312 = scmp.ne.s32.totalorder %s307, %s309
    %p313 = scmp.eq.s32.totalorder %s69, 0
    %p314 = por %p312, %p313
    %p315 = scmp.ne.s32.totalorder %s307, %s309
    %p316 = scmp.eq.s32.totalorder %s74, 1
    %p317 = por %p315, %p316
    %p318 = scmp.ne.s32.totalorder %s309, %s310
    %p319 = scmp.eq.s32.totalorder %s74, 0
    %p320 = por %p318, %p319
    %p321 = scmp.ne.s32.totalorder %s309, %s310
    %p322 = scmp.eq.s32.totalorder %s75, 1
    %p323 = por %p321, %p322
    %p325 = scmp.ne.s32.totalorder %s310, %s324
    %p326 = scmp.eq.s32.totalorder %s75, 0
    %p327 = por %p325, %p326
    %s329 = sadd.s32 %s328, 1
    %p332 = scmp.eq.s32.totalorder %s69, 1
    %p333 = scmp.ne.s32.totalorder %s328, %s330
    %p334 = scmp.eq.s32.totalorder %s69, 0
    %p335 = por %p333, %p334
    %p336 = scmp.ne.s32.totalorder %s328, %s330
    %p337 = scmp.eq.s32.totalorder %s74, 1
    %p338 = por %p336, %p337
    %p339 = scmp.ne.s32.totalorder %s330, %s331
    %p340 = scmp.eq.s32.totalorder %s74, 0
    %p341 = por %p339, %p340
    %p342 = scmp.ne.s32.totalorder %s330, %s331
    %p343 = scmp.eq.s32.totalorder %s75, 1
    %p344 = por %p342, %p343
    %p346 = scmp.ne.s32.totalorder %s331, %s345
    %p347 = scmp.eq.s32.totalorder %s75, 0
    %p348 = por %p346, %p347
    %s350 = sadd.s32 %s349, 1
    %p353 = scmp.eq.s32.totalorder %s69, 1
    %p354 = scmp.ne.s32.totalorder %s349, %s351
    %p355 = scmp.eq.s32.totalorder %s69, 0
    %p356 = por %p354, %p355
    %p357 = scmp.ne.s32.totalorder %s349, %s351
    %p358 = scmp.eq.s32.totalorder %s74, 1
    %p359 = por %p357, %p358
    %p360 = scmp.ne.s32.totalorder %s351, %s352
    %p361 = scmp.eq.s32.totalorder %s74, 0
    %p362 = por %p360, %p361
    %p363 = scmp.ne.s32.totalorder %s351, %s352
    %p364 = scmp.eq.s32.totalorder %s75, 1
    %p365 = por %p363, %p364
    %p367 = scmp.ne.s32.totalorder %s352, %s366
    %p368 = scmp.eq.s32.totalorder %s75, 0
    %p369 = por %p367, %p368
    %s371 = sadd.s32 %s370, 1
    %p374 = scmp.eq.s32.totalorder %s69, 1
    %p375 = scmp.ne.s32.totalorder %s370, %s372
    %p376 = scmp.eq.s32.totalorder %s69, 0
    %p377 = por %p375, %p376
    %p378 = scmp.ne.s32.totalorder %s370, %s372
    %p379 = scmp.eq.s32.totalorder %s74, 1
    %p380 = por %p378, %p379
    %p381 = scmp.ne.s32.totalorder %s372, %s373
    %p382 = scmp.eq.s32.totalorder %s74, 0
    %p383 = por %p381, %p382
    %p384 = scmp.ne.s32.totalorder %s372, %s373
    %p385 = scmp.eq.s32.totalorder %s75, 1
    %p386 = por %p384, %p385
    %p388 = scmp.ne.s32.totalorder %s373, %s387
    %p389 = scmp.eq.s32.totalorder %s75, 0
    %p390 = por %p388, %p389
    %s392 = sadd.s32 %s391, 1
    %p395 = scmp.eq.s32.totalorder %s69, 1
    %p396 = scmp.ne.s32.totalorder %s391, %s393
    %p397 = scmp.eq.s32.totalorder %s69, 0
    %p398 = por %p396, %p397
    %p399 = scmp.ne.s32.totalorder %s391, %s393
    %p400 = scmp.eq.s32.totalorder %s74, 1
    %p401 = por %p399, %p400
    %p402 = scmp.ne.s32.totalorder %s393, %s394
    %p403 = scmp.eq.s32.totalorder %s74, 0
    %p404 = por %p402, %p403
    %p405 = scmp.ne.s32.totalorder %s393, %s394
    %p406 = scmp.eq.s32.totalorder %s75, 1
    %p407 = por %p405, %p406
    %p409 = scmp.ne.s32.totalorder %s394, %s408
    %p410 = scmp.eq.s32.totalorder %s75, 0
    %p411 = por %p409, %p410
    %s413 = sadd.s32 %s412, 1
    %p416 = scmp.eq.s32.totalorder %s69, 1
    %p417 = scmp.ne.s32.totalorder %s412, %s414
    %p418 = scmp.eq.s32.totalorder %s69, 0
    %p419 = por %p417, %p418
    %p420 = scmp.ne.s32.totalorder %s412, %s414
    %p421 = scmp.eq.s32.totalorder %s74, 1
    %p422 = por %p420, %p421
    %p423 = scmp.ne.s32.totalorder %s414, %s415
    %p424 = scmp.eq.s32.totalorder %s74, 0
    %p425 = por %p423, %p424
    %p426 = scmp.ne.s32.totalorder %s414, %s415
    %p427 = scmp.eq.s32.totalorder %s75, 1
    %p428 = por %p426, %p427
    %p430 = scmp.ne.s32.totalorder %s415, %s429
    %p431 = scmp.eq.s32.totalorder %s75, 0
    %p432 = por %p430, %p431
    %s434 = sadd.s32 %s433, 1
    %p437 = scmp.eq.s32.totalorder %s69, 1
    %p438 = scmp.ne.s32.totalorder %s433, %s435
    %p439 = scmp.eq.s32.totalorder %s69, 0
    %p440 = por %p438, %p439
    %p441 = scmp.ne.s32.totalorder %s433, %s435
    %p442 = scmp.eq.s32.totalorder %s74, 1
    %p443 = por %p441, %p442
    %p444 = scmp.ne.s32.totalorder %s435, %s436
    %p445 = scmp.eq.s32.totalorder %s74, 0
    %p446 = por %p444, %p445
    %p447 = scmp.ne.s32.totalorder %s435, %s436
    %p448 = scmp.eq.s32.totalorder %s75, 1
    %p449 = por %p447, %p448
    %p451 = scmp.ne.s32.totalorder %s436, %s450
    %p452 = scmp.eq.s32.totalorder %s75, 0
    %p453 = por %p451, %p452
    %s455 = sadd.s32 %s454, 1
    %p458 = scmp.eq.s32.totalorder %s69, 1
    %p459 = scmp.ne.s32.totalorder %s454, %s456
    %p460 = scmp.eq.s32.totalorder %s69, 0
    %p461 = por %p459, %p460
    %p462 = scmp.ne.s32.totalorder %s454, %s456
    %p463 = scmp.eq.s32.totalorder %s74, 1
    %p464 = por %p462, %p463
    %p465 = scmp.ne.s32.totalorder %s456, %s457
    %p466 = scmp.eq.s32.totalorder %s74, 0
    %p467 = por %p465, %p466
    %p468 = scmp.ne.s32.totalorder %s456, %s457
    %p469 = scmp.eq.s32.totalorder %s75, 1
    %p470 = por %p468, %p469
    %p472 = scmp.ne.s32.totalorder %s457, %s471
    %p473 = scmp.eq.s32.totalorder %s75, 0
    %p474 = por %p472, %p473
    %s476 = sadd.s32 %s475, 1
    %p479 = scmp.eq.s32.totalorder %s69, 1
    %p480 = scmp.ne.s32.totalorder %s475, %s477
    %p481 = scmp.eq.s32.totalorder %s69, 0
    %p482 = por %p480, %p481
    %p483 = scmp.ne.s32.totalorder %s475, %s477
    %p484 = scmp.eq.s32.totalorder %s74, 1
    %p485 = por %p483, %p484
    %p486 = scmp.ne.s32.totalorder %s477, %s478
    %p487 = scmp.eq.s32.totalorder %s74, 0
    %p488 = por %p486, %p487
    %p489 = scmp.ne.s32.totalorder %s477, %s478
    %p490 = scmp.eq.s32.totalorder %s75, 1
    %p491 = por %p489, %p490
    %p493 = scmp.ne.s32.totalorder %s478, %s492
    %p494 = scmp.eq.s32.totalorder %s75, 0
    %p495 = por %p493, %p494
    %s497 = sadd.s32 %s496, 1
    %p500 = scmp.eq.s32.totalorder %s69, 1
    %p501 = scmp.ne.s32.totalorder %s496, %s498
    %p502 = scmp.eq.s32.totalorder %s69, 0
    %p503 = por %p501, %p502
    %p504 = scmp.ne.s32.totalorder %s496, %s498
    %p505 = scmp.eq.s32.totalorder %s74, 1
    %p506 = por %p504, %p505
    %p507 = scmp.ne.s32.totalorder %s498, %s499
    %p508 = scmp.eq.s32.totalorder %s74, 0
    %p509 = por %p507, %p508
    %p510 = scmp.ne.s32.totalorder %s498, %s499
    %p511 = scmp.eq.s32.totalorder %s75, 1
    %p512 = por %p510, %p511
    %p514 = scmp.ne.s32.totalorder %s499, %s513
    %p515 = scmp.eq.s32.totalorder %s75, 0
    %p516 = por %p514, %p515
    %s518 = sadd.s32 %s517, 1
    %p521 = scmp.eq.s32.totalorder %s69, 1
    %p522 = scmp.ne.s32.totalorder %s517, %s519
    %p523 = scmp.eq.s32.totalorder %s69, 0
    %p524 = por %p522, %p523
    %p525 = scmp.ne.s32.totalorder %s517, %s519
    %p526 = scmp.eq.s32.totalorder %s74, 1
    %p527 = por %p525, %p526
    %p528 = scmp.ne.s32.totalorder %s519, %s520
    %p529 = scmp.eq.s32.totalorder %s74, 0
    %p530 = por %p528, %p529
    %p531 = scmp.ne.s32.totalorder %s519, %s520
    %p532 = scmp.eq.s32.totalorder %s75, 1
    %p533 = por %p531, %p532
    %p535 = scmp.ne.s32.totalorder %s520, %s534
    %p536 = scmp.eq.s32.totalorder %s75, 0
    %p537 = por %p535, %p536
    %s539 = sadd.s32 %s538, 1
    %p542 = scmp.eq.s32.totalorder %s69, 1
    %p543 = scmp.ne.s32.totalorder %s538, %s540
    %p544 = scmp.eq.s32.totalorder %s69, 0
    %p545 = por %p543, %p544
    %p546 = scmp.ne.s32.totalorder %s538, %s540
    %p547 = scmp.eq.s32.totalorder %s74, 1
    %p548 = por %p546, %p547
    %p549 = scmp.ne.s32.totalorder %s540, %s541
    %p550 = scmp.eq.s32.totalorder %s74, 0
    %p551 = por %p549, %p550
    %p552 = scmp.ne.s32.totalorder %s540, %s541
    %p553 = scmp.eq.s32.totalorder %s75, 1
    %p554 = por %p552, %p553
    %p556 = scmp.ne.s32.totalorder %s541, %s555
    %p557 = scmp.eq.s32.totalorder %s75, 0
    %p558 = por %p556, %p557
    %s560 = sadd.s32 %s559, 1
    %p563 = scmp.eq.s32.totalorder %s69, 1
    %p564 = scmp.ne.s32.totalorder %s559, %s561
    %p565 = scmp.eq.s32.totalorder %s69, 0
    %p566 = por %p564, %p565
    %p567 = scmp.ne.s32.totalorder %s559, %s561
    %p568 = scmp.eq.s32.totalorder %s74, 1
    %p569 = por %p567, %p568
    %p570 = scmp.ne.s32.totalorder %s561, %s562
    %p571 = scmp.eq.s32.totalorder %s74, 0
    %p572 = por %p570, %p571
    %p573 = scmp.ne.s32.totalorder %s561, %s562
    %p574 = scmp.eq.s32.totalorder %s75, 1
    %p575 = por %p573, %p574
    %p577 = scmp.ne.s32.totalorder %s562, %s576
    %p578 = scmp.eq.s32.totalorder %s75, 0
    %p579 = por %p577, %p578
    %s581 = sadd.s32 %s580, 1
    %p584 = scmp.eq.s32.totalorder %s69, 1
    %p585 = scmp.ne.s32.totalorder %s580, %s582
    %p586 = scmp.eq.s32.totalorder %s69, 0
    %p587 = por %p585, %p586
    %p588 = scmp.ne.s32.totalorder %s580, %s582
    %p589 = scmp.eq.s32.totalorder %s74, 1
    %p590 = por %p588, %p589
    %p591 = scmp.ne.s32.totalorder %s582, %s583
    %p592 = scmp.eq.s32.totalorder %s74, 0
    %p593 = por %p591, %p592
    %p594 = scmp.ne.s32.totalorder %s582, %s583
    %p595 = scmp.eq.s32.totalorder %s75, 1
    %p596 = por %p594, %p595
    %p598 = scmp.ne.s32.totalorder %s583, %s597
    %p599 = scmp.eq.s32.totalorder %s75, 0
    %p600 = por %p598, %p599
    %s602 = sadd.s32 %s601, 1
    %p605 = scmp.eq.s32.totalorder %s69, 1
    %p606 = scmp.ne.s32.totalorder %s601, %s603
    %p607 = scmp.eq.s32.totalorder %s69, 0
    %p608 = por %p606, %p607
    %p609 = scmp.ne.s32.totalorder %s601, %s603
    %p610 = scmp.eq.s32.totalorder %s74, 1
    %p611 = por %p609, %p610
    %p612 = scmp.ne.s32.totalorder %s603, %s604
    %p613 = scmp.eq.s32.totalorder %s74, 0
    %p614 = por %p612, %p613
    %p615 = scmp.ne.s32.totalorder %s603, %s604
    %p616 = scmp.eq.s32.totalorder %s75, 1
    %p617 = por %p615, %p616
    %p619 = scmp.ne.s32.totalorder %s604, %s618
    %p620 = scmp.eq.s32.totalorder %s75, 0
    %p621 = por %p619, %p620
    %s623 = sadd.s32 %s622, 1
    %p626 = scmp.eq.s32.totalorder %s69, 1
    %p627 = scmp.ne.s32.totalorder %s622, %s624
    %p628 = scmp.eq.s32.totalorder %s69, 0
    %p629 = por %p627, %p628
    %p630 = scmp.ne.s32.totalorder %s622, %s624
    %p631 = scmp.eq.s32.totalorder %s74, 1
    %p632 = por %p630, %p631
    %p633 = scmp.ne.s32.totalorder %s624, %s625
    %p634 = scmp.eq.s32.totalorder %s74, 0
    %p635 = por %p633, %p634
    %p636 = scmp.ne.s32.totalorder %s624, %s625
    %p637 = scmp.eq.s32.totalorder %s75, 1
    %p638 = por %p636, %p637
    %p640 = scmp.ne.s32.totalorder %s625, %s639
    %p641 = scmp.eq.s32.totalorder %s75, 0
    %p642 = por %p640, %p641
    %s644 = sadd.s32 %s643, 1
    %p647 = scmp.eq.s32.totalorder %s69, 1
    %p648 = scmp.ne.s32.totalorder %s643, %s645
    %p649 = scmp.eq.s32.totalorder %s69, 0
    %p650 = por %p648, %p649
    %p651 = scmp.ne.s32.totalorder %s643, %s645
    %p652 = scmp.eq.s32.totalorder %s74, 1
    %p653 = por %p651, %p652
    %p654 = scmp.ne.s32.totalorder %s645, %s646
    %p655 = scmp.eq.s32.totalorder %s74, 0
    %p656 = por %p654, %p655
    %p657 = scmp.ne.s32.totalorder %s645, %s646
    %p658 = scmp.eq.s32.totalorder %s75, 1
    %p659 = por %p657, %p658
    %p661 = scmp.ne.s32.totalorder %s646, %s660
    %p662 = scmp.eq.s32.totalorder %s75, 0
    %p663 = por %p661, %p662
    %s665 = sadd.s32 %s664, 1
    %p668 = scmp.eq.s32.totalorder %s69, 1
    %p669 = scmp.ne.s32.totalorder %s664, %s666
    %p670 = scmp.eq.s32.totalorder %s69, 0
    %p671 = por %p669, %p670
    %p672 = scmp.ne.s32.totalorder %s664, %s666
    %p673 = scmp.eq.s32.totalorder %s74, 1
    %p674 = por %p672, %p673
    %p675 = scmp.ne.s32.totalorder %s666, %s667
    %p676 = scmp.eq.s32.totalorder %s74, 0
    %p677 = por %p675, %p676
    %p678 = scmp.ne.s32.totalorder %s666, %s667
    %p679 = scmp.eq.s32.totalorder %s75, 1
    %p680 = por %p678, %p679
    %p682 = scmp.ne.s32.totalorder %s667, %s681
    %p683 = scmp.eq.s32.totalorder %s75, 0
    %p684 = por %p682, %p683
    %s686 = sadd.s32 %s685, 1
    %p689 = scmp.eq.s32.totalorder %s69, 1
    %p690 = scmp.ne.s32.totalorder %s685, %s687
    %p691 = scmp.eq.s32.totalorder %s69, 0
    %p692 = por %p690, %p691
    %p693 = scmp.ne.s32.totalorder %s685, %s687
    %p694 = scmp.eq.s32.totalorder %s74, 1
    %p695 = por %p693, %p694
    %p696 = scmp.ne.s32.totalorder %s687, %s688
    %p697 = scmp.eq.s32.totalorder %s74, 0
    %p698 = por %p696, %p697
    %p699 = scmp.ne.s32.totalorder %s687, %s688
    %p700 = scmp.eq.s32.totalorder %s75, 1
    %p701 = por %p699, %p700
    %p703 = scmp.ne.s32.totalorder %s688, %s702
    %p704 = scmp.eq.s32.totalorder %s75, 0
    %p705 = por %p703, %p704
    %s707 = sadd.s32 %s706, 1
    %p710 = scmp.eq.s32.totalorder %s69, 1
    %p711 = scmp.ne.s32.totalorder %s706, %s708
    %p712 = scmp.eq.s32.totalorder %s69, 0
    %p713 = por %p711, %p712
    %p714 = scmp.ne.s32.totalorder %s706, %s708
    %p715 = scmp.eq.s32.totalorder %s74, 1
    %p716 = por %p714, %p715
    %p717 = scmp.ne.s32.totalorder %s708, %s709
    %p718 = scmp.eq.s32.totalorder %s74, 0
    %p719 = por %p717, %p718
    %p720 = scmp.ne.s32.totalorder %s708, %s709
    %p721 = scmp.eq.s32.totalorder %s75, 1
    %p722 = por %p720, %p721
    %p724 = scmp.ne.s32.totalorder %s709, %s723
    %p725 = scmp.eq.s32.totalorder %s75, 0
    %p726 = por %p724, %p725
    %s728 = sadd.s32 %s727, 1
    %p731 = scmp.eq.s32.totalorder %s69, 1
    %p732 = scmp.ne.s32.totalorder %s727, %s729
    %p733 = scmp.eq.s32.totalorder %s69, 0
    %p734 = por %p732, %p733
    %p735 = scmp.ne.s32.totalorder %s727, %s729
    %p736 = scmp.eq.s32.totalorder %s74, 1
    %p737 = por %p735, %p736
    %p738 = scmp.ne.s32.totalorder %s729, %s730
    %p739 = scmp.eq.s32.totalorder %s74, 0
    %p740 = por %p738, %p739
    %p741 = scmp.ne.s32.totalorder %s729, %s730
    %p742 = scmp.eq.s32.totalorder %s75, 1
    %p743 = por %p741, %p742
    %p745 = scmp.ne.s32.totalorder %s730, %s744
    %p746 = scmp.eq.s32.totalorder %s75, 0
    %p747 = por %p745, %p746
    %s748 = ssub.s32 %s69, %s76
    %p749 = scmp.eq.s32.totalorder %s748, 0
    %s751 = sadd.s32 %s750, 1
    %s752 = scalar_select %p749, %s750, %s751
    %p755 = pneg %p749
    %p756 = scmp.eq.s32.totalorder %s69, 1
    %p757 = por %p755, %p756
    %p758 = scmp.ne.s32.totalorder %s750, %s753
    %p759 = scmp.eq.s32.totalorder %s69, 0
    %p760 = por %p758, %p759
    %p761 = scmp.ne.s32.totalorder %s750, %s753
    %p762 = scmp.eq.s32.totalorder %s74, 1
    %p763 = por %p761, %p762
    %p764 = scmp.ne.s32.totalorder %s753, %s754
    %p765 = scmp.eq.s32.totalorder %s74, 0
    %p766 = por %p764, %p765
    %p767 = scmp.ne.s32.totalorder %s753, %s754
    %p768 = scmp.eq.s32.totalorder %s75, 1
    %p769 = por %p767, %p768
    %p771 = scmp.ne.s32.totalorder %s754, %s770
    %p772 = scmp.eq.s32.totalorder %s75, 0
    %p773 = por %p771, %p772
    %p774 = scmp.le.s32.totalorder 1, %s69
    %p775 = scmp.lt.s32.totalorder %s69, 3
    %p776 = pnand %p774, %p775
    %p777 = pneg %p776
    // Predicated region
    $region9: #{_lambda_.7} parent=5 // pred_check
      _
    $region10: #{_lambda_.7} parent=5 // pred_check_branch
      %779 = sbr.rel (%p776) target = $region12
    $region11: #{_lambda_.7} parent=5 // pred_region
      %s780 = ssub.s32 %s69, 1
      // Predicated region
      $region13: #{_lambda_.7} parent=11 // pred_check
        %p781 = pneg %p142
      $region14: #{_lambda_.7} parent=11 // pred_check_branch
        %783 = sbr.rel (%p781) target = $region16
      $region15: #{_lambda_.7} parent=11 // pred_region
        _
      $region16: #{_lambda_.7} parent=11 // pred_fallthru
        _
      // Predicated region
      $region17: #{_lambda_.7} parent=11 // pred_check
        %p784 = pneg %p215
      $region18: #{_lambda_.7} parent=11 // pred_check_branch
        %786 = sbr.rel (%p784) target = $region20
      $region19: #{_lambda_.7} parent=11 // pred_region
        _
      $region20: #{_lambda_.7} parent=11 // pred_fallthru
        _
      // Predicated region
      $region21: #{_lambda_.7} parent=11 // pred_check
        %p787 = pneg %p236
      $region22: #{_lambda_.7} parent=11 // pred_check_branch
        %789 = sbr.rel (%p787) target = $region24
      $region23: #{_lambda_.7} parent=11 // pred_region
        _
      $region24: #{_lambda_.7} parent=11 // pred_fallthru
        _
      // Predicated region
      $region25: #{_lambda_.7} parent=11 // pred_check
        %p790 = pneg %p257
      $region26: #{_lambda_.7} parent=11 // pred_check_branch
        %792 = sbr.rel (%p790) target = $region28
      $region27: #{_lambda_.7} parent=11 // pred_region
        _
      $region28: #{_lambda_.7} parent=11 // pred_fallthru
        _
      // Predicated region
      $region29: #{_lambda_.7} parent=11 // pred_check
        %p793 = pneg %p278
      $region30: #{_lambda_.7} parent=11 // pred_check_branch
        %795 = sbr.rel (%p793) target = $region32
      $region31: #{_lambda_.7} parent=11 // pred_region
        _
      $region32: #{_lambda_.7} parent=11 // pred_fallthru
        _
      // Predicated region
      $region33: #{_lambda_.7} parent=11 // pred_check
        %p796 = pneg %p299
      $region34: #{_lambda_.7} parent=11 // pred_check_branch
        %798 = sbr.rel (%p796) target = $region36
      $region35: #{_lambda_.7} parent=11 // pred_region
        _
      $region36: #{_lambda_.7} parent=11 // pred_fallthru
        _
      // Predicated region
      $region37: #{_lambda_.7} parent=11 // pred_check
        %p799 = pneg %p320
      $region38: #{_lambda_.7} parent=11 // pred_check_branch
        %801 = sbr.rel (%p799) target = $region40
      $region39: #{_lambda_.7} parent=11 // pred_region
        _
      $region40: #{_lambda_.7} parent=11 // pred_fallthru
        _
      // Predicated region
      $region41: #{_lambda_.7} parent=11 // pred_check
        %p802 = pneg %p341
      $region42: #{_lambda_.7} parent=11 // pred_check_branch
        %804 = sbr.rel (%p802) target = $region44
      $region43: #{_lambda_.7} parent=11 // pred_region
        _
      $region44: #{_lambda_.7} parent=11 // pred_fallthru
        _
      // Predicated region
      $region45: #{_lambda_.7} parent=11 // pred_check
        %p805 = pneg %p362
      $region46: #{_lambda_.7} parent=11 // pred_check_branch
        %807 = sbr.rel (%p805) target = $region48
      $region47: #{_lambda_.7} parent=11 // pred_region
        _
      $region48: #{_lambda_.7} parent=11 // pred_fallthru
        _
      // Predicated region
      $region49: #{_lambda_.7} parent=11 // pred_check
        %p808 = pneg %p383
      $region50: #{_lambda_.7} parent=11 // pred_check_branch
        %810 = sbr.rel (%p808) target = $region52
      $region51: #{_lambda_.7} parent=11 // pred_region
        _
      $region52: #{_lambda_.7} parent=11 // pred_fallthru
        _
      // Predicated region
      $region53: #{_lambda_.7} parent=11 // pred_check
        %p811 = pneg %p404
      $region54: #{_lambda_.7} parent=11 // pred_check_branch
        %813 = sbr.rel (%p811) target = $region56
      $region55: #{_lambda_.7} parent=11 // pred_region
        _
      $region56: #{_lambda_.7} parent=11 // pred_fallthru
        _
      // Predicated region
      $region57: #{_lambda_.7} parent=11 // pred_check
        %p814 = pneg %p425
      $region58: #{_lambda_.7} parent=11 // pred_check_branch
        %816 = sbr.rel (%p814) target = $region60
      $region59: #{_lambda_.7} parent=11 // pred_region
        _
      $region60: #{_lambda_.7} parent=11 // pred_fallthru
        _
      // Predicated region
      $region61: #{_lambda_.7} parent=11 // pred_check
        %p817 = pneg %p446
      $region62: #{_lambda_.7} parent=11 // pred_check_branch
        %819 = sbr.rel (%p817) target = $region64
      $region63: #{_lambda_.7} parent=11 // pred_region
        _
      $region64: #{_lambda_.7} parent=11 // pred_fallthru
        _
      // Predicated region
      $region65: #{_lambda_.7} parent=11 // pred_check
        %p820 = pneg %p467
      $region66: #{_lambda_.7} parent=11 // pred_check_branch
        %822 = sbr.rel (%p820) target = $region68
      $region67: #{_lambda_.7} parent=11 // pred_region
        _
      $region68: #{_lambda_.7} parent=11 // pred_fallthru
        _
      // Predicated region
      $region69: #{_lambda_.7} parent=11 // pred_check
        %p823 = pneg %p488
      $region70: #{_lambda_.7} parent=11 // pred_check_branch
        %825 = sbr.rel (%p823) target = $region72
      $region71: #{_lambda_.7} parent=11 // pred_region
        _
      $region72: #{_lambda_.7} parent=11 // pred_fallthru
        _
      // Predicated region
      $region73: #{_lambda_.7} parent=11 // pred_check
        %p826 = pneg %p509
      $region74: #{_lambda_.7} parent=11 // pred_check_branch
        %828 = sbr.rel (%p826) target = $region76
      $region75: #{_lambda_.7} parent=11 // pred_region
        _
      $region76: #{_lambda_.7} parent=11 // pred_fallthru
        _
      // Predicated region
      $region77: #{_lambda_.7} parent=11 // pred_check
        %p829 = pneg %p530
      $region78: #{_lambda_.7} parent=11 // pred_check_branch
        %831 = sbr.rel (%p829) target = $region80
      $region79: #{_lambda_.7} parent=11 // pred_region
        _
      $region80: #{_lambda_.7} parent=11 // pred_fallthru
        _
      // Predicated region
      $region81: #{_lambda_.7} parent=11 // pred_check
        %p832 = pneg %p551
      $region82: #{_lambda_.7} parent=11 // pred_check_branch
        %834 = sbr.rel (%p832) target = $region84
      $region83: #{_lambda_.7} parent=11 // pred_region
        _
      $region84: #{_lambda_.7} parent=11 // pred_fallthru
        _
      // Predicated region
      $region85: #{_lambda_.7} parent=11 // pred_check
        %p835 = pneg %p572
      $region86: #{_lambda_.7} parent=11 // pred_check_branch
        %837 = sbr.rel (%p835) target = $region88
      $region87: #{_lambda_.7} parent=11 // pred_region
        _
      $region88: #{_lambda_.7} parent=11 // pred_fallthru
        _
      // Predicated region
      $region89: #{_lambda_.7} parent=11 // pred_check
        %p838 = pneg %p593
      $region90: #{_lambda_.7} parent=11 // pred_check_branch
        %840 = sbr.rel (%p838) target = $region92
      $region91: #{_lambda_.7} parent=11 // pred_region
        _
      $region92: #{_lambda_.7} parent=11 // pred_fallthru
        _
      // Predicated region
      $region93: #{_lambda_.7} parent=11 // pred_check
        %p841 = pneg %p614
      $region94: #{_lambda_.7} parent=11 // pred_check_branch
        %843 = sbr.rel (%p841) target = $region96
      $region95: #{_lambda_.7} parent=11 // pred_region
        _
      $region96: #{_lambda_.7} parent=11 // pred_fallthru
        _
      // Predicated region
      $region97: #{_lambda_.7} parent=11 // pred_check
        %p844 = pneg %p635
      $region98: #{_lambda_.7} parent=11 // pred_check_branch
        %846 = sbr.rel (%p844) target = $region100
      $region99: #{_lambda_.7} parent=11 // pred_region
        _
      $region100: #{_lambda_.7} parent=11 // pred_fallthru
        _
      // Predicated region
      $region101: #{_lambda_.7} parent=11 // pred_check
        %p847 = pneg %p656
      $region102: #{_lambda_.7} parent=11 // pred_check_branch
        %849 = sbr.rel (%p847) target = $region104
      $region103: #{_lambda_.7} parent=11 // pred_region
        _
      $region104: #{_lambda_.7} parent=11 // pred_fallthru
        _
      // Predicated region
      $region105: #{_lambda_.7} parent=11 // pred_check
        %p850 = pneg %p677
      $region106: #{_lambda_.7} parent=11 // pred_check_branch
        %852 = sbr.rel (%p850) target = $region108
      $region107: #{_lambda_.7} parent=11 // pred_region
        _
      $region108: #{_lambda_.7} parent=11 // pred_fallthru
        _
      // Predicated region
      $region109: #{_lambda_.7} parent=11 // pred_check
        %p853 = pneg %p698
      $region110: #{_lambda_.7} parent=11 // pred_check_branch
        %855 = sbr.rel (%p853) target = $region112
      $region111: #{_lambda_.7} parent=11 // pred_region
        _
      $region112: #{_lambda_.7} parent=11 // pred_fallthru
        _
      // Predicated region
      $region113: #{_lambda_.7} parent=11 // pred_check
        %p856 = pneg %p719
      $region114: #{_lambda_.7} parent=11 // pred_check_branch
        %858 = sbr.rel (%p856) target = $region116
      $region115: #{_lambda_.7} parent=11 // pred_region
        _
      $region116: #{_lambda_.7} parent=11 // pred_fallthru
        _
      // Predicated region
      $region117: #{_lambda_.7} parent=11 // pred_check
        %p859 = pneg %p740
      $region118: #{_lambda_.7} parent=11 // pred_check_branch
        %861 = sbr.rel (%p859) target = $region120
      $region119: #{_lambda_.7} parent=11 // pred_region
        _
      $region120: #{_lambda_.7} parent=11 // pred_fallthru
        _
    $region12: #{_lambda_.7} parent=5 // pred_fallthru
      _
    %p862 = scmp.lt.s32.totalorder %s69, 2
    // Predicated region
    $region121: #{_lambda_.7} parent=5 // pred_check
      %p863 = pneg %p862
    $region122: #{_lambda_.7} parent=5 // pred_check_branch
      %865 = sbr.rel (%p863) target = $region124
    $region123: #{_lambda_.7} parent=5 // pred_region
      // Predicated region
      $region125: #{_lambda_.7} parent=123 // pred_check
        %p866 = pneg %p89
      $region126: #{_lambda_.7} parent=123 // pred_check_branch
        %868 = sbr.rel (%p866) target = $region128
      $region127: #{_lambda_.7} parent=123 // pred_region
        %p869 = scmp.lt.s32.totalorder %s69, 1
        %s870 = scalar_select %p869, %s69, 1
        %s871 = smul.addr %s870, 8
        %s872 = scalar_lea.vmem %s1, %s871
      $region128: #{_lambda_.7} parent=123 // pred_fallthru
        _
      // Predicated region
      $region129: #{_lambda_.7} parent=123 // pred_check
        %p873 = pneg %p115
      $region130: #{_lambda_.7} parent=123 // pred_check_branch
        %875 = sbr.rel (%p873) target = $region132
      $region131: #{_lambda_.7} parent=123 // pred_region
        %p876 = scmp.lt.s32.totalorder %s69, 1
        %s877 = scalar_select %p876, %s69, 1
        %s878 = smul.addr %s877, 8
        %s879 = scalar_lea.vmem %s3, %s878
      $region132: #{_lambda_.7} parent=123 // pred_fallthru
        _
      // Predicated region
      $region133: #{_lambda_.7} parent=123 // pred_check
        %p880 = pneg %p162
      $region134: #{_lambda_.7} parent=123 // pred_check_branch
        %882 = sbr.rel (%p880) target = $region136
      $region135: #{_lambda_.7} parent=123 // pred_region
        %p883 = scmp.lt.s32.totalorder %s69, 1
        %s884 = scalar_select %p883, %s69, 1
        %s885 = scalar_lea.vmem %s7, %s884
      $region136: #{_lambda_.7} parent=123 // pred_fallthru
        _
      // Predicated region
      $region137: #{_lambda_.7} parent=123 // pred_check
        %p886 = pneg %p188
      $region138: #{_lambda_.7} parent=123 // pred_check_branch
        %888 = sbr.rel (%p886) target = $region140
      $region139: #{_lambda_.7} parent=123 // pred_region
        %p889 = scmp.lt.s32.totalorder %s69, 1
        %s890 = scalar_select %p889, %s69, 1
        %s891 = scalar_lea.vmem %s9, %s890
      $region140: #{_lambda_.7} parent=123 // pred_fallthru
        _
    $region124: #{_lambda_.7} parent=5 // pred_fallthru
      _
    %p892 = scmp.le.s32.totalorder 1, %s69
    %p893 = scmp.lt.s32.totalorder %s69, 3
    %p894 = pnand %p892, %p893
    %p895 = pneg %p894
    // Predicated region
    $region141: #{_lambda_.7} parent=5 // pred_check
      _
    $region142: #{_lambda_.7} parent=5 // pred_check_branch
      %897 = sbr.rel (%p894) target = $region144
    $region143: #{_lambda_.7} parent=5 // pred_region
      %s898 = ssub.s32 %s69, 1
      %p899 = scmp.lt.s32.totalorder %s74, 1
      %s900 = scalar_select %p899, %s74, 1
      %s901 = smul.addr %s900, 8
      %s902 = scalar_lea.vmem %s1, %s901
      %p903 = pneg %p95
      %p904 = pneg %p92
      %p905 = scmp.lt.s32.totalorder %s74, 1
      %s906 = scalar_select %p905, %s74, 1
      %s907 = smul.addr %s906, 8
      %s908 = scalar_lea.vmem %s3, %s907
      %p909 = pneg %p121
      %p910 = pneg %p118
      %p911 = pneg %p142
      %p912 = pneg %p139
      %p913 = scmp.lt.s32.totalorder %s74, 1
      %s914 = scalar_select %p913, %s74, 1
      %s915 = scalar_lea.vmem %s7, %s914
      %p916 = pneg %p168
      %p917 = pneg %p165
      %p918 = scmp.lt.s32.totalorder %s74, 1
      %s919 = scalar_select %p918, %s74, 1
      %s920 = scalar_lea.vmem %s9, %s919
      %p921 = pneg %p194
      %p922 = pneg %p191
      %p923 = pneg %p215
      %p924 = pneg %p212
      %p925 = pneg %p236
      %p926 = pneg %p233
      %p927 = pneg %p257
      %p928 = pneg %p254
      %p929 = pneg %p278
      %p930 = pneg %p275
      %p931 = pneg %p299
      %p932 = pneg %p296
      %p933 = pneg %p320
      %p934 = pneg %p317
      %p935 = pneg %p341
      %p936 = pneg %p338
      %p937 = pneg %p362
      %p938 = pneg %p359
      %p939 = pneg %p383
      %p940 = pneg %p380
      %p941 = pneg %p404
      %p942 = pneg %p401
      %p943 = pneg %p425
      %p944 = pneg %p422
      %p945 = pneg %p446
      %p946 = pneg %p443
      %p947 = pneg %p467
      %p948 = pneg %p464
      %p949 = pneg %p488
      %p950 = pneg %p485
      %p951 = pneg %p509
      %p952 = pneg %p506
      %p953 = pneg %p530
      %p954 = pneg %p527
      %p955 = pneg %p551
      %p956 = pneg %p548
      %p957 = pneg %p572
      %p958 = pneg %p569
      %p959 = pneg %p593
      %p960 = pneg %p590
      %p961 = pneg %p614
      %p962 = pneg %p611
      %p963 = pneg %p635
      %p964 = pneg %p632
      %p965 = pneg %p656
      %p966 = pneg %p653
      %p967 = pneg %p677
      %p968 = pneg %p674
      %p969 = pneg %p698
      %p970 = pneg %p695
      %p971 = pneg %p719
      %p972 = pneg %p716
      %p973 = pneg %p740
      %p974 = pneg %p737
      %p975 = pneg %p766
      %p976 = pneg %p763
      %p977 = scmp.lt.s32.totalorder %s74, 1
      %s978 = scalar_select %p977, %s74, 1
      %s979 = smul.addr %s978, 8
      %s980 = scalar_lea.vmem %s63, %s979
      %p981 = scmp.lt.s32.totalorder %s74, 1
      %s982 = scalar_select %p981, %s74, 1
      %s983 = smul.addr %s982, 8
      %s984 = scalar_lea.vmem %s1, %s983
      %p985 = scmp.lt.s32.totalorder %s74, 1
      %s986 = scalar_select %p985, %s74, 1
      %s987 = smul.addr %s986, 8
      %s988 = scalar_lea.vmem %s3, %s987
      %p989 = scmp.lt.s32.totalorder %s74, 1
      %s990 = scalar_select %p989, %s74, 1
      %s991 = scalar_lea.vmem %s7, %s990
      %p992 = scmp.lt.s32.totalorder %s74, 1
      %s993 = scalar_select %p992, %s74, 1
      %s994 = scalar_lea.vmem %s9, %s993
      %p995 = scmp.lt.s32.totalorder %s74, 1
      %s996 = scalar_select %p995, %s74, 1
      %s997 = smul.addr %s996, 8
      %s998 = scalar_lea.vmem %s63, %s997
      %v999 = vld [vmem:[%s984] sm:$0xff]
      %v1000 = vld [vmem:[%s988] sm:$0xff]
      %v1001 = vld [vmem:[%s5] sm:$0xff]
      %v1002 = vld [vmem:[%s991] sm:$0x1]
      %v1003 = vld [vmem:[%s11] sm:$0xff]
      %v1004 = vld [vmem:[%s11 + $0x8] sm:$0xff]
      %v1005 = vld [vmem:[%s11 + $0x10] sm:$0xff]
      %v1006 = vld [vmem:[%s11 + $0x18] sm:$0xff]
      %v1007 = vld [vmem:[%s13] sm:$0x1]
      %v1009 = vlaneseq
      %v1010 = vshrl.u32 %v1009, 7
      %v1011 = vsub.s32 0, %v1010
      %v1012 = vrot.slane %v1007, %v1011
      %vm1014 = vcmask 261120
      %v1016 = vsel %vm1014, %v999, 0
      %1018 = vmatprep.subr.mxu0 0.0
      %1019 = vmatpush1.msra.mxu0 %v1003
      %1020 = vmatprep.subr.mxu0 0.0
      %1021 = vmatpush1.msra.mxu0 %v1004
      %1022 = vmatprep.subr.mxu0 0.0
      %1023 = vmatpush1.msra.mxu0 %v1005
      %1024 = vmatprep.subr.mxu0 0.0
      %1025 = vmatpush1.msra.mxu0 %v1006
      %1026 = vmatprep.subr.mxu0 0.0
      %1027 = vmatpush1.msra.mxu0 0.0
      %1028 = vmatprep.subr.mxu0 0.0
      %1029 = vmatpush1.msra.mxu0 0.0
      %1030 = vmatprep.subr.mxu0 0.0
      %1031 = vmatpush1.msra.mxu0 0.0
      %1032 = vmatprep.subr.mxu0 0.0
      %1033 = vmatpush1.msra.mxu0 0.0
      %1034 = vmatprep.subr.mxu0 0.0
      %1035 = vmatpush1.msra.mxu0 0.0
      %1036 = vmatprep.subr.mxu0 0.0
      %1037 = vmatpush1.msra.mxu0 0.0
      %1038 = vmatprep.subr.mxu0 0.0
      %1039 = vmatpush1.msra.mxu0 0.0
      %1040 = vmatprep.subr.mxu0 0.0
      %1041 = vmatpush1.msra.mxu0 0.0
      %1042 = vmatprep.subr.mxu0 0.0
      %1043 = vmatpush1.msra.mxu0 0.0
      %1044 = vmatprep.subr.mxu0 0.0
      %1045 = vmatpush1.msra.mxu0 0.0
      %1046 = vmatprep.subr.mxu0 0.0
      %1047 = vmatpush1.msra.mxu0 0.0
      %1048 = vmatprep.subr.mxu0 0.0
      %1049 = vmatpush1.msra.mxu0 0.0
      %1050 = vmatprep.subr.mxu0 0.0
      %1051 = vmatpush1.msra.mxu0 0.0
      %1052 = vmatprep.subr.mxu0 0.0
      %1053 = vmatpush1.msra.mxu0 0.0
      %1054 = vmatprep.subr.mxu0 0.0
      %1055 = vmatpush1.msra.mxu0 0.0
      %1056 = vmatprep.subr.mxu0 0.0
      %1057 = vmatpush1.msra.mxu0 0.0
      %1058 = vmatprep.subr.mxu0 0.0
      %1059 = vmatpush1.msra.mxu0 0.0
      %1060 = vmatprep.subr.mxu0 0.0
      %1061 = vmatpush1.msra.mxu0 0.0
      %1062 = vmatprep.subr.mxu0 0.0
      %1063 = vmatpush1.msra.mxu0 0.0
      %1064 = vmatprep.subr.mxu0 0.0
      %1065 = vmatpush1.msra.mxu0 0.0
      %1066 = vmatprep.subr.mxu0 0.0
      %1067 = vmatpush1.msra.mxu0 0.0
      %1068 = vmatprep.subr.mxu0 0.0
      %1069 = vmatpush1.msra.mxu0 0.0
      %1070 = vmatprep.subr.mxu0 0.0
      %1071 = vmatpush1.msra.mxu0 0.0
      %1072 = vmatprep.subr.mxu0 0.0
      %1073 = vmatpush1.msra.mxu0 0.0
      %1074 = vmatprep.subr.mxu0 0.0
      %1075 = vmatpush1.msra.mxu0 0.0
      %1076 = vmatprep.subr.mxu0 0.0
      %1077 = vmatpush1.msra.mxu0 0.0
      %1078 = vmatprep.subr.mxu0 0.0
      %1079 = vmatpush1.msra.mxu0 0.0
      %1080 = vmatprep.subr.mxu0 0.0
      %1081 = vmatpush1.msra.mxu0 0.0
      %1082 = vmatprep.mubr.f32.mxu0 0.0
      %1083 = vmatmul.mubr.f32.gmra.mrb[0].mxu0 %v1016
      %v1084 = vpop.f32.mrb[0].mxu0
      %v1085 = vadd.f32 %v1012, %v1084
      %v1086 = vpop.f32.mrb[0].mxu0
      %1087 = vdwg.mxu0
      %v1088 = vld [vmem:[%s15] sm:$0xff]
      %v1089 = vld [vmem:[%s15 + $0x8] sm:$0xff]
      %v1090 = vld [vmem:[%s15 + $0x10] sm:$0xff]
      %v1091 = vld [vmem:[%s15 + $0x18] sm:$0xff]
      %v1092 = vld [vmem:[%s17] sm:$0x1]
      %v1094 = vlaneseq
      %v1095 = vshrl.u32 %v1094, 7
      %v1096 = vsub.s32 0, %v1095
      %v1097 = vrot.slane %v1092, %v1096
      %1099 = vmatprep.subr.mxu0 0.0
      %1100 = vmatpush1.msra.mxu0 %v1088
      %1101 = vmatprep.subr.mxu0 0.0
      %1102 = vmatpush1.msra.mxu0 %v1089
      %1103 = vmatprep.subr.mxu0 0.0
      %1104 = vmatpush1.msra.mxu0 %v1090
      %1105 = vmatprep.subr.mxu0 0.0
      %1106 = vmatpush1.msra.mxu0 %v1091
      %1107 = vmatprep.subr.mxu0 0.0
      %1108 = vmatpush1.msra.mxu0 0.0
      %1109 = vmatprep.subr.mxu0 0.0
      %1110 = vmatpush1.msra.mxu0 0.0
      %1111 = vmatprep.subr.mxu0 0.0
      %1112 = vmatpush1.msra.mxu0 0.0
      %1113 = vmatprep.subr.mxu0 0.0
      %1114 = vmatpush1.msra.mxu0 0.0
      %1115 = vmatprep.subr.mxu0 0.0
      %1116 = vmatpush1.msra.mxu0 0.0
      %1117 = vmatprep.subr.mxu0 0.0
      %1118 = vmatpush1.msra.mxu0 0.0
      %1119 = vmatprep.subr.mxu0 0.0
      %1120 = vmatpush1.msra.mxu0 0.0
      %1121 = vmatprep.subr.mxu0 0.0
      %1122 = vmatpush1.msra.mxu0 0.0
      %1123 = vmatprep.subr.mxu0 0.0
      %1124 = vmatpush1.msra.mxu0 0.0
      %1125 = vmatprep.subr.mxu0 0.0
      %1126 = vmatpush1.msra.mxu0 0.0
      %1127 = vmatprep.subr.mxu0 0.0
      %1128 = vmatpush1.msra.mxu0 0.0
      %1129 = vmatprep.subr.mxu0 0.0
      %1130 = vmatpush1.msra.mxu0 0.0
      %1131 = vmatprep.subr.mxu0 0.0
      %1132 = vmatpush1.msra.mxu0 0.0
      %1133 = vmatprep.subr.mxu0 0.0
      %1134 = vmatpush1.msra.mxu0 0.0
      %1135 = vmatprep.subr.mxu0 0.0
      %1136 = vmatpush1.msra.mxu0 0.0
      %1137 = vmatprep.subr.mxu0 0.0
      %1138 = vmatpush1.msra.mxu0 0.0
      %1139 = vmatprep.subr.mxu0 0.0
      %1140 = vmatpush1.msra.mxu0 0.0
      %1141 = vmatprep.subr.mxu0 0.0
      %1142 = vmatpush1.msra.mxu0 0.0
      %1143 = vmatprep.subr.mxu0 0.0
      %1144 = vmatpush1.msra.mxu0 0.0
      %1145 = vmatprep.subr.mxu0 0.0
      %1146 = vmatpush1.msra.mxu0 0.0
      %1147 = vmatprep.subr.mxu0 0.0
      %1148 = vmatpush1.msra.mxu0 0.0
      %1149 = vmatprep.subr.mxu0 0.0
      %1150 = vmatpush1.msra.mxu0 0.0
      %1151 = vmatprep.subr.mxu0 0.0
      %1152 = vmatpush1.msra.mxu0 0.0
      %1153 = vmatprep.subr.mxu0 0.0
      %1154 = vmatpush1.msra.mxu0 0.0
      %1155 = vmatprep.subr.mxu0 0.0
      %1156 = vmatpush1.msra.mxu0 0.0
      %1157 = vmatprep.subr.mxu0 0.0
      %1158 = vmatpush1.msra.mxu0 0.0
      %1159 = vmatprep.subr.mxu0 0.0
      %1160 = vmatpush1.msra.mxu0 0.0
      %1161 = vmatprep.subr.mxu0 0.0
      %1162 = vmatpush1.msra.mxu0 0.0
      %1163 = vmatprep.mubr.f32.mxu0 0.0
      %1164 = vmatmul.mubr.f32.gmra.mrb[0].mxu0 %v1016
      %v1165 = vpop.f32.mrb[0].mxu0
      %v1166 = vadd.f32 %v1097, %v1165
      %v1167 = vpop.f32.mrb[0].mxu0
      %1168 = vdwg.mxu0
      %v1169 = vld [vmem:[%s19] sm:$0xff]
      %v1170 = vld [vmem:[%s19 + $0x8] sm:$0xff]
      %v1171 = vld [vmem:[%s19 + $0x10] sm:$0xff]
      %v1172 = vld [vmem:[%s19 + $0x18] sm:$0xff]
      %v1173 = vld [vmem:[%s21] sm:$0x1]
      %v1175 = vlaneseq
      %v1176 = vshrl.u32 %v1175, 7
      %v1177 = vsub.s32 0, %v1176
      %v1178 = vrot.slane %v1173, %v1177
      %1180 = vmatprep.subr.mxu0 0.0
      %1181 = vmatpush1.msra.mxu0 %v1169
      %1182 = vmatprep.subr.mxu0 0.0
      %1183 = vmatpush1.msra.mxu0 %v1170
      %1184 = vmatprep.subr.mxu0 0.0
      %1185 = vmatpush1.msra.mxu0 %v1171
      %1186 = vmatprep.subr.mxu0 0.0
      %1187 = vmatpush1.msra.mxu0 %v1172
      %1188 = vmatprep.subr.mxu0 0.0
      %1189 = vmatpush1.msra.mxu0 0.0
      %1190 = vmatprep.subr.mxu0 0.0
      %1191 = vmatpush1.msra.mxu0 0.0
      %1192 = vmatprep.subr.mxu0 0.0
      %1193 = vmatpush1.msra.mxu0 0.0
      %1194 = vmatprep.subr.mxu0 0.0
      %1195 = vmatpush1.msra.mxu0 0.0
      %1196 = vmatprep.subr.mxu0 0.0
      %1197 = vmatpush1.msra.mxu0 0.0
      %1198 = vmatprep.subr.mxu0 0.0
      %1199 = vmatpush1.msra.mxu0 0.0
      %1200 = vmatprep.subr.mxu0 0.0
      %1201 = vmatpush1.msra.mxu0 0.0
      %1202 = vmatprep.subr.mxu0 0.0
      %1203 = vmatpush1.msra.mxu0 0.0
      %1204 = vmatprep.subr.mxu0 0.0
      %1205 = vmatpush1.msra.mxu0 0.0
      %1206 = vmatprep.subr.mxu0 0.0
      %1207 = vmatpush1.msra.mxu0 0.0
      %1208 = vmatprep.subr.mxu0 0.0
      %1209 = vmatpush1.msra.mxu0 0.0
      %1210 = vmatprep.subr.mxu0 0.0
      %1211 = vmatpush1.msra.mxu0 0.0
      %1212 = vmatprep.subr.mxu0 0.0
      %1213 = vmatpush1.msra.mxu0 0.0
      %1214 = vmatprep.subr.mxu0 0.0
      %1215 = vmatpush1.msra.mxu0 0.0
      %1216 = vmatprep.subr.mxu0 0.0
      %1217 = vmatpush1.msra.mxu0 0.0
      %1218 = vmatprep.subr.mxu0 0.0
      %1219 = vmatpush1.msra.mxu0 0.0
      %1220 = vmatprep.subr.mxu0 0.0
      %1221 = vmatpush1.msra.mxu0 0.0
      %1222 = vmatprep.subr.mxu0 0.0
      %1223 = vmatpush1.msra.mxu0 0.0
      %1224 = vmatprep.subr.mxu0 0.0
      %1225 = vmatpush1.msra.mxu0 0.0
      %1226 = vmatprep.subr.mxu0 0.0
      %1227 = vmatpush1.msra.mxu0 0.0
      %1228 = vmatprep.subr.mxu0 0.0
      %1229 = vmatpush1.msra.mxu0 0.0
      %1230 = vmatprep.subr.mxu0 0.0
      %1231 = vmatpush1.msra.mxu0 0.0
      %1232 = vmatprep.subr.mxu0 0.0
      %1233 = vmatpush1.msra.mxu0 0.0
      %1234 = vmatprep.subr.mxu0 0.0
      %1235 = vmatpush1.msra.mxu0 0.0
      %1236 = vmatprep.subr.mxu0 0.0
      %1237 = vmatpush1.msra.mxu0 0.0
      %1238 = vmatprep.subr.mxu0 0.0
      %1239 = vmatpush1.msra.mxu0 0.0
      %1240 = vmatprep.subr.mxu0 0.0
      %1241 = vmatpush1.msra.mxu0 0.0
      %1242 = vmatprep.subr.mxu0 0.0
      %1243 = vmatpush1.msra.mxu0 0.0
      %1244 = vmatprep.mubr.f32.mxu0 0.0
      %1245 = vmatmul.mubr.f32.gmra.mrb[0].mxu0 %v1016
      %v1246 = vpop.f32.mrb[0].mxu0
      %v1247 = vadd.f32 %v1178, %v1246
      %v1248 = vpop.f32.mrb[0].mxu0
      %1249 = vdwg.mxu0
      %vm1250 = vcmask 64512
      %v1252 = vsel %vm1250, %v1085, 0
      %v1255 = vsel %vm1250, %v1166, 0
      %1257 = vmatprep.subr.mxu0 0.0
      %1258 = vmatpush1.xpose.msra.mxu0 %v1255
      %1259 = vmatprep.subr.mxu0 0.0
      %1260 = vmatpush1.xpose.msra.mxu0 0.0
      %1261 = vmatprep.subr.mxu0 0.0
      %1262 = vmatpush1.xpose.msra.mxu0 0.0
      %1263 = vmatprep.subr.mxu0 0.0
      %1264 = vmatpush1.xpose.msra.mxu0 0.0
      %1265 = vmatprep.subr.mxu0 0.0
      %1266 = vmatpush1.xpose.msra.mxu0 0.0
      %1267 = vmatprep.subr.mxu0 0.0
      %1268 = vmatpush1.xpose.msra.mxu0 0.0
      %1269 = vmatprep.subr.mxu0 0.0
      %1270 = vmatpush1.xpose.msra.mxu0 0.0
      %1271 = vmatprep.subr.mxu0 0.0
      %1272 = vmatpush1.xpose.msra.mxu0 0.0
      %1273 = vmatprep.subr.mxu0 0.0
      %1274 = vmatpush1.xpose.msra.mxu0 0.0
      %1275 = vmatprep.subr.mxu0 0.0
      %1276 = vmatpush1.xpose.msra.mxu0 0.0
      %1277 = vmatprep.subr.mxu0 0.0
      %1278 = vmatpush1.xpose.msra.mxu0 0.0
      %1279 = vmatprep.subr.mxu0 0.0
      %1280 = vmatpush1.xpose.msra.mxu0 0.0
      %1281 = vmatprep.subr.mxu0 0.0
      %1282 = vmatpush1.xpose.msra.mxu0 0.0
      %1283 = vmatprep.subr.mxu0 0.0
      %1284 = vmatpush1.xpose.msra.mxu0 0.0
      %1285 = vmatprep.subr.mxu0 0.0
      %1286 = vmatpush1.xpose.msra.mxu0 0.0
      %1287 = vmatprep.subr.mxu0 0.0
      %1288 = vmatpush1.xpose.msra.mxu0 0.0
      %1289 = vmatprep.subr.mxu0 0.0
      %1290 = vmatpush1.xpose.msra.mxu0 0.0
      %1291 = vmatprep.subr.mxu0 0.0
      %1292 = vmatpush1.xpose.msra.mxu0 0.0
      %1293 = vmatprep.subr.mxu0 0.0
      %1294 = vmatpush1.xpose.msra.mxu0 0.0
      %1295 = vmatprep.subr.mxu0 0.0
      %1296 = vmatpush1.xpose.msra.mxu0 0.0
      %1297 = vmatprep.subr.mxu0 0.0
      %1298 = vmatpush1.xpose.msra.mxu0 0.0
      %1299 = vmatprep.subr.mxu0 0.0
      %1300 = vmatpush1.xpose.msra.mxu0 0.0
      %1301 = vmatprep.subr.mxu0 0.0
      %1302 = vmatpush1.xpose.msra.mxu0 0.0
      %1303 = vmatprep.subr.mxu0 0.0
      %1304 = vmatpush1.xpose.msra.mxu0 0.0
      %1305 = vmatprep.subr.mxu0 0.0
      %1306 = vmatpush1.xpose.msra.mxu0 0.0
      %1307 = vmatprep.subr.mxu0 0.0
      %1308 = vmatpush1.xpose.msra.mxu0 0.0
      %1309 = vmatprep.subr.mxu0 0.0
      %1310 = vmatpush1.xpose.msra.mxu0 0.0
      %1311 = vmatprep.subr.mxu0 0.0
      %1312 = vmatpush1.xpose.msra.mxu0 0.0
      %1313 = vmatprep.subr.mxu0 0.0
      %1314 = vmatpush1.xpose.msra.mxu0 0.0
      %1315 = vmatprep.subr.mxu0 0.0
      %1316 = vmatpush1.xpose.msra.mxu0 0.0
      %1317 = vmatprep.subr.mxu0 0.0
      %1318 = vmatpush1.xpose.msra.mxu0 0.0
      %1319 = vmatprep.subr.mxu0 0.0
      %1320 = vmatpush1.xpose.msra.mxu0 0.0
      %1321 = vmatprep.mubr.f32.mxu0 0.0
      %1322 = vmatmul.mubr.f32.gmra.mrb[0].mxu0 %v1252
      %v1323 = vpop.f32.mrb[0].mxu0
      %v1324 = vadd.f32 %v1001, %v1323
      %v1325 = vpop.f32.mrb[0].mxu0
      %1326 = vdwg.mxu0
      %v1328 = vlaneseq
      %v1329 = vshrl.u32 %v1328, 7
      %v1330 = vsub.s32 0, %v1329
      %v1331 = vrot.slane %v1002, %v1330
      %v1333 = vadd.f32 %v1324, %v1331
      %v1334 = vsel %vm1250, %v1333, -inf
      %1335 = vmax.xlane.f32.xlu0 %v1334
      %v1336 = vpop.xlane.xlu0 %1335
      %v1337 = vsub.f32 %v1333, %v1336
      %v1338 = vmul.f32 %v1337, 1.442695
      %v1339 = vpow.pop %v1338
      %v1340 = vsel %vm1250, %v1339, 0.0
      %1341 = vadd.xlane.f32.xlu0 %v1340
      %v1342 = vpop.xlane.xlu0 %1341
      %v1343 = vrcp.pop %v1342
      %v1344 = vmul.f32 %v1339, %v1343
      %v1346 = vsel %vm1250, %v1344, 0
      %1348 = vmatprep.subr.mxu0 0.0
      %1349 = vmatpush1.msra.mxu0 %v1247
      %1350 = vmatprep.subr.mxu0 0.0
      %1351 = vmatpush1.msra.mxu0 0.0
      %1352 = vmatprep.subr.mxu0 0.0
      %1353 = vmatpush1.msra.mxu0 0.0
      %1354 = vmatprep.subr.mxu0 0.0
      %1355 = vmatpush1.msra.mxu0 0.0
      %1356 = vmatprep.subr.mxu0 0.0
      %1357 = vmatpush1.msra.mxu0 0.0
      %1358 = vmatprep.subr.mxu0 0.0
      %1359 = vmatpush1.msra.mxu0 0.0
      %1360 = vmatprep.subr.mxu0 0.0
      %1361 = vmatpush1.msra.mxu0 0.0
      %1362 = vmatprep.subr.mxu0 0.0
      %1363 = vmatpush1.msra.mxu0 0.0
      %1364 = vmatprep.subr.mxu0 0.0
      %1365 = vmatpush1.msra.mxu0 0.0
      %1366 = vmatprep.subr.mxu0 0.0
      %1367 = vmatpush1.msra.mxu0 0.0
      %1368 = vmatprep.subr.mxu0 0.0
      %1369 = vmatpush1.msra.mxu0 0.0
      %1370 = vmatprep.subr.mxu0 0.0
      %1371 = vmatpush1.msra.mxu0 0.0
      %1372 = vmatprep.subr.mxu0 0.0
      %1373 = vmatpush1.msra.mxu0 0.0
      %1374 = vmatprep.subr.mxu0 0.0
      %1375 = vmatpush1.msra.mxu0 0.0
      %1376 = vmatprep.subr.mxu0 0.0
      %1377 = vmatpush1.msra.mxu0 0.0
      %1378 = vmatprep.subr.mxu0 0.0
      %1379 = vmatpush1.msra.mxu0 0.0
      %1380 = vmatprep.subr.mxu0 0.0
      %1381 = vmatpush1.msra.mxu0 0.0
      %1382 = vmatprep.subr.mxu0 0.0
      %1383 = vmatpush1.msra.mxu0 0.0
      %1384 = vmatprep.subr.mxu0 0.0
      %1385 = vmatpush1.msra.mxu0 0.0
      %1386 = vmatprep.subr.mxu0 0.0
      %1387 = vmatpush1.msra.mxu0 0.0
      %1388 = vmatprep.subr.mxu0 0.0
      %1389 = vmatpush1.msra.mxu0 0.0
      %1390 = vmatprep.subr.mxu0 0.0
      %1391 = vmatpush1.msra.mxu0 0.0
      %1392 = vmatprep.subr.mxu0 0.0
      %1393 = vmatpush1.msra.mxu0 0.0
      %1394 = vmatprep.subr.mxu0 0.0
      %1395 = vmatpush1.msra.mxu0 0.0
      %1396 = vmatprep.subr.mxu0 0.0
      %1397 = vmatpush1.msra.mxu0 0.0
      %1398 = vmatprep.subr.mxu0 0.0
      %1399 = vmatpush1.msra.mxu0 0.0
      %1400 = vmatprep.subr.mxu0 0.0
      %1401 = vmatpush1.msra.mxu0 0.0
      %1402 = vmatprep.subr.mxu0 0.0
      %1403 = vmatpush1.msra.mxu0 0.0
      %1404 = vmatprep.subr.mxu0 0.0
      %1405 = vmatpush1.msra.mxu0 0.0
      %1406 = vmatprep.subr.mxu0 0.0
      %1407 = vmatpush1.msra.mxu0 0.0
      %1408 = vmatprep.subr.mxu0 0.0
      %1409 = vmatpush1.msra.mxu0 0.0
      %1410 = vmatprep.subr.mxu0 0.0
      %1411 = vmatpush1.msra.mxu0 0.0
      %1412 = vmatprep.mubr.f32.mxu0 0.0
      %1413 = vmatmul.mubr.f32.gmra.mrb[0].mxu0 %v1346
      %v1414 = vpop.f32.mrb[0].mxu0
      %v1415 = vadd.f32 0.0, %v1414
      %v1416 = vpop.f32.mrb[0].mxu0
      %1417 = vdwg.mxu0
      %v1418 = vld [vmem:[%s23] sm:$0xff]
      %s1419 = scalar_lea.vmem %s11, 32
      %v1420 = vld [vmem:[%s1419] sm:$0xff]
      %v1421 = vld [vmem:[%s1419 + $0x8] sm:$0xff]
      %v1422 = vld [vmem:[%s1419 + $0x10] sm:$0xff]
      %v1423 = vld [vmem:[%s1419 + $0x18] sm:$0xff]
      %s1424 = scalar_lea.vmem %s13, 1
      %v1425 = vld [vmem:[%s1424] sm:$0x1]
      %v1427 = vlaneseq
      %v1428 = vshrl.u32 %v1427, 7
      %v1429 = vsub.s32 0, %v1428
      %v1430 = vrot.slane %v1425, %v1429
      %1432 = vmatprep.subr.mxu0 0.0
      %1433 = vmatpush1.msra.mxu0 %v1420
      %1434 = vmatprep.subr.mxu0 0.0
      %1435 = vmatpush1.msra.mxu0 %v1421
      %1436 = vmatprep.subr.mxu0 0.0
      %1437 = vmatpush1.msra.mxu0 %v1422
      %1438 = vmatprep.subr.mxu0 0.0
      %1439 = vmatpush1.msra.mxu0 %v1423
      %1440 = vmatprep.subr.mxu0 0.0
      %1441 = vmatpush1.msra.mxu0 0.0
      %1442 = vmatprep.subr.mxu0 0.0
      %1443 = vmatpush1.msra.mxu0 0.0
      %1444 = vmatprep.subr.mxu0 0.0
      %1445 = vmatpush1.msra.mxu0 0.0
      %1446 = vmatprep.subr.mxu0 0.0
      %1447 = vmatpush1.msra.mxu0 0.0
      %1448 = vmatprep.subr.mxu0 0.0
      %1449 = vmatpush1.msra.mxu0 0.0
      %1450 = vmatprep.subr.mxu0 0.0
      %1451 = vmatpush1.msra.mxu0 0.0
      %1452 = vmatprep.subr.mxu0 0.0
      %1453 = vmatpush1.msra.mxu0 0.0
      %1454 = vmatprep.subr.mxu0 0.0
      %1455 = vmatpush1.msra.mxu0 0.0
      %1456 = vmatprep.subr.mxu0 0.0
      %1457 = vmatpush1.msra.mxu0 0.0
      %1458 = vmatprep.subr.mxu0 0.0
      %1459 = vmatpush1.msra.mxu0 0.0
      %1460 = vmatprep.subr.mxu0 0.0
      %1461 = vmatpush1.msra.mxu0 0.0
      %1462 = vmatprep.subr.mxu0 0.0
      %1463 = vmatpush1.msra.mxu0 0.0
      %1464 = vmatprep.subr.mxu0 0.0
      %1465 = vmatpush1.msra.mxu0 0.0
      %1466 = vmatprep.subr.mxu0 0.0
      %1467 = vmatpush1.msra.mxu0 0.0
      %1468 = vmatprep.subr.mxu0 0.0
      %1469 = vmatpush1.msra.mxu0 0.0
      %1470 = vmatprep.subr.mxu0 0.0
      %1471 = vmatpush1.msra.mxu0 0.0
      %1472 = vmatprep.subr.mxu0 0.0
      %1473 = vmatpush1.msra.mxu0 0.0
      %1474 = vmatprep.subr.mxu0 0.0
      %1475 = vmatpush1.msra.mxu0 0.0
      %1476 = vmatprep.subr.mxu0 0.0
      %1477 = vmatpush1.msra.mxu0 0.0
      %1478 = vmatprep.subr.mxu0 0.0
      %1479 = vmatpush1.msra.mxu0 0.0
      %1480 = vmatprep.subr.mxu0 0.0
      %1481 = vmatpush1.msra.mxu0 0.0
      %1482 = vmatprep.subr.mxu0 0.0
      %1483 = vmatpush1.msra.mxu0 0.0
      %1484 = vmatprep.subr.mxu0 0.0
      %1485 = vmatpush1.msra.mxu0 0.0
      %1486 = vmatprep.subr.mxu0 0.0
      %1487 = vmatpush1.msra.mxu0 0.0
      %1488 = vmatprep.subr.mxu0 0.0
      %1489 = vmatpush1.msra.mxu0 0.0
      %1490 = vmatprep.subr.mxu0 0.0
      %1491 = vmatpush1.msra.mxu0 0.0
      %1492 = vmatprep.subr.mxu0 0.0
      %1493 = vmatpush1.msra.mxu0 0.0
      %1494 = vmatprep.subr.mxu0 0.0
      %1495 = vmatpush1.msra.mxu0 0.0
      %1496 = vmatprep.mubr.f32.mxu0 0.0
      %1497 = vmatmul.mubr.f32.gmra.mrb[0].mxu0 %v1016
      %v1498 = vpop.f32.mrb[0].mxu0
      %v1499 = vadd.f32 %v1430, %v1498
      %v1500 = vpop.f32.mrb[0].mxu0
      %1501 = vdwg.mxu0
      %s1502 = scalar_lea.vmem %s15, 32
      %v1503 = vld [vmem:[%s1502] sm:$0xff]
      %v1504 = vld [vmem:[%s1502 + $0x8] sm:$0xff]
      %v1505 = vld [vmem:[%s1502 + $0x10] sm:$0xff]
      %v1506 = vld [vmem:[%s1502 + $0x18] sm:$0xff]
      %s1507 = scalar_lea.vmem %s17, 1
      %v1508 = vld [vmem:[%s1507] sm:$0x1]
      %v1510 = vlaneseq
      %v1511 = vshrl.u32 %v1510, 7
      %v1512 = vsub.s32 0, %v1511
      %v1513 = vrot.slane %v1508, %v1512
      %1515 = vmatprep.subr.mxu0 0.0
      %1516 = vmatpush1.msra.mxu0 %v1503
      %1517 = vmatprep.subr.mxu0 0.0
      %1518 = vmatpush1.msra.mxu0 %v1504
      %1519 = vmatprep.subr.mxu0 0.0
      %1520 = vmatpush1.msra.mxu0 %v1505
      %1521 = vmatprep.subr.mxu0 0.0
      %1522 = vmatpush1.msra.mxu0 %v1506
      %1523 = vmatprep.subr.mxu0 0.0
      %1524 = vmatpush1.msra.mxu0 0.0
      %1525 = vmatprep.subr.mxu0 0.0
      %1526 = vmatpush1.msra.mxu0 0.0
      %1527 = vmatprep.subr.mxu0 0.0
      %1528 = vmatpush1.msra.mxu0 0.0
      %1529 = vmatprep.subr.mxu0 0.0
      %1530 = vmatpush1.msra.mxu0 0.0
      %1531 = vmatprep.subr.mxu0 0.0
      %1532 = vmatpush1.msra.mxu0 0.0
      %1533 = vmatprep.subr.mxu0 0.0
      %1534 = vmatpush1.msra.mxu0 0.0
      %1535 = vmatprep.subr.mxu0 0.0
      %1536 = vmatpush1.msra.mxu0 0.0
      %1537 = vmatprep.subr.mxu0 0.0
      %1538 = vmatpush1.msra.mxu0 0.0
      %1539 = vmatprep.subr.mxu0 0.0
      %1540 = vmatpush1.msra.mxu0 0.0
      %1541 = vmatprep.subr.mxu0 0.0
      %1542 = vmatpush1.msra.mxu0 0.0
      %1543 = vmatprep.subr.mxu0 0.0
      %1544 = vmatpush1.msra.mxu0 0.0
      %1545 = vmatprep.subr.mxu0 0.0
      %1546 = vmatpush1.msra.mxu0 0.0
      %1547 = vmatprep.subr.mxu0 0.0
      %1548 = vmatpush1.msra.mxu0 0.0
      %1549 = vmatprep.subr.mxu0 0.0
      %1550 = vmatpush1.msra.mxu0 0.0
      %1551 = vmatprep.subr.mxu0 0.0
      %1552 = vmatpush1.msra.mxu0 0.0
      %1553 = vmatprep.subr.mxu0 0.0
      %1554 = vmatpush1.msra.mxu0 0.0
      %1555 = vmatprep.subr.mxu0 0.0
      %1556 = vmatpush1.msra.mxu0 0.0
      %1557 = vmatprep.subr.mxu0 0.0
      %1558 = vmatpush1.msra.mxu0 0.0
      %1559 = vmatprep.subr.mxu0 0.0
      %1560 = vmatpush1.msra.mxu0 0.0
      %1561 = vmatprep.subr.mxu0 0.0
      %1562 = vmatpush1.msra.mxu0 0.0
      %1563 = vmatprep.subr.mxu0 0.0
      %1564 = vmatpush1.msra.mxu0 0.0
      %1565 = vmatprep.subr.mxu0 0.0
      %1566 = vmatpush1.msra.mxu0 0.0
      %1567 = vmatprep.subr.mxu0 0.0
      %1568 = vmatpush1.msra.mxu0 0.0
      %1569 = vmatprep.subr.mxu0 0.0
      %1570 = vmatpush1.msra.mxu0 0.0
      %1571 = vmatprep.subr.mxu0 0.0
      %1572 = vmatpush1.msra.mxu0 0.0
      %1573 = vmatprep.subr.mxu0 0.0
      %1574 = vmatpush1.msra.mxu0 0.0
      %1575 = vmatprep.subr.mxu0 0.0
      %1576 = vmatpush1.msra.mxu0 0.0
      %1577 = vmatprep.subr.mxu0 0.0
      %1578 = vmatpush1.msra.mxu0 0.0
      %1579 = vmatprep.mubr.f32.mxu0 0.0
      %1580 = vmatmul.mubr.f32.gmra.mrb[0].mxu0 %v1016
      %v1581 = vpop.f32.mrb[0].mxu0
      %v1582 = vadd.f32 %v1513, %v1581
      %v1583 = vpop.f32.mrb[0].mxu0
      %1584 = vdwg.mxu0
      %s1585 = scalar_lea.vmem %s19, 32
      %v1586 = vld [vmem:[%s1585] sm:$0xff]
      %v1587 = vld [vmem:[%s1585 + $0x8] sm:$0xff]
      %v1588 = vld [vmem:[%s1585 + $0x10] sm:$0xff]
      %v1589 = vld [vmem:[%s1585 + $0x18] sm:$0xff]
      %s1590 = scalar_lea.vmem %s21, 1
      %v1591 = vld [vmem:[%s1590] sm:$0x1]
      %v1593 = vlaneseq
      %v1594 = vshrl.u32 %v1593, 7
      %v1595 = vsub.s32 0, %v1594
      %v1596 = vrot.slane %v1591, %v1595
      %1598 = vmatprep.subr.mxu0 0.0
      %1599 = vmatpush1.msra.mxu0 %v1586
      %1600 = vmatprep.subr.mxu0 0.0
      %1601 = vmatpush1.msra.mxu0 %v1587
      %1602 = vmatprep.subr.mxu0 0.0
      %1603 = vmatpush1.msra.mxu0 %v1588
      %1604 = vmatprep.subr.mxu0 0.0
      %1605 = vmatpush1.msra.mxu0 %v1589
      %1606 = vmatprep.subr.mxu0 0.0
      %1607 = vmatpush1.msra.mxu0 0.0
      %1608 = vmatprep.subr.mxu0 0.0
      %1609 = vmatpush1.msra.mxu0 0.0
      %1610 = vmatprep.subr.mxu0 0.0
      %1611 = vmatpush1.msra.mxu0 0.0
      %1612 = vmatprep.subr.mxu0 0.0
      %1613 = vmatpush1.msra.mxu0 0.0
      %1614 = vmatprep.subr.mxu0 0.0
      %1615 = vmatpush1.msra.mxu0 0.0
      %1616 = vmatprep.subr.mxu0 0.0
      %1617 = vmatpush1.msra.mxu0 0.0
      %1618 = vmatprep.subr.mxu0 0.0
      %1619 = vmatpush1.msra.mxu0 0.0
      %1620 = vmatprep.subr.mxu0 0.0
      %1621 = vmatpush1.msra.mxu0 0.0
      %1622 = vmatprep.subr.mxu0 0.0
      %1623 = vmatpush1.msra.mxu0 0.0
      %1624 = vmatprep.subr.mxu0 0.0
      %1625 = vmatpush1.msra.mxu0 0.0
      %1626 = vmatprep.subr.mxu0 0.0
      %1627 = vmatpush1.msra.mxu0 0.0
      %1628 = vmatprep.subr.mxu0 0.0
      %1629 = vmatpush1.msra.mxu0 0.0
      %1630 = vmatprep.subr.mxu0 0.0
      %1631 = vmatpush1.msra.mxu0 0.0
      %1632 = vmatprep.subr.mxu0 0.0
      %1633 = vmatpush1.msra.mxu0 0.0
      %1634 = vmatprep.subr.mxu0 0.0
      %1635 = vmatpush1.msra.mxu0 0.0
      %1636 = vmatprep.subr.mxu0 0.0
      %1637 = vmatpush1.msra.mxu0 0.0
      %1638 = vmatprep.subr.mxu0 0.0
      %1639 = vmatpush1.msra.mxu0 0.0
      %1640 = vmatprep.subr.mxu0 0.0
      %1641 = vmatpush1.msra.mxu0 0.0
      %1642 = vmatprep.subr.mxu0 0.0
      %1643 = vmatpush1.msra.mxu0 0.0
      %1644 = vmatprep.subr.mxu0 0.0
      %1645 = vmatpush1.msra.mxu0 0.0
      %1646 = vmatprep.subr.mxu0 0.0
      %1647 = vmatpush1.msra.mxu0 0.0
      %1648 = vmatprep.subr.mxu0 0.0
      %1649 = vmatpush1.msra.mxu0 0.0
      %1650 = vmatprep.subr.mxu0 0.0
      %1651 = vmatpush1.msra.mxu0 0.0
      %1652 = vmatprep.subr.mxu0 0.0
      %1653 = vmatpush1.msra.mxu0 0.0
      %1654 = vmatprep.subr.mxu0 0.0
      %1655 = vmatpush1.msra.mxu0 0.0
      %1656 = vmatprep.subr.mxu0 0.0
      %1657 = vmatpush1.msra.mxu0 0.0
      %1658 = vmatprep.subr.mxu0 0.0
      %1659 = vmatpush1.msra.mxu0 0.0
      %1660 = vmatprep.subr.mxu0 0.0
      %1661 = vmatpush1.msra.mxu0 0.0
      %1662 = vmatprep.mubr.f32.mxu0 0.0
      %1663 = vmatmul.mubr.f32.gmra.mrb[0].mxu0 %v1016
      %v1664 = vpop.f32.mrb[0].mxu0
      %v1665 = vadd.f32 %v1596, %v1664
      %v1666 = vpop.f32.mrb[0].mxu0
      %1667 = vdwg.mxu0
      %v1669 = vsel %vm1250, %v1499, 0
      %v1672 = vsel %vm1250, %v1582, 0
      %1674 = vmatprep.subr.mxu0 0.0
      %1675 = vmatpush1.xpose.msra.mxu0 %v1672
      %1676 = vmatprep.subr.mxu0 0.0
      %1677 = vmatpush1.xpose.msra.mxu0 0.0
      %1678 = vmatprep.subr.mxu0 0.0
      %1679 = vmatpush1.xpose.msra.mxu0 0.0
      %1680 = vmatprep.subr.mxu0 0.0
      %1681 = vmatpush1.xpose.msra.mxu0 0.0
      %1682 = vmatprep.subr.mxu0 0.0
      %1683 = vmatpush1.xpose.msra.mxu0 0.0
      %1684 = vmatprep.subr.mxu0 0.0
      %1685 = vmatpush1.xpose.msra.mxu0 0.0
      %1686 = vmatprep.subr.mxu0 0.0
      %1687 = vmatpush1.xpose.msra.mxu0 0.0
      %1688 = vmatprep.subr.mxu0 0.0
      %1689 = vmatpush1.xpose.msra.mxu0 0.0
      %1690 = vmatprep.subr.mxu0 0.0
      %1691 = vmatpush1.xpose.msra.mxu0 0.0
      %1692 = vmatprep.subr.mxu0 0.0
      %1693 = vmatpush1.xpose.msra.mxu0 0.0
      %1694 = vmatprep.subr.mxu0 0.0
      %1695 = vmatpush1.xpose.msra.mxu0 0.0
      %1696 = vmatprep.subr.mxu0 0.0
      %1697 = vmatpush1.xpose.msra.mxu0 0.0
      %1698 = vmatprep.subr.mxu0 0.0
      %1699 = vmatpush1.xpose.msra.mxu0 0.0
      %1700 = vmatprep.subr.mxu0 0.0
      %1701 = vmatpush1.xpose.msra.mxu0 0.0
      %1702 = vmatprep.subr.mxu0 0.0
      %1703 = vmatpush1.xpose.msra.mxu0 0.0
      %1704 = vmatprep.subr.mxu0 0.0
      %1705 = vmatpush1.xpose.msra.mxu0 0.0
      %1706 = vmatprep.subr.mxu0 0.0
      %1707 = vmatpush1.xpose.msra.mxu0 0.0
      %1708 = vmatprep.subr.mxu0 0.0
      %1709 = vmatpush1.xpose.msra.mxu0 0.0
      %1710 = vmatprep.subr.mxu0 0.0
      %1711 = vmatpush1.xpose.msra.mxu0 0.0
      %1712 = vmatprep.subr.mxu0 0.0
      %1713 = vmatpush1.xpose.msra.mxu0 0.0
      %1714 = vmatprep.subr.mxu0 0.0
      %1715 = vmatpush1.xpose.msra.mxu0 0.0
      %1716 = vmatprep.subr.mxu0 0.0
      %1717 = vmatpush1.xpose.msra.mxu0 0.0
      %1718 = vmatprep.subr.mxu0 0.0
      %1719 = vmatpush1.xpose.msra.mxu0 0.0
      %1720 = vmatprep.subr.mxu0 0.0
      %1721 = vmatpush1.xpose.msra.mxu0 0.0
      %1722 = vmatprep.subr.mxu0 0.0
      %1723 = vmatpush1.xpose.msra.mxu0 0.0
      %1724 = vmatprep.subr.mxu0 0.0
      %1725 = vmatpush1.xpose.msra.mxu0 0.0
      %1726 = vmatprep.subr.mxu0 0.0
      %1727 = vmatpush1.xpose.msra.mxu0 0.0
      %1728 = vmatprep.subr.mxu0 0.0
      %1729 = vmatpush1.xpose.msra.mxu0 0.0
      %1730 = vmatprep.subr.mxu0 0.0
      %1731 = vmatpush1.xpose.msra.mxu0 0.0
      %1732 = vmatprep.subr.mxu0 0.0
      %1733 = vmatpush1.xpose.msra.mxu0 0.0
      %1734 = vmatprep.subr.mxu0 0.0
      %1735 = vmatpush1.xpose.msra.mxu0 0.0
      %1736 = vmatprep.subr.mxu0 0.0
      %1737 = vmatpush1.xpose.msra.mxu0 0.0
      %1738 = vmatprep.mubr.f32.mxu0 0.0
      %1739 = vmatmul.mubr.f32.gmra.mrb[0].mxu0 %v1669
      %v1740 = vpop.f32.mrb[0].mxu0
      %v1741 = vadd.f32 %v1001, %v1740
      %v1742 = vpop.f32.mrb[0].mxu0
      %1743 = vdwg.mxu0
      %v1744 = vadd.f32 %v1741, %v1331
      %v1745 = vsel %vm1250, %v1744, -inf
      %1746 = vmax.xlane.f32.xlu0 %v1745
      %v1747 = vpop.xlane.xlu0 %1746
      %v1748 = vsub.f32 %v1744, %v1747
      %v1749 = vmul.f32 %v1748, 1.442695
      %v1750 = vpow.pop %v1749
      %v1751 = vsel %vm1250, %v1750, 0.0
      %1752 = vadd.xlane.f32.xlu0 %v1751
      %v1753 = vpop.xlane.xlu0 %1752
      %v1754 = vrcp.pop %v1753
      %v1755 = vmul.f32 %v1750, %v1754
      %v1757 = vsel %vm1250, %v1755, 0
      %1759 = vmatprep.subr.mxu0 0.0
      %1760 = vmatpush1.msra.mxu0 %v1665
      %1761 = vmatprep.subr.mxu0 0.0
      %1762 = vmatpush1.msra.mxu0 0.0
      %1763 = vmatprep.subr.mxu0 0.0
      %1764 = vmatpush1.msra.mxu0 0.0
      %1765 = vmatprep.subr.mxu0 0.0
      %1766 = vmatpush1.msra.mxu0 0.0
      %1767 = vmatprep.subr.mxu0 0.0
      %1768 = vmatpush1.msra.mxu0 0.0
      %1769 = vmatprep.subr.mxu0 0.0
      %1770 = vmatpush1.msra.mxu0 0.0
      %1771 = vmatprep.subr.mxu0 0.0
      %1772 = vmatpush1.msra.mxu0 0.0
      %1773 = vmatprep.subr.mxu0 0.0
      %1774 = vmatpush1.msra.mxu0 0.0
      %1775 = vmatprep.subr.mxu0 0.0
      %1776 = vmatpush1.msra.mxu0 0.0
      %1777 = vmatprep.subr.mxu0 0.0
      %1778 = vmatpush1.msra.mxu0 0.0
      %1779 = vmatprep.subr.mxu0 0.0
      %1780 = vmatpush1.msra.mxu0 0.0
      %1781 = vmatprep.subr.mxu0 0.0
      %1782 = vmatpush1.msra.mxu0 0.0
      %1783 = vmatprep.subr.mxu0 0.0
      %1784 = vmatpush1.msra.mxu0 0.0
      %1785 = vmatprep.subr.mxu0 0.0
      %1786 = vmatpush1.msra.mxu0 0.0
      %1787 = vmatprep.subr.mxu0 0.0
      %1788 = vmatpush1.msra.mxu0 0.0
      %1789 = vmatprep.subr.mxu0 0.0
      %1790 = vmatpush1.msra.mxu0 0.0
      %1791 = vmatprep.subr.mxu0 0.0
      %1792 = vmatpush1.msra.mxu0 0.0
      %1793 = vmatprep.subr.mxu0 0.0
      %1794 = vmatpush1.msra.mxu0 0.0
      %1795 = vmatprep.subr.mxu0 0.0
      %1796 = vmatpush1.msra.mxu0 0.0
      %1797 = vmatprep.subr.mxu0 0.0
      %1798 = vmatpush1.msra.mxu0 0.0
      %1799 = vmatprep.subr.mxu0 0.0
      %1800 = vmatpush1.msra.mxu0 0.0
      %1801 = vmatprep.subr.mxu0 0.0
      %1802 = vmatpush1.msra.mxu0 0.0
      %1803 = vmatprep.subr.mxu0 0.0
      %1804 = vmatpush1.msra.mxu0 0.0
      %1805 = vmatprep.subr.mxu0 0.0
      %1806 = vmatpush1.msra.mxu0 0.0
      %1807 = vmatprep.subr.mxu0 0.0
      %1808 = vmatpush1.msra.mxu0 0.0
      %1809 = vmatprep.subr.mxu0 0.0
      %1810 = vmatpush1.msra.mxu0 0.0
      %1811 = vmatprep.subr.mxu0 0.0
      %1812 = vmatpush1.msra.mxu0 0.0
      %1813 = vmatprep.subr.mxu0 0.0
      %1814 = vmatpush1.msra.mxu0 0.0
      %1815 = vmatprep.subr.mxu0 0.0
      %1816 = vmatpush1.msra.mxu0 0.0
      %1817 = vmatprep.subr.mxu0 0.0
      %1818 = vmatpush1.msra.mxu0 0.0
      %1819 = vmatprep.subr.mxu0 0.0
      %1820 = vmatpush1.msra.mxu0 0.0
      %1821 = vmatprep.subr.mxu0 0.0
      %1822 = vmatpush1.msra.mxu0 0.0
      %1823 = vmatprep.mubr.f32.mxu0 0.0
      %1824 = vmatmul.mubr.f32.gmra.mrb[0].mxu0 %v1757
      %v1825 = vpop.f32.mrb[0].mxu0
      %v1826 = vadd.f32 0.0, %v1825
      %v1827 = vpop.f32.mrb[0].mxu0
      %1828 = vdwg.mxu0
      %s1829 = scalar_lea.vmem %s23, 8
      %v1830 = vld [vmem:[%s1829] sm:$0xff]
      %v1832 = vsel %vm1250, %v1826, 0
      %1834 = vmatprep.subr.mxu0 0.0
      %1835 = vmatpush1.msra.mxu0 %v1830
      %1836 = vmatprep.subr.mxu0 0.0
      %1837 = vmatpush1.msra.mxu0 0.0
      %1838 = vmatprep.subr.mxu0 0.0
      %1839 = vmatpush1.msra.mxu0 0.0
      %1840 = vmatprep.subr.mxu0 0.0
      %1841 = vmatpush1.msra.mxu0 0.0
      %1842 = vmatprep.subr.mxu0 0.0
      %1843 = vmatpush1.msra.mxu0 0.0
      %1844 = vmatprep.subr.mxu0 0.0
      %1845 = vmatpush1.msra.mxu0 0.0
      %1846 = vmatprep.subr.mxu0 0.0
      %1847 = vmatpush1.msra.mxu0 0.0
      %1848 = vmatprep.subr.mxu0 0.0
      %1849 = vmatpush1.msra.mxu0 0.0
      %1850 = vmatprep.subr.mxu0 0.0
      %1851 = vmatpush1.msra.mxu0 0.0
      %1852 = vmatprep.subr.mxu0 0.0
      %1853 = vmatpush1.msra.mxu0 0.0
      %1854 = vmatprep.subr.mxu0 0.0
      %1855 = vmatpush1.msra.mxu0 0.0
      %1856 = vmatprep.subr.mxu0 0.0
      %1857 = vmatpush1.msra.mxu0 0.0
      %1858 = vmatprep.subr.mxu0 0.0
      %1859 = vmatpush1.msra.mxu0 0.0
      %1860 = vmatprep.subr.mxu0 0.0
      %1861 = vmatpush1.msra.mxu0 0.0
      %1862 = vmatprep.subr.mxu0 0.0
      %1863 = vmatpush1.msra.mxu0 0.0
      %1864 = vmatprep.subr.mxu0 0.0
      %1865 = vmatpush1.msra.mxu0 0.0
      %1866 = vmatprep.subr.mxu0 0.0
      %1867 = vmatpush1.msra.mxu0 0.0
      %1868 = vmatprep.subr.mxu0 0.0
      %1869 = vmatpush1.msra.mxu0 0.0
      %1870 = vmatprep.subr.mxu0 0.0
      %1871 = vmatpush1.msra.mxu0 0.0
      %1872 = vmatprep.subr.mxu0 0.0
      %1873 = vmatpush1.msra.mxu0 0.0
      %1874 = vmatprep.subr.mxu0 0.0
      %1875 = vmatpush1.msra.mxu0 0.0
      %1876 = vmatprep.subr.mxu0 0.0
      %1877 = vmatpush1.msra.mxu0 0.0
      %1878 = vmatprep.subr.mxu0 0.0
      %1879 = vmatpush1.msra.mxu0 0.0
      %1880 = vmatprep.subr.mxu0 0.0
      %1881 = vmatpush1.msra.mxu0 0.0
      %1882 = vmatprep.subr.mxu0 0.0
      %1883 = vmatpush1.msra.mxu0 0.0
      %1884 = vmatprep.subr.mxu0 0.0
      %1885 = vmatpush1.msra.mxu0 0.0
      %1886 = vmatprep.subr.mxu0 0.0
      %1887 = vmatpush1.msra.mxu0 0.0
      %1888 = vmatprep.subr.mxu0 0.0
      %1889 = vmatpush1.msra.mxu0 0.0
      %1890 = vmatprep.subr.mxu0 0.0
      %1891 = vmatpush1.msra.mxu0 0.0
      %1892 = vmatprep.subr.mxu0 0.0
      %1893 = vmatpush1.msra.mxu0 0.0
      %1894 = vmatprep.subr.mxu0 0.0
      %1895 = vmatpush1.msra.mxu0 0.0
      %1896 = vmatprep.subr.mxu0 0.0
      %1897 = vmatpush1.msra.mxu0 0.0
      %1898 = vmatprep.mubr.f32.mxu0 0.0
      %1899 = vmatmul.mubr.f32.gmra.mrb[0].mxu0 %v1832
      %v1900 = vpop.f32.mrb[0].mxu0
      %v1901 = vadd.f32 0.0, %v1900
      %v1902 = vpop.f32.mrb[0].mxu0
      %1903 = vdwg.mxu0
      %v1905 = vsel %vm1250, %v1415, 0
      %1907 = vmatprep.subr.mxu0 0.0
      %1908 = vmatpush1.msra.mxu0 %v1418
      %1909 = vmatprep.subr.mxu0 0.0
      %1910 = vmatpush1.msra.mxu0 0.0
      %1911 = vmatprep.subr.mxu0 0.0
      %1912 = vmatpush1.msra.mxu0 0.0
      %1913 = vmatprep.subr.mxu0 0.0
      %1914 = vmatpush1.msra.mxu0 0.0
      %1915 = vmatprep.subr.mxu0 0.0
      %1916 = vmatpush1.msra.mxu0 0.0
      %1917 = vmatprep.subr.mxu0 0.0
      %1918 = vmatpush1.msra.mxu0 0.0
      %1919 = vmatprep.subr.mxu0 0.0
      %1920 = vmatpush1.msra.mxu0 0.0
      %1921 = vmatprep.subr.mxu0 0.0
      %1922 = vmatpush1.msra.mxu0 0.0
      %1923 = vmatprep.subr.mxu0 0.0
      %1924 = vmatpush1.msra.mxu0 0.0
      %1925 = vmatprep.subr.mxu0 0.0
      %1926 = vmatpush1.msra.mxu0 0.0
      %1927 = vmatprep.subr.mxu0 0.0
      %1928 = vmatpush1.msra.mxu0 0.0
      %1929 = vmatprep.subr.mxu0 0.0
      %1930 = vmatpush1.msra.mxu0 0.0
      %1931 = vmatprep.subr.mxu0 0.0
      %1932 = vmatpush1.msra.mxu0 0.0
      %1933 = vmatprep.subr.mxu0 0.0
      %1934 = vmatpush1.msra.mxu0 0.0
      %1935 = vmatprep.subr.mxu0 0.0
      %1936 = vmatpush1.msra.mxu0 0.0
      %1937 = vmatprep.subr.mxu0 0.0
      %1938 = vmatpush1.msra.mxu0 0.0
      %1939 = vmatprep.subr.mxu0 0.0
      %1940 = vmatpush1.msra.mxu0 0.0
      %1941 = vmatprep.subr.mxu0 0.0
      %1942 = vmatpush1.msra.mxu0 0.0
      %1943 = vmatprep.subr.mxu0 0.0
      %1944 = vmatpush1.msra.mxu0 0.0
      %1945 = vmatprep.subr.mxu0 0.0
      %1946 = vmatpush1.msra.mxu0 0.0
      %1947 = vmatprep.subr.mxu0 0.0
      %1948 = vmatpush1.msra.mxu0 0.0
      %1949 = vmatprep.subr.mxu0 0.0
      %1950 = vmatpush1.msra.mxu0 0.0
      %1951 = vmatprep.subr.mxu0 0.0
      %1952 = vmatpush1.msra.mxu0 0.0
      %1953 = vmatprep.subr.mxu0 0.0
      %1954 = vmatpush1.msra.mxu0 0.0
      %1955 = vmatprep.subr.mxu0 0.0
      %1956 = vmatpush1.msra.mxu0 0.0
      %1957 = vmatprep.subr.mxu0 0.0
      %1958 = vmatpush1.msra.mxu0 0.0
      %1959 = vmatprep.subr.mxu0 0.0
      %1960 = vmatpush1.msra.mxu0 0.0
      %1961 = vmatprep.subr.mxu0 0.0
      %1962 = vmatpush1.msra.mxu0 0.0
      %1963 = vmatprep.subr.mxu0 0.0
      %1964 = vmatpush1.msra.mxu0 0.0
      %1965 = vmatprep.subr.mxu0 0.0
      %1966 = vmatpush1.msra.mxu0 0.0
      %1967 = vmatprep.subr.mxu0 0.0
      %1968 = vmatpush1.msra.mxu0 0.0
      %1969 = vmatprep.subr.mxu0 0.0
      %1970 = vmatpush1.msra.mxu0 0.0
      %1971 = vmatprep.mubr.f32.mxu0 0.0
      %1972 = vmatmul.mubr.f32.gmra.mrb[0].mxu0 %v1905
      %v1973 = vpop.f32.mrb[0].mxu0
      %v1974 = vadd.f32 %v1901, %v1973
      %v1975 = vpop.f32.mrb[0].mxu0
      %1976 = vdwg.mxu0
      %s1977 = scalar_lea.vmem %s11, 64
      %v1978 = vld [vmem:[%s1977] sm:$0xff]
      %v1979 = vld [vmem:[%s1977 + $0x8] sm:$0xff]
      %v1980 = vld [vmem:[%s1977 + $0x10] sm:$0xff]
      %v1981 = vld [vmem:[%s1977 + $0x18] sm:$0xff]
      %s1982 = scalar_lea.vmem %s13, 2
      %v1983 = vld [vmem:[%s1982] sm:$0x1]
      %v1985 = vlaneseq
      %v1986 = vshrl.u32 %v1985, 7
      %v1987 = vsub.s32 0, %v1986
      %v1988 = vrot.slane %v1983, %v1987
      %1990 = vmatprep.subr.mxu0 0.0
      %1991 = vmatpush1.msra.mxu0 %v1978
      %1992 = vmatprep.subr.mxu0 0.0
      %1993 = vmatpush1.msra.mxu0 %v1979
      %1994 = vmatprep.subr.mxu0 0.0
      %1995 = vmatpush1.msra.mxu0 %v1980
      %1996 = vmatprep.subr.mxu0 0.0
      %1997 = vmatpush1.msra.mxu0 %v1981
      %1998 = vmatprep.subr.mxu0 0.0
      %1999 = vmatpush1.msra.mxu0 0.0
      %2000 = vmatprep.subr.mxu0 0.0
      %2001 = vmatpush1.msra.mxu0 0.0
      %2002 = vmatprep.subr.mxu0 0.0
      %2003 = vmatpush1.msra.mxu0 0.0
      %2004 = vmatprep.subr.mxu0 0.0
      %2005 = vmatpush1.msra.mxu0 0.0
      %2006 = vmatprep.subr.mxu0 0.0
      %2007 = vmatpush1.msra.mxu0 0.0
      %2008 = vmatprep.subr.mxu0 0.0
      %2009 = vmatpush1.msra.mxu0 0.0
      %2010 = vmatprep.subr.mxu0 0.0
      %2011 = vmatpush1.msra.mxu0 0.0
      %2012 = vmatprep.subr.mxu0 0.0
      %2013 = vmatpush1.msra.mxu0 0.0
      %2014 = vmatprep.subr.mxu0 0.0
      %2015 = vmatpush1.msra.mxu0 0.0
      %2016 = vmatprep.subr.mxu0 0.0
      %2017 = vmatpush1.msra.mxu0 0.0
      %2018 = vmatprep.subr.mxu0 0.0
      %2019 = vmatpush1.msra.mxu0 0.0
      %2020 = vmatprep.subr.mxu0 0.0
      %2021 = vmatpush1.msra.mxu0 0.0
      %2022 = vmatprep.subr.mxu0 0.0
      %2023 = vmatpush1.msra.mxu0 0.0
      %2024 = vmatprep.subr.mxu0 0.0
      %2025 = vmatpush1.msra.mxu0 0.0
      %2026 = vmatprep.subr.mxu0 0.0
      %2027 = vmatpush1.msra.mxu0 0.0
      %2028 = vmatprep.subr.mxu0 0.0
      %2029 = vmatpush1.msra.mxu0 0.0
      %2030 = vmatprep.subr.mxu0 0.0
      %2031 = vmatpush1.msra.mxu0 0.0
      %2032 = vmatprep.subr.mxu0 0.0
      %2033 = vmatpush1.msra.mxu0 0.0
      %2034 = vmatprep.subr.mxu0 0.0
      %2035 = vmatpush1.msra.mxu0 0.0
      %2036 = vmatprep.subr.mxu0 0.0
      %2037 = vmatpush1.msra.mxu0 0.0
      %2038 = vmatprep.subr.mxu0 0.0
      %2039 = vmatpush1.msra.mxu0 0.0
      %2040 = vmatprep.subr.mxu0 0.0
      %2041 = vmatpush1.msra.mxu0 0.0
      %2042 = vmatprep.subr.mxu0 0.0
      %2043 = vmatpush1.msra.mxu0 0.0
      %2044 = vmatprep.subr.mxu0 0.0
      %2045 = vmatpush1.msra.mxu0 0.0
      %2046 = vmatprep.subr.mxu0 0.0
      %2047 = vmatpush1.msra.mxu0 0.0
      %2048 = vmatprep.subr.mxu0 0.0
      %2049 = vmatpush1.msra.mxu0 0.0
      %2050 = vmatprep.subr.mxu0 0.0
      %2051 = vmatpush1.msra.mxu0 0.0
      %2052 = vmatprep.subr.mxu0 0.0
      %2053 = vmatpush1.msra.mxu0 0.0
      %2054 = vmatprep.mubr.f32.mxu0 0.0
      %2055 = vmatmul.mubr.f32.gmra.mrb[0].mxu0 %v1016
      %v2056 = vpop.f32.mrb[0].mxu0
      %v2057 = vadd.f32 %v1988, %v2056
      %v2058 = vpop.f32.mrb[0].mxu0
      %2059 = vdwg.mxu0
      %s2060 = scalar_lea.vmem %s15, 64
      %v2061 = vld [vmem:[%s2060] sm:$0xff]
      %v2062 = vld [vmem:[%s2060 + $0x8] sm:$0xff]
      %v2063 = vld [vmem:[%s2060 + $0x10] sm:$0xff]
      %v2064 = vld [vmem:[%s2060 + $0x18] sm:$0xff]
      %s2065 = scalar_lea.vmem %s17, 2
      %v2066 = vld [vmem:[%s2065] sm:$0x1]
      %v2068 = vlaneseq
      %v2069 = vshrl.u32 %v2068, 7
      %v2070 = vsub.s32 0, %v2069
      %v2071 = vrot.slane %v2066, %v2070
      %2073 = vmatprep.subr.mxu0 0.0
      %2074 = vmatpush1.msra.mxu0 %v2061
      %2075 = vmatprep.subr.mxu0 0.0
      %2076 = vmatpush1.msra.mxu0 %v2062
      %2077 = vmatprep.subr.mxu0 0.0
      %2078 = vmatpush1.msra.mxu0 %v2063
      %2079 = vmatprep.subr.mxu0 0.0
      %2080 = vmatpush1.msra.mxu0 %v2064
      %2081 = vmatprep.subr.mxu0 0.0
      %2082 = vmatpush1.msra.mxu0 0.0
      %2083 = vmatprep.subr.mxu0 0.0
      %2084 = vmatpush1.msra.mxu0 0.0
      %2085 = vmatprep.subr.mxu0 0.0
      %2086 = vmatpush1.msra.mxu0 0.0
      %2087 = vmatprep.subr.mxu0 0.0
      %2088 = vmatpush1.msra.mxu0 0.0
      %2089 = vmatprep.subr.mxu0 0.0
      %2090 = vmatpush1.msra.mxu0 0.0
      %2091 = vmatprep.subr.mxu0 0.0
      %2092 = vmatpush1.msra.mxu0 0.0
      %2093 = vmatprep.subr.mxu0 0.0
      %2094 = vmatpush1.msra.mxu0 0.0
      %2095 = vmatprep.subr.mxu0 0.0
      %2096 = vmatpush1.msra.mxu0 0.0
      %2097 = vmatprep.subr.mxu0 0.0
      %2098 = vmatpush1.msra.mxu0 0.0
      %2099 = vmatprep.subr.mxu0 0.0
      %2100 = vmatpush1.msra.mxu0 0.0
      %2101 = vmatprep.subr.mxu0 0.0
      %2102 = vmatpush1.msra.mxu0 0.0
      %2103 = vmatprep.subr.mxu0 0.0
      %2104 = vmatpush1.msra.mxu0 0.0
      %2105 = vmatprep.subr.mxu0 0.0
      %2106 = vmatpush1.msra.mxu0 0.0
      %2107 = vmatprep.subr.mxu0 0.0
      %2108 = vmatpush1.msra.mxu0 0.0
      %2109 = vmatprep.subr.mxu0 0.0
      %2110 = vmatpush1.msra.mxu0 0.0
      %2111 = vmatprep.subr.mxu0 0.0
      %2112 = vmatpush1.msra.mxu0 0.0
      %2113 = vmatprep.subr.mxu0 0.0
      %2114 = vmatpush1.msra.mxu0 0.0
      %2115 = vmatprep.subr.mxu0 0.0
      %2116 = vmatpush1.msra.mxu0 0.0
      %2117 = vmatprep.subr.mxu0 0.0
      %2118 = vmatpush1.msra.mxu0 0.0
      %2119 = vmatprep.subr.mxu0 0.0
      %2120 = vmatpush1.msra.mxu0 0.0
      %2121 = vmatprep.subr.mxu0 0.0
      %2122 = vmatpush1.msra.mxu0 0.0
      %2123 = vmatprep.subr.mxu0 0.0
      %2124 = vmatpush1.msra.mxu0 0.0
      %2125 = vmatprep.subr.mxu0 0.0
      %2126 = vmatpush1.msra.mxu0 0.0
      %2127 = vmatprep.subr.mxu0 0.0
      %2128 = vmatpush1.msra.mxu0 0.0
      %2129 = vmatprep.subr.mxu0 0.0
      %2130 = vmatpush1.msra.mxu0 0.0
      %2131 = vmatprep.subr.mxu0 0.0
      %2132 = vmatpush1.msra.mxu0 0.0
      %2133 = vmatprep.subr.mxu0 0.0
      %2134 = vmatpush1.msra.mxu0 0.0
      %2135 = vmatprep.subr.mxu0 0.0
      %2136 = vmatpush1.msra.mxu0 0.0
      %2137 = vmatprep.mubr.f32.mxu0 0.0
      %2138 = vmatmul.mubr.f32.gmra.mrb[0].mxu0 %v1016
      %v2139 = vpop.f32.mrb[0].mxu0
      %v2140 = vadd.f32 %v2071, %v2139
      %v2141 = vpop.f32.mrb[0].mxu0
      %2142 = vdwg.mxu0
      %s2143 = scalar_lea.vmem %s19, 64
      %v2144 = vld [vmem:[%s2143] sm:$0xff]
      %v2145 = vld [vmem:[%s2143 + $0x8] sm:$0xff]
      %v2146 = vld [vmem:[%s2143 + $0x10] sm:$0xff]
      %v2147 = vld [vmem:[%s2143 + $0x18] sm:$0xff]
      %s2148 = scalar_lea.vmem %s21, 2
      %v2149 = vld [vmem:[%s2148] sm:$0x1]
      %v2151 = vlaneseq
      %v2152 = vshrl.u32 %v2151, 7
      %v2153 = vsub.s32 0, %v2152
      %v2154 = vrot.slane %v2149, %v2153
      %2156 = vmatprep.subr.mxu0 0.0
      %2157 = vmatpush1.msra.mxu0 %v2144
      %2158 = vmatprep.subr.mxu0 0.0
      %2159 = vmatpush1.msra.mxu0 %v2145
      %2160 = vmatprep.subr.mxu0 0.0
      %2161 = vmatpush1.msra.mxu0 %v2146
      %2162 = vmatprep.subr.mxu0 0.0
      %2163 = vmatpush1.msra.mxu0 %v2147
      %2164 = vmatprep.subr.mxu0 0.0
      %2165 = vmatpush1.msra.mxu0 0.0
      %2166 = vmatprep.subr.mxu0 0.0
      %2167 = vmatpush1.msra.mxu0 0.0
      %2168 = vmatprep.subr.mxu0 0.0
      %2169 = vmatpush1.msra.mxu0 0.0
      %2170 = vmatprep.subr.mxu0 0.0
      %2171 = vmatpush1.msra.mxu0 0.0
      %2172 = vmatprep.subr.mxu0 0.0
      %2173 = vmatpush1.msra.mxu0 0.0
      %2174 = vmatprep.subr.mxu0 0.0
      %2175 = vmatpush1.msra.mxu0 0.0
      %2176 = vmatprep.subr.mxu0 0.0
      %2177 = vmatpush1.msra.mxu0 0.0
      %2178 = vmatprep.subr.mxu0 0.0
      %2179 = vmatpush1.msra.mxu0 0.0
      %2180 = vmatprep.subr.mxu0 0.0
      %2181 = vmatpush1.msra.mxu0 0.0
      %2182 = vmatprep.subr.mxu0 0.0
      %2183 = vmatpush1.msra.mxu0 0.0
      %2184 = vmatprep.subr.mxu0 0.0
      %2185 = vmatpush1.msra.mxu0 0.0
      %2186 = vmatprep.subr.mxu0 0.0
      %2187 = vmatpush1.msra.mxu0 0.0
      %2188 = vmatprep.subr.mxu0 0.0
      %2189 = vmatpush1.msra.mxu0 0.0
      %2190 = vmatprep.subr.mxu0 0.0
      %2191 = vmatpush1.msra.mxu0 0.0
      %2192 = vmatprep.subr.mxu0 0.0
      %2193 = vmatpush1.msra.mxu0 0.0
      %2194 = vmatprep.subr.mxu0 0.0
      %2195 = vmatpush1.msra.mxu0 0.0
      %2196 = vmatprep.subr.mxu0 0.0
      %2197 = vmatpush1.msra.mxu0 0.0
      %2198 = vmatprep.subr.mxu0 0.0
      %2199 = vmatpush1.msra.mxu0 0.0
      %2200 = vmatprep.subr.mxu0 0.0
      %2201 = vmatpush1.msra.mxu0 0.0
      %2202 = vmatprep.subr.mxu0 0.0
      %2203 = vmatpush1.msra.mxu0 0.0
      %2204 = vmatprep.subr.mxu0 0.0
      %2205 = vmatpush1.msra.mxu0 0.0
      %2206 = vmatprep.subr.mxu0 0.0
      %2207 = vmatpush1.msra.mxu0 0.0
      %2208 = vmatprep.subr.mxu0 0.0
      %2209 = vmatpush1.msra.mxu0 0.0
      %2210 = vmatprep.subr.mxu0 0.0
      %2211 = vmatpush1.msra.mxu0 0.0
      %2212 = vmatprep.subr.mxu0 0.0
      %2213 = vmatpush1.msra.mxu0 0.0
      %2214 = vmatprep.subr.mxu0 0.0
      %2215 = vmatpush1.msra.mxu0 0.0
      %2216 = vmatprep.subr.mxu0 0.0
      %2217 = vmatpush1.msra.mxu0 0.0
      %2218 = vmatprep.subr.mxu0 0.0
      %2219 = vmatpush1.msra.mxu0 0.0
      %2220 = vmatprep.mubr.f32.mxu0 0.0
      %2221 = vmatmul.mubr.f32.gmra.mrb[0].mxu0 %v1016
      %v2222 = vpop.f32.mrb[0].mxu0
      %v2223 = vadd.f32 %v2154, %v2222
      %v2224 = vpop.f32.mrb[0].mxu0
      %2225 = vdwg.mxu0
      %v2227 = vsel %vm1250, %v2057, 0
      %v2230 = vsel %vm1250, %v2140, 0
      %2232 = vmatprep.subr.mxu0 0.0
      %2233 = vmatpush1.xpose.msra.mxu0 %v2230
      %2234 = vmatprep.subr.mxu0 0.0
      %2235 = vmatpush1.xpose.msra.mxu0 0.0
      %2236 = vmatprep.subr.mxu0 0.0
      %2237 = vmatpush1.xpose.msra.mxu0 0.0
      %2238 = vmatprep.subr.mxu0 0.0
      %2239 = vmatpush1.xpose.msra.mxu0 0.0
      %2240 = vmatprep.subr.mxu0 0.0
      %2241 = vmatpush1.xpose.msra.mxu0 0.0
      %2242 = vmatprep.subr.mxu0 0.0
      %2243 = vmatpush1.xpose.msra.mxu0 0.0
      %2244 = vmatprep.subr.mxu0 0.0
      %2245 = vmatpush1.xpose.msra.mxu0 0.0
      %2246 = vmatprep.subr.mxu0 0.0
      %2247 = vmatpush1.xpose.msra.mxu0 0.0
      %2248 = vmatprep.subr.mxu0 0.0
      %2249 = vmatpush1.xpose.msra.mxu0 0.0
      %2250 = vmatprep.subr.mxu0 0.0
      %2251 = vmatpush1.xpose.msra.mxu0 0.0
      %2252 = vmatprep.subr.mxu0 0.0
      %2253 = vmatpush1.xpose.msra.mxu0 0.0
      %2254 = vmatprep.subr.mxu0 0.0
      %2255 = vmatpush1.xpose.msra.mxu0 0.0
      %2256 = vmatprep.subr.mxu0 0.0
      %2257 = vmatpush1.xpose.msra.mxu0 0.0
      %2258 = vmatprep.subr.mxu0 0.0
      %2259 = vmatpush1.xpose.msra.mxu0 0.0
      %2260 = vmatprep.subr.mxu0 0.0
      %2261 = vmatpush1.xpose.msra.mxu0 0.0
      %2262 = vmatprep.subr.mxu0 0.0
      %2263 = vmatpush1.xpose.msra.mxu0 0.0
      %2264 = vmatprep.subr.mxu0 0.0
      %2265 = vmatpush1.xpose.msra.mxu0 0.0
      %2266 = vmatprep.subr.mxu0 0.0
      %2267 = vmatpush1.xpose.msra.mxu0 0.0
      %2268 = vmatprep.subr.mxu0 0.0
      %2269 = vmatpush1.xpose.msra.mxu0 0.0
      %2270 = vmatprep.subr.mxu0 0.0
      %2271 = vmatpush1.xpose.msra.mxu0 0.0
      %2272 = vmatprep.subr.mxu0 0.0
      %2273 = vmatpush1.xpose.msra.mxu0 0.0
      %2274 = vmatprep.subr.mxu0 0.0
      %2275 = vmatpush1.xpose.msra.mxu0 0.0
      %2276 = vmatprep.subr.mxu0 0.0
      %2277 = vmatpush1.xpose.msra.mxu0 0.0
      %2278 = vmatprep.subr.mxu0 0.0
      %2279 = vmatpush1.xpose.msra.mxu0 0.0
      %2280 = vmatprep.subr.mxu0 0.0
      %2281 = vmatpush1.xpose.msra.mxu0 0.0
      %2282 = vmatprep.subr.mxu0 0.0
      %2283 = vmatpush1.xpose.msra.mxu0 0.0
      %2284 = vmatprep.subr.mxu0 0.0
      %2285 = vmatpush1.xpose.msra.mxu0 0.0
      %2286 = vmatprep.subr.mxu0 0.0
      %2287 = vmatpush1.xpose.msra.mxu0 0.0
      %2288 = vmatprep.subr.mxu0 0.0
      %2289 = vmatpush1.xpose.msra.mxu0 0.0
      %2290 = vmatprep.subr.mxu0 0.0
      %2291 = vmatpush1.xpose.msra.mxu0 0.0
      %2292 = vmatprep.subr.mxu0 0.0
      %2293 = vmatpush1.xpose.msra.mxu0 0.0
      %2294 = vmatprep.subr.mxu0 0.0
      %2295 = vmatpush1.xpose.msra.mxu0 0.0
      %2296 = vmatprep.mubr.f32.mxu0 0.0
      %2297 = vmatmul.mubr.f32.gmra.mrb[0].mxu0 %v2227
      %v2298 = vpop.f32.mrb[0].mxu0
      %v2299 = vadd.f32 %v1001, %v2298
      %v2300 = vpop.f32.mrb[0].mxu0
      %2301 = vdwg.mxu0
      %v2302 = vadd.f32 %v2299, %v1331
      %v2303 = vsel %vm1250, %v2302, -inf
      %2304 = vmax.xlane.f32.xlu0 %v2303
      %v2305 = vpop.xlane.xlu0 %2304
      %v2306 = vsub.f32 %v2302, %v2305
      %v2307 = vmul.f32 %v2306, 1.442695
      %v2308 = vpow.pop %v2307
      %v2309 = vsel %vm1250, %v2308, 0.0
      %2310 = vadd.xlane.f32.xlu0 %v2309
      %v2311 = vpop.xlane.xlu0 %2310
      %v2312 = vrcp.pop %v2311
      %v2313 = vmul.f32 %v2308, %v2312
      %v2315 = vsel %vm1250, %v2313, 0
      %2317 = vmatprep.subr.mxu0 0.0
      %2318 = vmatpush1.msra.mxu0 %v2223
      %2319 = vmatprep.subr.mxu0 0.0
      %2320 = vmatpush1.msra.mxu0 0.0
      %2321 = vmatprep.subr.mxu0 0.0
      %2322 = vmatpush1.msra.mxu0 0.0
      %2323 = vmatprep.subr.mxu0 0.0
      %2324 = vmatpush1.msra.mxu0 0.0
      %2325 = vmatprep.subr.mxu0 0.0
      %2326 = vmatpush1.msra.mxu0 0.0
      %2327 = vmatprep.subr.mxu0 0.0
      %2328 = vmatpush1.msra.mxu0 0.0
      %2329 = vmatprep.subr.mxu0 0.0
      %2330 = vmatpush1.msra.mxu0 0.0
      %2331 = vmatprep.subr.mxu0 0.0
      %2332 = vmatpush1.msra.mxu0 0.0
      %2333 = vmatprep.subr.mxu0 0.0
      %2334 = vmatpush1.msra.mxu0 0.0
      %2335 = vmatprep.subr.mxu0 0.0
      %2336 = vmatpush1.msra.mxu0 0.0
      %2337 = vmatprep.subr.mxu0 0.0
      %2338 = vmatpush1.msra.mxu0 0.0
      %2339 = vmatprep.subr.mxu0 0.0
      %2340 = vmatpush1.msra.mxu0 0.0
      %2341 = vmatprep.subr.mxu0 0.0
      %2342 = vmatpush1.msra.mxu0 0.0
      %2343 = vmatprep.subr.mxu0 0.0
      %2344 = vmatpush1.msra.mxu0 0.0
      %2345 = vmatprep.subr.mxu0 0.0
      %2346 = vmatpush1.msra.mxu0 0.0
      %2347 = vmatprep.subr.mxu0 0.0
      %2348 = vmatpush1.msra.mxu0 0.0
      %2349 = vmatprep.subr.mxu0 0.0
      %2350 = vmatpush1.msra.mxu0 0.0
      %2351 = vmatprep.subr.mxu0 0.0
      %2352 = vmatpush1.msra.mxu0 0.0
      %2353 = vmatprep.subr.mxu0 0.0
      %2354 = vmatpush1.msra.mxu0 0.0
      %2355 = vmatprep.subr.mxu0 0.0
      %2356 = vmatpush1.msra.mxu0 0.0
      %2357 = vmatprep.subr.mxu0 0.0
      %2358 = vmatpush1.msra.mxu0 0.0
      %2359 = vmatprep.subr.mxu0 0.0
      %2360 = vmatpush1.msra.mxu0 0.0
      %2361 = vmatprep.subr.mxu0 0.0
      %2362 = vmatpush1.msra.mxu0 0.0
      %2363 = vmatprep.subr.mxu0 0.0
      %2364 = vmatpush1.msra.mxu0 0.0
      %2365 = vmatprep.subr.mxu0 0.0
      %2366 = vmatpush1.msra.mxu0 0.0
      %2367 = vmatprep.subr.mxu0 0.0
      %2368 = vmatpush1.msra.mxu0 0.0
      %2369 = vmatprep.subr.mxu0 0.0
      %2370 = vmatpush1.msra.mxu0 0.0
      %2371 = vmatprep.subr.mxu0 0.0
      %2372 = vmatpush1.msra.mxu0 0.0
      %2373 = vmatprep.subr.mxu0 0.0
      %2374 = vmatpush1.msra.mxu0 0.0
      %2375 = vmatprep.subr.mxu0 0.0
      %2376 = vmatpush1.msra.mxu0 0.0
      %2377 = vmatprep.subr.mxu0 0.0
      %2378 = vmatpush1.msra.mxu0 0.0
      %2379 = vmatprep.subr.mxu0 0.0
      %2380 = vmatpush1.msra.mxu0 0.0
      %2381 = vmatprep.mubr.f32.mxu0 0.0
      %2382 = vmatmul.mubr.f32.gmra.mrb[0].mxu0 %v2315
      %v2383 = vpop.f32.mrb[0].mxu0
      %v2384 = vadd.f32 0.0, %v2383
      %v2385 = vpop.f32.mrb[0].mxu0
      %2386 = vdwg.mxu0
      %s2387 = scalar_lea.vmem %s23, 16
      %v2388 = vld [vmem:[%s2387] sm:$0xff]
      %v2390 = vsel %vm1250, %v2384, 0
      %2392 = vmatprep.subr.mxu0 0.0
      %2393 = vmatpush1.msra.mxu0 %v2388
      %2394 = vmatprep.subr.mxu0 0.0
      %2395 = vmatpush1.msra.mxu0 0.0
      %2396 = vmatprep.subr.mxu0 0.0
      %2397 = vmatpush1.msra.mxu0 0.0
      %2398 = vmatprep.subr.mxu0 0.0
      %2399 = vmatpush1.msra.mxu0 0.0
      %2400 = vmatprep.subr.mxu0 0.0
      %2401 = vmatpush1.msra.mxu0 0.0
      %2402 = vmatprep.subr.mxu0 0.0
      %2403 = vmatpush1.msra.mxu0 0.0
      %2404 = vmatprep.subr.mxu0 0.0
      %2405 = vmatpush1.msra.mxu0 0.0
      %2406 = vmatprep.subr.mxu0 0.0
      %2407 = vmatpush1.msra.mxu0 0.0
      %2408 = vmatprep.subr.mxu0 0.0
      %2409 = vmatpush1.msra.mxu0 0.0
      %2410 = vmatprep.subr.mxu0 0.0
      %2411 = vmatpush1.msra.mxu0 0.0
      %2412 = vmatprep.subr.mxu0 0.0
      %2413 = vmatpush1.msra.mxu0 0.0
      %2414 = vmatprep.subr.mxu0 0.0
      %2415 = vmatpush1.msra.mxu0 0.0
      %2416 = vmatprep.subr.mxu0 0.0
      %2417 = vmatpush1.msra.mxu0 0.0
      %2418 = vmatprep.subr.mxu0 0.0
      %2419 = vmatpush1.msra.mxu0 0.0
      %2420 = vmatprep.subr.mxu0 0.0
      %2421 = vmatpush1.msra.mxu0 0.0
      %2422 = vmatprep.subr.mxu0 0.0
      %2423 = vmatpush1.msra.mxu0 0.0
      %2424 = vmatprep.subr.mxu0 0.0
      %2425 = vmatpush1.msra.mxu0 0.0
      %2426 = vmatprep.subr.mxu0 0.0
      %2427 = vmatpush1.msra.mxu0 0.0
      %2428 = vmatprep.subr.mxu0 0.0
      %2429 = vmatpush1.msra.mxu0 0.0
      %2430 = vmatprep.subr.mxu0 0.0
      %2431 = vmatpush1.msra.mxu0 0.0
      %2432 = vmatprep.subr.mxu0 0.0
      %2433 = vmatpush1.msra.mxu0 0.0
      %2434 = vmatprep.subr.mxu0 0.0
      %2435 = vmatpush1.msra.mxu0 0.0
      %2436 = vmatprep.subr.mxu0 0.0
      %2437 = vmatpush1.msra.mxu0 0.0
      %2438 = vmatprep.subr.mxu0 0.0
      %2439 = vmatpush1.msra.mxu0 0.0
      %2440 = vmatprep.subr.mxu0 0.0
      %2441 = vmatpush1.msra.mxu0 0.0
      %2442 = vmatprep.subr.mxu0 0.0
      %2443 = vmatpush1.msra.mxu0 0.0
      %2444 = vmatprep.subr.mxu0 0.0
      %2445 = vmatpush1.msra.mxu0 0.0
      %2446 = vmatprep.subr.mxu0 0.0
      %2447 = vmatpush1.msra.mxu0 0.0
      %2448 = vmatprep.subr.mxu0 0.0
      %2449 = vmatpush1.msra.mxu0 0.0
      %2450 = vmatprep.subr.mxu0 0.0
      %2451 = vmatpush1.msra.mxu0 0.0
      %2452 = vmatprep.subr.mxu0 0.0
      %2453 = vmatpush1.msra.mxu0 0.0
      %2454 = vmatprep.subr.mxu0 0.0
      %2455 = vmatpush1.msra.mxu0 0.0
      %2456 = vmatprep.mubr.f32.mxu0 0.0
      %2457 = vmatmul.mubr.f32.gmra.mrb[0].mxu0 %v2390
      %v2458 = vpop.f32.mrb[0].mxu0
      %v2459 = vadd.f32 0.0, %v2458
      %v2460 = vpop.f32.mrb[0].mxu0
      %2461 = vdwg.mxu0
      %v2462 = vadd.f32 %v1974, %v2459
      %s2463 = scalar_lea.vmem %s11, 96
      %v2464 = vld [vmem:[%s2463] sm:$0xff]
      %v2465 = vld [vmem:[%s2463 + $0x8] sm:$0xff]
      %v2466 = vld [vmem:[%s2463 + $0x10] sm:$0xff]
      %v2467 = vld [vmem:[%s2463 + $0x18] sm:$0xff]
      %s2468 = scalar_lea.vmem %s13, 3
      %v2469 = vld [vmem:[%s2468] sm:$0x1]
      %v2471 = vlaneseq
      %v2472 = vshrl.u32 %v2471, 7
      %v2473 = vsub.s32 0, %v2472
      %v2474 = vrot.slane %v2469, %v2473
      %2476 = vmatprep.subr.mxu0 0.0
      %2477 = vmatpush1.msra.mxu0 %v2464
      %2478 = vmatprep.subr.mxu0 0.0
      %2479 = vmatpush1.msra.mxu0 %v2465
      %2480 = vmatprep.subr.mxu0 0.0
      %2481 = vmatpush1.msra.mxu0 %v2466
      %2482 = vmatprep.subr.mxu0 0.0
      %2483 = vmatpush1.msra.mxu0 %v2467
      %2484 = vmatprep.subr.mxu0 0.0
      %2485 = vmatpush1.msra.mxu0 0.0
      %2486 = vmatprep.subr.mxu0 0.0
      %2487 = vmatpush1.msra.mxu0 0.0
      %2488 = vmatprep.subr.mxu0 0.0
      %2489 = vmatpush1.msra.mxu0 0.0
      %2490 = vmatprep.subr.mxu0 0.0
      %2491 = vmatpush1.msra.mxu0 0.0
      %2492 = vmatprep.subr.mxu0 0.0
      %2493 = vmatpush1.msra.mxu0 0.0
      %2494 = vmatprep.subr.mxu0 0.0
      %2495 = vmatpush1.msra.mxu0 0.0
      %2496 = vmatprep.subr.mxu0 0.0
      %2497 = vmatpush1.msra.mxu0 0.0
      %2498 = vmatprep.subr.mxu0 0.0
      %2499 = vmatpush1.msra.mxu0 0.0
      %2500 = vmatprep.subr.mxu0 0.0
      %2501 = vmatpush1.msra.mxu0 0.0
      %2502 = vmatprep.subr.mxu0 0.0
      %2503 = vmatpush1.msra.mxu0 0.0
      %2504 = vmatprep.subr.mxu0 0.0
      %2505 = vmatpush1.msra.mxu0 0.0
      %2506 = vmatprep.subr.mxu0 0.0
      %2507 = vmatpush1.msra.mxu0 0.0
      %2508 = vmatprep.subr.mxu0 0.0
      %2509 = vmatpush1.msra.mxu0 0.0
      %2510 = vmatprep.subr.mxu0 0.0
      %2511 = vmatpush1.msra.mxu0 0.0
      %2512 = vmatprep.subr.mxu0 0.0
      %2513 = vmatpush1.msra.mxu0 0.0
      %2514 = vmatprep.subr.mxu0 0.0
      %2515 = vmatpush1.msra.mxu0 0.0
      %2516 = vmatprep.subr.mxu0 0.0
      %2517 = vmatpush1.msra.mxu0 0.0
      %2518 = vmatprep.subr.mxu0 0.0
      %2519 = vmatpush1.msra.mxu0 0.0
      %2520 = vmatprep.subr.mxu0 0.0
      %2521 = vmatpush1.msra.mxu0 0.0
      %2522 = vmatprep.subr.mxu0 0.0
      %2523 = vmatpush1.msra.mxu0 0.0
      %2524 = vmatprep.subr.mxu0 0.0
      %2525 = vmatpush1.msra.mxu0 0.0
      %2526 = vmatprep.subr.mxu0 0.0
      %2527 = vmatpush1.msra.mxu0 0.0
      %2528 = vmatprep.subr.mxu0 0.0
      %2529 = vmatpush1.msra.mxu0 0.0
      %2530 = vmatprep.subr.mxu0 0.0
      %2531 = vmatpush1.msra.mxu0 0.0
      %2532 = vmatprep.subr.mxu0 0.0
      %2533 = vmatpush1.msra.mxu0 0.0
      %2534 = vmatprep.subr.mxu0 0.0
      %2535 = vmatpush1.msra.mxu0 0.0
      %2536 = vmatprep.subr.mxu0 0.0
      %2537 = vmatpush1.msra.mxu0 0.0
      %2538 = vmatprep.subr.mxu0 0.0
      %2539 = vmatpush1.msra.mxu0 0.0
      %2540 = vmatprep.mubr.f32.mxu0 0.0
      %2541 = vmatmul.mubr.f32.gmra.mrb[0].mxu0 %v1016
      %v2542 = vpop.f32.mrb[0].mxu0
      %v2543 = vadd.f32 %v2474, %v2542
      %v2544 = vpop.f32.mrb[0].mxu0
      %2545 = vdwg.mxu0
      %s2546 = scalar_lea.vmem %s15, 96
      %v2547 = vld [vmem:[%s2546] sm:$0xff]
      %v2548 = vld [vmem:[%s2546 + $0x8] sm:$0xff]
      %v2549 = vld [vmem:[%s2546 + $0x10] sm:$0xff]
      %v2550 = vld [vmem:[%s2546 + $0x18] sm:$0xff]
      %s2551 = scalar_lea.vmem %s17, 3
      %v2552 = vld [vmem:[%s2551] sm:$0x1]
      %v2554 = vlaneseq
      %v2555 = vshrl.u32 %v2554, 7
      %v2556 = vsub.s32 0, %v2555
      %v2557 = vrot.slane %v2552, %v2556
      %2559 = vmatprep.subr.mxu0 0.0
      %2560 = vmatpush1.msra.mxu0 %v2547
      %2561 = vmatprep.subr.mxu0 0.0
      %2562 = vmatpush1.msra.mxu0 %v2548
      %2563 = vmatprep.subr.mxu0 0.0
      %2564 = vmatpush1.msra.mxu0 %v2549
      %2565 = vmatprep.subr.mxu0 0.0
      %2566 = vmatpush1.msra.mxu0 %v2550
      %2567 = vmatprep.subr.mxu0 0.0
      %2568 = vmatpush1.msra.mxu0 0.0
      %2569 = vmatprep.subr.mxu0 0.0
      %2570 = vmatpush1.msra.mxu0 0.0
      %2571 = vmatprep.subr.mxu0 0.0
      %2572 = vmatpush1.msra.mxu0 0.0
      %2573 = vmatprep.subr.mxu0 0.0
      %2574 = vmatpush1.msra.mxu0 0.0
      %2575 = vmatprep.subr.mxu0 0.0
      %2576 = vmatpush1.msra.mxu0 0.0
      %2577 = vmatprep.subr.mxu0 0.0
      %2578 = vmatpush1.msra.mxu0 0.0
      %2579 = vmatprep.subr.mxu0 0.0
      %2580 = vmatpush1.msra.mxu0 0.0
      %2581 = vmatprep.subr.mxu0 0.0
      %2582 = vmatpush1.msra.mxu0 0.0
      %2583 = vmatprep.subr.mxu0 0.0
      %2584 = vmatpush1.msra.mxu0 0.0
      %2585 = vmatprep.subr.mxu0 0.0
      %2586 = vmatpush1.msra.mxu0 0.0
      %2587 = vmatprep.subr.mxu0 0.0
      %2588 = vmatpush1.msra.mxu0 0.0
      %2589 = vmatprep.subr.mxu0 0.0
      %2590 = vmatpush1.msra.mxu0 0.0
      %2591 = vmatprep.subr.mxu0 0.0
      %2592 = vmatpush1.msra.mxu0 0.0
      %2593 = vmatprep.subr.mxu0 0.0
      %2594 = vmatpush1.msra.mxu0 0.0
      %2595 = vmatprep.subr.mxu0 0.0
      %2596 = vmatpush1.msra.mxu0 0.0
      %2597 = vmatprep.subr.mxu0 0.0
      %2598 = vmatpush1.msra.mxu0 0.0
      %2599 = vmatprep.subr.mxu0 0.0
      %2600 = vmatpush1.msra.mxu0 0.0
      %2601 = vmatprep.subr.mxu0 0.0
      %2602 = vmatpush1.msra.mxu0 0.0
      %2603 = vmatprep.subr.mxu0 0.0
      %2604 = vmatpush1.msra.mxu0 0.0
      %2605 = vmatprep.subr.mxu0 0.0
      %2606 = vmatpush1.msra.mxu0 0.0
      %2607 = vmatprep.subr.mxu0 0.0
      %2608 = vmatpush1.msra.mxu0 0.0
      %2609 = vmatprep.subr.mxu0 0.0
      %2610 = vmatpush1.msra.mxu0 0.0
      %2611 = vmatprep.subr.mxu0 0.0
      %2612 = vmatpush1.msra.mxu0 0.0
      %2613 = vmatprep.subr.mxu0 0.0
      %2614 = vmatpush1.msra.mxu0 0.0
      %2615 = vmatprep.subr.mxu0 0.0
      %2616 = vmatpush1.msra.mxu0 0.0
      %2617 = vmatprep.subr.mxu0 0.0
      %2618 = vmatpush1.msra.mxu0 0.0
      %2619 = vmatprep.subr.mxu0 0.0
      %2620 = vmatpush1.msra.mxu0 0.0
      %2621 = vmatprep.subr.mxu0 0.0
      %2622 = vmatpush1.msra.mxu0 0.0
      %2623 = vmatprep.mubr.f32.mxu0 0.0
      %2624 = vmatmul.mubr.f32.gmra.mrb[0].mxu0 %v1016
      %v2625 = vpop.f32.mrb[0].mxu0
      %v2626 = vadd.f32 %v2557, %v2625
      %v2627 = vpop.f32.mrb[0].mxu0
      %2628 = vdwg.mxu0
      %s2629 = scalar_lea.vmem %s19, 96
      %v2630 = vld [vmem:[%s2629] sm:$0xff]
      %v2631 = vld [vmem:[%s2629 + $0x8] sm:$0xff]
      %v2632 = vld [vmem:[%s2629 + $0x10] sm:$0xff]
      %v2633 = vld [vmem:[%s2629 + $0x18] sm:$0xff]
      %s2634 = scalar_lea.vmem %s21, 3
      %v2635 = vld [vmem:[%s2634] sm:$0x1]
      %v2637 = vlaneseq
      %v2638 = vshrl.u32 %v2637, 7
      %v2639 = vsub.s32 0, %v2638
      %v2640 = vrot.slane %v2635, %v2639
      %2642 = vmatprep.subr.mxu0 0.0
      %2643 = vmatpush1.msra.mxu0 %v2630
      %2644 = vmatprep.subr.mxu0 0.0
      %2645 = vmatpush1.msra.mxu0 %v2631
      %2646 = vmatprep.subr.mxu0 0.0
      %2647 = vmatpush1.msra.mxu0 %v2632
      %2648 = vmatprep.subr.mxu0 0.0
      %2649 = vmatpush1.msra.mxu0 %v2633
      %2650 = vmatprep.subr.mxu0 0.0
      %2651 = vmatpush1.msra.mxu0 0.0
      %2652 = vmatprep.subr.mxu0 0.0
      %2653 = vmatpush1.msra.mxu0 0.0
      %2654 = vmatprep.subr.mxu0 0.0
      %2655 = vmatpush1.msra.mxu0 0.0
      %2656 = vmatprep.subr.mxu0 0.0
      %2657 = vmatpush1.msra.mxu0 0.0
      %2658 = vmatprep.subr.mxu0 0.0
      %2659 = vmatpush1.msra.mxu0 0.0
      %2660 = vmatprep.subr.mxu0 0.0
      %2661 = vmatpush1.msra.mxu0 0.0
      %2662 = vmatprep.subr.mxu0 0.0
      %2663 = vmatpush1.msra.mxu0 0.0
      %2664 = vmatprep.subr.mxu0 0.0
      %2665 = vmatpush1.msra.mxu0 0.0
      %2666 = vmatprep.subr.mxu0 0.0
      %2667 = vmatpush1.msra.mxu0 0.0
      %2668 = vmatprep.subr.mxu0 0.0
      %2669 = vmatpush1.msra.mxu0 0.0
      %2670 = vmatprep.subr.mxu0 0.0
      %2671 = vmatpush1.msra.mxu0 0.0
      %2672 = vmatprep.subr.mxu0 0.0
      %2673 = vmatpush1.msra.mxu0 0.0
      %2674 = vmatprep.subr.mxu0 0.0
      %2675 = vmatpush1.msra.mxu0 0.0
      %2676 = vmatprep.subr.mxu0 0.0
      %2677 = vmatpush1.msra.mxu0 0.0
      %2678 = vmatprep.subr.mxu0 0.0
      %2679 = vmatpush1.msra.mxu0 0.0
      %2680 = vmatprep.subr.mxu0 0.0
      %2681 = vmatpush1.msra.mxu0 0.0
      %2682 = vmatprep.subr.mxu0 0.0
      %2683 = vmatpush1.msra.mxu0 0.0
      %2684 = vmatprep.subr.mxu0 0.0
      %2685 = vmatpush1.msra.mxu0 0.0
      %2686 = vmatprep.subr.mxu0 0.0
      %2687 = vmatpush1.msra.mxu0 0.0
      %2688 = vmatprep.subr.mxu0 0.0
      %2689 = vmatpush1.msra.mxu0 0.0
      %2690 = vmatprep.subr.mxu0 0.0
      %2691 = vmatpush1.msra.mxu0 0.0
      %2692 = vmatprep.subr.mxu0 0.0
      %2693 = vmatpush1.msra.mxu0 0.0
      %2694 = vmatprep.subr.mxu0 0.0
      %2695 = vmatpush1.msra.mxu0 0.0
      %2696 = vmatprep.subr.mxu0 0.0
      %2697 = vmatpush1.msra.mxu0 0.0
      %2698 = vmatprep.subr.mxu0 0.0
      %2699 = vmatpush1.msra.mxu0 0.0
      %2700 = vmatprep.subr.mxu0 0.0
      %2701 = vmatpush1.msra.mxu0 0.0
      %2702 = vmatprep.subr.mxu0 0.0
      %2703 = vmatpush1.msra.mxu0 0.0
      %2704 = vmatprep.subr.mxu0 0.0
      %2705 = vmatpush1.msra.mxu0 0.0
      %2706 = vmatprep.mubr.f32.mxu0 0.0
      %2707 = vmatmul.mubr.f32.gmra.mrb[0].mxu0 %v1016
      %v2708 = vpop.f32.mrb[0].mxu0
      %v2709 = vadd.f32 %v2640, %v2708
      %v2710 = vpop.f32.mrb[0].mxu0
      %2711 = vdwg.mxu0
      %v2713 = vsel %vm1250, %v2543, 0
      %v2716 = vsel %vm1250, %v2626, 0
      %2718 = vmatprep.subr.mxu0 0.0
      %2719 = vmatpush1.xpose.msra.mxu0 %v2716
      %2720 = vmatprep.subr.mxu0 0.0
      %2721 = vmatpush1.xpose.msra.mxu0 0.0
      %2722 = vmatprep.subr.mxu0 0.0
      %2723 = vmatpush1.xpose.msra.mxu0 0.0
      %2724 = vmatprep.subr.mxu0 0.0
      %2725 = vmatpush1.xpose.msra.mxu0 0.0
      %2726 = vmatprep.subr.mxu0 0.0
      %2727 = vmatpush1.xpose.msra.mxu0 0.0
      %2728 = vmatprep.subr.mxu0 0.0
      %2729 = vmatpush1.xpose.msra.mxu0 0.0
      %2730 = vmatprep.subr.mxu0 0.0
      %2731 = vmatpush1.xpose.msra.mxu0 0.0
      %2732 = vmatprep.subr.mxu0 0.0
      %2733 = vmatpush1.xpose.msra.mxu0 0.0
      %2734 = vmatprep.subr.mxu0 0.0
      %2735 = vmatpush1.xpose.msra.mxu0 0.0
      %2736 = vmatprep.subr.mxu0 0.0
      %2737 = vmatpush1.xpose.msra.mxu0 0.0
      %2738 = vmatprep.subr.mxu0 0.0
      %2739 = vmatpush1.xpose.msra.mxu0 0.0
      %2740 = vmatprep.subr.mxu0 0.0
      %2741 = vmatpush1.xpose.msra.mxu0 0.0
      %2742 = vmatprep.subr.mxu0 0.0
      %2743 = vmatpush1.xpose.msra.mxu0 0.0
      %2744 = vmatprep.subr.mxu0 0.0
      %2745 = vmatpush1.xpose.msra.mxu0 0.0
      %2746 = vmatprep.subr.mxu0 0.0
      %2747 = vmatpush1.xpose.msra.mxu0 0.0
      %2748 = vmatprep.subr.mxu0 0.0
      %2749 = vmatpush1.xpose.msra.mxu0 0.0
      %2750 = vmatprep.subr.mxu0 0.0
      %2751 = vmatpush1.xpose.msra.mxu0 0.0
      %2752 = vmatprep.subr.mxu0 0.0
      %2753 = vmatpush1.xpose.msra.mxu0 0.0
      %2754 = vmatprep.subr.mxu0 0.0
      %2755 = vmatpush1.xpose.msra.mxu0 0.0
      %2756 = vmatprep.subr.mxu0 0.0
      %2757 = vmatpush1.xpose.msra.mxu0 0.0
      %2758 = vmatprep.subr.mxu0 0.0
      %2759 = vmatpush1.xpose.msra.mxu0 0.0
      %2760 = vmatprep.subr.mxu0 0.0
      %2761 = vmatpush1.xpose.msra.mxu0 0.0
      %2762 = vmatprep.subr.mxu0 0.0
      %2763 = vmatpush1.xpose.msra.mxu0 0.0
      %2764 = vmatprep.subr.mxu0 0.0
      %2765 = vmatpush1.xpose.msra.mxu0 0.0
      %2766 = vmatprep.subr.mxu0 0.0
      %2767 = vmatpush1.xpose.msra.mxu0 0.0
      %2768 = vmatprep.subr.mxu0 0.0
      %2769 = vmatpush1.xpose.msra.mxu0 0.0
      %2770 = vmatprep.subr.mxu0 0.0
      %2771 = vmatpush1.xpose.msra.mxu0 0.0
      %2772 = vmatprep.subr.mxu0 0.0
      %2773 = vmatpush1.xpose.msra.mxu0 0.0
      %2774 = vmatprep.subr.mxu0 0.0
      %2775 = vmatpush1.xpose.msra.mxu0 0.0
      %2776 = vmatprep.subr.mxu0 0.0
      %2777 = vmatpush1.xpose.msra.mxu0 0.0
      %2778 = vmatprep.subr.mxu0 0.0
      %2779 = vmatpush1.xpose.msra.mxu0 0.0
      %2780 = vmatprep.subr.mxu0 0.0
      %2781 = vmatpush1.xpose.msra.mxu0 0.0
      %2782 = vmatprep.mubr.f32.mxu0 0.0
      %2783 = vmatmul.mubr.f32.gmra.mrb[0].mxu0 %v2713
      %v2784 = vpop.f32.mrb[0].mxu0
      %v2785 = vadd.f32 %v1001, %v2784
      %v2786 = vpop.f32.mrb[0].mxu0
      %2787 = vdwg.mxu0
      %v2788 = vadd.f32 %v2785, %v1331
      %v2789 = vsel %vm1250, %v2788, -inf
      %2790 = vmax.xlane.f32.xlu0 %v2789
      %v2791 = vpop.xlane.xlu0 %2790
      %v2792 = vsub.f32 %v2788, %v2791
      %v2793 = vmul.f32 %v2792, 1.442695
      %v2794 = vpow.pop %v2793
      %v2795 = vsel %vm1250, %v2794, 0.0
      %2796 = vadd.xlane.f32.xlu0 %v2795
      %v2797 = vpop.xlane.xlu0 %2796
      %v2798 = vrcp.pop %v2797
      %v2799 = vmul.f32 %v2794, %v2798
      %v2801 = vsel %vm1250, %v2799, 0
      %2803 = vmatprep.subr.mxu0 0.0
      %2804 = vmatpush1.msra.mxu0 %v2709
      %2805 = vmatprep.subr.mxu0 0.0
      %2806 = vmatpush1.msra.mxu0 0.0
      %2807 = vmatprep.subr.mxu0 0.0
      %2808 = vmatpush1.msra.mxu0 0.0
      %2809 = vmatprep.subr.mxu0 0.0
      %2810 = vmatpush1.msra.mxu0 0.0
      %2811 = vmatprep.subr.mxu0 0.0
      %2812 = vmatpush1.msra.mxu0 0.0
      %2813 = vmatprep.subr.mxu0 0.0
      %2814 = vmatpush1.msra.mxu0 0.0
      %2815 = vmatprep.subr.mxu0 0.0
      %2816 = vmatpush1.msra.mxu0 0.0
      %2817 = vmatprep.subr.mxu0 0.0
      %2818 = vmatpush1.msra.mxu0 0.0
      %2819 = vmatprep.subr.mxu0 0.0
      %2820 = vmatpush1.msra.mxu0 0.0
      %2821 = vmatprep.subr.mxu0 0.0
      %2822 = vmatpush1.msra.mxu0 0.0
      %2823 = vmatprep.subr.mxu0 0.0
      %2824 = vmatpush1.msra.mxu0 0.0
      %2825 = vmatprep.subr.mxu0 0.0
      %2826 = vmatpush1.msra.mxu0 0.0
      %2827 = vmatprep.subr.mxu0 0.0
      %2828 = vmatpush1.msra.mxu0 0.0
      %2829 = vmatprep.subr.mxu0 0.0
      %2830 = vmatpush1.msra.mxu0 0.0
      %2831 = vmatprep.subr.mxu0 0.0
      %2832 = vmatpush1.msra.mxu0 0.0
      %2833 = vmatprep.subr.mxu0 0.0
      %2834 = vmatpush1.msra.mxu0 0.0
      %2835 = vmatprep.subr.mxu0 0.0
      %2836 = vmatpush1.msra.mxu0 0.0
      %2837 = vmatprep.subr.mxu0 0.0
      %2838 = vmatpush1.msra.mxu0 0.0
      %2839 = vmatprep.subr.mxu0 0.0
      %2840 = vmatpush1.msra.mxu0 0.0
      %2841 = vmatprep.subr.mxu0 0.0
      %2842 = vmatpush1.msra.mxu0 0.0
      %2843 = vmatprep.subr.mxu0 0.0
      %2844 = vmatpush1.msra.mxu0 0.0
      %2845 = vmatprep.subr.mxu0 0.0
      %2846 = vmatpush1.msra.mxu0 0.0
      %2847 = vmatprep.subr.mxu0 0.0
      %2848 = vmatpush1.msra.mxu0 0.0
      %2849 = vmatprep.subr.mxu0 0.0
      %2850 = vmatpush1.msra.mxu0 0.0
      %2851 = vmatprep.subr.mxu0 0.0
      %2852 = vmatpush1.msra.mxu0 0.0
      %2853 = vmatprep.subr.mxu0 0.0
      %2854 = vmatpush1.msra.mxu0 0.0
      %2855 = vmatprep.subr.mxu0 0.0
      %2856 = vmatpush1.msra.mxu0 0.0
      %2857 = vmatprep.subr.mxu0 0.0
      %2858 = vmatpush1.msra.mxu0 0.0
      %2859 = vmatprep.subr.mxu0 0.0
      %2860 = vmatpush1.msra.mxu0 0.0
      %2861 = vmatprep.subr.mxu0 0.0
      %2862 = vmatpush1.msra.mxu0 0.0
      %2863 = vmatprep.subr.mxu0 0.0
      %2864 = vmatpush1.msra.mxu0 0.0
      %2865 = vmatprep.subr.mxu0 0.0
      %2866 = vmatpush1.msra.mxu0 0.0
      %2867 = vmatprep.mubr.f32.mxu0 0.0
      %2868 = vmatmul.mubr.f32.gmra.mrb[0].mxu0 %v2801
      %v2869 = vpop.f32.mrb[0].mxu0
      %v2870 = vadd.f32 0.0, %v2869
      %v2871 = vpop.f32.mrb[0].mxu0
      %2872 = vdwg.mxu0
      %s2873 = scalar_lea.vmem %s23, 24
      %v2874 = vld [vmem:[%s2873] sm:$0xff]
      %v2876 = vsel %vm1250, %v2870, 0
      %2878 = vmatprep.subr.mxu0 0.0
      %2879 = vmatpush1.msra.mxu0 %v2874
      %2880 = vmatprep.subr.mxu0 0.0
      %2881 = vmatpush1.msra.mxu0 0.0
      %2882 = vmatprep.subr.mxu0 0.0
      %2883 = vmatpush1.msra.mxu0 0.0
      %2884 = vmatprep.subr.mxu0 0.0
      %2885 = vmatpush1.msra.mxu0 0.0
      %2886 = vmatprep.subr.mxu0 0.0
      %2887 = vmatpush1.msra.mxu0 0.0
      %2888 = vmatprep.subr.mxu0 0.0
      %2889 = vmatpush1.msra.mxu0 0.0
      %2890 = vmatprep.subr.mxu0 0.0
      %2891 = vmatpush1.msra.mxu0 0.0
      %2892 = vmatprep.subr.mxu0 0.0
      %2893 = vmatpush1.msra.mxu0 0.0
      %2894 = vmatprep.subr.mxu0 0.0
      %2895 = vmatpush1.msra.mxu0 0.0
      %2896 = vmatprep.subr.mxu0 0.0
      %2897 = vmatpush1.msra.mxu0 0.0
      %2898 = vmatprep.subr.mxu0 0.0
      %2899 = vmatpush1.msra.mxu0 0.0
      %2900 = vmatprep.subr.mxu0 0.0
      %2901 = vmatpush1.msra.mxu0 0.0
      %2902 = vmatprep.subr.mxu0 0.0
      %2903 = vmatpush1.msra.mxu0 0.0
      %2904 = vmatprep.subr.mxu0 0.0
      %2905 = vmatpush1.msra.mxu0 0.0
      %2906 = vmatprep.subr.mxu0 0.0
      %2907 = vmatpush1.msra.mxu0 0.0
      %2908 = vmatprep.subr.mxu0 0.0
      %2909 = vmatpush1.msra.mxu0 0.0
      %2910 = vmatprep.subr.mxu0 0.0
      %2911 = vmatpush1.msra.mxu0 0.0
      %2912 = vmatprep.subr.mxu0 0.0
      %2913 = vmatpush1.msra.mxu0 0.0
      %2914 = vmatprep.subr.mxu0 0.0
      %2915 = vmatpush1.msra.mxu0 0.0
      %2916 = vmatprep.subr.mxu0 0.0
      %2917 = vmatpush1.msra.mxu0 0.0
      %2918 = vmatprep.subr.mxu0 0.0
      %2919 = vmatpush1.msra.mxu0 0.0
      %2920 = vmatprep.subr.mxu0 0.0
      %2921 = vmatpush1.msra.mxu0 0.0
      %2922 = vmatprep.subr.mxu0 0.0
      %2923 = vmatpush1.msra.mxu0 0.0
      %2924 = vmatprep.subr.mxu0 0.0
      %2925 = vmatpush1.msra.mxu0 0.0
      %2926 = vmatprep.subr.mxu0 0.0
      %2927 = vmatpush1.msra.mxu0 0.0
      %2928 = vmatprep.subr.mxu0 0.0
      %2929 = vmatpush1.msra.mxu0 0.0
      %2930 = vmatprep.subr.mxu0 0.0
      %2931 = vmatpush1.msra.mxu0 0.0
      %2932 = vmatprep.subr.mxu0 0.0
      %2933 = vmatpush1.msra.mxu0 0.0
      %2934 = vmatprep.subr.mxu0 0.0
      %2935 = vmatpush1.msra.mxu0 0.0
      %2936 = vmatprep.subr.mxu0 0.0
      %2937 = vmatpush1.msra.mxu0 0.0
      %2938 = vmatprep.subr.mxu0 0.0
      %2939 = vmatpush1.msra.mxu0 0.0
      %2940 = vmatprep.subr.mxu0 0.0
      %2941 = vmatpush1.msra.mxu0 0.0
      %2942 = vmatprep.mubr.f32.mxu0 0.0
      %2943 = vmatmul.mubr.f32.gmra.mrb[0].mxu0 %v2876
      %v2944 = vpop.f32.mrb[0].mxu0
      %v2945 = vadd.f32 0.0, %v2944
      %v2946 = vpop.f32.mrb[0].mxu0
      %2947 = vdwg.mxu0
      %v2948 = vadd.f32 %v2462, %v2945
      %v2949 = vld [vmem:[%s25] sm:$0x1]
      %v2951 = vlaneseq
      %v2952 = vshrl.u32 %v2951, 7
      %v2953 = vsub.s32 0, %v2952
      %v2954 = vrot.slane %v2949, %v2953
      %v2956 = vadd.f32 %v2948, %v2954
      %v2957 = vld [vmem:[%s27] sm:$0x1]
      %v2958 = vld [vmem:[%s29] sm:$0x1]
      %v2959 = vadd.f32 %v999, %v2956
      %v2960 = vsel %vm1014, %v2959, 0.0
      %2961 = vadd.xlane.f32.xlu0 %v2960
      %v2962 = vpop.xlane.xlu0 %2961
      %v2963 = vrcp.pop 32.0
      %v2964 = vmul.f32 %v2962, %v2963
      %v2965 = vsub.f32 %v2959, %v2964
      %v2966 = vmul.f32 %v2965, %v2965
      %v2967 = vsel %vm1014, %v2966, 0.0
      %2968 = vadd.xlane.f32.xlu0 %v2967
      %v2969 = vpop.xlane.xlu0 %2968
      %v2970 = vmul.f32 %v2969, %v2963
      %v2971 = vadd.f32 %v2970, 1e-05
      %v2972 = vrsqrt.pop %v2971
      %v2973 = vmul.f32 %v2965, %v2972
      %v2975 = vlaneseq
      %v2976 = vshrl.u32 %v2975, 7
      %v2977 = vsub.s32 0, %v2976
      %v2978 = vrot.slane %v2957, %v2977
      %v2980 = vmul.f32 %v2973, %v2978
      %v2982 = vlaneseq
      %v2983 = vshrl.u32 %v2982, 7
      %v2984 = vsub.s32 0, %v2983
      %v2985 = vrot.slane %v2958, %v2984
      %v2987 = vadd.f32 %v2980, %v2985
      %v2988 = vld [vmem:[%s994] sm:$0x1]
      %v2989 = vld [vmem:[%s31] sm:$0xff]
      %v2990 = vld [vmem:[%s31 + $0x8] sm:$0xff]
      %v2991 = vld [vmem:[%s31 + $0x10] sm:$0xff]
      %v2992 = vld [vmem:[%s31 + $0x18] sm:$0xff]
      %v2993 = vld [vmem:[%s33] sm:$0x1]
      %v2995 = vlaneseq
      %v2996 = vshrl.u32 %v2995, 7
      %v2997 = vsub.s32 0, %v2996
      %v2998 = vrot.slane %v2993, %v2997
      %v3001 = vsel %vm1014, %v2987, 0
      %3003 = vmatprep.subr.mxu0 0.0
      %3004 = vmatpush1.msra.mxu0 %v2989
      %3005 = vmatprep.subr.mxu0 0.0
      %3006 = vmatpush1.msra.mxu0 %v2990
      %3007 = vmatprep.subr.mxu0 0.0
      %3008 = vmatpush1.msra.mxu0 %v2991
      %3009 = vmatprep.subr.mxu0 0.0
      %3010 = vmatpush1.msra.mxu0 %v2992
      %3011 = vmatprep.subr.mxu0 0.0
      %3012 = vmatpush1.msra.mxu0 0.0
      %3013 = vmatprep.subr.mxu0 0.0
      %3014 = vmatpush1.msra.mxu0 0.0
      %3015 = vmatprep.subr.mxu0 0.0
      %3016 = vmatpush1.msra.mxu0 0.0
      %3017 = vmatprep.subr.mxu0 0.0
      %3018 = vmatpush1.msra.mxu0 0.0
      %3019 = vmatprep.subr.mxu0 0.0
      %3020 = vmatpush1.msra.mxu0 0.0
      %3021 = vmatprep.subr.mxu0 0.0
      %3022 = vmatpush1.msra.mxu0 0.0
      %3023 = vmatprep.subr.mxu0 0.0
      %3024 = vmatpush1.msra.mxu0 0.0
      %3025 = vmatprep.subr.mxu0 0.0
      %3026 = vmatpush1.msra.mxu0 0.0
      %3027 = vmatprep.subr.mxu0 0.0
      %3028 = vmatpush1.msra.mxu0 0.0
      %3029 = vmatprep.subr.mxu0 0.0
      %3030 = vmatpush1.msra.mxu0 0.0
      %3031 = vmatprep.subr.mxu0 0.0
      %3032 = vmatpush1.msra.mxu0 0.0
      %3033 = vmatprep.subr.mxu0 0.0
      %3034 = vmatpush1.msra.mxu0 0.0
      %3035 = vmatprep.subr.mxu0 0.0
      %3036 = vmatpush1.msra.mxu0 0.0
      %3037 = vmatprep.subr.mxu0 0.0
      %3038 = vmatpush1.msra.mxu0 0.0
      %3039 = vmatprep.subr.mxu0 0.0
      %3040 = vmatpush1.msra.mxu0 0.0
      %3041 = vmatprep.subr.mxu0 0.0
      %3042 = vmatpush1.msra.mxu0 0.0
      %3043 = vmatprep.subr.mxu0 0.0
      %3044 = vmatpush1.msra.mxu0 0.0
      %3045 = vmatprep.subr.mxu0 0.0
      %3046 = vmatpush1.msra.mxu0 0.0
      %3047 = vmatprep.subr.mxu0 0.0
      %3048 = vmatpush1.msra.mxu0 0.0
      %3049 = vmatprep.subr.mxu0 0.0
      %3050 = vmatpush1.msra.mxu0 0.0
      %3051 = vmatprep.subr.mxu0 0.0
      %3052 = vmatpush1.msra.mxu0 0.0
      %3053 = vmatprep.subr.mxu0 0.0
      %3054 = vmatpush1.msra.mxu0 0.0
      %3055 = vmatprep.subr.mxu0 0.0
      %3056 = vmatpush1.msra.mxu0 0.0
      %3057 = vmatprep.subr.mxu0 0.0
      %3058 = vmatpush1.msra.mxu0 0.0
      %3059 = vmatprep.subr.mxu0 0.0
      %3060 = vmatpush1.msra.mxu0 0.0
      %3061 = vmatprep.subr.mxu0 0.0
      %3062 = vmatpush1.msra.mxu0 0.0
      %3063 = vmatprep.subr.mxu0 0.0
      %3064 = vmatpush1.msra.mxu0 0.0
      %3065 = vmatprep.subr.mxu0 0.0
      %3066 = vmatpush1.msra.mxu0 0.0
      %3067 = vmatprep.mubr.f32.mxu0 0.0
      %3068 = vmatmul.mubr.f32.gmra.mrb[0].mxu0 %v3001
      %v3069 = vpop.f32.mrb[0].mxu0
      %v3070 = vadd.f32 %v2998, %v3069
      %v3071 = vpop.f32.mrb[0].mxu0
      %3072 = vdwg.mxu0
      %v3073 = vld [vmem:[%s35] sm:$0xff]
      %v3074 = vld [vmem:[%s35 + $0x8] sm:$0xff]
      %v3075 = vld [vmem:[%s35 + $0x10] sm:$0xff]
      %v3076 = vld [vmem:[%s35 + $0x18] sm:$0xff]
      %v3077 = vld [vmem:[%s37] sm:$0x1]
      %v3079 = vlaneseq
      %v3080 = vshrl.u32 %v3079, 7
      %v3081 = vsub.s32 0, %v3080
      %v3082 = vrot.slane %v3077, %v3081
      %v3085 = vsel %vm1014, %v1000, 0
      %3087 = vmatprep.subr.mxu0 0.0
      %3088 = vmatpush1.msra.mxu0 %v3073
      %3089 = vmatprep.subr.mxu0 0.0
      %3090 = vmatpush1.msra.mxu0 %v3074
      %3091 = vmatprep.subr.mxu0 0.0
      %3092 = vmatpush1.msra.mxu0 %v3075
      %3093 = vmatprep.subr.mxu0 0.0
      %3094 = vmatpush1.msra.mxu0 %v3076
      %3095 = vmatprep.subr.mxu0 0.0
      %3096 = vmatpush1.msra.mxu0 0.0
      %3097 = vmatprep.subr.mxu0 0.0
      %3098 = vmatpush1.msra.mxu0 0.0
      %3099 = vmatprep.subr.mxu0 0.0
      %3100 = vmatpush1.msra.mxu0 0.0
      %3101 = vmatprep.subr.mxu0 0.0
      %3102 = vmatpush1.msra.mxu0 0.0
      %3103 = vmatprep.subr.mxu0 0.0
      %3104 = vmatpush1.msra.mxu0 0.0
      %3105 = vmatprep.subr.mxu0 0.0
      %3106 = vmatpush1.msra.mxu0 0.0
      %3107 = vmatprep.subr.mxu0 0.0
      %3108 = vmatpush1.msra.mxu0 0.0
      %3109 = vmatprep.subr.mxu0 0.0
      %3110 = vmatpush1.msra.mxu0 0.0
      %3111 = vmatprep.subr.mxu0 0.0
      %3112 = vmatpush1.msra.mxu0 0.0
      %3113 = vmatprep.subr.mxu0 0.0
      %3114 = vmatpush1.msra.mxu0 0.0
      %3115 = vmatprep.subr.mxu0 0.0
      %3116 = vmatpush1.msra.mxu0 0.0
      %3117 = vmatprep.subr.mxu0 0.0
      %3118 = vmatpush1.msra.mxu0 0.0
      %3119 = vmatprep.subr.mxu0 0.0
      %3120 = vmatpush1.msra.mxu0 0.0
      %3121 = vmatprep.subr.mxu0 0.0
      %3122 = vmatpush1.msra.mxu0 0.0
      %3123 = vmatprep.subr.mxu0 0.0
      %3124 = vmatpush1.msra.mxu0 0.0
      %3125 = vmatprep.subr.mxu0 0.0
      %3126 = vmatpush1.msra.mxu0 0.0
      %3127 = vmatprep.subr.mxu0 0.0
      %3128 = vmatpush1.msra.mxu0 0.0
      %3129 = vmatprep.subr.mxu0 0.0
      %3130 = vmatpush1.msra.mxu0 0.0
      %3131 = vmatprep.subr.mxu0 0.0
      %3132 = vmatpush1.msra.mxu0 0.0
      %3133 = vmatprep.subr.mxu0 0.0
      %3134 = vmatpush1.msra.mxu0 0.0
      %3135 = vmatprep.subr.mxu0 0.0
      %3136 = vmatpush1.msra.mxu0 0.0
      %3137 = vmatprep.subr.mxu0 0.0
      %3138 = vmatpush1.msra.mxu0 0.0
      %3139 = vmatprep.subr.mxu0 0.0
      %3140 = vmatpush1.msra.mxu0 0.0
      %3141 = vmatprep.subr.mxu0 0.0
      %3142 = vmatpush1.msra.mxu0 0.0
      %3143 = vmatprep.subr.mxu0 0.0
      %3144 = vmatpush1.msra.mxu0 0.0
      %3145 = vmatprep.subr.mxu0 0.0
      %3146 = vmatpush1.msra.mxu0 0.0
      %3147 = vmatprep.subr.mxu0 0.0
      %3148 = vmatpush1.msra.mxu0 0.0
      %3149 = vmatprep.subr.mxu0 0.0
      %3150 = vmatpush1.msra.mxu0 0.0
      %3151 = vmatprep.mubr.f32.mxu0 0.0
      %3152 = vmatmul.mubr.f32.gmra.mrb[0].mxu0 %v3085
      %v3153 = vpop.f32.mrb[0].mxu0
      %v3154 = vadd.f32 %v3082, %v3153
      %v3155 = vpop.f32.mrb[0].mxu0
      %3156 = vdwg.mxu0
      %v3157 = vld [vmem:[%s39] sm:$0xff]
      %v3158 = vld [vmem:[%s39 + $0x8] sm:$0xff]
      %v3159 = vld [vmem:[%s39 + $0x10] sm:$0xff]
      %v3160 = vld [vmem:[%s39 + $0x18] sm:$0xff]
      %v3161 = vld [vmem:[%s41] sm:$0x1]
      %v3163 = vlaneseq
      %v3164 = vshrl.u32 %v3163, 7
      %v3165 = vsub.s32 0, %v3164
      %v3166 = vrot.slane %v3161, %v3165
      %3168 = vmatprep.subr.mxu0 0.0
      %3169 = vmatpush1.msra.mxu0 %v3157
      %3170 = vmatprep.subr.mxu0 0.0
      %3171 = vmatpush1.msra.mxu0 %v3158
      %3172 = vmatprep.subr.mxu0 0.0
      %3173 = vmatpush1.msra.mxu0 %v3159
      %3174 = vmatprep.subr.mxu0 0.0
      %3175 = vmatpush1.msra.mxu0 %v3160
      %3176 = vmatprep.subr.mxu0 0.0
      %3177 = vmatpush1.msra.mxu0 0.0
      %3178 = vmatprep.subr.mxu0 0.0
      %3179 = vmatpush1.msra.mxu0 0.0
      %3180 = vmatprep.subr.mxu0 0.0
      %3181 = vmatpush1.msra.mxu0 0.0
      %3182 = vmatprep.subr.mxu0 0.0
      %3183 = vmatpush1.msra.mxu0 0.0
      %3184 = vmatprep.subr.mxu0 0.0
      %3185 = vmatpush1.msra.mxu0 0.0
      %3186 = vmatprep.subr.mxu0 0.0
      %3187 = vmatpush1.msra.mxu0 0.0
      %3188 = vmatprep.subr.mxu0 0.0
      %3189 = vmatpush1.msra.mxu0 0.0
      %3190 = vmatprep.subr.mxu0 0.0
      %3191 = vmatpush1.msra.mxu0 0.0
      %3192 = vmatprep.subr.mxu0 0.0
      %3193 = vmatpush1.msra.mxu0 0.0
      %3194 = vmatprep.subr.mxu0 0.0
      %3195 = vmatpush1.msra.mxu0 0.0
      %3196 = vmatprep.subr.mxu0 0.0
      %3197 = vmatpush1.msra.mxu0 0.0
      %3198 = vmatprep.subr.mxu0 0.0
      %3199 = vmatpush1.msra.mxu0 0.0
      %3200 = vmatprep.subr.mxu0 0.0
      %3201 = vmatpush1.msra.mxu0 0.0
      %3202 = vmatprep.subr.mxu0 0.0
      %3203 = vmatpush1.msra.mxu0 0.0
      %3204 = vmatprep.subr.mxu0 0.0
      %3205 = vmatpush1.msra.mxu0 0.0
      %3206 = vmatprep.subr.mxu0 0.0
      %3207 = vmatpush1.msra.mxu0 0.0
      %3208 = vmatprep.subr.mxu0 0.0
      %3209 = vmatpush1.msra.mxu0 0.0
      %3210 = vmatprep.subr.mxu0 0.0
      %3211 = vmatpush1.msra.mxu0 0.0
      %3212 = vmatprep.subr.mxu0 0.0
      %3213 = vmatpush1.msra.mxu0 0.0
      %3214 = vmatprep.subr.mxu0 0.0
      %3215 = vmatpush1.msra.mxu0 0.0
      %3216 = vmatprep.subr.mxu0 0.0
      %3217 = vmatpush1.msra.mxu0 0.0
      %3218 = vmatprep.subr.mxu0 0.0
      %3219 = vmatpush1.msra.mxu0 0.0
      %3220 = vmatprep.subr.mxu0 0.0
      %3221 = vmatpush1.msra.mxu0 0.0
      %3222 = vmatprep.subr.mxu0 0.0
      %3223 = vmatpush1.msra.mxu0 0.0
      %3224 = vmatprep.subr.mxu0 0.0
      %3225 = vmatpush1.msra.mxu0 0.0
      %3226 = vmatprep.subr.mxu0 0.0
      %3227 = vmatpush1.msra.mxu0 0.0
      %3228 = vmatprep.subr.mxu0 0.0
      %3229 = vmatpush1.msra.mxu0 0.0
      %3230 = vmatprep.subr.mxu0 0.0
      %3231 = vmatpush1.msra.mxu0 0.0
      %3232 = vmatprep.mubr.f32.mxu0 0.0
      %3233 = vmatmul.mubr.f32.gmra.mrb[0].mxu0 %v3085
      %v3234 = vpop.f32.mrb[0].mxu0
      %v3235 = vadd.f32 %v3166, %v3234
      %v3236 = vpop.f32.mrb[0].mxu0
      %3237 = vdwg.mxu0
      %v3239 = vlaneseq
      %v3240 = vshrl.u32 %v3239, 7
      %v3241 = vsub.s32 0, %v3240
      %v3242 = vrot.slane %v2988, %v3241
      %v3245 = vsel %vm1250, %v3070, 0
      %v3248 = vsel %vm1250, %v3154, 0
      %3250 = vmatprep.subr.mxu0 0.0
      %3251 = vmatpush1.xpose.msra.mxu0 %v3248
      %3252 = vmatprep.subr.mxu0 0.0
      %3253 = vmatpush1.xpose.msra.mxu0 0.0
      %3254 = vmatprep.subr.mxu0 0.0
      %3255 = vmatpush1.xpose.msra.mxu0 0.0
      %3256 = vmatprep.subr.mxu0 0.0
      %3257 = vmatpush1.xpose.msra.mxu0 0.0
      %3258 = vmatprep.subr.mxu0 0.0
      %3259 = vmatpush1.xpose.msra.mxu0 0.0
      %3260 = vmatprep.subr.mxu0 0.0
      %3261 = vmatpush1.xpose.msra.mxu0 0.0
      %3262 = vmatprep.subr.mxu0 0.0
      %3263 = vmatpush1.xpose.msra.mxu0 0.0
      %3264 = vmatprep.subr.mxu0 0.0
      %3265 = vmatpush1.xpose.msra.mxu0 0.0
      %3266 = vmatprep.subr.mxu0 0.0
      %3267 = vmatpush1.xpose.msra.mxu0 0.0
      %3268 = vmatprep.subr.mxu0 0.0
      %3269 = vmatpush1.xpose.msra.mxu0 0.0
      %3270 = vmatprep.subr.mxu0 0.0
      %3271 = vmatpush1.xpose.msra.mxu0 0.0
      %3272 = vmatprep.subr.mxu0 0.0
      %3273 = vmatpush1.xpose.msra.mxu0 0.0
      %3274 = vmatprep.subr.mxu0 0.0
      %3275 = vmatpush1.xpose.msra.mxu0 0.0
      %3276 = vmatprep.subr.mxu0 0.0
      %3277 = vmatpush1.xpose.msra.mxu0 0.0
      %3278 = vmatprep.subr.mxu0 0.0
      %3279 = vmatpush1.xpose.msra.mxu0 0.0
      %3280 = vmatprep.subr.mxu0 0.0
      %3281 = vmatpush1.xpose.msra.mxu0 0.0
      %3282 = vmatprep.subr.mxu0 0.0
      %3283 = vmatpush1.xpose.msra.mxu0 0.0
      %3284 = vmatprep.subr.mxu0 0.0
      %3285 = vmatpush1.xpose.msra.mxu0 0.0
      %3286 = vmatprep.subr.mxu0 0.0
      %3287 = vmatpush1.xpose.msra.mxu0 0.0
      %3288 = vmatprep.subr.mxu0 0.0
      %3289 = vmatpush1.xpose.msra.mxu0 0.0
      %3290 = vmatprep.subr.mxu0 0.0
      %3291 = vmatpush1.xpose.msra.mxu0 0.0
      %3292 = vmatprep.subr.mxu0 0.0
      %3293 = vmatpush1.xpose.msra.mxu0 0.0
      %3294 = vmatprep.subr.mxu0 0.0
      %3295 = vmatpush1.xpose.msra.mxu0 0.0
      %3296 = vmatprep.subr.mxu0 0.0
      %3297 = vmatpush1.xpose.msra.mxu0 0.0
      %3298 = vmatprep.subr.mxu0 0.0
      %3299 = vmatpush1.xpose.msra.mxu0 0.0
      %3300 = vmatprep.subr.mxu0 0.0
      %3301 = vmatpush1.xpose.msra.mxu0 0.0
      %3302 = vmatprep.subr.mxu0 0.0
      %3303 = vmatpush1.xpose.msra.mxu0 0.0
      %3304 = vmatprep.subr.mxu0 0.0
      %3305 = vmatpush1.xpose.msra.mxu0 0.0
      %3306 = vmatprep.subr.mxu0 0.0
      %3307 = vmatpush1.xpose.msra.mxu0 0.0
      %3308 = vmatprep.subr.mxu0 0.0
      %3309 = vmatpush1.xpose.msra.mxu0 0.0
      %3310 = vmatprep.subr.mxu0 0.0
      %3311 = vmatpush1.xpose.msra.mxu0 0.0
      %3312 = vmatprep.subr.mxu0 0.0
      %3313 = vmatpush1.xpose.msra.mxu0 0.0
      %3314 = vmatprep.mubr.f32.mxu0 0.0
      %3315 = vmatmul.mubr.f32.gmra.mrb[0].mxu0 %v3245
      %v3316 = vpop.f32.mrb[0].mxu0
      %v3317 = vadd.f32 %v3242, %v3316
      %v3318 = vpop.f32.mrb[0].mxu0
      %3319 = vdwg.mxu0
      %v3320 = vsel %vm1250, %v3317, -inf
      %3321 = vmax.xlane.f32.xlu0 %v3320
      %v3322 = vpop.xlane.xlu0 %3321
      %v3323 = vsub.f32 %v3317, %v3322
      %v3324 = vmul.f32 %v3323, 1.442695
      %v3325 = vpow.pop %v3324
      %v3326 = vsel %vm1250, %v3325, 0.0
      %3327 = vadd.xlane.f32.xlu0 %v3326
      %v3328 = vpop.xlane.xlu0 %3327
      %v3329 = vrcp.pop %v3328
      %v3330 = vmul.f32 %v3325, %v3329
      %v3332 = vsel %vm1250, %v3330, 0
      %3334 = vmatprep.subr.mxu0 0.0
      %3335 = vmatpush1.msra.mxu0 %v3235
      %3336 = vmatprep.subr.mxu0 0.0
      %3337 = vmatpush1.msra.mxu0 0.0
      %3338 = vmatprep.subr.mxu0 0.0
      %3339 = vmatpush1.msra.mxu0 0.0
      %3340 = vmatprep.subr.mxu0 0.0
      %3341 = vmatpush1.msra.mxu0 0.0
      %3342 = vmatprep.subr.mxu0 0.0
      %3343 = vmatpush1.msra.mxu0 0.0
      %3344 = vmatprep.subr.mxu0 0.0
      %3345 = vmatpush1.msra.mxu0 0.0
      %3346 = vmatprep.subr.mxu0 0.0
      %3347 = vmatpush1.msra.mxu0 0.0
      %3348 = vmatprep.subr.mxu0 0.0
      %3349 = vmatpush1.msra.mxu0 0.0
      %3350 = vmatprep.subr.mxu0 0.0
      %3351 = vmatpush1.msra.mxu0 0.0
      %3352 = vmatprep.subr.mxu0 0.0
      %3353 = vmatpush1.msra.mxu0 0.0
      %3354 = vmatprep.subr.mxu0 0.0
      %3355 = vmatpush1.msra.mxu0 0.0
      %3356 = vmatprep.subr.mxu0 0.0
      %3357 = vmatpush1.msra.mxu0 0.0
      %3358 = vmatprep.subr.mxu0 0.0
      %3359 = vmatpush1.msra.mxu0 0.0
      %3360 = vmatprep.subr.mxu0 0.0
      %3361 = vmatpush1.msra.mxu0 0.0
      %3362 = vmatprep.subr.mxu0 0.0
      %3363 = vmatpush1.msra.mxu0 0.0
      %3364 = vmatprep.subr.mxu0 0.0
      %3365 = vmatpush1.msra.mxu0 0.0
      %3366 = vmatprep.subr.mxu0 0.0
      %3367 = vmatpush1.msra.mxu0 0.0
      %3368 = vmatprep.subr.mxu0 0.0
      %3369 = vmatpush1.msra.mxu0 0.0
      %3370 = vmatprep.subr.mxu0 0.0
      %3371 = vmatpush1.msra.mxu0 0.0
      %3372 = vmatprep.subr.mxu0 0.0
      %3373 = vmatpush1.msra.mxu0 0.0
      %3374 = vmatprep.subr.mxu0 0.0
      %3375 = vmatpush1.msra.mxu0 0.0
      %3376 = vmatprep.subr.mxu0 0.0
      %3377 = vmatpush1.msra.mxu0 0.0
      %3378 = vmatprep.subr.mxu0 0.0
      %3379 = vmatpush1.msra.mxu0 0.0
      %3380 = vmatprep.subr.mxu0 0.0
      %3381 = vmatpush1.msra.mxu0 0.0
      %3382 = vmatprep.subr.mxu0 0.0
      %3383 = vmatpush1.msra.mxu0 0.0
      %3384 = vmatprep.subr.mxu0 0.0
      %3385 = vmatpush1.msra.mxu0 0.0
      %3386 = vmatprep.subr.mxu0 0.0
      %3387 = vmatpush1.msra.mxu0 0.0
      %3388 = vmatprep.subr.mxu0 0.0
      %3389 = vmatpush1.msra.mxu0 0.0
      %3390 = vmatprep.subr.mxu0 0.0
      %3391 = vmatpush1.msra.mxu0 0.0
      %3392 = vmatprep.subr.mxu0 0.0
      %3393 = vmatpush1.msra.mxu0 0.0
      %3394 = vmatprep.subr.mxu0 0.0
      %3395 = vmatpush1.msra.mxu0 0.0
      %3396 = vmatprep.subr.mxu0 0.0
      %3397 = vmatpush1.msra.mxu0 0.0
      %3398 = vmatprep.mubr.f32.mxu0 0.0
      %3399 = vmatmul.mubr.f32.gmra.mrb[0].mxu0 %v3332
      %v3400 = vpop.f32.mrb[0].mxu0
      %v3401 = vadd.f32 0.0, %v3400
      %v3402 = vpop.f32.mrb[0].mxu0
      %3403 = vdwg.mxu0
      %v3404 = vld [vmem:[%s43] sm:$0xff]
      %s3405 = scalar_lea.vmem %s31, 32
      %v3406 = vld [vmem:[%s3405] sm:$0xff]
      %v3407 = vld [vmem:[%s3405 + $0x8] sm:$0xff]
      %v3408 = vld [vmem:[%s3405 + $0x10] sm:$0xff]
      %v3409 = vld [vmem:[%s3405 + $0x18] sm:$0xff]
      %s3410 = scalar_lea.vmem %s33, 1
      %v3411 = vld [vmem:[%s3410] sm:$0x1]
      %v3413 = vlaneseq
      %v3414 = vshrl.u32 %v3413, 7
      %v3415 = vsub.s32 0, %v3414
      %v3416 = vrot.slane %v3411, %v3415
      %3418 = vmatprep.subr.mxu0 0.0
      %3419 = vmatpush1.msra.mxu0 %v3406
      %3420 = vmatprep.subr.mxu0 0.0
      %3421 = vmatpush1.msra.mxu0 %v3407
      %3422 = vmatprep.subr.mxu0 0.0
      %3423 = vmatpush1.msra.mxu0 %v3408
      %3424 = vmatprep.subr.mxu0 0.0
      %3425 = vmatpush1.msra.mxu0 %v3409
      %3426 = vmatprep.subr.mxu0 0.0
      %3427 = vmatpush1.msra.mxu0 0.0
      %3428 = vmatprep.subr.mxu0 0.0
      %3429 = vmatpush1.msra.mxu0 0.0
      %3430 = vmatprep.subr.mxu0 0.0
      %3431 = vmatpush1.msra.mxu0 0.0
      %3432 = vmatprep.subr.mxu0 0.0
      %3433 = vmatpush1.msra.mxu0 0.0
      %3434 = vmatprep.subr.mxu0 0.0
      %3435 = vmatpush1.msra.mxu0 0.0
      %3436 = vmatprep.subr.mxu0 0.0
      %3437 = vmatpush1.msra.mxu0 0.0
      %3438 = vmatprep.subr.mxu0 0.0
      %3439 = vmatpush1.msra.mxu0 0.0
      %3440 = vmatprep.subr.mxu0 0.0
      %3441 = vmatpush1.msra.mxu0 0.0
      %3442 = vmatprep.subr.mxu0 0.0
      %3443 = vmatpush1.msra.mxu0 0.0
      %3444 = vmatprep.subr.mxu0 0.0
      %3445 = vmatpush1.msra.mxu0 0.0
      %3446 = vmatprep.subr.mxu0 0.0
      %3447 = vmatpush1.msra.mxu0 0.0
      %3448 = vmatprep.subr.mxu0 0.0
      %3449 = vmatpush1.msra.mxu0 0.0
      %3450 = vmatprep.subr.mxu0 0.0
      %3451 = vmatpush1.msra.mxu0 0.0
      %3452 = vmatprep.subr.mxu0 0.0
      %3453 = vmatpush1.msra.mxu0 0.0
      %3454 = vmatprep.subr.mxu0 0.0
      %3455 = vmatpush1.msra.mxu0 0.0
      %3456 = vmatprep.subr.mxu0 0.0
      %3457 = vmatpush1.msra.mxu0 0.0
      %3458 = vmatprep.subr.mxu0 0.0
      %3459 = vmatpush1.msra.mxu0 0.0
      %3460 = vmatprep.subr.mxu0 0.0
      %3461 = vmatpush1.msra.mxu0 0.0
      %3462 = vmatprep.subr.mxu0 0.0
      %3463 = vmatpush1.msra.mxu0 0.0
      %3464 = vmatprep.subr.mxu0 0.0
      %3465 = vmatpush1.msra.mxu0 0.0
      %3466 = vmatprep.subr.mxu0 0.0
      %3467 = vmatpush1.msra.mxu0 0.0
      %3468 = vmatprep.subr.mxu0 0.0
      %3469 = vmatpush1.msra.mxu0 0.0
      %3470 = vmatprep.subr.mxu0 0.0
      %3471 = vmatpush1.msra.mxu0 0.0
      %3472 = vmatprep.subr.mxu0 0.0
      %3473 = vmatpush1.msra.mxu0 0.0
      %3474 = vmatprep.subr.mxu0 0.0
      %3475 = vmatpush1.msra.mxu0 0.0
      %3476 = vmatprep.subr.mxu0 0.0
      %3477 = vmatpush1.msra.mxu0 0.0
      %3478 = vmatprep.subr.mxu0 0.0
      %3479 = vmatpush1.msra.mxu0 0.0
      %3480 = vmatprep.subr.mxu0 0.0
      %3481 = vmatpush1.msra.mxu0 0.0
      %3482 = vmatprep.mubr.f32.mxu0 0.0
      %3483 = vmatmul.mubr.f32.gmra.mrb[0].mxu0 %v3001
      %v3484 = vpop.f32.mrb[0].mxu0
      %v3485 = vadd.f32 %v3416, %v3484
      %v3486 = vpop.f32.mrb[0].mxu0
      %3487 = vdwg.mxu0
      %s3488 = scalar_lea.vmem %s35, 32
      %v3489 = vld [vmem:[%s3488] sm:$0xff]
      %v3490 = vld [vmem:[%s3488 + $0x8] sm:$0xff]
      %v3491 = vld [vmem:[%s3488 + $0x10] sm:$0xff]
      %v3492 = vld [vmem:[%s3488 + $0x18] sm:$0xff]
      %s3493 = scalar_lea.vmem %s37, 1
      %v3494 = vld [vmem:[%s3493] sm:$0x1]
      %v3496 = vlaneseq
      %v3497 = vshrl.u32 %v3496, 7
      %v3498 = vsub.s32 0, %v3497
      %v3499 = vrot.slane %v3494, %v3498
      %3501 = vmatprep.subr.mxu0 0.0
      %3502 = vmatpush1.msra.mxu0 %v3489
      %3503 = vmatprep.subr.mxu0 0.0
      %3504 = vmatpush1.msra.mxu0 %v3490
      %3505 = vmatprep.subr.mxu0 0.0
      %3506 = vmatpush1.msra.mxu0 %v3491
      %3507 = vmatprep.subr.mxu0 0.0
      %3508 = vmatpush1.msra.mxu0 %v3492
      %3509 = vmatprep.subr.mxu0 0.0
      %3510 = vmatpush1.msra.mxu0 0.0
      %3511 = vmatprep.subr.mxu0 0.0
      %3512 = vmatpush1.msra.mxu0 0.0
      %3513 = vmatprep.subr.mxu0 0.0
      %3514 = vmatpush1.msra.mxu0 0.0
      %3515 = vmatprep.subr.mxu0 0.0
      %3516 = vmatpush1.msra.mxu0 0.0
      %3517 = vmatprep.subr.mxu0 0.0
      %3518 = vmatpush1.msra.mxu0 0.0
      %3519 = vmatprep.subr.mxu0 0.0
      %3520 = vmatpush1.msra.mxu0 0.0
      %3521 = vmatprep.subr.mxu0 0.0
      %3522 = vmatpush1.msra.mxu0 0.0
      %3523 = vmatprep.subr.mxu0 0.0
      %3524 = vmatpush1.msra.mxu0 0.0
      %3525 = vmatprep.subr.mxu0 0.0
      %3526 = vmatpush1.msra.mxu0 0.0
      %3527 = vmatprep.subr.mxu0 0.0
      %3528 = vmatpush1.msra.mxu0 0.0
      %3529 = vmatprep.subr.mxu0 0.0
      %3530 = vmatpush1.msra.mxu0 0.0
      %3531 = vmatprep.subr.mxu0 0.0
      %3532 = vmatpush1.msra.mxu0 0.0
      %3533 = vmatprep.subr.mxu0 0.0
      %3534 = vmatpush1.msra.mxu0 0.0
      %3535 = vmatprep.subr.mxu0 0.0
      %3536 = vmatpush1.msra.mxu0 0.0
      %3537 = vmatprep.subr.mxu0 0.0
      %3538 = vmatpush1.msra.mxu0 0.0
      %3539 = vmatprep.subr.mxu0 0.0
      %3540 = vmatpush1.msra.mxu0 0.0
      %3541 = vmatprep.subr.mxu0 0.0
      %3542 = vmatpush1.msra.mxu0 0.0
      %3543 = vmatprep.subr.mxu0 0.0
      %3544 = vmatpush1.msra.mxu0 0.0
      %3545 = vmatprep.subr.mxu0 0.0
      %3546 = vmatpush1.msra.mxu0 0.0
      %3547 = vmatprep.subr.mxu0 0.0
      %3548 = vmatpush1.msra.mxu0 0.0
      %3549 = vmatprep.subr.mxu0 0.0
      %3550 = vmatpush1.msra.mxu0 0.0
      %3551 = vmatprep.subr.mxu0 0.0
      %3552 = vmatpush1.msra.mxu0 0.0
      %3553 = vmatprep.subr.mxu0 0.0
      %3554 = vmatpush1.msra.mxu0 0.0
      %3555 = vmatprep.subr.mxu0 0.0
      %3556 = vmatpush1.msra.mxu0 0.0
      %3557 = vmatprep.subr.mxu0 0.0
      %3558 = vmatpush1.msra.mxu0 0.0
      %3559 = vmatprep.subr.mxu0 0.0
      %3560 = vmatpush1.msra.mxu0 0.0
      %3561 = vmatprep.subr.mxu0 0.0
      %3562 = vmatpush1.msra.mxu0 0.0
      %3563 = vmatprep.subr.mxu0 0.0
      %3564 = vmatpush1.msra.mxu0 0.0
      %3565 = vmatprep.mubr.f32.mxu0 0.0
      %3566 = vmatmul.mubr.f32.gmra.mrb[0].mxu0 %v3085
      %v3567 = vpop.f32.mrb[0].mxu0
      %v3568 = vadd.f32 %v3499, %v3567
      %v3569 = vpop.f32.mrb[0].mxu0
      %3570 = vdwg.mxu0
      %s3571 = scalar_lea.vmem %s39, 32
      %v3572 = vld [vmem:[%s3571] sm:$0xff]
      %v3573 = vld [vmem:[%s3571 + $0x8] sm:$0xff]
      %v3574 = vld [vmem:[%s3571 + $0x10] sm:$0xff]
      %v3575 = vld [vmem:[%s3571 + $0x18] sm:$0xff]
      %s3576 = scalar_lea.vmem %s41, 1
      %v3577 = vld [vmem:[%s3576] sm:$0x1]
      %v3579 = vlaneseq
      %v3580 = vshrl.u32 %v3579, 7
      %v3581 = vsub.s32 0, %v3580
      %v3582 = vrot.slane %v3577, %v3581
      %3584 = vmatprep.subr.mxu0 0.0
      %3585 = vmatpush1.msra.mxu0 %v3572
      %3586 = vmatprep.subr.mxu0 0.0
      %3587 = vmatpush1.msra.mxu0 %v3573
      %3588 = vmatprep.subr.mxu0 0.0
      %3589 = vmatpush1.msra.mxu0 %v3574
      %3590 = vmatprep.subr.mxu0 0.0
      %3591 = vmatpush1.msra.mxu0 %v3575
      %3592 = vmatprep.subr.mxu0 0.0
      %3593 = vmatpush1.msra.mxu0 0.0
      %3594 = vmatprep.subr.mxu0 0.0
      %3595 = vmatpush1.msra.mxu0 0.0
      %3596 = vmatprep.subr.mxu0 0.0
      %3597 = vmatpush1.msra.mxu0 0.0
      %3598 = vmatprep.subr.mxu0 0.0
      %3599 = vmatpush1.msra.mxu0 0.0
      %3600 = vmatprep.subr.mxu0 0.0
      %3601 = vmatpush1.msra.mxu0 0.0
      %3602 = vmatprep.subr.mxu0 0.0
      %3603 = vmatpush1.msra.mxu0 0.0
      %3604 = vmatprep.subr.mxu0 0.0
      %3605 = vmatpush1.msra.mxu0 0.0
      %3606 = vmatprep.subr.mxu0 0.0
      %3607 = vmatpush1.msra.mxu0 0.0
      %3608 = vmatprep.subr.mxu0 0.0
      %3609 = vmatpush1.msra.mxu0 0.0
      %3610 = vmatprep.subr.mxu0 0.0
      %3611 = vmatpush1.msra.mxu0 0.0
      %3612 = vmatprep.subr.mxu0 0.0
      %3613 = vmatpush1.msra.mxu0 0.0
      %3614 = vmatprep.subr.mxu0 0.0
      %3615 = vmatpush1.msra.mxu0 0.0
      %3616 = vmatprep.subr.mxu0 0.0
      %3617 = vmatpush1.msra.mxu0 0.0
      %3618 = vmatprep.subr.mxu0 0.0
      %3619 = vmatpush1.msra.mxu0 0.0
      %3620 = vmatprep.subr.mxu0 0.0
      %3621 = vmatpush1.msra.mxu0 0.0
      %3622 = vmatprep.subr.mxu0 0.0
      %3623 = vmatpush1.msra.mxu0 0.0
      %3624 = vmatprep.subr.mxu0 0.0
      %3625 = vmatpush1.msra.mxu0 0.0
      %3626 = vmatprep.subr.mxu0 0.0
      %3627 = vmatpush1.msra.mxu0 0.0
      %3628 = vmatprep.subr.mxu0 0.0
      %3629 = vmatpush1.msra.mxu0 0.0
      %3630 = vmatprep.subr.mxu0 0.0
      %3631 = vmatpush1.msra.mxu0 0.0
      %3632 = vmatprep.subr.mxu0 0.0
      %3633 = vmatpush1.msra.mxu0 0.0
      %3634 = vmatprep.subr.mxu0 0.0
      %3635 = vmatpush1.msra.mxu0 0.0
      %3636 = vmatprep.subr.mxu0 0.0
      %3637 = vmatpush1.msra.mxu0 0.0
      %3638 = vmatprep.subr.mxu0 0.0
      %3639 = vmatpush1.msra.mxu0 0.0
      %3640 = vmatprep.subr.mxu0 0.0
      %3641 = vmatpush1.msra.mxu0 0.0
      %3642 = vmatprep.subr.mxu0 0.0
      %3643 = vmatpush1.msra.mxu0 0.0
      %3644 = vmatprep.subr.mxu0 0.0
      %3645 = vmatpush1.msra.mxu0 0.0
      %3646 = vmatprep.subr.mxu0 0.0
      %3647 = vmatpush1.msra.mxu0 0.0
      %3648 = vmatprep.mubr.f32.mxu0 0.0
      %3649 = vmatmul.mubr.f32.gmra.mrb[0].mxu0 %v3085
      %v3650 = vpop.f32.mrb[0].mxu0
      %v3651 = vadd.f32 %v3582, %v3650
      %v3652 = vpop.f32.mrb[0].mxu0
      %3653 = vdwg.mxu0
      %v3655 = vsel %vm1250, %v3485, 0
      %v3658 = vsel %vm1250, %v3568, 0
      %3660 = vmatprep.subr.mxu0 0.0
      %3661 = vmatpush1.xpose.msra.mxu0 %v3658
      %3662 = vmatprep.subr.mxu0 0.0
      %3663 = vmatpush1.xpose.msra.mxu0 0.0
      %3664 = vmatprep.subr.mxu0 0.0
      %3665 = vmatpush1.xpose.msra.mxu0 0.0
      %3666 = vmatprep.subr.mxu0 0.0
      %3667 = vmatpush1.xpose.msra.mxu0 0.0
      %3668 = vmatprep.subr.mxu0 0.0
      %3669 = vmatpush1.xpose.msra.mxu0 0.0
      %3670 = vmatprep.subr.mxu0 0.0
      %3671 = vmatpush1.xpose.msra.mxu0 0.0
      %3672 = vmatprep.subr.mxu0 0.0
      %3673 = vmatpush1.xpose.msra.mxu0 0.0
      %3674 = vmatprep.subr.mxu0 0.0
      %3675 = vmatpush1.xpose.msra.mxu0 0.0
      %3676 = vmatprep.subr.mxu0 0.0
      %3677 = vmatpush1.xpose.msra.mxu0 0.0
      %3678 = vmatprep.subr.mxu0 0.0
      %3679 = vmatpush1.xpose.msra.mxu0 0.0
      %3680 = vmatprep.subr.mxu0 0.0
      %3681 = vmatpush1.xpose.msra.mxu0 0.0
      %3682 = vmatprep.subr.mxu0 0.0
      %3683 = vmatpush1.xpose.msra.mxu0 0.0
      %3684 = vmatprep.subr.mxu0 0.0
      %3685 = vmatpush1.xpose.msra.mxu0 0.0
      %3686 = vmatprep.subr.mxu0 0.0
      %3687 = vmatpush1.xpose.msra.mxu0 0.0
      %3688 = vmatprep.subr.mxu0 0.0
      %3689 = vmatpush1.xpose.msra.mxu0 0.0
      %3690 = vmatprep.subr.mxu0 0.0
      %3691 = vmatpush1.xpose.msra.mxu0 0.0
      %3692 = vmatprep.subr.mxu0 0.0
      %3693 = vmatpush1.xpose.msra.mxu0 0.0
      %3694 = vmatprep.subr.mxu0 0.0
      %3695 = vmatpush1.xpose.msra.mxu0 0.0
      %3696 = vmatprep.subr.mxu0 0.0
      %3697 = vmatpush1.xpose.msra.mxu0 0.0
      %3698 = vmatprep.subr.mxu0 0.0
      %3699 = vmatpush1.xpose.msra.mxu0 0.0
      %3700 = vmatprep.subr.mxu0 0.0
      %3701 = vmatpush1.xpose.msra.mxu0 0.0
      %3702 = vmatprep.subr.mxu0 0.0
      %3703 = vmatpush1.xpose.msra.mxu0 0.0
      %3704 = vmatprep.subr.mxu0 0.0
      %3705 = vmatpush1.xpose.msra.mxu0 0.0
      %3706 = vmatprep.subr.mxu0 0.0
      %3707 = vmatpush1.xpose.msra.mxu0 0.0
      %3708 = vmatprep.subr.mxu0 0.0
      %3709 = vmatpush1.xpose.msra.mxu0 0.0
      %3710 = vmatprep.subr.mxu0 0.0
      %3711 = vmatpush1.xpose.msra.mxu0 0.0
      %3712 = vmatprep.subr.mxu0 0.0
      %3713 = vmatpush1.xpose.msra.mxu0 0.0
      %3714 = vmatprep.subr.mxu0 0.0
      %3715 = vmatpush1.xpose.msra.mxu0 0.0
      %3716 = vmatprep.subr.mxu0 0.0
      %3717 = vmatpush1.xpose.msra.mxu0 0.0
      %3718 = vmatprep.subr.mxu0 0.0
      %3719 = vmatpush1.xpose.msra.mxu0 0.0
      %3720 = vmatprep.subr.mxu0 0.0
      %3721 = vmatpush1.xpose.msra.mxu0 0.0
      %3722 = vmatprep.subr.mxu0 0.0
      %3723 = vmatpush1.xpose.msra.mxu0 0.0
      %3724 = vmatprep.mubr.f32.mxu0 0.0
      %3725 = vmatmul.mubr.f32.gmra.mrb[0].mxu0 %v3655
      %v3726 = vpop.f32.mrb[0].mxu0
      %v3727 = vadd.f32 %v3242, %v3726
      %v3728 = vpop.f32.mrb[0].mxu0
      %3729 = vdwg.mxu0
      %v3730 = vsel %vm1250, %v3727, -inf
      %3731 = vmax.xlane.f32.xlu0 %v3730
      %v3732 = vpop.xlane.xlu0 %3731
      %v3733 = vsub.f32 %v3727, %v3732
      %v3734 = vmul.f32 %v3733, 1.442695
      %v3735 = vpow.pop %v3734
      %v3736 = vsel %vm1250, %v3735, 0.0
      %3737 = vadd.xlane.f32.xlu0 %v3736
      %v3738 = vpop.xlane.xlu0 %3737
      %v3739 = vrcp.pop %v3738
      %v3740 = vmul.f32 %v3735, %v3739
      %v3742 = vsel %vm1250, %v3740, 0
      %3744 = vmatprep.subr.mxu0 0.0
      %3745 = vmatpush1.msra.mxu0 %v3651
      %3746 = vmatprep.subr.mxu0 0.0
      %3747 = vmatpush1.msra.mxu0 0.0
      %3748 = vmatprep.subr.mxu0 0.0
      %3749 = vmatpush1.msra.mxu0 0.0
      %3750 = vmatprep.subr.mxu0 0.0
      %3751 = vmatpush1.msra.mxu0 0.0
      %3752 = vmatprep.subr.mxu0 0.0
      %3753 = vmatpush1.msra.mxu0 0.0
      %3754 = vmatprep.subr.mxu0 0.0
      %3755 = vmatpush1.msra.mxu0 0.0
      %3756 = vmatprep.subr.mxu0 0.0
      %3757 = vmatpush1.msra.mxu0 0.0
      %3758 = vmatprep.subr.mxu0 0.0
      %3759 = vmatpush1.msra.mxu0 0.0
      %3760 = vmatprep.subr.mxu0 0.0
      %3761 = vmatpush1.msra.mxu0 0.0
      %3762 = vmatprep.subr.mxu0 0.0
      %3763 = vmatpush1.msra.mxu0 0.0
      %3764 = vmatprep.subr.mxu0 0.0
      %3765 = vmatpush1.msra.mxu0 0.0
      %3766 = vmatprep.subr.mxu0 0.0
      %3767 = vmatpush1.msra.mxu0 0.0
      %3768 = vmatprep.subr.mxu0 0.0
      %3769 = vmatpush1.msra.mxu0 0.0
      %3770 = vmatprep.subr.mxu0 0.0
      %3771 = vmatpush1.msra.mxu0 0.0
      %3772 = vmatprep.subr.mxu0 0.0
      %3773 = vmatpush1.msra.mxu0 0.0
      %3774 = vmatprep.subr.mxu0 0.0
      %3775 = vmatpush1.msra.mxu0 0.0
      %3776 = vmatprep.subr.mxu0 0.0
      %3777 = vmatpush1.msra.mxu0 0.0
      %3778 = vmatprep.subr.mxu0 0.0
      %3779 = vmatpush1.msra.mxu0 0.0
      %3780 = vmatprep.subr.mxu0 0.0
      %3781 = vmatpush1.msra.mxu0 0.0
      %3782 = vmatprep.subr.mxu0 0.0
      %3783 = vmatpush1.msra.mxu0 0.0
      %3784 = vmatprep.subr.mxu0 0.0
      %3785 = vmatpush1.msra.mxu0 0.0
      %3786 = vmatprep.subr.mxu0 0.0
      %3787 = vmatpush1.msra.mxu0 0.0
      %3788 = vmatprep.subr.mxu0 0.0
      %3789 = vmatpush1.msra.mxu0 0.0
      %3790 = vmatprep.subr.mxu0 0.0
      %3791 = vmatpush1.msra.mxu0 0.0
      %3792 = vmatprep.subr.mxu0 0.0
      %3793 = vmatpush1.msra.mxu0 0.0
      %3794 = vmatprep.subr.mxu0 0.0
      %3795 = vmatpush1.msra.mxu0 0.0
      %3796 = vmatprep.subr.mxu0 0.0
      %3797 = vmatpush1.msra.mxu0 0.0
      %3798 = vmatprep.subr.mxu0 0.0
      %3799 = vmatpush1.msra.mxu0 0.0
      %3800 = vmatprep.subr.mxu0 0.0
      %3801 = vmatpush1.msra.mxu0 0.0
      %3802 = vmatprep.subr.mxu0 0.0
      %3803 = vmatpush1.msra.mxu0 0.0
      %3804 = vmatprep.subr.mxu0 0.0
      %3805 = vmatpush1.msra.mxu0 0.0
      %3806 = vmatprep.subr.mxu0 0.0
      %3807 = vmatpush1.msra.mxu0 0.0
      %3808 = vmatprep.mubr.f32.mxu0 0.0
      %3809 = vmatmul.mubr.f32.gmra.mrb[0].mxu0 %v3742
      %v3810 = vpop.f32.mrb[0].mxu0
      %v3811 = vadd.f32 0.0, %v3810
      %v3812 = vpop.f32.mrb[0].mxu0
      %3813 = vdwg.mxu0
      %s3814 = scalar_lea.vmem %s43, 8
      %v3815 = vld [vmem:[%s3814] sm:$0xff]
      %v3817 = vsel %vm1250, %v3811, 0
      %3819 = vmatprep.subr.mxu0 0.0
      %3820 = vmatpush1.msra.mxu0 %v3815
      %3821 = vmatprep.subr.mxu0 0.0
      %3822 = vmatpush1.msra.mxu0 0.0
      %3823 = vmatprep.subr.mxu0 0.0
      %3824 = vmatpush1.msra.mxu0 0.0
      %3825 = vmatprep.subr.mxu0 0.0
      %3826 = vmatpush1.msra.mxu0 0.0
      %3827 = vmatprep.subr.mxu0 0.0
      %3828 = vmatpush1.msra.mxu0 0.0
      %3829 = vmatprep.subr.mxu0 0.0
      %3830 = vmatpush1.msra.mxu0 0.0
      %3831 = vmatprep.subr.mxu0 0.0
      %3832 = vmatpush1.msra.mxu0 0.0
      %3833 = vmatprep.subr.mxu0 0.0
      %3834 = vmatpush1.msra.mxu0 0.0
      %3835 = vmatprep.subr.mxu0 0.0
      %3836 = vmatpush1.msra.mxu0 0.0
      %3837 = vmatprep.subr.mxu0 0.0
      %3838 = vmatpush1.msra.mxu0 0.0
      %3839 = vmatprep.subr.mxu0 0.0
      %3840 = vmatpush1.msra.mxu0 0.0
      %3841 = vmatprep.subr.mxu0 0.0
      %3842 = vmatpush1.msra.mxu0 0.0
      %3843 = vmatprep.subr.mxu0 0.0
      %3844 = vmatpush1.msra.mxu0 0.0
      %3845 = vmatprep.subr.mxu0 0.0
      %3846 = vmatpush1.msra.mxu0 0.0
      %3847 = vmatprep.subr.mxu0 0.0
      %3848 = vmatpush1.msra.mxu0 0.0
      %3849 = vmatprep.subr.mxu0 0.0
      %3850 = vmatpush1.msra.mxu0 0.0
      %3851 = vmatprep.subr.mxu0 0.0
      %3852 = vmatpush1.msra.mxu0 0.0
      %3853 = vmatprep.subr.mxu0 0.0
      %3854 = vmatpush1.msra.mxu0 0.0
      %3855 = vmatprep.subr.mxu0 0.0
      %3856 = vmatpush1.msra.mxu0 0.0
      %3857 = vmatprep.subr.mxu0 0.0
      %3858 = vmatpush1.msra.mxu0 0.0
      %3859 = vmatprep.subr.mxu0 0.0
      %3860 = vmatpush1.msra.mxu0 0.0
      %3861 = vmatprep.subr.mxu0 0.0
      %3862 = vmatpush1.msra.mxu0 0.0
      %3863 = vmatprep.subr.mxu0 0.0
      %3864 = vmatpush1.msra.mxu0 0.0
      %3865 = vmatprep.subr.mxu0 0.0
      %3866 = vmatpush1.msra.mxu0 0.0
      %3867 = vmatprep.subr.mxu0 0.0
      %3868 = vmatpush1.msra.mxu0 0.0
      %3869 = vmatprep.subr.mxu0 0.0
      %3870 = vmatpush1.msra.mxu0 0.0
      %3871 = vmatprep.subr.mxu0 0.0
      %3872 = vmatpush1.msra.mxu0 0.0
      %3873 = vmatprep.subr.mxu0 0.0
      %3874 = vmatpush1.msra.mxu0 0.0
      %3875 = vmatprep.subr.mxu0 0.0
      %3876 = vmatpush1.msra.mxu0 0.0
      %3877 = vmatprep.subr.mxu0 0.0
      %3878 = vmatpush1.msra.mxu0 0.0
      %3879 = vmatprep.subr.mxu0 0.0
      %3880 = vmatpush1.msra.mxu0 0.0
      %3881 = vmatprep.subr.mxu0 0.0
      %3882 = vmatpush1.msra.mxu0 0.0
      %3883 = vmatprep.mubr.f32.mxu0 0.0
      %3884 = vmatmul.mubr.f32.gmra.mrb[0].mxu0 %v3817
      %v3885 = vpop.f32.mrb[0].mxu0
      %v3886 = vadd.f32 0.0, %v3885
      %v3887 = vpop.f32.mrb[0].mxu0
      %3888 = vdwg.mxu0
      %v3890 = vsel %vm1250, %v3401, 0
      %3892 = vmatprep.subr.mxu0 0.0
      %3893 = vmatpush1.msra.mxu0 %v3404
      %3894 = vmatprep.subr.mxu0 0.0
      %3895 = vmatpush1.msra.mxu0 0.0
      %3896 = vmatprep.subr.mxu0 0.0
      %3897 = vmatpush1.msra.mxu0 0.0
      %3898 = vmatprep.subr.mxu0 0.0
      %3899 = vmatpush1.msra.mxu0 0.0
      %3900 = vmatprep.subr.mxu0 0.0
      %3901 = vmatpush1.msra.mxu0 0.0
      %3902 = vmatprep.subr.mxu0 0.0
      %3903 = vmatpush1.msra.mxu0 0.0
      %3904 = vmatprep.subr.mxu0 0.0
      %3905 = vmatpush1.msra.mxu0 0.0
      %3906 = vmatprep.subr.mxu0 0.0
      %3907 = vmatpush1.msra.mxu0 0.0
      %3908 = vmatprep.subr.mxu0 0.0
      %3909 = vmatpush1.msra.mxu0 0.0
      %3910 = vmatprep.subr.mxu0 0.0
      %3911 = vmatpush1.msra.mxu0 0.0
      %3912 = vmatprep.subr.mxu0 0.0
      %3913 = vmatpush1.msra.mxu0 0.0
      %3914 = vmatprep.subr.mxu0 0.0
      %3915 = vmatpush1.msra.mxu0 0.0
      %3916 = vmatprep.subr.mxu0 0.0
      %3917 = vmatpush1.msra.mxu0 0.0
      %3918 = vmatprep.subr.mxu0 0.0
      %3919 = vmatpush1.msra.mxu0 0.0
      %3920 = vmatprep.subr.mxu0 0.0
      %3921 = vmatpush1.msra.mxu0 0.0
      %3922 = vmatprep.subr.mxu0 0.0
      %3923 = vmatpush1.msra.mxu0 0.0
      %3924 = vmatprep.subr.mxu0 0.0
      %3925 = vmatpush1.msra.mxu0 0.0
      %3926 = vmatprep.subr.mxu0 0.0
      %3927 = vmatpush1.msra.mxu0 0.0
      %3928 = vmatprep.subr.mxu0 0.0
      %3929 = vmatpush1.msra.mxu0 0.0
      %3930 = vmatprep.subr.mxu0 0.0
      %3931 = vmatpush1.msra.mxu0 0.0
      %3932 = vmatprep.subr.mxu0 0.0
      %3933 = vmatpush1.msra.mxu0 0.0
      %3934 = vmatprep.subr.mxu0 0.0
      %3935 = vmatpush1.msra.mxu0 0.0
      %3936 = vmatprep.subr.mxu0 0.0
      %3937 = vmatpush1.msra.mxu0 0.0
      %3938 = vmatprep.subr.mxu0 0.0
      %3939 = vmatpush1.msra.mxu0 0.0
      %3940 = vmatprep.subr.mxu0 0.0
      %3941 = vmatpush1.msra.mxu0 0.0
      %3942 = vmatprep.subr.mxu0 0.0
      %3943 = vmatpush1.msra.mxu0 0.0
      %3944 = vmatprep.subr.mxu0 0.0
      %3945 = vmatpush1.msra.mxu0 0.0
      %3946 = vmatprep.subr.mxu0 0.0
      %3947 = vmatpush1.msra.mxu0 0.0
      %3948 = vmatprep.subr.mxu0 0.0
      %3949 = vmatpush1.msra.mxu0 0.0
      %3950 = vmatprep.subr.mxu0 0.0
      %3951 = vmatpush1.msra.mxu0 0.0
      %3952 = vmatprep.subr.mxu0 0.0
      %3953 = vmatpush1.msra.mxu0 0.0
      %3954 = vmatprep.subr.mxu0 0.0
      %3955 = vmatpush1.msra.mxu0 0.0
      %3956 = vmatprep.mubr.f32.mxu0 0.0
      %3957 = vmatmul.mubr.f32.gmra.mrb[0].mxu0 %v3890
      %v3958 = vpop.f32.mrb[0].mxu0
      %v3959 = vadd.f32 %v3886, %v3958
      %v3960 = vpop.f32.mrb[0].mxu0
      %3961 = vdwg.mxu0
      %s3962 = scalar_lea.vmem %s31, 64
      %v3963 = vld [vmem:[%s3962] sm:$0xff]
      %v3964 = vld [vmem:[%s3962 + $0x8] sm:$0xff]
      %v3965 = vld [vmem:[%s3962 + $0x10] sm:$0xff]
      %v3966 = vld [vmem:[%s3962 + $0x18] sm:$0xff]
      %s3967 = scalar_lea.vmem %s33, 2
      %v3968 = vld [vmem:[%s3967] sm:$0x1]
      %v3970 = vlaneseq
      %v3971 = vshrl.u32 %v3970, 7
      %v3972 = vsub.s32 0, %v3971
      %v3973 = vrot.slane %v3968, %v3972
      %3975 = vmatprep.subr.mxu0 0.0
      %3976 = vmatpush1.msra.mxu0 %v3963
      %3977 = vmatprep.subr.mxu0 0.0
      %3978 = vmatpush1.msra.mxu0 %v3964
      %3979 = vmatprep.subr.mxu0 0.0
      %3980 = vmatpush1.msra.mxu0 %v3965
      %3981 = vmatprep.subr.mxu0 0.0
      %3982 = vmatpush1.msra.mxu0 %v3966
      %3983 = vmatprep.subr.mxu0 0.0
      %3984 = vmatpush1.msra.mxu0 0.0
      %3985 = vmatprep.subr.mxu0 0.0
      %3986 = vmatpush1.msra.mxu0 0.0
      %3987 = vmatprep.subr.mxu0 0.0
      %3988 = vmatpush1.msra.mxu0 0.0
      %3989 = vmatprep.subr.mxu0 0.0
      %3990 = vmatpush1.msra.mxu0 0.0
      %3991 = vmatprep.subr.mxu0 0.0
      %3992 = vmatpush1.msra.mxu0 0.0
      %3993 = vmatprep.subr.mxu0 0.0
      %3994 = vmatpush1.msra.mxu0 0.0
      %3995 = vmatprep.subr.mxu0 0.0
      %3996 = vmatpush1.msra.mxu0 0.0
      %3997 = vmatprep.subr.mxu0 0.0
      %3998 = vmatpush1.msra.mxu0 0.0
      %3999 = vmatprep.subr.mxu0 0.0
      %4000 = vmatpush1.msra.mxu0 0.0
      %4001 = vmatprep.subr.mxu0 0.0
      %4002 = vmatpush1.msra.mxu0 0.0
      %4003 = vmatprep.subr.mxu0 0.0
      %4004 = vmatpush1.msra.mxu0 0.0
      %4005 = vmatprep.subr.mxu0 0.0
      %4006 = vmatpush1.msra.mxu0 0.0
      %4007 = vmatprep.subr.mxu0 0.0
      %4008 = vmatpush1.msra.mxu0 0.0
      %4009 = vmatprep.subr.mxu0 0.0
      %4010 = vmatpush1.msra.mxu0 0.0
      %4011 = vmatprep.subr.mxu0 0.0
      %4012 = vmatpush1.msra.mxu0 0.0
      %4013 = vmatprep.subr.mxu0 0.0
      %4014 = vmatpush1.msra.mxu0 0.0
      %4015 = vmatprep.subr.mxu0 0.0
      %4016 = vmatpush1.msra.mxu0 0.0
      %4017 = vmatprep.subr.mxu0 0.0
      %4018 = vmatpush1.msra.mxu0 0.0
      %4019 = vmatprep.subr.mxu0 0.0
      %4020 = vmatpush1.msra.mxu0 0.0
      %4021 = vmatprep.subr.mxu0 0.0
      %4022 = vmatpush1.msra.mxu0 0.0
      %4023 = vmatprep.subr.mxu0 0.0
      %4024 = vmatpush1.msra.mxu0 0.0
      %4025 = vmatprep.subr.mxu0 0.0
      %4026 = vmatpush1.msra.mxu0 0.0
      %4027 = vmatprep.subr.mxu0 0.0
      %4028 = vmatpush1.msra.mxu0 0.0
      %4029 = vmatprep.subr.mxu0 0.0
      %4030 = vmatpush1.msra.mxu0 0.0
      %4031 = vmatprep.subr.mxu0 0.0
      %4032 = vmatpush1.msra.mxu0 0.0
      %4033 = vmatprep.subr.mxu0 0.0
      %4034 = vmatpush1.msra.mxu0 0.0
      %4035 = vmatprep.subr.mxu0 0.0
      %4036 = vmatpush1.msra.mxu0 0.0
      %4037 = vmatprep.subr.mxu0 0.0
      %4038 = vmatpush1.msra.mxu0 0.0
      %4039 = vmatprep.mubr.f32.mxu0 0.0
      %4040 = vmatmul.mubr.f32.gmra.mrb[0].mxu0 %v3001
      %v4041 = vpop.f32.mrb[0].mxu0
      %v4042 = vadd.f32 %v3973, %v4041
      %v4043 = vpop.f32.mrb[0].mxu0
      %4044 = vdwg.mxu0
      %s4045 = scalar_lea.vmem %s35, 64
      %v4046 = vld [vmem:[%s4045] sm:$0xff]
      %v4047 = vld [vmem:[%s4045 + $0x8] sm:$0xff]
      %v4048 = vld [vmem:[%s4045 + $0x10] sm:$0xff]
      %v4049 = vld [vmem:[%s4045 + $0x18] sm:$0xff]
      %s4050 = scalar_lea.vmem %s37, 2
      %v4051 = vld [vmem:[%s4050] sm:$0x1]
      %v4053 = vlaneseq
      %v4054 = vshrl.u32 %v4053, 7
      %v4055 = vsub.s32 0, %v4054
      %v4056 = vrot.slane %v4051, %v4055
      %4058 = vmatprep.subr.mxu0 0.0
      %4059 = vmatpush1.msra.mxu0 %v4046
      %4060 = vmatprep.subr.mxu0 0.0
      %4061 = vmatpush1.msra.mxu0 %v4047
      %4062 = vmatprep.subr.mxu0 0.0
      %4063 = vmatpush1.msra.mxu0 %v4048
      %4064 = vmatprep.subr.mxu0 0.0
      %4065 = vmatpush1.msra.mxu0 %v4049
      %4066 = vmatprep.subr.mxu0 0.0
      %4067 = vmatpush1.msra.mxu0 0.0
      %4068 = vmatprep.subr.mxu0 0.0
      %4069 = vmatpush1.msra.mxu0 0.0
      %4070 = vmatprep.subr.mxu0 0.0
      %4071 = vmatpush1.msra.mxu0 0.0
      %4072 = vmatprep.subr.mxu0 0.0
      %4073 = vmatpush1.msra.mxu0 0.0
      %4074 = vmatprep.subr.mxu0 0.0
      %4075 = vmatpush1.msra.mxu0 0.0
      %4076 = vmatprep.subr.mxu0 0.0
      %4077 = vmatpush1.msra.mxu0 0.0
      %4078 = vmatprep.subr.mxu0 0.0
      %4079 = vmatpush1.msra.mxu0 0.0
      %4080 = vmatprep.subr.mxu0 0.0
      %4081 = vmatpush1.msra.mxu0 0.0
      %4082 = vmatprep.subr.mxu0 0.0
      %4083 = vmatpush1.msra.mxu0 0.0
      %4084 = vmatprep.subr.mxu0 0.0
      %4085 = vmatpush1.msra.mxu0 0.0
      %4086 = vmatprep.subr.mxu0 0.0
      %4087 = vmatpush1.msra.mxu0 0.0
      %4088 = vmatprep.subr.mxu0 0.0
      %4089 = vmatpush1.msra.mxu0 0.0
      %4090 = vmatprep.subr.mxu0 0.0
      %4091 = vmatpush1.msra.mxu0 0.0
      %4092 = vmatprep.subr.mxu0 0.0
      %4093 = vmatpush1.msra.mxu0 0.0
      %4094 = vmatprep.subr.mxu0 0.0
      %4095 = vmatpush1.msra.mxu0 0.0
      %4096 = vmatprep.subr.mxu0 0.0
      %4097 = vmatpush1.msra.mxu0 0.0
      %4098 = vmatprep.subr.mxu0 0.0
      %4099 = vmatpush1.msra.mxu0 0.0
      %4100 = vmatprep.subr.mxu0 0.0
      %4101 = vmatpush1.msra.mxu0 0.0
      %4102 = vmatprep.subr.mxu0 0.0
      %4103 = vmatpush1.msra.mxu0 0.0
      %4104 = vmatprep.subr.mxu0 0.0
      %4105 = vmatpush1.msra.mxu0 0.0
      %4106 = vmatprep.subr.mxu0 0.0
      %4107 = vmatpush1.msra.mxu0 0.0
      %4108 = vmatprep.subr.mxu0 0.0
      %4109 = vmatpush1.msra.mxu0 0.0
      %4110 = vmatprep.subr.mxu0 0.0
      %4111 = vmatpush1.msra.mxu0 0.0
      %4112 = vmatprep.subr.mxu0 0.0
      %4113 = vmatpush1.msra.mxu0 0.0
      %4114 = vmatprep.subr.mxu0 0.0
      %4115 = vmatpush1.msra.mxu0 0.0
      %4116 = vmatprep.subr.mxu0 0.0
      %4117 = vmatpush1.msra.mxu0 0.0
      %4118 = vmatprep.subr.mxu0 0.0
      %4119 = vmatpush1.msra.mxu0 0.0
      %4120 = vmatprep.subr.mxu0 0.0
      %4121 = vmatpush1.msra.mxu0 0.0
      %4122 = vmatprep.mubr.f32.mxu0 0.0
      %4123 = vmatmul.mubr.f32.gmra.mrb[0].mxu0 %v3085
      %v4124 = vpop.f32.mrb[0].mxu0
      %v4125 = vadd.f32 %v4056, %v4124
      %v4126 = vpop.f32.mrb[0].mxu0
      %4127 = vdwg.mxu0
      %s4128 = scalar_lea.vmem %s39, 64
      %v4129 = vld [vmem:[%s4128] sm:$0xff]
      %v4130 = vld [vmem:[%s4128 + $0x8] sm:$0xff]
      %v4131 = vld [vmem:[%s4128 + $0x10] sm:$0xff]
      %v4132 = vld [vmem:[%s4128 + $0x18] sm:$0xff]
      %s4133 = scalar_lea.vmem %s41, 2
      %v4134 = vld [vmem:[%s4133] sm:$0x1]
      %v4136 = vlaneseq
      %v4137 = vshrl.u32 %v4136, 7
      %v4138 = vsub.s32 0, %v4137
      %v4139 = vrot.slane %v4134, %v4138
      %4141 = vmatprep.subr.mxu0 0.0
      %4142 = vmatpush1.msra.mxu0 %v4129
      %4143 = vmatprep.subr.mxu0 0.0
      %4144 = vmatpush1.msra.mxu0 %v4130
      %4145 = vmatprep.subr.mxu0 0.0
      %4146 = vmatpush1.msra.mxu0 %v4131
      %4147 = vmatprep.subr.mxu0 0.0
      %4148 = vmatpush1.msra.mxu0 %v4132
      %4149 = vmatprep.subr.mxu0 0.0
      %4150 = vmatpush1.msra.mxu0 0.0
      %4151 = vmatprep.subr.mxu0 0.0
      %4152 = vmatpush1.msra.mxu0 0.0
      %4153 = vmatprep.subr.mxu0 0.0
      %4154 = vmatpush1.msra.mxu0 0.0
      %4155 = vmatprep.subr.mxu0 0.0
      %4156 = vmatpush1.msra.mxu0 0.0
      %4157 = vmatprep.subr.mxu0 0.0
      %4158 = vmatpush1.msra.mxu0 0.0
      %4159 = vmatprep.subr.mxu0 0.0
      %4160 = vmatpush1.msra.mxu0 0.0
      %4161 = vmatprep.subr.mxu0 0.0
      %4162 = vmatpush1.msra.mxu0 0.0
      %4163 = vmatprep.subr.mxu0 0.0
      %4164 = vmatpush1.msra.mxu0 0.0
      %4165 = vmatprep.subr.mxu0 0.0
      %4166 = vmatpush1.msra.mxu0 0.0
      %4167 = vmatprep.subr.mxu0 0.0
      %4168 = vmatpush1.msra.mxu0 0.0
      %4169 = vmatprep.subr.mxu0 0.0
      %4170 = vmatpush1.msra.mxu0 0.0
      %4171 = vmatprep.subr.mxu0 0.0
      %4172 = vmatpush1.msra.mxu0 0.0
      %4173 = vmatprep.subr.mxu0 0.0
      %4174 = vmatpush1.msra.mxu0 0.0
      %4175 = vmatprep.subr.mxu0 0.0
      %4176 = vmatpush1.msra.mxu0 0.0
      %4177 = vmatprep.subr.mxu0 0.0
      %4178 = vmatpush1.msra.mxu0 0.0
      %4179 = vmatprep.subr.mxu0 0.0
      %4180 = vmatpush1.msra.mxu0 0.0
      %4181 = vmatprep.subr.mxu0 0.0
      %4182 = vmatpush1.msra.mxu0 0.0
      %4183 = vmatprep.subr.mxu0 0.0
      %4184 = vmatpush1.msra.mxu0 0.0
      %4185 = vmatprep.subr.mxu0 0.0
      %4186 = vmatpush1.msra.mxu0 0.0
      %4187 = vmatprep.subr.mxu0 0.0
      %4188 = vmatpush1.msra.mxu0 0.0
      %4189 = vmatprep.subr.mxu0 0.0
      %4190 = vmatpush1.msra.mxu0 0.0
      %4191 = vmatprep.subr.mxu0 0.0
      %4192 = vmatpush1.msra.mxu0 0.0
      %4193 = vmatprep.subr.mxu0 0.0
      %4194 = vmatpush1.msra.mxu0 0.0
      %4195 = vmatprep.subr.mxu0 0.0
      %4196 = vmatpush1.msra.mxu0 0.0
      %4197 = vmatprep.subr.mxu0 0.0
      %4198 = vmatpush1.msra.mxu0 0.0
      %4199 = vmatprep.subr.mxu0 0.0
      %4200 = vmatpush1.msra.mxu0 0.0
      %4201 = vmatprep.subr.mxu0 0.0
      %4202 = vmatpush1.msra.mxu0 0.0
      %4203 = vmatprep.subr.mxu0 0.0
      %4204 = vmatpush1.msra.mxu0 0.0
      %4205 = vmatprep.mubr.f32.mxu0 0.0
      %4206 = vmatmul.mubr.f32.gmra.mrb[0].mxu0 %v3085
      %v4207 = vpop.f32.mrb[0].mxu0
      %v4208 = vadd.f32 %v4139, %v4207
      %v4209 = vpop.f32.mrb[0].mxu0
      %4210 = vdwg.mxu0
      %v4212 = vsel %vm1250, %v4042, 0
      %v4215 = vsel %vm1250, %v4125, 0
      %4217 = vmatprep.subr.mxu0 0.0
      %4218 = vmatpush1.xpose.msra.mxu0 %v4215
      %4219 = vmatprep.subr.mxu0 0.0
      %4220 = vmatpush1.xpose.msra.mxu0 0.0
      %4221 = vmatprep.subr.mxu0 0.0
      %4222 = vmatpush1.xpose.msra.mxu0 0.0
      %4223 = vmatprep.subr.mxu0 0.0
      %4224 = vmatpush1.xpose.msra.mxu0 0.0
      %4225 = vmatprep.subr.mxu0 0.0
      %4226 = vmatpush1.xpose.msra.mxu0 0.0
      %4227 = vmatprep.subr.mxu0 0.0
      %4228 = vmatpush1.xpose.msra.mxu0 0.0
      %4229 = vmatprep.subr.mxu0 0.0
      %4230 = vmatpush1.xpose.msra.mxu0 0.0
      %4231 = vmatprep.subr.mxu0 0.0
      %4232 = vmatpush1.xpose.msra.mxu0 0.0
      %4233 = vmatprep.subr.mxu0 0.0
      %4234 = vmatpush1.xpose.msra.mxu0 0.0
      %4235 = vmatprep.subr.mxu0 0.0
      %4236 = vmatpush1.xpose.msra.mxu0 0.0
      %4237 = vmatprep.subr.mxu0 0.0
      %4238 = vmatpush1.xpose.msra.mxu0 0.0
      %4239 = vmatprep.subr.mxu0 0.0
      %4240 = vmatpush1.xpose.msra.mxu0 0.0
      %4241 = vmatprep.subr.mxu0 0.0
      %4242 = vmatpush1.xpose.msra.mxu0 0.0
      %4243 = vmatprep.subr.mxu0 0.0
      %4244 = vmatpush1.xpose.msra.mxu0 0.0
      %4245 = vmatprep.subr.mxu0 0.0
      %4246 = vmatpush1.xpose.msra.mxu0 0.0
      %4247 = vmatprep.subr.mxu0 0.0
      %4248 = vmatpush1.xpose.msra.mxu0 0.0
      %4249 = vmatprep.subr.mxu0 0.0
      %4250 = vmatpush1.xpose.msra.mxu0 0.0
      %4251 = vmatprep.subr.mxu0 0.0
      %4252 = vmatpush1.xpose.msra.mxu0 0.0
      %4253 = vmatprep.subr.mxu0 0.0
      %4254 = vmatpush1.xpose.msra.mxu0 0.0
      %4255 = vmatprep.subr.mxu0 0.0
      %4256 = vmatpush1.xpose.msra.mxu0 0.0
      %4257 = vmatprep.subr.mxu0 0.0
      %4258 = vmatpush1.xpose.msra.mxu0 0.0
      %4259 = vmatprep.subr.mxu0 0.0
      %4260 = vmatpush1.xpose.msra.mxu0 0.0
      %4261 = vmatprep.subr.mxu0 0.0
      %4262 = vmatpush1.xpose.msra.mxu0 0.0
      %4263 = vmatprep.subr.mxu0 0.0
      %4264 = vmatpush1.xpose.msra.mxu0 0.0
      %4265 = vmatprep.subr.mxu0 0.0
      %4266 = vmatpush1.xpose.msra.mxu0 0.0
      %4267 = vmatprep.subr.mxu0 0.0
      %4268 = vmatpush1.xpose.msra.mxu0 0.0
      %4269 = vmatprep.subr.mxu0 0.0
      %4270 = vmatpush1.xpose.msra.mxu0 0.0
      %4271 = vmatprep.subr.mxu0 0.0
      %4272 = vmatpush1.xpose.msra.mxu0 0.0
      %4273 = vmatprep.subr.mxu0 0.0
      %4274 = vmatpush1.xpose.msra.mxu0 0.0
      %4275 = vmatprep.subr.mxu0 0.0
      %4276 = vmatpush1.xpose.msra.mxu0 0.0
      %4277 = vmatprep.subr.mxu0 0.0
      %4278 = vmatpush1.xpose.msra.mxu0 0.0
      %4279 = vmatprep.subr.mxu0 0.0
      %4280 = vmatpush1.xpose.msra.mxu0 0.0
      %4281 = vmatprep.mubr.f32.mxu0 0.0
      %4282 = vmatmul.mubr.f32.gmra.mrb[0].mxu0 %v4212
      %v4283 = vpop.f32.mrb[0].mxu0
      %v4284 = vadd.f32 %v3242, %v4283
      %v4285 = vpop.f32.mrb[0].mxu0
      %4286 = vdwg.mxu0
      %v4287 = vsel %vm1250, %v4284, -inf
      %4288 = vmax.xlane.f32.xlu0 %v4287
      %v4289 = vpop.xlane.xlu0 %4288
      %v4290 = vsub.f32 %v4284, %v4289
      %v4291 = vmul.f32 %v4290, 1.442695
      %v4292 = vpow.pop %v4291
      %v4293 = vsel %vm1250, %v4292, 0.0
      %4294 = vadd.xlane.f32.xlu0 %v4293
      %v4295 = vpop.xlane.xlu0 %4294
      %v4296 = vrcp.pop %v4295
      %v4297 = vmul.f32 %v4292, %v4296
      %v4299 = vsel %vm1250, %v4297, 0
      %4301 = vmatprep.subr.mxu0 0.0
      %4302 = vmatpush1.msra.mxu0 %v4208
      %4303 = vmatprep.subr.mxu0 0.0
      %4304 = vmatpush1.msra.mxu0 0.0
      %4305 = vmatprep.subr.mxu0 0.0
      %4306 = vmatpush1.msra.mxu0 0.0
      %4307 = vmatprep.subr.mxu0 0.0
      %4308 = vmatpush1.msra.mxu0 0.0
      %4309 = vmatprep.subr.mxu0 0.0
      %4310 = vmatpush1.msra.mxu0 0.0
      %4311 = vmatprep.subr.mxu0 0.0
      %4312 = vmatpush1.msra.mxu0 0.0
      %4313 = vmatprep.subr.mxu0 0.0
      %4314 = vmatpush1.msra.mxu0 0.0
      %4315 = vmatprep.subr.mxu0 0.0
      %4316 = vmatpush1.msra.mxu0 0.0
      %4317 = vmatprep.subr.mxu0 0.0
      %4318 = vmatpush1.msra.mxu0 0.0
      %4319 = vmatprep.subr.mxu0 0.0
      %4320 = vmatpush1.msra.mxu0 0.0
      %4321 = vmatprep.subr.mxu0 0.0
      %4322 = vmatpush1.msra.mxu0 0.0
      %4323 = vmatprep.subr.mxu0 0.0
      %4324 = vmatpush1.msra.mxu0 0.0
      %4325 = vmatprep.subr.mxu0 0.0
      %4326 = vmatpush1.msra.mxu0 0.0
      %4327 = vmatprep.subr.mxu0 0.0
      %4328 = vmatpush1.msra.mxu0 0.0
      %4329 = vmatprep.subr.mxu0 0.0
      %4330 = vmatpush1.msra.mxu0 0.0
      %4331 = vmatprep.subr.mxu0 0.0
      %4332 = vmatpush1.msra.mxu0 0.0
      %4333 = vmatprep.subr.mxu0 0.0
      %4334 = vmatpush1.msra.mxu0 0.0
      %4335 = vmatprep.subr.mxu0 0.0
      %4336 = vmatpush1.msra.mxu0 0.0
      %4337 = vmatprep.subr.mxu0 0.0
      %4338 = vmatpush1.msra.mxu0 0.0
      %4339 = vmatprep.subr.mxu0 0.0
      %4340 = vmatpush1.msra.mxu0 0.0
      %4341 = vmatprep.subr.mxu0 0.0
      %4342 = vmatpush1.msra.mxu0 0.0
      %4343 = vmatprep.subr.mxu0 0.0
      %4344 = vmatpush1.msra.mxu0 0.0
      %4345 = vmatprep.subr.mxu0 0.0
      %4346 = vmatpush1.msra.mxu0 0.0
      %4347 = vmatprep.subr.mxu0 0.0
      %4348 = vmatpush1.msra.mxu0 0.0
      %4349 = vmatprep.subr.mxu0 0.0
      %4350 = vmatpush1.msra.mxu0 0.0
      %4351 = vmatprep.subr.mxu0 0.0
      %4352 = vmatpush1.msra.mxu0 0.0
      %4353 = vmatprep.subr.mxu0 0.0
      %4354 = vmatpush1.msra.mxu0 0.0
      %4355 = vmatprep.subr.mxu0 0.0
      %4356 = vmatpush1.msra.mxu0 0.0
      %4357 = vmatprep.subr.mxu0 0.0
      %4358 = vmatpush1.msra.mxu0 0.0
      %4359 = vmatprep.subr.mxu0 0.0
      %4360 = vmatpush1.msra.mxu0 0.0
      %4361 = vmatprep.subr.mxu0 0.0
      %4362 = vmatpush1.msra.mxu0 0.0
      %4363 = vmatprep.subr.mxu0 0.0
      %4364 = vmatpush1.msra.mxu0 0.0
      %4365 = vmatprep.mubr.f32.mxu0 0.0
      %4366 = vmatmul.mubr.f32.gmra.mrb[0].mxu0 %v4299
      %v4367 = vpop.f32.mrb[0].mxu0
      %v4368 = vadd.f32 0.0, %v4367
      %v4369 = vpop.f32.mrb[0].mxu0
      %4370 = vdwg.mxu0
      %s4371 = scalar_lea.vmem %s43, 16
      %v4372 = vld [vmem:[%s4371] sm:$0xff]
      %v4374 = vsel %vm1250, %v4368, 0
      %4376 = vmatprep.subr.mxu0 0.0
      %4377 = vmatpush1.msra.mxu0 %v4372
      %4378 = vmatprep.subr.mxu0 0.0
      %4379 = vmatpush1.msra.mxu0 0.0
      %4380 = vmatprep.subr.mxu0 0.0
      %4381 = vmatpush1.msra.mxu0 0.0
      %4382 = vmatprep.subr.mxu0 0.0
      %4383 = vmatpush1.msra.mxu0 0.0
      %4384 = vmatprep.subr.mxu0 0.0
      %4385 = vmatpush1.msra.mxu0 0.0
      %4386 = vmatprep.subr.mxu0 0.0
      %4387 = vmatpush1.msra.mxu0 0.0
      %4388 = vmatprep.subr.mxu0 0.0
      %4389 = vmatpush1.msra.mxu0 0.0
      %4390 = vmatprep.subr.mxu0 0.0
      %4391 = vmatpush1.msra.mxu0 0.0
      %4392 = vmatprep.subr.mxu0 0.0
      %4393 = vmatpush1.msra.mxu0 0.0
      %4394 = vmatprep.subr.mxu0 0.0
      %4395 = vmatpush1.msra.mxu0 0.0
      %4396 = vmatprep.subr.mxu0 0.0
      %4397 = vmatpush1.msra.mxu0 0.0
      %4398 = vmatprep.subr.mxu0 0.0
      %4399 = vmatpush1.msra.mxu0 0.0
      %4400 = vmatprep.subr.mxu0 0.0
      %4401 = vmatpush1.msra.mxu0 0.0
      %4402 = vmatprep.subr.mxu0 0.0
      %4403 = vmatpush1.msra.mxu0 0.0
      %4404 = vmatprep.subr.mxu0 0.0
      %4405 = vmatpush1.msra.mxu0 0.0
      %4406 = vmatprep.subr.mxu0 0.0
      %4407 = vmatpush1.msra.mxu0 0.0
      %4408 = vmatprep.subr.mxu0 0.0
      %4409 = vmatpush1.msra.mxu0 0.0
      %4410 = vmatprep.subr.mxu0 0.0
      %4411 = vmatpush1.msra.mxu0 0.0
      %4412 = vmatprep.subr.mxu0 0.0
      %4413 = vmatpush1.msra.mxu0 0.0
      %4414 = vmatprep.subr.mxu0 0.0
      %4415 = vmatpush1.msra.mxu0 0.0
      %4416 = vmatprep.subr.mxu0 0.0
      %4417 = vmatpush1.msra.mxu0 0.0
      %4418 = vmatprep.subr.mxu0 0.0
      %4419 = vmatpush1.msra.mxu0 0.0
      %4420 = vmatprep.subr.mxu0 0.0
      %4421 = vmatpush1.msra.mxu0 0.0
      %4422 = vmatprep.subr.mxu0 0.0
      %4423 = vmatpush1.msra.mxu0 0.0
      %4424 = vmatprep.subr.mxu0 0.0
      %4425 = vmatpush1.msra.mxu0 0.0
      %4426 = vmatprep.subr.mxu0 0.0
      %4427 = vmatpush1.msra.mxu0 0.0
      %4428 = vmatprep.subr.mxu0 0.0
      %4429 = vmatpush1.msra.mxu0 0.0
      %4430 = vmatprep.subr.mxu0 0.0
      %4431 = vmatpush1.msra.mxu0 0.0
      %4432 = vmatprep.subr.mxu0 0.0
      %4433 = vmatpush1.msra.mxu0 0.0
      %4434 = vmatprep.subr.mxu0 0.0
      %4435 = vmatpush1.msra.mxu0 0.0
      %4436 = vmatprep.subr.mxu0 0.0
      %4437 = vmatpush1.msra.mxu0 0.0
      %4438 = vmatprep.subr.mxu0 0.0
      %4439 = vmatpush1.msra.mxu0 0.0
      %4440 = vmatprep.mubr.f32.mxu0 0.0
      %4441 = vmatmul.mubr.f32.gmra.mrb[0].mxu0 %v4374
      %v4442 = vpop.f32.mrb[0].mxu0
      %v4443 = vadd.f32 0.0, %v4442
      %v4444 = vpop.f32.mrb[0].mxu0
      %4445 = vdwg.mxu0
      %v4446 = vadd.f32 %v3959, %v4443
      %s4447 = scalar_lea.vmem %s31, 96
      %v4448 = vld [vmem:[%s4447] sm:$0xff]
      %v4449 = vld [vmem:[%s4447 + $0x8] sm:$0xff]
      %v4450 = vld [vmem:[%s4447 + $0x10] sm:$0xff]
      %v4451 = vld [vmem:[%s4447 + $0x18] sm:$0xff]
      %s4452 = scalar_lea.vmem %s33, 3
      %v4453 = vld [vmem:[%s4452] sm:$0x1]
      %v4455 = vlaneseq
      %v4456 = vshrl.u32 %v4455, 7
      %v4457 = vsub.s32 0, %v4456
      %v4458 = vrot.slane %v4453, %v4457
      %4460 = vmatprep.subr.mxu0 0.0
      %4461 = vmatpush1.msra.mxu0 %v4448
      %4462 = vmatprep.subr.mxu0 0.0
      %4463 = vmatpush1.msra.mxu0 %v4449
      %4464 = vmatprep.subr.mxu0 0.0
      %4465 = vmatpush1.msra.mxu0 %v4450
      %4466 = vmatprep.subr.mxu0 0.0
      %4467 = vmatpush1.msra.mxu0 %v4451
      %4468 = vmatprep.subr.mxu0 0.0
      %4469 = vmatpush1.msra.mxu0 0.0
      %4470 = vmatprep.subr.mxu0 0.0
      %4471 = vmatpush1.msra.mxu0 0.0
      %4472 = vmatprep.subr.mxu0 0.0
      %4473 = vmatpush1.msra.mxu0 0.0
      %4474 = vmatprep.subr.mxu0 0.0
      %4475 = vmatpush1.msra.mxu0 0.0
      %4476 = vmatprep.subr.mxu0 0.0
      %4477 = vmatpush1.msra.mxu0 0.0
      %4478 = vmatprep.subr.mxu0 0.0
      %4479 = vmatpush1.msra.mxu0 0.0
      %4480 = vmatprep.subr.mxu0 0.0
      %4481 = vmatpush1.msra.mxu0 0.0
      %4482 = vmatprep.subr.mxu0 0.0
      %4483 = vmatpush1.msra.mxu0 0.0
      %4484 = vmatprep.subr.mxu0 0.0
      %4485 = vmatpush1.msra.mxu0 0.0
      %4486 = vmatprep.subr.mxu0 0.0
      %4487 = vmatpush1.msra.mxu0 0.0
      %4488 = vmatprep.subr.mxu0 0.0
      %4489 = vmatpush1.msra.mxu0 0.0
      %4490 = vmatprep.subr.mxu0 0.0
      %4491 = vmatpush1.msra.mxu0 0.0
      %4492 = vmatprep.subr.mxu0 0.0
      %4493 = vmatpush1.msra.mxu0 0.0
      %4494 = vmatprep.subr.mxu0 0.0
      %4495 = vmatpush1.msra.mxu0 0.0
      %4496 = vmatprep.subr.mxu0 0.0
      %4497 = vmatpush1.msra.mxu0 0.0
      %4498 = vmatprep.subr.mxu0 0.0
      %4499 = vmatpush1.msra.mxu0 0.0
      %4500 = vmatprep.subr.mxu0 0.0
      %4501 = vmatpush1.msra.mxu0 0.0
      %4502 = vmatprep.subr.mxu0 0.0
      %4503 = vmatpush1.msra.mxu0 0.0
      %4504 = vmatprep.subr.mxu0 0.0
      %4505 = vmatpush1.msra.mxu0 0.0
      %4506 = vmatprep.subr.mxu0 0.0
      %4507 = vmatpush1.msra.mxu0 0.0
      %4508 = vmatprep.subr.mxu0 0.0
      %4509 = vmatpush1.msra.mxu0 0.0
      %4510 = vmatprep.subr.mxu0 0.0
      %4511 = vmatpush1.msra.mxu0 0.0
      %4512 = vmatprep.subr.mxu0 0.0
      %4513 = vmatpush1.msra.mxu0 0.0
      %4514 = vmatprep.subr.mxu0 0.0
      %4515 = vmatpush1.msra.mxu0 0.0
      %4516 = vmatprep.subr.mxu0 0.0
      %4517 = vmatpush1.msra.mxu0 0.0
      %4518 = vmatprep.subr.mxu0 0.0
      %4519 = vmatpush1.msra.mxu0 0.0
      %4520 = vmatprep.subr.mxu0 0.0
      %4521 = vmatpush1.msra.mxu0 0.0
      %4522 = vmatprep.subr.mxu0 0.0
      %4523 = vmatpush1.msra.mxu0 0.0
      %4524 = vmatprep.mubr.f32.mxu0 0.0
      %4525 = vmatmul.mubr.f32.gmra.mrb[0].mxu0 %v3001
      %v4526 = vpop.f32.mrb[0].mxu0
      %v4527 = vadd.f32 %v4458, %v4526
      %v4528 = vpop.f32.mrb[0].mxu0
      %4529 = vdwg.mxu0
      %s4530 = scalar_lea.vmem %s35, 96
      %v4531 = vld [vmem:[%s4530] sm:$0xff]
      %v4532 = vld [vmem:[%s4530 + $0x8] sm:$0xff]
      %v4533 = vld [vmem:[%s4530 + $0x10] sm:$0xff]
      %v4534 = vld [vmem:[%s4530 + $0x18] sm:$0xff]
      %s4535 = scalar_lea.vmem %s37, 3
      %v4536 = vld [vmem:[%s4535] sm:$0x1]
      %v4538 = vlaneseq
      %v4539 = vshrl.u32 %v4538, 7
      %v4540 = vsub.s32 0, %v4539
      %v4541 = vrot.slane %v4536, %v4540
      %4543 = vmatprep.subr.mxu0 0.0
      %4544 = vmatpush1.msra.mxu0 %v4531
      %4545 = vmatprep.subr.mxu0 0.0
      %4546 = vmatpush1.msra.mxu0 %v4532
      %4547 = vmatprep.subr.mxu0 0.0
      %4548 = vmatpush1.msra.mxu0 %v4533
      %4549 = vmatprep.subr.mxu0 0.0
      %4550 = vmatpush1.msra.mxu0 %v4534
      %4551 = vmatprep.subr.mxu0 0.0
      %4552 = vmatpush1.msra.mxu0 0.0
      %4553 = vmatprep.subr.mxu0 0.0
      %4554 = vmatpush1.msra.mxu0 0.0
      %4555 = vmatprep.subr.mxu0 0.0
      %4556 = vmatpush1.msra.mxu0 0.0
      %4557 = vmatprep.subr.mxu0 0.0
      %4558 = vmatpush1.msra.mxu0 0.0
      %4559 = vmatprep.subr.mxu0 0.0
      %4560 = vmatpush1.msra.mxu0 0.0
      %4561 = vmatprep.subr.mxu0 0.0
      %4562 = vmatpush1.msra.mxu0 0.0
      %4563 = vmatprep.subr.mxu0 0.0
      %4564 = vmatpush1.msra.mxu0 0.0
      %4565 = vmatprep.subr.mxu0 0.0
      %4566 = vmatpush1.msra.mxu0 0.0
      %4567 = vmatprep.subr.mxu0 0.0
      %4568 = vmatpush1.msra.mxu0 0.0
      %4569 = vmatprep.subr.mxu0 0.0
      %4570 = vmatpush1.msra.mxu0 0.0
      %4571 = vmatprep.subr.mxu0 0.0
      %4572 = vmatpush1.msra.mxu0 0.0
      %4573 = vmatprep.subr.mxu0 0.0
      %4574 = vmatpush1.msra.mxu0 0.0
      %4575 = vmatprep.subr.mxu0 0.0
      %4576 = vmatpush1.msra.mxu0 0.0
      %4577 = vmatprep.subr.mxu0 0.0
      %4578 = vmatpush1.msra.mxu0 0.0
      %4579 = vmatprep.subr.mxu0 0.0
      %4580 = vmatpush1.msra.mxu0 0.0
      %4581 = vmatprep.subr.mxu0 0.0
      %4582 = vmatpush1.msra.mxu0 0.0
      %4583 = vmatprep.subr.mxu0 0.0
      %4584 = vmatpush1.msra.mxu0 0.0
      %4585 = vmatprep.subr.mxu0 0.0
      %4586 = vmatpush1.msra.mxu0 0.0
      %4587 = vmatprep.subr.mxu0 0.0
      %4588 = vmatpush1.msra.mxu0 0.0
      %4589 = vmatprep.subr.mxu0 0.0
      %4590 = vmatpush1.msra.mxu0 0.0
      %4591 = vmatprep.subr.mxu0 0.0
      %4592 = vmatpush1.msra.mxu0 0.0
      %4593 = vmatprep.subr.mxu0 0.0
      %4594 = vmatpush1.msra.mxu0 0.0
      %4595 = vmatprep.subr.mxu0 0.0
      %4596 = vmatpush1.msra.mxu0 0.0
      %4597 = vmatprep.subr.mxu0 0.0
      %4598 = vmatpush1.msra.mxu0 0.0
      %4599 = vmatprep.subr.mxu0 0.0
      %4600 = vmatpush1.msra.mxu0 0.0
      %4601 = vmatprep.subr.mxu0 0.0
      %4602 = vmatpush1.msra.mxu0 0.0
      %4603 = vmatprep.subr.mxu0 0.0
      %4604 = vmatpush1.msra.mxu0 0.0
      %4605 = vmatprep.subr.mxu0 0.0
      %4606 = vmatpush1.msra.mxu0 0.0
      %4607 = vmatprep.mubr.f32.mxu0 0.0
      %4608 = vmatmul.mubr.f32.gmra.mrb[0].mxu0 %v3085
      %v4609 = vpop.f32.mrb[0].mxu0
      %v4610 = vadd.f32 %v4541, %v4609
      %v4611 = vpop.f32.mrb[0].mxu0
      %4612 = vdwg.mxu0
      %s4613 = scalar_lea.vmem %s39, 96
      %v4614 = vld [vmem:[%s4613] sm:$0xff]
      %v4615 = vld [vmem:[%s4613 + $0x8] sm:$0xff]
      %v4616 = vld [vmem:[%s4613 + $0x10] sm:$0xff]
      %v4617 = vld [vmem:[%s4613 + $0x18] sm:$0xff]
      %s4618 = scalar_lea.vmem %s41, 3
      %v4619 = vld [vmem:[%s4618] sm:$0x1]
      %v4621 = vlaneseq
      %v4622 = vshrl.u32 %v4621, 7
      %v4623 = vsub.s32 0, %v4622
      %v4624 = vrot.slane %v4619, %v4623
      %4626 = vmatprep.subr.mxu0 0.0
      %4627 = vmatpush1.msra.mxu0 %v4614
      %4628 = vmatprep.subr.mxu0 0.0
      %4629 = vmatpush1.msra.mxu0 %v4615
      %4630 = vmatprep.subr.mxu0 0.0
      %4631 = vmatpush1.msra.mxu0 %v4616
      %4632 = vmatprep.subr.mxu0 0.0
      %4633 = vmatpush1.msra.mxu0 %v4617
      %4634 = vmatprep.subr.mxu0 0.0
      %4635 = vmatpush1.msra.mxu0 0.0
      %4636 = vmatprep.subr.mxu0 0.0
      %4637 = vmatpush1.msra.mxu0 0.0
      %4638 = vmatprep.subr.mxu0 0.0
      %4639 = vmatpush1.msra.mxu0 0.0
      %4640 = vmatprep.subr.mxu0 0.0
      %4641 = vmatpush1.msra.mxu0 0.0
      %4642 = vmatprep.subr.mxu0 0.0
      %4643 = vmatpush1.msra.mxu0 0.0
      %4644 = vmatprep.subr.mxu0 0.0
      %4645 = vmatpush1.msra.mxu0 0.0
      %4646 = vmatprep.subr.mxu0 0.0
      %4647 = vmatpush1.msra.mxu0 0.0
      %4648 = vmatprep.subr.mxu0 0.0
      %4649 = vmatpush1.msra.mxu0 0.0
      %4650 = vmatprep.subr.mxu0 0.0
      %4651 = vmatpush1.msra.mxu0 0.0
      %4652 = vmatprep.subr.mxu0 0.0
      %4653 = vmatpush1.msra.mxu0 0.0
      %4654 = vmatprep.subr.mxu0 0.0
      %4655 = vmatpush1.msra.mxu0 0.0
      %4656 = vmatprep.subr.mxu0 0.0
      %4657 = vmatpush1.msra.mxu0 0.0
      %4658 = vmatprep.subr.mxu0 0.0
      %4659 = vmatpush1.msra.mxu0 0.0
      %4660 = vmatprep.subr.mxu0 0.0
      %4661 = vmatpush1.msra.mxu0 0.0
      %4662 = vmatprep.subr.mxu0 0.0
      %4663 = vmatpush1.msra.mxu0 0.0
      %4664 = vmatprep.subr.mxu0 0.0
      %4665 = vmatpush1.msra.mxu0 0.0
      %4666 = vmatprep.subr.mxu0 0.0
      %4667 = vmatpush1.msra.mxu0 0.0
      %4668 = vmatprep.subr.mxu0 0.0
      %4669 = vmatpush1.msra.mxu0 0.0
      %4670 = vmatprep.subr.mxu0 0.0
      %4671 = vmatpush1.msra.mxu0 0.0
      %4672 = vmatprep.subr.mxu0 0.0
      %4673 = vmatpush1.msra.mxu0 0.0
      %4674 = vmatprep.subr.mxu0 0.0
      %4675 = vmatpush1.msra.mxu0 0.0
      %4676 = vmatprep.subr.mxu0 0.0
      %4677 = vmatpush1.msra.mxu0 0.0
      %4678 = vmatprep.subr.mxu0 0.0
      %4679 = vmatpush1.msra.mxu0 0.0
      %4680 = vmatprep.subr.mxu0 0.0
      %4681 = vmatpush1.msra.mxu0 0.0
      %4682 = vmatprep.subr.mxu0 0.0
      %4683 = vmatpush1.msra.mxu0 0.0
      %4684 = vmatprep.subr.mxu0 0.0
      %4685 = vmatpush1.msra.mxu0 0.0
      %4686 = vmatprep.subr.mxu0 0.0
      %4687 = vmatpush1.msra.mxu0 0.0
      %4688 = vmatprep.subr.mxu0 0.0
      %4689 = vmatpush1.msra.mxu0 0.0
      %4690 = vmatprep.mubr.f32.mxu0 0.0
      %4691 = vmatmul.mubr.f32.gmra.mrb[0].mxu0 %v3085
      %v4692 = vpop.f32.mrb[0].mxu0
      %v4693 = vadd.f32 %v4624, %v4692
      %v4694 = vpop.f32.mrb[0].mxu0
      %4695 = vdwg.mxu0
      %v4697 = vsel %vm1250, %v4527, 0
      %v4700 = vsel %vm1250, %v4610, 0
      %4702 = vmatprep.subr.mxu0 0.0
      %4703 = vmatpush1.xpose.msra.mxu0 %v4700
      %4704 = vmatprep.subr.mxu0 0.0
      %4705 = vmatpush1.xpose.msra.mxu0 0.0
      %4706 = vmatprep.subr.mxu0 0.0
      %4707 = vmatpush1.xpose.msra.mxu0 0.0
      %4708 = vmatprep.subr.mxu0 0.0
      %4709 = vmatpush1.xpose.msra.mxu0 0.0
      %4710 = vmatprep.subr.mxu0 0.0
      %4711 = vmatpush1.xpose.msra.mxu0 0.0
      %4712 = vmatprep.subr.mxu0 0.0
      %4713 = vmatpush1.xpose.msra.mxu0 0.0
      %4714 = vmatprep.subr.mxu0 0.0
      %4715 = vmatpush1.xpose.msra.mxu0 0.0
      %4716 = vmatprep.subr.mxu0 0.0
      %4717 = vmatpush1.xpose.msra.mxu0 0.0
      %4718 = vmatprep.subr.mxu0 0.0
      %4719 = vmatpush1.xpose.msra.mxu0 0.0
      %4720 = vmatprep.subr.mxu0 0.0
      %4721 = vmatpush1.xpose.msra.mxu0 0.0
      %4722 = vmatprep.subr.mxu0 0.0
      %4723 = vmatpush1.xpose.msra.mxu0 0.0
      %4724 = vmatprep.subr.mxu0 0.0
      %4725 = vmatpush1.xpose.msra.mxu0 0.0
      %4726 = vmatprep.subr.mxu0 0.0
      %4727 = vmatpush1.xpose.msra.mxu0 0.0
      %4728 = vmatprep.subr.mxu0 0.0
      %4729 = vmatpush1.xpose.msra.mxu0 0.0
      %4730 = vmatprep.subr.mxu0 0.0
      %4731 = vmatpush1.xpose.msra.mxu0 0.0
      %4732 = vmatprep.subr.mxu0 0.0
      %4733 = vmatpush1.xpose.msra.mxu0 0.0
      %4734 = vmatprep.subr.mxu0 0.0
      %4735 = vmatpush1.xpose.msra.mxu0 0.0
      %4736 = vmatprep.subr.mxu0 0.0
      %4737 = vmatpush1.xpose.msra.mxu0 0.0
      %4738 = vmatprep.subr.mxu0 0.0
      %4739 = vmatpush1.xpose.msra.mxu0 0.0
      %4740 = vmatprep.subr.mxu0 0.0
      %4741 = vmatpush1.xpose.msra.mxu0 0.0
      %4742 = vmatprep.subr.mxu0 0.0
      %4743 = vmatpush1.xpose.msra.mxu0 0.0
      %4744 = vmatprep.subr.mxu0 0.0
      %4745 = vmatpush1.xpose.msra.mxu0 0.0
      %4746 = vmatprep.subr.mxu0 0.0
      %4747 = vmatpush1.xpose.msra.mxu0 0.0
      %4748 = vmatprep.subr.mxu0 0.0
      %4749 = vmatpush1.xpose.msra.mxu0 0.0
      %4750 = vmatprep.subr.mxu0 0.0
      %4751 = vmatpush1.xpose.msra.mxu0 0.0
      %4752 = vmatprep.subr.mxu0 0.0
      %4753 = vmatpush1.xpose.msra.mxu0 0.0
      %4754 = vmatprep.subr.mxu0 0.0
      %4755 = vmatpush1.xpose.msra.mxu0 0.0
      %4756 = vmatprep.subr.mxu0 0.0
      %4757 = vmatpush1.xpose.msra.mxu0 0.0
      %4758 = vmatprep.subr.mxu0 0.0
      %4759 = vmatpush1.xpose.msra.mxu0 0.0
      %4760 = vmatprep.subr.mxu0 0.0
      %4761 = vmatpush1.xpose.msra.mxu0 0.0
      %4762 = vmatprep.subr.mxu0 0.0
      %4763 = vmatpush1.xpose.msra.mxu0 0.0
      %4764 = vmatprep.subr.mxu0 0.0
      %4765 = vmatpush1.xpose.msra.mxu0 0.0
      %4766 = vmatprep.mubr.f32.mxu0 0.0
      %4767 = vmatmul.mubr.f32.gmra.mrb[0].mxu0 %v4697
      %v4768 = vpop.f32.mrb[0].mxu0
      %v4769 = vadd.f32 %v3242, %v4768
      %v4770 = vpop.f32.mrb[0].mxu0
      %4771 = vdwg.mxu0
      %v4772 = vsel %vm1250, %v4769, -inf
      %4773 = vmax.xlane.f32.xlu0 %v4772
      %v4774 = vpop.xlane.xlu0 %4773
      %v4775 = vsub.f32 %v4769, %v4774
      %v4776 = vmul.f32 %v4775, 1.442695
      %v4777 = vpow.pop %v4776
      %v4778 = vsel %vm1250, %v4777, 0.0
      %4779 = vadd.xlane.f32.xlu0 %v4778
      %v4780 = vpop.xlane.xlu0 %4779
      %v4781 = vrcp.pop %v4780
      %v4782 = vmul.f32 %v4777, %v4781
      %v4784 = vsel %vm1250, %v4782, 0
      %4786 = vmatprep.subr.mxu0 0.0
      %4787 = vmatpush1.msra.mxu0 %v4693
      %4788 = vmatprep.subr.mxu0 0.0
      %4789 = vmatpush1.msra.mxu0 0.0
      %4790 = vmatprep.subr.mxu0 0.0
      %4791 = vmatpush1.msra.mxu0 0.0
      %4792 = vmatprep.subr.mxu0 0.0
      %4793 = vmatpush1.msra.mxu0 0.0
      %4794 = vmatprep.subr.mxu0 0.0
      %4795 = vmatpush1.msra.mxu0 0.0
      %4796 = vmatprep.subr.mxu0 0.0
      %4797 = vmatpush1.msra.mxu0 0.0
      %4798 = vmatprep.subr.mxu0 0.0
      %4799 = vmatpush1.msra.mxu0 0.0
      %4800 = vmatprep.subr.mxu0 0.0
      %4801 = vmatpush1.msra.mxu0 0.0
      %4802 = vmatprep.subr.mxu0 0.0
      %4803 = vmatpush1.msra.mxu0 0.0
      %4804 = vmatprep.subr.mxu0 0.0
      %4805 = vmatpush1.msra.mxu0 0.0
      %4806 = vmatprep.subr.mxu0 0.0
      %4807 = vmatpush1.msra.mxu0 0.0
      %4808 = vmatprep.subr.mxu0 0.0
      %4809 = vmatpush1.msra.mxu0 0.0
      %4810 = vmatprep.subr.mxu0 0.0
      %4811 = vmatpush1.msra.mxu0 0.0
      %4812 = vmatprep.subr.mxu0 0.0
      %4813 = vmatpush1.msra.mxu0 0.0
      %4814 = vmatprep.subr.mxu0 0.0
      %4815 = vmatpush1.msra.mxu0 0.0
      %4816 = vmatprep.subr.mxu0 0.0
      %4817 = vmatpush1.msra.mxu0 0.0
      %4818 = vmatprep.subr.mxu0 0.0
      %4819 = vmatpush1.msra.mxu0 0.0
      %4820 = vmatprep.subr.mxu0 0.0
      %4821 = vmatpush1.msra.mxu0 0.0
      %4822 = vmatprep.subr.mxu0 0.0
      %4823 = vmatpush1.msra.mxu0 0.0
      %4824 = vmatprep.subr.mxu0 0.0
      %4825 = vmatpush1.msra.mxu0 0.0
      %4826 = vmatprep.subr.mxu0 0.0
      %4827 = vmatpush1.msra.mxu0 0.0
      %4828 = vmatprep.subr.mxu0 0.0
      %4829 = vmatpush1.msra.mxu0 0.0
      %4830 = vmatprep.subr.mxu0 0.0
      %4831 = vmatpush1.msra.mxu0 0.0
      %4832 = vmatprep.subr.mxu0 0.0
      %4833 = vmatpush1.msra.mxu0 0.0
      %4834 = vmatprep.subr.mxu0 0.0
      %4835 = vmatpush1.msra.mxu0 0.0
      %4836 = vmatprep.subr.mxu0 0.0
      %4837 = vmatpush1.msra.mxu0 0.0
      %4838 = vmatprep.subr.mxu0 0.0
      %4839 = vmatpush1.msra.mxu0 0.0
      %4840 = vmatprep.subr.mxu0 0.0
      %4841 = vmatpush1.msra.mxu0 0.0
      %4842 = vmatprep.subr.mxu0 0.0
      %4843 = vmatpush1.msra.mxu0 0.0
      %4844 = vmatprep.subr.mxu0 0.0
      %4845 = vmatpush1.msra.mxu0 0.0
      %4846 = vmatprep.subr.mxu0 0.0
      %4847 = vmatpush1.msra.mxu0 0.0
      %4848 = vmatprep.subr.mxu0 0.0
      %4849 = vmatpush1.msra.mxu0 0.0
      %4850 = vmatprep.mubr.f32.mxu0 0.0
      %4851 = vmatmul.mubr.f32.gmra.mrb[0].mxu0 %v4784
      %v4852 = vpop.f32.mrb[0].mxu0
      %v4853 = vadd.f32 0.0, %v4852
      %v4854 = vpop.f32.mrb[0].mxu0
      %4855 = vdwg.mxu0
      %s4856 = scalar_lea.vmem %s43, 24
      %v4857 = vld [vmem:[%s4856] sm:$0xff]
      %v4859 = vsel %vm1250, %v4853, 0
      %4861 = vmatprep.subr.mxu0 0.0
      %4862 = vmatpush1.msra.mxu0 %v4857
      %4863 = vmatprep.subr.mxu0 0.0
      %4864 = vmatpush1.msra.mxu0 0.0
      %4865 = vmatprep.subr.mxu0 0.0
      %4866 = vmatpush1.msra.mxu0 0.0
      %4867 = vmatprep.subr.mxu0 0.0
      %4868 = vmatpush1.msra.mxu0 0.0
      %4869 = vmatprep.subr.mxu0 0.0
      %4870 = vmatpush1.msra.mxu0 0.0
      %4871 = vmatprep.subr.mxu0 0.0
      %4872 = vmatpush1.msra.mxu0 0.0
      %4873 = vmatprep.subr.mxu0 0.0
      %4874 = vmatpush1.msra.mxu0 0.0
      %4875 = vmatprep.subr.mxu0 0.0
      %4876 = vmatpush1.msra.mxu0 0.0
      %4877 = vmatprep.subr.mxu0 0.0
      %4878 = vmatpush1.msra.mxu0 0.0
      %4879 = vmatprep.subr.mxu0 0.0
      %4880 = vmatpush1.msra.mxu0 0.0
      %4881 = vmatprep.subr.mxu0 0.0
      %4882 = vmatpush1.msra.mxu0 0.0
      %4883 = vmatprep.subr.mxu0 0.0
      %4884 = vmatpush1.msra.mxu0 0.0
      %4885 = vmatprep.subr.mxu0 0.0
      %4886 = vmatpush1.msra.mxu0 0.0
      %4887 = vmatprep.subr.mxu0 0.0
      %4888 = vmatpush1.msra.mxu0 0.0
      %4889 = vmatprep.subr.mxu0 0.0
      %4890 = vmatpush1.msra.mxu0 0.0
      %4891 = vmatprep.subr.mxu0 0.0
      %4892 = vmatpush1.msra.mxu0 0.0
      %4893 = vmatprep.subr.mxu0 0.0
      %4894 = vmatpush1.msra.mxu0 0.0
      %4895 = vmatprep.subr.mxu0 0.0
      %4896 = vmatpush1.msra.mxu0 0.0
      %4897 = vmatprep.subr.mxu0 0.0
      %4898 = vmatpush1.msra.mxu0 0.0
      %4899 = vmatprep.subr.mxu0 0.0
      %4900 = vmatpush1.msra.mxu0 0.0
      %4901 = vmatprep.subr.mxu0 0.0
      %4902 = vmatpush1.msra.mxu0 0.0
      %4903 = vmatprep.subr.mxu0 0.0
      %4904 = vmatpush1.msra.mxu0 0.0
      %4905 = vmatprep.subr.mxu0 0.0
      %4906 = vmatpush1.msra.mxu0 0.0
      %4907 = vmatprep.subr.mxu0 0.0
      %4908 = vmatpush1.msra.mxu0 0.0
      %4909 = vmatprep.subr.mxu0 0.0
      %4910 = vmatpush1.msra.mxu0 0.0
      %4911 = vmatprep.subr.mxu0 0.0
      %4912 = vmatpush1.msra.mxu0 0.0
      %4913 = vmatprep.subr.mxu0 0.0
      %4914 = vmatpush1.msra.mxu0 0.0
      %4915 = vmatprep.subr.mxu0 0.0
      %4916 = vmatpush1.msra.mxu0 0.0
      %4917 = vmatprep.subr.mxu0 0.0
      %4918 = vmatpush1.msra.mxu0 0.0
      %4919 = vmatprep.subr.mxu0 0.0
      %4920 = vmatpush1.msra.mxu0 0.0
      %4921 = vmatprep.subr.mxu0 0.0
      %4922 = vmatpush1.msra.mxu0 0.0
      %4923 = vmatprep.subr.mxu0 0.0
      %4924 = vmatpush1.msra.mxu0 0.0
      %4925 = vmatprep.mubr.f32.mxu0 0.0
      %4926 = vmatmul.mubr.f32.gmra.mrb[0].mxu0 %v4859
      %v4927 = vpop.f32.mrb[0].mxu0
      %v4928 = vadd.f32 0.0, %v4927
      %v4929 = vpop.f32.mrb[0].mxu0
      %4930 = vdwg.mxu0
      %v4931 = vadd.f32 %v4446, %v4928
      %v4932 = vld [vmem:[%s45] sm:$0x1]
      %v4934 = vlaneseq
      %v4935 = vshrl.u32 %v4934, 7
      %v4936 = vsub.s32 0, %v4935
      %v4937 = vrot.slane %v4932, %v4936
      %v4939 = vadd.f32 %v4931, %v4937
      %v4940 = vld [vmem:[%s47] sm:$0x1]
      %v4941 = vld [vmem:[%s49] sm:$0x1]
      %v4942 = vadd.f32 %v2987, %v4939
      %v4943 = vsel %vm1014, %v4942, 0.0
      %4944 = vadd.xlane.f32.xlu0 %v4943
      %v4945 = vpop.xlane.xlu0 %4944
      %v4946 = vmul.f32 %v4945, %v2963
      %v4947 = vsub.f32 %v4942, %v4946
      %v4948 = vmul.f32 %v4947, %v4947
      %v4949 = vsel %vm1014, %v4948, 0.0
      %4950 = vadd.xlane.f32.xlu0 %v4949
      %v4951 = vpop.xlane.xlu0 %4950
      %v4952 = vmul.f32 %v4951, %v2963
      %v4953 = vadd.f32 %v4952, 1e-05
      %v4954 = vrsqrt.pop %v4953
      %v4955 = vmul.f32 %v4947, %v4954
      %v4957 = vlaneseq
      %v4958 = vshrl.u32 %v4957, 7
      %v4959 = vsub.s32 0, %v4958
      %v4960 = vrot.slane %v4940, %v4959
      %v4962 = vmul.f32 %v4955, %v4960
      %v4964 = vlaneseq
      %v4965 = vshrl.u32 %v4964, 7
      %v4966 = vsub.s32 0, %v4965
      %v4967 = vrot.slane %v4941, %v4966
      %v4969 = vadd.f32 %v4962, %v4967
      %v4970 = vld [vmem:[%s51] sm:$0xff]
      %v4971 = vld [vmem:[%s51 + $0x8] sm:$0xff]
      %v4972 = vld [vmem:[%s51 + $0x10] sm:$0xff]
      %v4973 = vld [vmem:[%s51 + $0x18] sm:$0xff]
      %v4974 = vld [vmem:[%s53] sm:$0x1]
      %v4975 = vld [vmem:[%s55] sm:$0xff]
      %v4976 = vld [vmem:[%s55 + $0x8] sm:$0xff]
      %v4977 = vld [vmem:[%s55 + $0x10] sm:$0xff]
      %v4978 = vld [vmem:[%s55 + $0x18] sm:$0xff]
      %v4979 = vld [vmem:[%s55 + $0x20] sm:$0xff]
      %v4980 = vld [vmem:[%s55 + $0x28] sm:$0xff]
      %v4981 = vld [vmem:[%s55 + $0x30] sm:$0xff]
      %v4982 = vld [vmem:[%s55 + $0x38] sm:$0xff]
      %v4983 = vld [vmem:[%s57] sm:$0x1]
      %v4985 = vlaneseq
      %v4986 = vshrl.u32 %v4985, 7
      %v4987 = vsub.s32 0, %v4986
      %v4988 = vrot.slane %v4974, %v4987
      %v4991 = vsel %vm1014, %v4969, 0
      %4993 = vmatprep.subr.mxu0 0.0
      %4994 = vmatpush1.msra.mxu0 %v4970
      %4995 = vmatprep.subr.mxu0 0.0
      %4996 = vmatpush1.msra.mxu0 %v4971
      %4997 = vmatprep.subr.mxu0 0.0
      %4998 = vmatpush1.msra.mxu0 %v4972
      %4999 = vmatprep.subr.mxu0 0.0
      %5000 = vmatpush1.msra.mxu0 %v4973
      %5001 = vmatprep.subr.mxu0 0.0
      %5002 = vmatpush1.msra.mxu0 0.0
      %5003 = vmatprep.subr.mxu0 0.0
      %5004 = vmatpush1.msra.mxu0 0.0
      %5005 = vmatprep.subr.mxu0 0.0
      %5006 = vmatpush1.msra.mxu0 0.0
      %5007 = vmatprep.subr.mxu0 0.0
      %5008 = vmatpush1.msra.mxu0 0.0
      %5009 = vmatprep.subr.mxu0 0.0
      %5010 = vmatpush1.msra.mxu0 0.0
      %5011 = vmatprep.subr.mxu0 0.0
      %5012 = vmatpush1.msra.mxu0 0.0
      %5013 = vmatprep.subr.mxu0 0.0
      %5014 = vmatpush1.msra.mxu0 0.0
      %5015 = vmatprep.subr.mxu0 0.0
      %5016 = vmatpush1.msra.mxu0 0.0
      %5017 = vmatprep.subr.mxu0 0.0
      %5018 = vmatpush1.msra.mxu0 0.0
      %5019 = vmatprep.subr.mxu0 0.0
      %5020 = vmatpush1.msra.mxu0 0.0
      %5021 = vmatprep.subr.mxu0 0.0
      %5022 = vmatpush1.msra.mxu0 0.0
      %5023 = vmatprep.subr.mxu0 0.0
      %5024 = vmatpush1.msra.mxu0 0.0
      %5025 = vmatprep.subr.mxu0 0.0
      %5026 = vmatpush1.msra.mxu0 0.0
      %5027 = vmatprep.subr.mxu0 0.0
      %5028 = vmatpush1.msra.mxu0 0.0
      %5029 = vmatprep.subr.mxu0 0.0
      %5030 = vmatpush1.msra.mxu0 0.0
      %5031 = vmatprep.subr.mxu0 0.0
      %5032 = vmatpush1.msra.mxu0 0.0
      %5033 = vmatprep.subr.mxu0 0.0
      %5034 = vmatpush1.msra.mxu0 0.0
      %5035 = vmatprep.subr.mxu0 0.0
      %5036 = vmatpush1.msra.mxu0 0.0
      %5037 = vmatprep.subr.mxu0 0.0
      %5038 = vmatpush1.msra.mxu0 0.0
      %5039 = vmatprep.subr.mxu0 0.0
      %5040 = vmatpush1.msra.mxu0 0.0
      %5041 = vmatprep.subr.mxu0 0.0
      %5042 = vmatpush1.msra.mxu0 0.0
      %5043 = vmatprep.subr.mxu0 0.0
      %5044 = vmatpush1.msra.mxu0 0.0
      %5045 = vmatprep.subr.mxu0 0.0
      %5046 = vmatpush1.msra.mxu0 0.0
      %5047 = vmatprep.subr.mxu0 0.0
      %5048 = vmatpush1.msra.mxu0 0.0
      %5049 = vmatprep.subr.mxu0 0.0
      %5050 = vmatpush1.msra.mxu0 0.0
      %5051 = vmatprep.subr.mxu0 0.0
      %5052 = vmatpush1.msra.mxu0 0.0
      %5053 = vmatprep.subr.mxu0 0.0
      %5054 = vmatpush1.msra.mxu0 0.0
      %5055 = vmatprep.subr.mxu0 0.0
      %5056 = vmatpush1.msra.mxu0 0.0
      %5057 = vmatprep.mubr.f32.mxu0 0.0
      %5058 = vmatmul.mubr.f32.gmra.mrb[0].mxu0 %v4991
      %v5059 = vpop.f32.mrb[0].mxu0
      %v5060 = vadd.f32 %v4988, %v5059
      %v5061 = vpop.f32.mrb[0].mxu0
      %5062 = vdwg.mxu0
      %v5063 = vmax.f32 %v5060, 0.0
      %v5065 = vlaneseq
      %v5066 = vshrl.u32 %v5065, 7
      %v5067 = vsub.s32 0, %v5066
      %v5068 = vrot.slane %v4983, %v5067
      %vm5070 = vcmask 523264
      %v5072 = vsel %vm5070, %v5063, 0
      %5074 = vmatprep.subr.mxu0 0.0
      %5075 = vmatpush1.msra.mxu0 %v4975
      %5076 = vmatprep.subr.mxu0 0.0
      %5077 = vmatpush1.msra.mxu0 %v4976
      %5078 = vmatprep.subr.mxu0 0.0
      %5079 = vmatpush1.msra.mxu0 %v4977
      %5080 = vmatprep.subr.mxu0 0.0
      %5081 = vmatpush1.msra.mxu0 %v4978
      %5082 = vmatprep.subr.mxu0 0.0
      %5083 = vmatpush1.msra.mxu0 %v4979
      %5084 = vmatprep.subr.mxu0 0.0
      %5085 = vmatpush1.msra.mxu0 %v4980
      %5086 = vmatprep.subr.mxu0 0.0
      %5087 = vmatpush1.msra.mxu0 %v4981
      %5088 = vmatprep.subr.mxu0 0.0
      %5089 = vmatpush1.msra.mxu0 %v4982
      %5090 = vmatprep.subr.mxu0 0.0
      %5091 = vmatpush1.msra.mxu0 0.0
      %5092 = vmatprep.subr.mxu0 0.0
      %5093 = vmatpush1.msra.mxu0 0.0
      %5094 = vmatprep.subr.mxu0 0.0
      %5095 = vmatpush1.msra.mxu0 0.0
      %5096 = vmatprep.subr.mxu0 0.0
      %5097 = vmatpush1.msra.mxu0 0.0
      %5098 = vmatprep.subr.mxu0 0.0
      %5099 = vmatpush1.msra.mxu0 0.0
      %5100 = vmatprep.subr.mxu0 0.0
      %5101 = vmatpush1.msra.mxu0 0.0
      %5102 = vmatprep.subr.mxu0 0.0
      %5103 = vmatpush1.msra.mxu0 0.0
      %5104 = vmatprep.subr.mxu0 0.0
      %5105 = vmatpush1.msra.mxu0 0.0
      %5106 = vmatprep.subr.mxu0 0.0
      %5107 = vmatpush1.msra.mxu0 0.0
      %5108 = vmatprep.subr.mxu0 0.0
      %5109 = vmatpush1.msra.mxu0 0.0
      %5110 = vmatprep.subr.mxu0 0.0
      %5111 = vmatpush1.msra.mxu0 0.0
      %5112 = vmatprep.subr.mxu0 0.0
      %5113 = vmatpush1.msra.mxu0 0.0
      %5114 = vmatprep.subr.mxu0 0.0
      %5115 = vmatpush1.msra.mxu0 0.0
      %5116 = vmatprep.subr.mxu0 0.0
      %5117 = vmatpush1.msra.mxu0 0.0
      %5118 = vmatprep.subr.mxu0 0.0
      %5119 = vmatpush1.msra.mxu0 0.0
      %5120 = vmatprep.subr.mxu0 0.0
      %5121 = vmatpush1.msra.mxu0 0.0
      %5122 = vmatprep.subr.mxu0 0.0
      %5123 = vmatpush1.msra.mxu0 0.0
      %5124 = vmatprep.subr.mxu0 0.0
      %5125 = vmatpush1.msra.mxu0 0.0
      %5126 = vmatprep.subr.mxu0 0.0
      %5127 = vmatpush1.msra.mxu0 0.0
      %5128 = vmatprep.subr.mxu0 0.0
      %5129 = vmatpush1.msra.mxu0 0.0
      %5130 = vmatprep.subr.mxu0 0.0
      %5131 = vmatpush1.msra.mxu0 0.0
      %5132 = vmatprep.subr.mxu0 0.0
      %5133 = vmatpush1.msra.mxu0 0.0
      %5134 = vmatprep.subr.mxu0 0.0
      %5135 = vmatpush1.msra.mxu0 0.0
      %5136 = vmatprep.subr.mxu0 0.0
      %5137 = vmatpush1.msra.mxu0 0.0
      %5138 = vmatprep.mubr.f32.mxu0 0.0
      %5139 = vmatmul.mubr.f32.gmra.mrb[0].mxu0 %v5072
      %v5140 = vpop.f32.mrb[0].mxu0
      %v5141 = vadd.f32 %v5068, %v5140
      %v5142 = vpop.f32.mrb[0].mxu0
      %5143 = vdwg.mxu0
      %v5144 = vld [vmem:[%s59] sm:$0x1]
      %v5145 = vld [vmem:[%s61] sm:$0x1]
      %v5146 = vadd.f32 %v4969, %v5141
      %v5147 = vsel %vm1014, %v5146, 0.0
      %5148 = vadd.xlane.f32.xlu0 %v5147
      %v5149 = vpop.xlane.xlu0 %5148
      %v5150 = vmul.f32 %v5149, %v2963
      %v5151 = vsub.f32 %v5146, %v5150
      %v5152 = vmul.f32 %v5151, %v5151
      %v5153 = vsel %vm1014, %v5152, 0.0
      %5154 = vadd.xlane.f32.xlu0 %v5153
      %v5155 = vpop.xlane.xlu0 %5154
      %v5156 = vmul.f32 %v5155, %v2963
      %v5157 = vadd.f32 %v5156, 1e-05
      %v5158 = vrsqrt.pop %v5157
      %v5159 = vmul.f32 %v5151, %v5158
      %v5161 = vlaneseq
      %v5162 = vshrl.u32 %v5161, 7
      %v5163 = vsub.s32 0, %v5162
      %v5164 = vrot.slane %v5144, %v5163
      %v5166 = vmul.f32 %v5159, %v5164
      %v5168 = vlaneseq
      %v5169 = vshrl.u32 %v5168, 7
      %v5170 = vsub.s32 0, %v5169
      %v5171 = vrot.slane %v5145, %v5170
      %v5173 = vadd.f32 %v5166, %v5171
      %5174 = vst.msk [vmem:[%s998] sm:$0xff] %vm1014, %v5173
      %p5175 = scmp.lt.s32.totalorder %s74, 1
      %s5176 = scalar_select %p5175, %s74, 1
      %s5177 = smul.addr %s5176, 8
      %s5178 = scalar_lea.vmem %s63, %s5177
      // Predicated region
      $region145: #{_lambda_.7} parent=143 // pred_check
        %p5179 = pneg %p763
      $region146: #{_lambda_.7} parent=143 // pred_check_branch
        %5181 = sbr.rel (%p5179) target = $region148
      $region147: #{_lambda_.7} parent=143 // pred_region
        _
      $region148: #{_lambda_.7} parent=143 // pred_fallthru
        _
    $region144: #{_lambda_.7} parent=5 // pred_fallthru
      _
    %p5182 = scmp.le.s32.totalorder 2, %s69
    // Predicated region
    $region149: #{_lambda_.7} parent=5 // pred_check
      %p5183 = pneg %p5182
    $region150: #{_lambda_.7} parent=5 // pred_check_branch
      %5185 = sbr.rel (%p5183) target = $region152
    $region151: #{_lambda_.7} parent=5 // pred_region
      %s5186 = ssub.s32 %s69, 2
      // Predicated region
      $region153: #{_lambda_.7} parent=151 // pred_check
        %p5187 = pneg %p769
      $region154: #{_lambda_.7} parent=151 // pred_check_branch
        %5189 = sbr.rel (%p5187) target = $region156
      $region155: #{_lambda_.7} parent=151 // pred_region
        %p5190 = scmp.lt.s32.totalorder %s75, 1
        %s5191 = scalar_select %p5190, %s75, 1
        %s5192 = smul.addr %s5191, 8
        %s5193 = scalar_lea.vmem %s63, %s5192
      $region156: #{_lambda_.7} parent=151 // pred_fallthru
        _
    $region152: #{_lambda_.7} parent=5 // pred_fallthru
      _
  $region6: #{_lambda_.7} parent=0 // loop_footer
    %s73 = sadd.s32 1, %s69
  $region7: #{_lambda_.7} parent=0 // loop_footer_branch
    %68 = sbr.rel target = $region3
  $region8: #{_lambda_.7} parent=0 // loop_exit
    _

</llo_original>
